<compile_context>
chip_gen: v5e
topology: v5e:2x2
jax: 0.10.0
libtpu: 0.0.40
codegen_flags: <defaults>
</compile_context>

<pallas_src>
import functools
import numpy as np
import jax
import jax.numpy as jnp
from jax import lax
from jax.experimental import pallas as pl
from jax.experimental.pallas import tpu as pltpu


def _round_up(a, b):
    return -(-a // b) * b


# ----------------------------- Pallas kernel ------------------------------

def _stft_loss_kernel(f_ref, basis_ref, out_ref, *,
                      eps, n_bins, tile_m, rows_last, need_mask, use_roll):
    """One stacked tile of frames -> per-block sum of squared magnitude errors.

    f_ref     : [2, TILE_M, n_fft] bf16   (x frames, y frames)
    basis_ref : [n_fft, 2*n_bins]  bf16   (windowed DFT, re/im concatenated)
    out_ref   : [1, 8, 128]        f32    (lane-dense slab, only [0,0,0] read)
    """
    n_fft = f_ref.shape[-1]
    # Collapse the leading x/y axis into sublanes (tile_m is a multiple of 16,
    # so the reshape does not cross (16,128) bf16 tile boundaries -> free).
    f = f_ref[...].reshape(2 * tile_m, n_fft)          # bf16
    basis = basis_ref[...]                              # bf16

    # Single native-bf16 MXU matmul for both signals, f32 accumulation.
    z = jnp.dot(f, basis, preferred_element_type=jnp.float32)  # [2*TM, 2*n_bins] f32
    zx = z[:tile_m]                                     # sublane-aligned row split
    zy = z[tile_m:]
    zs = zx + zy                                        # STFT(x + y) by linearity

    if use_roll:
        # n_bins not a multiple of 128 (fs=512 -> 64): avoid the lane-64 slice.
        # power[k] = re_k^2 + im_k^2 appears in BOTH halves of the 2*n_bins
        # lanes -> every bin counted twice; wrapper divides the sum by 2.
        def mag(w):
            sq = w * w
            power = sq + pltpu.roll(sq, n_bins, 1)      # XLU lane rotate (free-ish)
            return jnp.sqrt(jnp.maximum(power, eps))
    else:
        def mag(w):
            re, im = w[:, :n_bins], w[:, n_bins:]       # lane-aligned slices
            return jnp.sqrt(jnp.maximum(re * re + im * im, eps))

    d = (mag(zx) + mag(zy)) - mag(zs)                   # f32

    def write(val):
        # Lane-dense (8,128) slab per block; only [0,0,0] is read back.
        out_ref[...] = jnp.full(out_ref.shape, val, dtype=jnp.float32)

    if need_mask:
        last = pl.num_programs(0) - 1

        @pl.when(pl.program_id(0) != last)
        def _():
            write(jnp.sum(d * d))

        @pl.when(pl.program_id(0) == last)
        def _():
            # Zero out rows that are pure padding (M rounded up to the tile).
            row_ids = lax.broadcasted_iota(jnp.int32, d.shape, 0)
            dm = jnp.where(row_ids < rows_last, d, 0.0)
            write(jnp.sum(dm * dm))
    else:
        write(jnp.sum(d * d))


def _stft_sq_err_sum(frames, basis, eps, m_valid, tile_m):
    """Sum over all frames/bins of ((mag_x + mag_y) - mag_{x+y})^2.

    frames : [2, m_pad, n_fft] bf16 (x frames / y frames, zero-padded rows)
    basis  : [n_fft, 2*n_bins] bf16
    """
    _, m_pad, n_fft = frames.shape
    n2 = basis.shape[1]
    n_bins = n2 // 2
    num_blocks = m_pad // tile_m
    rows_last = m_valid - (num_blocks - 1) * tile_m
    need_mask = rows_last != tile_m
    use_roll = (n_bins % 128) != 0

    kernel = functools.partial(
        _stft_loss_kernel, eps=eps, n_bins=n_bins, tile_m=tile_m,
        rows_last=rows_last, need_mask=need_mask, use_roll=use_roll)

    partial_sums = pl.pallas_call(
        kernel,
        out_shape=jax.ShapeDtypeStruct((num_blocks, 8, 128), jnp.float32),
        grid=(num_blocks,),
        in_specs=[
            pl.BlockSpec((2, tile_m, n_fft), lambda i: (0, i, 0)),
            # Grid-invariant basis; <= 2 MiB in bf16 so default double-buffer
            # is cheap (pl.Buffered(1) not worth the plumbing here).
            pl.BlockSpec((n_fft, n2), lambda i: (0, 0)),
        ],
        out_specs=pl.BlockSpec((1, 8, 128), lambda i: (i, 0, 0)),
        compiler_params=pltpu.CompilerParams(
            # Per-block partial sums -> safe to shard across TCs (megacore).
            dimension_semantics=("parallel",),
            # ~2x measured per-block need (~20 MiB at fs=2048, TILE_M=512 bf16).
            vmem_limit_bytes=40 * 1024 * 1024),
    )(frames, basis)

    s = jnp.sum(partial_sums[:, 0, 0])
    if use_roll:
        s = s * jnp.float32(0.5)          # every bin was counted twice
    return s


# ------------------------------- JAX glue ---------------------------------

def _make_basis(fft_size, win_length):
    """Windowed real-DFT basis, first fft_size//8 bins, re/im concatenated (f32)."""
    n_bins = fft_size // 8
    # torch.hann_window(win_length) is periodic: 0.5 - 0.5*cos(2*pi*n/win_length)
    hann = 0.5 - 0.5 * np.cos(2.0 * np.pi * np.arange(win_length) / win_length)
    # torch.stft zero-pads the window to n_fft, centered
    win = np.zeros(fft_size, dtype=np.float64)
    lpad = (fft_size - win_length) // 2
    win[lpad:lpad + win_length] = hann
    n = np.arange(fft_size)[:, None]
    k = np.arange(n_bins)[None, :]
    ang = 2.0 * np.pi * n * k / fft_size
    basis_re = win[:, None] * np.cos(ang)
    basis_im = -win[:, None] * np.sin(ang)
    basis = np.concatenate([basis_re, basis_im], axis=1).astype(np.float32)
    return jnp.asarray(basis)                  # [n_fft, 2*n_bins]


def _frame(x2d, fft_size, hop_size):
    """Reflect-pad (center=True) and extract overlapping frames: [B, n_frames, n_fft]."""
    # TODO(synk): framing is still an XLA gather that expands HBM traffic by
    # ~fft_size/hop; building frame tiles in-kernel from the padded signal
    # (memory_space=pl.ANY + per-block DMA + pltpu.roll for the non-128-aligned
    # hops 120/50/240) would cut HBM bytes ~an order of magnitude.
    pad = fft_size // 2
    xp = jnp.pad(x2d, ((0, 0), (pad, pad)), mode="reflect")
    length = x2d.shape[1]
    n_frames = length // hop_size + 1            # torch.stft frame count (center=True)
    idx = jnp.arange(n_frames)[:, None] * hop_size + jnp.arange(fft_size)[None, :]
    return xp[:, idx]                            # [B, n_frames, n_fft]


def multi_resolution_stft_loss(
    x, y,
    fft_sizes=(1024, 512, 2048),
    hop_sizes=(120, 50, 240),
    win_lengths=(600, 240, 1200),
    eps=1e-8,
    max_tile_m=512,          # bf16: safe on v7x (64 MiB VMEM); 1024 viable on v5e/v6e
):
    x2 = x.reshape(-1, x.shape[-1]).astype(jnp.float32)
    y2 = y.reshape(-1, y.shape[-1]).astype(jnp.float32)
    nb = x2.shape[0]
    # One framing gather per resolution covers both signals.
    xy = jnp.concatenate([x2, y2], axis=0)       # [2B, L]

    total = jnp.float32(0.0)
    for fs, hs, wl in zip(fft_sizes, hop_sizes, win_lengths):
        assert x2.shape[1] > fs // 2, "reflect padding needs length > fft_size//2"
        basis = _make_basis(fs, wl).astype(jnp.bfloat16)

        fr = _frame(xy, fs, hs)                  # [2B, n_frames, fs]
        n_frames = fr.shape[1]
        m_valid = nb * n_frames
        fr = fr.reshape(2, m_valid, fs)          # [x frames ; y frames]

        # Tile the frame axis (multiple of 16 for bf16 sublane packing) and
        # prefer >= 2 grid blocks so the parallel axis can use both TCs (v7x).
        tile_m = min(max_tile_m, _round_up(m_valid, 16))
        if m_valid >= 32 and _round_up(m_valid, tile_m) // tile_m < 2:
            tile_m = _round_up(-(-m_valid // 2), 16)
        m_pad = _round_up(m_valid, tile_m)
        if m_pad != m_valid:
            fr = jnp.pad(fr, ((0, 0), (0, m_pad - m_valid), (0, 0)))
        fr = fr.astype(jnp.bfloat16)             # halves frame DMA bytes / VMEM

        sq_sum = _stft_sq_err_sum(fr, basis, eps, m_valid, tile_m)
        n_bins = fs // 8
        total = total + sq_sum / jnp.float32(m_valid * n_bins)   # MSE (mean)

    return total / jnp.float32(len(fft_sizes))


# ------------------------ pure-f32 JAX reference ---------------------------

def _reference_loss(x, y,
                    fft_sizes=(1024, 512, 2048),
                    hop_sizes=(120, 50, 240),
                    win_lengths=(600, 240, 1200),
                    eps=1e-8):
    """Straightforward f32 implementation of the torch semantics (no Pallas)."""
    x2 = x.reshape(-1, x.shape[-1]).astype(jnp.float32)
    y2 = y.reshape(-1, y.shape[-1]).astype(jnp.float32)
    total = jnp.float32(0.0)
    for fs, hs, wl in zip(fft_sizes, hop_sizes, win_lengths):
        basis = _make_basis(fs, wl)
        n_bins = fs // 8

        def mag(sig):
            fr = _frame(sig, fs, hs).reshape(-1, fs)
            z = fr @ basis
            re, im = z[:, :n_bins], z[:, n_bins:]
            return jnp.sqrt(jnp.maximum(re * re + im * im, eps))

        mx, my, ms = mag(x2), mag(y2), mag(x2 + y2)
        total = total + jnp.mean(((mx + my) - ms) ** 2)
    return total / jnp.float32(len(fft_sizes))


# --------------------------------- main ------------------------------------

if __name__ == "__main__":
    key = jax.random.PRNGKey(0)
    kx, ky = jax.random.split(key)
    # batch=2, signal length 4096 (must exceed fft_size//2 = 1024 for reflect
    # padding at the largest resolution, 2048)
    x = jax.random.normal(kx, (2, 4096), dtype=jnp.float32)
    y = jax.random.normal(ky, (2, 4096), dtype=jnp.float32)

    loss_fn = jax.jit(multi_resolution_stft_loss)
    loss = jax.block_until_ready(loss_fn(x, y))

    # Validate the bf16-MXU kernel against the f32 reference.
    ref = jax.block_until_ready(_reference_loss(x, y))
    rel_err = abs(float(loss) - float(ref)) / max(abs(float(ref)), 1e-12)

    assert loss.shape == () and jnp.isfinite(loss)
    assert rel_err < 5e-2, f"bf16 kernel vs f32 reference rel err {rel_err:.3e}"
    print("KERNEL_OK")
</pallas_src>

<mosaic_0001>
module attributes {stable_mosaic.version = 11 : i64} {
  func.func @_stft_loss_kernel(%arg0: i32, %arg1: memref<2x96x512xbf16, #tpu.memory_space<vmem>>, %arg2: memref<512x128xbf16, #tpu.memory_space<vmem>>, %arg3: memref<1x8x128xf32, #tpu.memory_space<vmem>>) attributes {dimension_semantics = [#tpu.dimension_semantics<parallel>], iteration_bounds = array<i64: 2>, scalar_prefetch = 0 : i64, scratch_operands = 0 : i64, tpu.core_type = #tpu.core_type<tc>, window_params = [{transform_indices = @transform_0, window_bounds = array<i64: 2, 96, 512>}, {pipeline_mode = #tpu.pipeline_mode<synchronous>, transform_indices = @transform_1, window_bounds = array<i64: 512, 128>}, {transform_indices = @transform_2, window_bounds = array<i64: 1, 8, 128>}]} {
    %c0 = arith.constant 0 : index
    %c0_0 = arith.constant 0 : index
    %c0_1 = arith.constant 0 : index
    %0 = vector.load %arg1[%c0, %c0_0, %c0_1] : memref<2x96x512xbf16, #tpu.memory_space<vmem>>, vector<2x96x512xbf16>
    %1 = vector.shape_cast %0 : vector<2x96x512xbf16> to vector<192x512xbf16>
    %c0_2 = arith.constant 0 : index
    %c0_3 = arith.constant 0 : index
    %2 = vector.load %arg2[%c0_2, %c0_3] : memref<512x128xbf16, #tpu.memory_space<vmem>>, vector<512x128xbf16>
    %cst = arith.constant dense<0.000000e+00> : vector<192x128xf32>
    %3 = tpu.matmul %1, %2, %cst {dimension_numbers = #tpu.dot_dimension_numbers<[1], [0], [0], [1], [0, 0, 1, 1], [], []>} : vector<192x512xbf16>, vector<512x128xbf16>, vector<192x128xf32> -> vector<192x128xf32>
    %4 = vector.extract_strided_slice %3 {offsets = [0, 0], sizes = [96, 128], strides = [1, 1]} : vector<192x128xf32> to vector<96x128xf32>
    %5 = vector.extract_strided_slice %3 {offsets = [96, 0], sizes = [96, 128], strides = [1, 1]} : vector<192x128xf32> to vector<96x128xf32>
    %6 = arith.addf %4, %5 : vector<96x128xf32>
    %7 = arith.mulf %4, %4 : vector<96x128xf32>
    %c64_i32 = arith.constant 64 : i32
    %8 = tpu.dynamic_rotate %7 by %c64_i32 dim 1 : vector<96x128xf32>, i32 -> vector<96x128xf32>
    %9 = arith.addf %7, %8 : vector<96x128xf32>
    %cst_4 = arith.constant 9.99999993E-9 : f32
    %10 = vector.broadcast %cst_4 : f32 to vector<96x128xf32>
    %11 = arith.maximumf %9, %10 : vector<96x128xf32>
    %12 = math.sqrt %11 : vector<96x128xf32>
    %13 = arith.mulf %5, %5 : vector<96x128xf32>
    %c64_i32_5 = arith.constant 64 : i32
    %14 = tpu.dynamic_rotate %13 by %c64_i32_5 dim 1 : vector<96x128xf32>, i32 -> vector<96x128xf32>
    %15 = arith.addf %13, %14 : vector<96x128xf32>
    %cst_6 = arith.constant 9.99999993E-9 : f32
    %16 = vector.broadcast %cst_6 : f32 to vector<96x128xf32>
    %17 = arith.maximumf %15, %16 : vector<96x128xf32>
    %18 = math.sqrt %17 : vector<96x128xf32>
    %19 = arith.addf %12, %18 : vector<96x128xf32>
    %20 = arith.mulf %6, %6 : vector<96x128xf32>
    %c64_i32_7 = arith.constant 64 : i32
    %21 = tpu.dynamic_rotate %20 by %c64_i32_7 dim 1 : vector<96x128xf32>, i32 -> vector<96x128xf32>
    %22 = arith.addf %20, %21 : vector<96x128xf32>
    %cst_8 = arith.constant 9.99999993E-9 : f32
    %23 = vector.broadcast %cst_8 : f32 to vector<96x128xf32>
    %24 = arith.maximumf %22, %23 : vector<96x128xf32>
    %25 = math.sqrt %24 : vector<96x128xf32>
    %26 = arith.subf %19, %25 : vector<96x128xf32>
    %c1_i32 = arith.constant 1 : i32
    %27 = arith.cmpi ne, %arg0, %c1_i32 : i32
    %28 = arith.extui %27 : i1 to i32
    %c0_i32 = arith.constant 0 : i32
    %29 = arith.cmpi ne, %28, %c0_i32 : i32
    scf.if %29 {
      %33 = arith.mulf %26, %26 : vector<96x128xf32>
      %34 = vector.shape_cast %33 : vector<96x128xf32> to vector<1x96x128xf32>
      %cst_11 = arith.constant dense<0.000000e+00> : vector<1xf32>
      %35 = vector.multi_reduction <add>, %34, %cst_11 [1, 2] : vector<1x96x128xf32> to vector<1xf32>
      %36 = vector.shape_cast %35 : vector<1xf32> to vector<1x1x1xf32>
      %37 = vector.extract %36[0, 0, 0] : f32 from vector<1x1x1xf32>
      %38 = vector.broadcast %37 : f32 to vector<1x8x128xf32>
      %c0_12 = arith.constant 0 : index
      %c0_13 = arith.constant 0 : index
      %c0_14 = arith.constant 0 : index
      %39 = vector.load %arg3[%c0_12, %c0_13, %c0_14] : memref<1x8x128xf32, #tpu.memory_space<vmem>>, vector<1x8x128xf32>
      tpu.vector_store %arg3[%c0_12, %c0_13, %c0_14], %38 {strides = array<i32>} : memref<1x8x128xf32, #tpu.memory_space<vmem>>, vector<1x8x128xf32>,
    } else {
    }
    %c1_i32_9 = arith.constant 1 : i32
    %30 = arith.cmpi eq, %arg0, %c1_i32_9 : i32
    %31 = arith.extui %30 : i1 to i32
    %c0_i32_10 = arith.constant 0 : i32
    %32 = arith.cmpi ne, %31, %c0_i32_10 : i32
    scf.if %32 {
      %33 = tpu.iota {dimensions = array<i32: 0>} : vector<96x128xi32>
      %c68_i32 = arith.constant 68 : i32
      %34 = vector.broadcast %c68_i32 : i32 to vector<96x128xi32>
      %35 = arith.cmpi slt, %33, %34 : vector<96x128xi32>
      %cst_11 = arith.constant 0.000000e+00 : f32
      %36 = vector.broadcast %cst_11 : f32 to vector<96x128xf32>
      %37 = arith.select %35, %26, %36 : vector<96x128xi1>, vector<96x128xf32>
      %38 = arith.mulf %37, %37 : vector<96x128xf32>
      %39 = vector.shape_cast %38 : vector<96x128xf32> to vector<1x96x128xf32>
      %cst_12 = arith.constant dense<0.000000e+00> : vector<1xf32>
      %40 = vector.multi_reduction <add>, %39, %cst_12 [1, 2] : vector<1x96x128xf32> to vector<1xf32>
      %41 = vector.shape_cast %40 : vector<1xf32> to vector<1x1x1xf32>
      %42 = vector.extract %41[0, 0, 0] : f32 from vector<1x1x1xf32>
      %43 = vector.broadcast %42 : f32 to vector<1x8x128xf32>
      %c0_13 = arith.constant 0 : index
      %c0_14 = arith.constant 0 : index
      %c0_15 = arith.constant 0 : index
      %44 = vector.load %arg3[%c0_13, %c0_14, %c0_15] : memref<1x8x128xf32, #tpu.memory_space<vmem>>, vector<1x8x128xf32>
      tpu.vector_store %arg3[%c0_13, %c0_14, %c0_15], %43 {strides = array<i32>} : memref<1x8x128xf32, #tpu.memory_space<vmem>>, vector<1x8x128xf32>,
    } else {
    }
    return
  }
  func.func @transform_0(%arg0: i32) -> (i32, i32, i32) {
    %c0_i32 = arith.constant 0 : i32
    %c0_i32_0 = arith.constant 0 : i32
    %c0_i32_1 = arith.constant 0 : i32
    return %c0_i32, %arg0, %c0_i32_0 : i32, i32, i32
  }
  func.func @transform_1(%arg0: i32) -> (i32, i32) {
    %c0_i32 = arith.constant 0 : i32
    %c0_i32_0 = arith.constant 0 : i32
    %c0_i32_1 = arith.constant 0 : i32
    return %c0_i32, %c0_i32_0 : i32, i32
  }
  func.func @transform_2(%arg0: i32) -> (i32, i32, i32) {
    %c0_i32 = arith.constant 0 : i32
    %c0_i32_0 = arith.constant 0 : i32
    %c0_i32_1 = arith.constant 0 : i32
    return %arg0, %c0_i32, %c0_i32_0 : i32, i32, i32
  }
}

module attributes {stable_mosaic.version = 11 : i64} {
  func.func @_stft_loss_kernel(%arg0: i32, %arg1: memref<2x48x1024xbf16, #tpu.memory_space<vmem>>, %arg2: memref<1024x256xbf16, #tpu.memory_space<vmem>>, %arg3: memref<1x8x128xf32, #tpu.memory_space<vmem>>) attributes {dimension_semantics = [#tpu.dimension_semantics<parallel>], iteration_bounds = array<i64: 2>, scalar_prefetch = 0 : i64, scratch_operands = 0 : i64, tpu.core_type = #tpu.core_type<tc>, window_params = [{transform_indices = @transform_0, window_bounds = array<i64: 2, 48, 1024>}, {pipeline_mode = #tpu.pipeline_mode<synchronous>, transform_indices = @transform_1, window_bounds = array<i64: 1024, 256>}, {transform_indices = @transform_2, window_bounds = array<i64: 1, 8, 128>}]} {
    %c0 = arith.constant 0 : index
    %c0_0 = arith.constant 0 : index
    %c0_1 = arith.constant 0 : index
    %0 = vector.load %arg1[%c0, %c0_0, %c0_1] : memref<2x48x1024xbf16, #tpu.memory_space<vmem>>, vector<2x48x1024xbf16>
    %1 = vector.shape_cast %0 : vector<2x48x1024xbf16> to vector<96x1024xbf16>
    %c0_2 = arith.constant 0 : index
    %c0_3 = arith.constant 0 : index
    %2 = vector.load %arg2[%c0_2, %c0_3] : memref<1024x256xbf16, #tpu.memory_space<vmem>>, vector<1024x256xbf16>
    %cst = arith.constant dense<0.000000e+00> : vector<96x256xf32>
    %3 = tpu.matmul %1, %2, %cst {dimension_numbers = #tpu.dot_dimension_numbers<[1], [0], [0], [1], [0, 0, 1, 1], [], []>} : vector<96x1024xbf16>, vector<1024x256xbf16>, vector<96x256xf32> -> vector<96x256xf32>
    %4 = vector.extract_strided_slice %3 {offsets = [0, 0], sizes = [48, 256], strides = [1, 1]} : vector<96x256xf32> to vector<48x256xf32>
    %5 = vector.extract_strided_slice %3 {offsets = [48, 0], sizes = [48, 256], strides = [1, 1]} : vector<96x256xf32> to vector<48x256xf32>
    %6 = arith.addf %4, %5 : vector<48x256xf32>
    %7 = vector.extract_strided_slice %4 {offsets = [0, 0], sizes = [48, 128], strides = [1, 1]} : vector<48x256xf32> to vector<48x128xf32>
    %8 = vector.extract_strided_slice %4 {offsets = [0, 128], sizes = [48, 128], strides = [1, 1]} : vector<48x256xf32> to vector<48x128xf32>
    %9 = arith.mulf %7, %7 : vector<48x128xf32>
    %10 = arith.mulf %8, %8 : vector<48x128xf32>
    %11 = arith.addf %9, %10 : vector<48x128xf32>
    %cst_4 = arith.constant 9.99999993E-9 : f32
    %12 = vector.broadcast %cst_4 : f32 to vector<48x128xf32>
    %13 = arith.maximumf %11, %12 : vector<48x128xf32>
    %14 = math.sqrt %13 : vector<48x128xf32>
    %15 = vector.extract_strided_slice %5 {offsets = [0, 0], sizes = [48, 128], strides = [1, 1]} : vector<48x256xf32> to vector<48x128xf32>
    %16 = vector.extract_strided_slice %5 {offsets = [0, 128], sizes = [48, 128], strides = [1, 1]} : vector<48x256xf32> to vector<48x128xf32>
    %17 = arith.mulf %15, %15 : vector<48x128xf32>
    %18 = arith.mulf %16, %16 : vector<48x128xf32>
    %19 = arith.addf %17, %18 : vector<48x128xf32>
    %cst_5 = arith.constant 9.99999993E-9 : f32
    %20 = vector.broadcast %cst_5 : f32 to vector<48x128xf32>
    %21 = arith.maximumf %19, %20 : vector<48x128xf32>
    %22 = math.sqrt %21 : vector<48x128xf32>
    %23 = arith.addf %14, %22 : vector<48x128xf32>
    %24 = vector.extract_strided_slice %6 {offsets = [0, 0], sizes = [48, 128], strides = [1, 1]} : vector<48x256xf32> to vector<48x128xf32>
    %25 = vector.extract_strided_slice %6 {offsets = [0, 128], sizes = [48, 128], strides = [1, 1]} : vector<48x256xf32> to vector<48x128xf32>
    %26 = arith.mulf %24, %24 : vector<48x128xf32>
    %27 = arith.mulf %25, %25 : vector<48x128xf32>
    %28 = arith.addf %26, %27 : vector<48x128xf32>
    %cst_6 = arith.constant 9.99999993E-9 : f32
    %29 = vector.broadcast %cst_6 : f32 to vector<48x128xf32>
    %30 = arith.maximumf %28, %29 : vector<48x128xf32>
    %31 = math.sqrt %30 : vector<48x128xf32>
    %32 = arith.subf %23, %31 : vector<48x128xf32>
    %c1_i32 = arith.constant 1 : i32
    %33 = arith.cmpi ne, %arg0, %c1_i32 : i32
    %34 = arith.extui %33 : i1 to i32
    %c0_i32 = arith.constant 0 : i32
    %35 = arith.cmpi ne, %34, %c0_i32 : i32
    scf.if %35 {
      %39 = arith.mulf %32, %32 : vector<48x128xf32>
      %40 = vector.shape_cast %39 : vector<48x128xf32> to vector<1x48x128xf32>
      %cst_9 = arith.constant dense<0.000000e+00> : vector<1xf32>
      %41 = vector.multi_reduction <add>, %40, %cst_9 [1, 2] : vector<1x48x128xf32> to vector<1xf32>
      %42 = vector.shape_cast %41 : vector<1xf32> to vector<1x1x1xf32>
      %43 = vector.extract %42[0, 0, 0] : f32 from vector<1x1x1xf32>
      %44 = vector.broadcast %43 : f32 to vector<1x8x128xf32>
      %c0_10 = arith.constant 0 : index
      %c0_11 = arith.constant 0 : index
      %c0_12 = arith.constant 0 : index
      %45 = vector.load %arg3[%c0_10, %c0_11, %c0_12] : memref<1x8x128xf32, #tpu.memory_space<vmem>>, vector<1x8x128xf32>
      tpu.vector_store %arg3[%c0_10, %c0_11, %c0_12], %44 {strides = array<i32>} : memref<1x8x128xf32, #tpu.memory_space<vmem>>, vector<1x8x128xf32>,
    } else {
    }
    %c1_i32_7 = arith.constant 1 : i32
    %36 = arith.cmpi eq, %arg0, %c1_i32_7 : i32
    %37 = arith.extui %36 : i1 to i32
    %c0_i32_8 = arith.constant 0 : i32
    %38 = arith.cmpi ne, %37, %c0_i32_8 : i32
    scf.if %38 {
      %39 = tpu.iota {dimensions = array<i32: 0>} : vector<48x128xi32>
      %c22_i32 = arith.constant 22 : i32
      %40 = vector.broadcast %c22_i32 : i32 to vector<48x128xi32>
      %41 = arith.cmpi slt, %39, %40 : vector<48x128xi32>
      %cst_9 = arith.constant 0.000000e+00 : f32
      %42 = vector.broadcast %cst_9 : f32 to vector<48x128xf32>
      %43 = arith.select %41, %32, %42 : vector<48x128xi1>, vector<48x128xf32>
      %44 = arith.mulf %43, %43 : vector<48x128xf32>
      %45 = vector.shape_cast %44 : vector<48x128xf32> to vector<1x48x128xf32>
      %cst_10 = arith.constant dense<0.000000e+00> : vector<1xf32>
      %46 = vector.multi_reduction <add>, %45, %cst_10 [1, 2] : vector<1x48x128xf32> to vector<1xf32>
      %47 = vector.shape_cast %46 : vector<1xf32> to vector<1x1x1xf32>
      %48 = vector.extract %47[0, 0, 0] : f32 from vector<1x1x1xf32>
      %49 = vector.broadcast %48 : f32 to vector<1x8x128xf32>
      %c0_11 = arith.constant 0 : index
      %c0_12 = arith.constant 0 : index
      %c0_13 = arith.constant 0 : index
      %50 = vector.load %arg3[%c0_11, %c0_12, %c0_13] : memref<1x8x128xf32, #tpu.memory_space<vmem>>, vector<1x8x128xf32>
      tpu.vector_store %arg3[%c0_11, %c0_12, %c0_13], %49 {strides = array<i32>} : memref<1x8x128xf32, #tpu.memory_space<vmem>>, vector<1x8x128xf32>,
    } else {
    }
    return
  }
  func.func @transform_0(%arg0: i32) -> (i32, i32, i32) {
    %c0_i32 = arith.constant 0 : i32
    %c0_i32_0 = arith.constant 0 : i32
    %c0_i32_1 = arith.constant 0 : i32
    return %c0_i32, %arg0, %c0_i32_0 : i32, i32, i32
  }
  func.func @transform_1(%arg0: i32) -> (i32, i32) {
    %c0_i32 = arith.constant 0 : i32
    %c0_i32_0 = arith.constant 0 : i32
    %c0_i32_1 = arith.constant 0 : i32
    return %c0_i32, %c0_i32_0 : i32, i32
  }
  func.func @transform_2(%arg0: i32) -> (i32, i32, i32) {
    %c0_i32 = arith.constant 0 : i32
    %c0_i32_0 = arith.constant 0 : i32
    %c0_i32_1 = arith.constant 0 : i32
    return %arg0, %c0_i32, %c0_i32_0 : i32, i32, i32
  }
}

module attributes {stable_mosaic.version = 11 : i64} {
  func.func @_stft_loss_kernel(%arg0: i32, %arg1: memref<2x32x2048xbf16, #tpu.memory_space<vmem>>, %arg2: memref<2048x512xbf16, #tpu.memory_space<vmem>>, %arg3: memref<1x8x128xf32, #tpu.memory_space<vmem>>) attributes {dimension_semantics = [#tpu.dimension_semantics<parallel>], iteration_bounds = array<i64: 2>, scalar_prefetch = 0 : i64, scratch_operands = 0 : i64, tpu.core_type = #tpu.core_type<tc>, window_params = [{transform_indices = @transform_0, window_bounds = array<i64: 2, 32, 2048>}, {pipeline_mode = #tpu.pipeline_mode<synchronous>, transform_indices = @transform_1, window_bounds = array<i64: 2048, 512>}, {transform_indices = @transform_2, window_bounds = array<i64: 1, 8, 128>}]} {
    %c0 = arith.constant 0 : index
    %c0_0 = arith.constant 0 : index
    %c0_1 = arith.constant 0 : index
    %0 = vector.load %arg1[%c0, %c0_0, %c0_1] : memref<2x32x2048xbf16, #tpu.memory_space<vmem>>, vector<2x32x2048xbf16>
    %1 = vector.shape_cast %0 : vector<2x32x2048xbf16> to vector<64x2048xbf16>
    %c0_2 = arith.constant 0 : index
    %c0_3 = arith.constant 0 : index
    %2 = vector.load %arg2[%c0_2, %c0_3] : memref<2048x512xbf16, #tpu.memory_space<vmem>>, vector<2048x512xbf16>
    %cst = arith.constant dense<0.000000e+00> : vector<64x512xf32>
    %3 = tpu.matmul %1, %2, %cst {dimension_numbers = #tpu.dot_dimension_numbers<[1], [0], [0], [1], [0, 0, 1, 1], [], []>} : vector<64x2048xbf16>, vector<2048x512xbf16>, vector<64x512xf32> -> vector<64x512xf32>
    %4 = vector.extract_strided_slice %3 {offsets = [0, 0], sizes = [32, 512], strides = [1, 1]} : vector<64x512xf32> to vector<32x512xf32>
    %5 = vector.extract_strided_slice %3 {offsets = [32, 0], sizes = [32, 512], strides = [1, 1]} : vector<64x512xf32> to vector<32x512xf32>
    %6 = arith.addf %4, %5 : vector<32x512xf32>
    %7 = vector.extract_strided_slice %4 {offsets = [0, 0], sizes = [32, 256], strides = [1, 1]} : vector<32x512xf32> to vector<32x256xf32>
    %8 = vector.extract_strided_slice %4 {offsets = [0, 256], sizes = [32, 256], strides = [1, 1]} : vector<32x512xf32> to vector<32x256xf32>
    %9 = arith.mulf %7, %7 : vector<32x256xf32>
    %10 = arith.mulf %8, %8 : vector<32x256xf32>
    %11 = arith.addf %9, %10 : vector<32x256xf32>
    %cst_4 = arith.constant 9.99999993E-9 : f32
    %12 = vector.broadcast %cst_4 : f32 to vector<32x256xf32>
    %13 = arith.maximumf %11, %12 : vector<32x256xf32>
    %14 = math.sqrt %13 : vector<32x256xf32>
    %15 = vector.extract_strided_slice %5 {offsets = [0, 0], sizes = [32, 256], strides = [1, 1]} : vector<32x512xf32> to vector<32x256xf32>
    %16 = vector.extract_strided_slice %5 {offsets = [0, 256], sizes = [32, 256], strides = [1, 1]} : vector<32x512xf32> to vector<32x256xf32>
    %17 = arith.mulf %15, %15 : vector<32x256xf32>
    %18 = arith.mulf %16, %16 : vector<32x256xf32>
    %19 = arith.addf %17, %18 : vector<32x256xf32>
    %cst_5 = arith.constant 9.99999993E-9 : f32
    %20 = vector.broadcast %cst_5 : f32 to vector<32x256xf32>
    %21 = arith.maximumf %19, %20 : vector<32x256xf32>
    %22 = math.sqrt %21 : vector<32x256xf32>
    %23 = arith.addf %14, %22 : vector<32x256xf32>
    %24 = vector.extract_strided_slice %6 {offsets = [0, 0], sizes = [32, 256], strides = [1, 1]} : vector<32x512xf32> to vector<32x256xf32>
    %25 = vector.extract_strided_slice %6 {offsets = [0, 256], sizes = [32, 256], strides = [1, 1]} : vector<32x512xf32> to vector<32x256xf32>
    %26 = arith.mulf %24, %24 : vector<32x256xf32>
    %27 = arith.mulf %25, %25 : vector<32x256xf32>
    %28 = arith.addf %26, %27 : vector<32x256xf32>
    %cst_6 = arith.constant 9.99999993E-9 : f32
    %29 = vector.broadcast %cst_6 : f32 to vector<32x256xf32>
    %30 = arith.maximumf %28, %29 : vector<32x256xf32>
    %31 = math.sqrt %30 : vector<32x256xf32>
    %32 = arith.subf %23, %31 : vector<32x256xf32>
    %c1_i32 = arith.constant 1 : i32
    %33 = arith.cmpi ne, %arg0, %c1_i32 : i32
    %34 = arith.extui %33 : i1 to i32
    %c0_i32 = arith.constant 0 : i32
    %35 = arith.cmpi ne, %34, %c0_i32 : i32
    scf.if %35 {
      %39 = arith.mulf %32, %32 : vector<32x256xf32>
      %40 = vector.shape_cast %39 : vector<32x256xf32> to vector<1x32x256xf32>
      %cst_9 = arith.constant dense<0.000000e+00> : vector<1xf32>
      %41 = vector.multi_reduction <add>, %40, %cst_9 [1, 2] : vector<1x32x256xf32> to vector<1xf32>
      %42 = vector.shape_cast %41 : vector<1xf32> to vector<1x1x1xf32>
      %43 = vector.extract %42[0, 0, 0] : f32 from vector<1x1x1xf32>
      %44 = vector.broadcast %43 : f32 to vector<1x8x128xf32>
      %c0_10 = arith.constant 0 : index
      %c0_11 = arith.constant 0 : index
      %c0_12 = arith.constant 0 : index
      %45 = vector.load %arg3[%c0_10, %c0_11, %c0_12] : memref<1x8x128xf32, #tpu.memory_space<vmem>>, vector<1x8x128xf32>
      tpu.vector_store %arg3[%c0_10, %c0_11, %c0_12], %44 {strides = array<i32>} : memref<1x8x128xf32, #tpu.memory_space<vmem>>, vector<1x8x128xf32>,
    } else {
    }
    %c1_i32_7 = arith.constant 1 : i32
    %36 = arith.cmpi eq, %arg0, %c1_i32_7 : i32
    %37 = arith.extui %36 : i1 to i32
    %c0_i32_8 = arith.constant 0 : i32
    %38 = arith.cmpi ne, %37, %c0_i32_8 : i32
    scf.if %38 {
      %39 = tpu.iota {dimensions = array<i32: 0>} : vector<32x256xi32>
      %c4_i32 = arith.constant 4 : i32
      %40 = vector.broadcast %c4_i32 : i32 to vector<32x256xi32>
      %41 = arith.cmpi slt, %39, %40 : vector<32x256xi32>
      %cst_9 = arith.constant 0.000000e+00 : f32
      %42 = vector.broadcast %cst_9 : f32 to vector<32x256xf32>
      %43 = arith.select %41, %32, %42 : vector<32x256xi1>, vector<32x256xf32>
      %44 = arith.mulf %43, %43 : vector<32x256xf32>
      %45 = vector.shape_cast %44 : vector<32x256xf32> to vector<1x32x256xf32>
      %cst_10 = arith.constant dense<0.000000e+00> : vector<1xf32>
      %46 = vector.multi_reduction <add>, %45, %cst_10 [1, 2] : vector<1x32x256xf32> to vector<1xf32>
      %47 = vector.shape_cast %46 : vector<1xf32> to vector<1x1x1xf32>
      %48 = vector.extract %47[0, 0, 0] : f32 from vector<1x1x1xf32>
      %49 = vector.broadcast %48 : f32 to vector<1x8x128xf32>
      %c0_11 = arith.constant 0 : index
      %c0_12 = arith.constant 0 : index
      %c0_13 = arith.constant 0 : index
      %50 = vector.load %arg3[%c0_11, %c0_12, %c0_13] : memref<1x8x128xf32, #tpu.memory_space<vmem>>, vector<1x8x128xf32>
      tpu.vector_store %arg3[%c0_11, %c0_12, %c0_13], %49 {strides = array<i32>} : memref<1x8x128xf32, #tpu.memory_space<vmem>>, vector<1x8x128xf32>,
    } else {
    }
    return
  }
  func.func @transform_0(%arg0: i32) -> (i32, i32, i32) {
    %c0_i32 = arith.constant 0 : i32
    %c0_i32_0 = arith.constant 0 : i32
    %c0_i32_1 = arith.constant 0 : i32
    return %c0_i32, %arg0, %c0_i32_0 : i32, i32, i32
  }
  func.func @transform_1(%arg0: i32) -> (i32, i32) {
    %c0_i32 = arith.constant 0 : i32
    %c0_i32_0 = arith.constant 0 : i32
    %c0_i32_1 = arith.constant 0 : i32
    return %c0_i32, %c0_i32_0 : i32, i32
  }
  func.func @transform_2(%arg0: i32) -> (i32, i32, i32) {
    %c0_i32 = arith.constant 0 : i32
    %c0_i32_0 = arith.constant 0 : i32
    %c0_i32_1 = arith.constant 0 : i32
    return %arg0, %c0_i32, %c0_i32_0 : i32, i32, i32
  }
}

</mosaic_0001>

<llo_original>
// kernel: multi_resolution_stft_loss.4
$region0: #{multi_resolution_stft_loss.4}
  #allocation0 [shape = 'u32[]', space=smem, size = 0x4, offset = 0x4, fixed_abs, tag = 'smem constant byte address 0x4 - core index']
  #allocation1 [shape = 'u32[72,128]{1,0:T(1,128)}', space=vmem, size = 0x9000, scoped, tag = 'internal scratch']
  %s0 = inlined_call_operand.vmem [shape: bf16[2,192,512], index: 0, kind: input, shape index: {}]
  %s1 = inlined_call_operand.vmem [shape: bf16[512,128], index: 1, kind: input, shape index: {}]
  %s2 = inlined_call_operand.vmem [shape: f32[2,8,128], index: 2, kind: output, shape index: {}]
  %s3 = sld [smem:[#allocation0]]
  $region72: #{multi_resolution_stft_loss.4} parent=0
    _
  %s5 = ssub.s32 1, %s3
  %s6 = scalar_select 0, %s5, %s3
  $region1: #{multi_resolution_stft_loss.4} parent=0
    #allocation2 [shape = 'u8[393216]{0}', space=vmem, size = 0x60000, scoped, tag = 'input window, operand 0']
    loop: start=0, step=1, limit=4
    $region2: #{multi_resolution_stft_loss.4} parent=1 // loop_pre_header
      _
    $region3: #{multi_resolution_stft_loss.4} parent=1 // loop_header
      %s8 = sphi 0, %s12
      %p9 = scmp.ge.s32.totalorder %s8, 4
      %s18 = sphi 0, %s20
      %s21 = sphi 0, %s18
      %s22 = sphi 0, %s21
      %s38 = sphi 0, %s22
      %s42 = sphi 0, %s42
      %s44 = sphi 0, %s42
      %s45 = sphi 0, %s44
      %s59 = sphi 0, %s45
      %s65 = sphi 0, %s67
      %s68 = sphi 0, %s65
      %s69 = sphi 0, %s68
      %s85 = sphi 0, %s69
    $region4: #{multi_resolution_stft_loss.4} parent=1 // loop_header_branch
      %11 = sbr.rel (%p9) target = $region8
    $region5: #{multi_resolution_stft_loss.4} parent=1 // loop_body
      %s13 = ssub.s32 %s8, 1
      %s14 = ssub.s32 %s8, 2
      %s15 = sadd.s32 %s8, 1
      %s16 = ssub.s32 %s8, %s15
      %p17 = scmp.eq.s32.totalorder %s16, 0
      %s19 = sadd.s32 %s18, 1
      %s20 = scalar_select %p17, %s18, %s19
      %p23 = pneg %p17
      %p24 = scmp.eq.s32.totalorder %s8, 1
      %p25 = por %p23, %p24
      %p26 = scmp.ne.s32.totalorder %s18, %s21
      %p27 = scmp.eq.s32.totalorder %s8, 0
      %p28 = por %p26, %p27
      %p29 = scmp.ne.s32.totalorder %s18, %s21
      %p30 = scmp.eq.s32.totalorder %s13, 1
      %p31 = por %p29, %p30
      %p32 = scmp.ne.s32.totalorder %s21, %s22
      %p33 = scmp.eq.s32.totalorder %s13, 0
      %p34 = por %p32, %p33
      %p35 = scmp.ne.s32.totalorder %s21, %s22
      %p36 = scmp.eq.s32.totalorder %s14, 1
      %p37 = por %p35, %p36
      %p39 = scmp.ne.s32.totalorder %s22, %s38
      %p40 = scmp.eq.s32.totalorder %s14, 0
      %p41 = por %p39, %p40
      %s43 = sadd.s32 %s42, 1
      %p46 = scmp.eq.s32.totalorder %s8, 1
      %p47 = scmp.ne.s32.totalorder %s42, %s44
      %p48 = scmp.eq.s32.totalorder %s8, 0
      %p49 = por %p47, %p48
      %p50 = scmp.ne.s32.totalorder %s42, %s44
      %p51 = scmp.eq.s32.totalorder %s13, 1
      %p52 = por %p50, %p51
      %p53 = scmp.ne.s32.totalorder %s44, %s45
      %p54 = scmp.eq.s32.totalorder %s13, 0
      %p55 = por %p53, %p54
      %p56 = scmp.ne.s32.totalorder %s44, %s45
      %p57 = scmp.eq.s32.totalorder %s14, 1
      %p58 = por %p56, %p57
      %p60 = scmp.ne.s32.totalorder %s45, %s59
      %p61 = scmp.eq.s32.totalorder %s14, 0
      %p62 = por %p60, %p61
      %s63 = ssub.s32 %s8, %s15
      %p64 = scmp.eq.s32.totalorder %s63, 0
      %s66 = sadd.s32 %s65, 1
      %s67 = scalar_select %p64, %s65, %s66
      %p70 = pneg %p64
      %p71 = scmp.eq.s32.totalorder %s8, 1
      %p72 = por %p70, %p71
      %p73 = scmp.ne.s32.totalorder %s65, %s68
      %p74 = scmp.eq.s32.totalorder %s8, 0
      %p75 = por %p73, %p74
      %p76 = scmp.ne.s32.totalorder %s65, %s68
      %p77 = scmp.eq.s32.totalorder %s13, 1
      %p78 = por %p76, %p77
      %p79 = scmp.ne.s32.totalorder %s68, %s69
      %p80 = scmp.eq.s32.totalorder %s13, 0
      %p81 = por %p79, %p80
      %p82 = scmp.ne.s32.totalorder %s68, %s69
      %p83 = scmp.eq.s32.totalorder %s14, 1
      %p84 = por %p82, %p83
      %p86 = scmp.ne.s32.totalorder %s69, %s85
      %p87 = scmp.eq.s32.totalorder %s14, 0
      %p88 = por %p86, %p87
      %p89 = scmp.le.s32.totalorder 1, %s8
      %p90 = scmp.lt.s32.totalorder %s8, 3
      %p91 = pnand %p89, %p90
      %p92 = pneg %p91
      // Predicated region
      $region9: #{multi_resolution_stft_loss.4} parent=5 // pred_check
        _
      $region10: #{multi_resolution_stft_loss.4} parent=5 // pred_check_branch
        %94 = sbr.rel (%p91) target = $region12
      $region11: #{multi_resolution_stft_loss.4} parent=5 // pred_region
        %s95 = ssub.s32 %s8, 1
        // Predicated region
        $region13: #{multi_resolution_stft_loss.4} parent=11 // pred_check
          %p96 = pneg %p55
        $region14: #{multi_resolution_stft_loss.4} parent=11 // pred_check_branch
          %98 = sbr.rel (%p96) target = $region16
        $region15: #{multi_resolution_stft_loss.4} parent=11 // pred_region
          _
        $region16: #{multi_resolution_stft_loss.4} parent=11 // pred_fallthru
          _
      $region12: #{multi_resolution_stft_loss.4} parent=5 // pred_fallthru
        _
      %p99 = scmp.lt.s32.totalorder %s8, 2
      // Predicated region
      $region17: #{multi_resolution_stft_loss.4} parent=5 // pred_check
        %p100 = pneg %p99
      $region18: #{multi_resolution_stft_loss.4} parent=5 // pred_check_branch
        %102 = sbr.rel (%p100) target = $region20
      $region19: #{multi_resolution_stft_loss.4} parent=5 // pred_region
        // Predicated region
        $region21: #{multi_resolution_stft_loss.4} parent=19 // pred_check
          %p103 = pneg %p28
        $region22: #{multi_resolution_stft_loss.4} parent=19 // pred_check_branch
          %105 = sbr.rel (%p103) target = $region24
        $region23: #{multi_resolution_stft_loss.4} parent=19 // pred_region
          %s106 = sand.u32 %s18, 1
          %s107 = sand.u32 %s18, 1
          %s108 = smul.addr %s107, 384
          %s109 = scalar_lea.vmem [#allocation2], %s108
          %s110 = smul.u32 12, %s8
          %s111 = smul.addr %s110, 4
          %s112 = smul.addr %s111, 4
          %s113 = scalar_lea.vmem %s0, %s112
          // Predicated region
          $region25: #{multi_resolution_stft_loss.4} parent=23 // pred_check
            _
          $region26: #{multi_resolution_stft_loss.4} parent=23 // pred_check_branch
            %115 = sbr.rel (0) target = $region28
          $region27: #{multi_resolution_stft_loss.4} parent=23 // pred_region
            // Predicated region
            $region29: #{multi_resolution_stft_loss.4} parent=27 // pred_check
              _
            $region30: #{multi_resolution_stft_loss.4} parent=27 // pred_check_branch
              %117 = sbr.rel (0) target = $region32
            $region31: #{multi_resolution_stft_loss.4} parent=27 // pred_region
              loop: start=0, step=1, limit=1
              $region33: #{multi_resolution_stft_loss.4} parent=31 // loop_pre_header
                _
              $region34: #{multi_resolution_stft_loss.4} parent=31 // loop_header
                %s119 = sphi 0, %s123
                %p120 = scmp.ge.s32.totalorder %s119, 1
                %s124 = sphi %s113, %s113
                %s125 = sphi %s109, %s109
              $region35: #{multi_resolution_stft_loss.4} parent=31 // loop_header_branch
                %122 = sbr.rel (%p120) target = $region39
              $region36: #{multi_resolution_stft_loss.4} parent=31 // loop_body
                %v126 = vld [vmem:[%s124] sm:$0xff]
                %127 = vst [vmem:[%s125] sm:$0xff] %v126
                %v128 = vld [vmem:[%s124 + $0x8] sm:$0xff]
                %129 = vst [vmem:[%s125 + $0x8] sm:$0xff] %v128
                %v130 = vld [vmem:[%s124 + $0x10] sm:$0xff]
                %131 = vst [vmem:[%s125 + $0x10] sm:$0xff] %v130
                %v132 = vld [vmem:[%s124 + $0x18] sm:$0xff]
                %133 = vst [vmem:[%s125 + $0x18] sm:$0xff] %v132
                %v134 = vld [vmem:[%s124 + $0x20] sm:$0xff]
                %135 = vst [vmem:[%s125 + $0x20] sm:$0xff] %v134
                %v136 = vld [vmem:[%s124 + $0x28] sm:$0xff]
                %137 = vst [vmem:[%s125 + $0x28] sm:$0xff] %v136
                %v138 = vld [vmem:[%s124 + $0x30] sm:$0xff]
                %139 = vst [vmem:[%s125 + $0x30] sm:$0xff] %v138
                %v140 = vld [vmem:[%s124 + $0x38] sm:$0xff]
                %141 = vst [vmem:[%s125 + $0x38] sm:$0xff] %v140
                %v142 = vld [vmem:[%s124 + $0x40] sm:$0xff]
                %143 = vst [vmem:[%s125 + $0x40] sm:$0xff] %v142
                %v144 = vld [vmem:[%s124 + $0x48] sm:$0xff]
                %145 = vst [vmem:[%s125 + $0x48] sm:$0xff] %v144
                %v146 = vld [vmem:[%s124 + $0x50] sm:$0xff]
                %147 = vst [vmem:[%s125 + $0x50] sm:$0xff] %v146
                %v148 = vld [vmem:[%s124 + $0x58] sm:$0xff]
                %149 = vst [vmem:[%s125 + $0x58] sm:$0xff] %v148
                %v150 = vld [vmem:[%s124 + $0x60] sm:$0xff]
                %151 = vst [vmem:[%s125 + $0x60] sm:$0xff] %v150
                %v152 = vld [vmem:[%s124 + $0x68] sm:$0xff]
                %153 = vst [vmem:[%s125 + $0x68] sm:$0xff] %v152
                %v154 = vld [vmem:[%s124 + $0x70] sm:$0xff]
                %155 = vst [vmem:[%s125 + $0x70] sm:$0xff] %v154
                %v156 = vld [vmem:[%s124 + $0x78] sm:$0xff]
                %157 = vst [vmem:[%s125 + $0x78] sm:$0xff] %v156
                %v158 = vld [vmem:[%s124 + $0x80] sm:$0xff]
                %159 = vst [vmem:[%s125 + $0x80] sm:$0xff] %v158
                %v160 = vld [vmem:[%s124 + $0x88] sm:$0xff]
                %161 = vst [vmem:[%s125 + $0x88] sm:$0xff] %v160
                %v162 = vld [vmem:[%s124 + $0x90] sm:$0xff]
                %163 = vst [vmem:[%s125 + $0x90] sm:$0xff] %v162
                %v164 = vld [vmem:[%s124 + $0x98] sm:$0xff]
                %165 = vst [vmem:[%s125 + $0x98] sm:$0xff] %v164
                %v166 = vld [vmem:[%s124 + $0xa0] sm:$0xff]
                %167 = vst [vmem:[%s125 + $0xa0] sm:$0xff] %v166
                %v168 = vld [vmem:[%s124 + $0xa8] sm:$0xff]
                %169 = vst [vmem:[%s125 + $0xa8] sm:$0xff] %v168
                %v170 = vld [vmem:[%s124 + $0xb0] sm:$0xff]
                %171 = vst [vmem:[%s125 + $0xb0] sm:$0xff] %v170
                %v172 = vld [vmem:[%s124 + $0xb8] sm:$0xff]
                %173 = vst [vmem:[%s125 + $0xb8] sm:$0xff] %v172
                %v174 = vld [vmem:[%s124 + $0x180] sm:$0xff]
                %175 = vst [vmem:[%s125 + $0xc0] sm:$0xff] %v174
                %v176 = vld [vmem:[%s124 + $0x188] sm:$0xff]
                %177 = vst [vmem:[%s125 + $0xc8] sm:$0xff] %v176
                %v178 = vld [vmem:[%s124 + $0x190] sm:$0xff]
                %179 = vst [vmem:[%s125 + $0xd0] sm:$0xff] %v178
                %v180 = vld [vmem:[%s124 + $0x198] sm:$0xff]
                %181 = vst [vmem:[%s125 + $0xd8] sm:$0xff] %v180
                %v182 = vld [vmem:[%s124 + $0x1a0] sm:$0xff]
                %183 = vst [vmem:[%s125 + $0xe0] sm:$0xff] %v182
                %v184 = vld [vmem:[%s124 + $0x1a8] sm:$0xff]
                %185 = vst [vmem:[%s125 + $0xe8] sm:$0xff] %v184
                %v186 = vld [vmem:[%s124 + $0x1b0] sm:$0xff]
                %187 = vst [vmem:[%s125 + $0xf0] sm:$0xff] %v186
                %v188 = vld [vmem:[%s124 + $0x1b8] sm:$0xff]
                %189 = vst [vmem:[%s125 + $0xf8] sm:$0xff] %v188
                %v190 = vld [vmem:[%s124 + $0x1c0] sm:$0xff]
                %191 = vst [vmem:[%s125 + $0x100] sm:$0xff] %v190
                %v192 = vld [vmem:[%s124 + $0x1c8] sm:$0xff]
                %193 = vst [vmem:[%s125 + $0x108] sm:$0xff] %v192
                %v194 = vld [vmem:[%s124 + $0x1d0] sm:$0xff]
                %195 = vst [vmem:[%s125 + $0x110] sm:$0xff] %v194
                %v196 = vld [vmem:[%s124 + $0x1d8] sm:$0xff]
                %197 = vst [vmem:[%s125 + $0x118] sm:$0xff] %v196
                %v198 = vld [vmem:[%s124 + $0x1e0] sm:$0xff]
                %199 = vst [vmem:[%s125 + $0x120] sm:$0xff] %v198
                %v200 = vld [vmem:[%s124 + $0x1e8] sm:$0xff]
                %201 = vst [vmem:[%s125 + $0x128] sm:$0xff] %v200
                %v202 = vld [vmem:[%s124 + $0x1f0] sm:$0xff]
                %203 = vst [vmem:[%s125 + $0x130] sm:$0xff] %v202
                %v204 = vld [vmem:[%s124 + $0x1f8] sm:$0xff]
                %205 = vst [vmem:[%s125 + $0x138] sm:$0xff] %v204
                %v206 = vld [vmem:[%s124 + $0x200] sm:$0xff]
                %207 = vst [vmem:[%s125 + $0x140] sm:$0xff] %v206
                %v208 = vld [vmem:[%s124 + $0x208] sm:$0xff]
                %209 = vst [vmem:[%s125 + $0x148] sm:$0xff] %v208
                %v210 = vld [vmem:[%s124 + $0x210] sm:$0xff]
                %211 = vst [vmem:[%s125 + $0x150] sm:$0xff] %v210
                %v212 = vld [vmem:[%s124 + $0x218] sm:$0xff]
                %213 = vst [vmem:[%s125 + $0x158] sm:$0xff] %v212
                %v214 = vld [vmem:[%s124 + $0x220] sm:$0xff]
                %215 = vst [vmem:[%s125 + $0x160] sm:$0xff] %v214
                %v216 = vld [vmem:[%s124 + $0x228] sm:$0xff]
                %217 = vst [vmem:[%s125 + $0x168] sm:$0xff] %v216
                %v218 = vld [vmem:[%s124 + $0x230] sm:$0xff]
                %219 = vst [vmem:[%s125 + $0x170] sm:$0xff] %v218
                %v220 = vld [vmem:[%s124 + $0x238] sm:$0xff]
                %221 = vst [vmem:[%s125 + $0x178] sm:$0xff] %v220
              $region37: #{multi_resolution_stft_loss.4} parent=31 // loop_footer
                %s123 = sadd.s32 1, %s119
              $region38: #{multi_resolution_stft_loss.4} parent=31 // loop_footer_branch
                %118 = sbr.rel target = $region34
              $region39: #{multi_resolution_stft_loss.4} parent=31 // loop_exit
                _
            $region32: #{multi_resolution_stft_loss.4} parent=27 // pred_fallthru
              _
            // Predicated region
            $region40: #{multi_resolution_stft_loss.4} parent=27 // pred_check
              _
            $region41: #{multi_resolution_stft_loss.4} parent=27 // pred_check_branch
              %223 = sbr.rel target = $region43
            $region42: #{multi_resolution_stft_loss.4} parent=27 // pred_region
              _
            $region43: #{multi_resolution_stft_loss.4} parent=27 // pred_fallthru
              _
          $region28: #{multi_resolution_stft_loss.4} parent=23 // pred_fallthru
            _
          %224 = vnop
        $region24: #{multi_resolution_stft_loss.4} parent=19 // pred_fallthru
          _
      $region20: #{multi_resolution_stft_loss.4} parent=5 // pred_fallthru
        _
      %p225 = scmp.le.s32.totalorder 1, %s8
      %p226 = scmp.lt.s32.totalorder %s8, 3
      %p227 = pnand %p225, %p226
      %p228 = pneg %p227
      // Predicated region
      $region44: #{multi_resolution_stft_loss.4} parent=5 // pred_check
        _
      $region45: #{multi_resolution_stft_loss.4} parent=5 // pred_check_branch
        %230 = sbr.rel (%p227) target = $region47
      $region46: #{multi_resolution_stft_loss.4} parent=5 // pred_region
        %s231 = ssub.s32 %s8, 1
        %s232 = sand.u32 %s21, 1
        %s233 = sand.u32 %s21, 1
        %s234 = smul.addr %s233, 384
        %s235 = scalar_lea.vmem [#allocation2], %s234
        // Predicated region
        $region48: #{multi_resolution_stft_loss.4} parent=46 // pred_check
          %p236 = pneg %p34
        $region49: #{multi_resolution_stft_loss.4} parent=46 // pred_check_branch
          %238 = sbr.rel (%p236) target = $region51
        $region50: #{multi_resolution_stft_loss.4} parent=46 // pred_region
          _
        $region51: #{multi_resolution_stft_loss.4} parent=46 // pred_fallthru
          _
        %s239 = sand.u32 %s21, 1
        %s240 = sand.u32 %s21, 1
        %s241 = smul.addr %s240, 384
        %s242 = scalar_lea.vmem [#allocation2], %s241
        %p243 = pneg %p34
        %p244 = pneg %p31
        %p245 = pneg %p55
        %p246 = pneg %p52
        %p247 = pneg %p81
        %p248 = pneg %p78
        %p249 = scmp.lt.s32.totalorder %s13, 1
        %s250 = scalar_select %p249, %s13, 1
        %s251 = smul.addr %s250, 8
        %s252 = scalar_lea.vmem %s2, %s251
        %s253 = smul.u32 12, %s13
        %p254 = scmp.lt.s32.totalorder %s13, 1
        %s255 = scalar_select %p254, %s13, 1
        %s256 = smul.addr %s255, 8
        %s257 = scalar_lea.vmem %s2, %s256
        %v258 = vld [vmem:[%s235] sm:$0xff]
        %v259 = vld [vmem:[%s235 + $0x8] sm:$0xff]
        %v260 = vld [vmem:[%s235 + $0x10] sm:$0xff]
        %v261 = vld [vmem:[%s235 + $0x18] sm:$0xff]
        %v262 = vld [vmem:[%s235 + $0x20] sm:$0xff]
        %v263 = vld [vmem:[%s235 + $0x28] sm:$0xff]
        %v264 = vld [vmem:[%s235 + $0x30] sm:$0xff]
        %v265 = vld [vmem:[%s235 + $0x38] sm:$0xff]
        %v266 = vld [vmem:[%s235 + $0x40] sm:$0xff]
        %v267 = vld [vmem:[%s235 + $0x48] sm:$0xff]
        %v268 = vld [vmem:[%s235 + $0x50] sm:$0xff]
        %v269 = vld [vmem:[%s235 + $0x58] sm:$0xff]
        %v270 = vld [vmem:[%s235 + $0x60] sm:$0xff]
        %v271 = vld [vmem:[%s235 + $0x68] sm:$0xff]
        %v272 = vld [vmem:[%s235 + $0x70] sm:$0xff]
        %v273 = vld [vmem:[%s235 + $0x78] sm:$0xff]
        %v274 = vld [vmem:[%s235 + $0x80] sm:$0xff]
        %v275 = vld [vmem:[%s235 + $0x88] sm:$0xff]
        %v276 = vld [vmem:[%s235 + $0x90] sm:$0xff]
        %v277 = vld [vmem:[%s235 + $0x98] sm:$0xff]
        %v278 = vld [vmem:[%s235 + $0xa0] sm:$0xff]
        %v279 = vld [vmem:[%s235 + $0xa8] sm:$0xff]
        %v280 = vld [vmem:[%s235 + $0xb0] sm:$0xff]
        %v281 = vld [vmem:[%s235 + $0xb8] sm:$0xff]
        %v282 = vld [vmem:[%s235 + $0xc0] sm:$0xff]
        %v283 = vld [vmem:[%s235 + $0xc8] sm:$0xff]
        %v284 = vld [vmem:[%s235 + $0xd0] sm:$0xff]
        %v285 = vld [vmem:[%s235 + $0xd8] sm:$0xff]
        %v286 = vld [vmem:[%s235 + $0xe0] sm:$0xff]
        %v287 = vld [vmem:[%s235 + $0xe8] sm:$0xff]
        %v288 = vld [vmem:[%s235 + $0xf0] sm:$0xff]
        %v289 = vld [vmem:[%s235 + $0xf8] sm:$0xff]
        %v290 = vld [vmem:[%s235 + $0x100] sm:$0xff]
        %v291 = vld [vmem:[%s235 + $0x108] sm:$0xff]
        %v292 = vld [vmem:[%s235 + $0x110] sm:$0xff]
        %v293 = vld [vmem:[%s235 + $0x118] sm:$0xff]
        %v294 = vld [vmem:[%s235 + $0x120] sm:$0xff]
        %v295 = vld [vmem:[%s235 + $0x128] sm:$0xff]
        %v296 = vld [vmem:[%s235 + $0x130] sm:$0xff]
        %v297 = vld [vmem:[%s235 + $0x138] sm:$0xff]
        %v298 = vld [vmem:[%s235 + $0x140] sm:$0xff]
        %v299 = vld [vmem:[%s235 + $0x148] sm:$0xff]
        %v300 = vld [vmem:[%s235 + $0x150] sm:$0xff]
        %v301 = vld [vmem:[%s235 + $0x158] sm:$0xff]
        %v302 = vld [vmem:[%s235 + $0x160] sm:$0xff]
        %v303 = vld [vmem:[%s235 + $0x168] sm:$0xff]
        %v304 = vld [vmem:[%s235 + $0x170] sm:$0xff]
        %v305 = vld [vmem:[%s235 + $0x178] sm:$0xff]
        %v306 = vld [vmem:[%s1] sm:$0xf]
        %v307 = vld [vmem:[%s1 + $0x4] sm:$0xf]
        %v308 = vld [vmem:[%s1 + $0x8] sm:$0xf]
        %v309 = vld [vmem:[%s1 + $0xc] sm:$0xf]
        %v310 = vld [vmem:[%s1 + $0x10] sm:$0xf]
        %v311 = vld [vmem:[%s1 + $0x14] sm:$0xf]
        %v312 = vld [vmem:[%s1 + $0x18] sm:$0xf]
        %v313 = vld [vmem:[%s1 + $0x1c] sm:$0xf]
        %v314 = vld [vmem:[%s1 + $0x20] sm:$0xf]
        %v315 = vld [vmem:[%s1 + $0x24] sm:$0xf]
        %v316 = vld [vmem:[%s1 + $0x28] sm:$0xf]
        %v317 = vld [vmem:[%s1 + $0x2c] sm:$0xf]
        %v318 = vld [vmem:[%s1 + $0x30] sm:$0xf]
        %v319 = vld [vmem:[%s1 + $0x34] sm:$0xf]
        %v320 = vld [vmem:[%s1 + $0x38] sm:$0xf]
        %v321 = vld [vmem:[%s1 + $0x3c] sm:$0xf]
        %v322 = vld [vmem:[%s1 + $0x40] sm:$0xf]
        %v323 = vld [vmem:[%s1 + $0x44] sm:$0xf]
        %v324 = vld [vmem:[%s1 + $0x48] sm:$0xf]
        %v325 = vld [vmem:[%s1 + $0x4c] sm:$0xf]
        %v326 = vld [vmem:[%s1 + $0x50] sm:$0xf]
        %v327 = vld [vmem:[%s1 + $0x54] sm:$0xf]
        %v328 = vld [vmem:[%s1 + $0x58] sm:$0xf]
        %v329 = vld [vmem:[%s1 + $0x5c] sm:$0xf]
        %v330 = vld [vmem:[%s1 + $0x60] sm:$0xf]
        %v331 = vld [vmem:[%s1 + $0x64] sm:$0xf]
        %v332 = vld [vmem:[%s1 + $0x68] sm:$0xf]
        %v333 = vld [vmem:[%s1 + $0x6c] sm:$0xf]
        %v334 = vld [vmem:[%s1 + $0x70] sm:$0xf]
        %v335 = vld [vmem:[%s1 + $0x74] sm:$0xf]
        %v336 = vld [vmem:[%s1 + $0x78] sm:$0xf]
        %v337 = vld [vmem:[%s1 + $0x7c] sm:$0xf]
        %v338 = vld [vmem:[%s1 + $0x80] sm:$0xf]
        %v339 = vld [vmem:[%s1 + $0x84] sm:$0xf]
        %v340 = vld [vmem:[%s1 + $0x88] sm:$0xf]
        %v341 = vld [vmem:[%s1 + $0x8c] sm:$0xf]
        %v342 = vld [vmem:[%s1 + $0x90] sm:$0xf]
        %v343 = vld [vmem:[%s1 + $0x94] sm:$0xf]
        %v344 = vld [vmem:[%s1 + $0x98] sm:$0xf]
        %v345 = vld [vmem:[%s1 + $0x9c] sm:$0xf]
        %v346 = vld [vmem:[%s1 + $0xa0] sm:$0xf]
        %v347 = vld [vmem:[%s1 + $0xa4] sm:$0xf]
        %v348 = vld [vmem:[%s1 + $0xa8] sm:$0xf]
        %v349 = vld [vmem:[%s1 + $0xac] sm:$0xf]
        %v350 = vld [vmem:[%s1 + $0xb0] sm:$0xf]
        %v351 = vld [vmem:[%s1 + $0xb4] sm:$0xf]
        %v352 = vld [vmem:[%s1 + $0xb8] sm:$0xf]
        %v353 = vld [vmem:[%s1 + $0xbc] sm:$0xf]
        %v354 = vld [vmem:[%s1 + $0xc0] sm:$0xf]
        %v355 = vld [vmem:[%s1 + $0xc4] sm:$0xf]
        %v356 = vld [vmem:[%s1 + $0xc8] sm:$0xf]
        %v357 = vld [vmem:[%s1 + $0xcc] sm:$0xf]
        %v358 = vld [vmem:[%s1 + $0xd0] sm:$0xf]
        %v359 = vld [vmem:[%s1 + $0xd4] sm:$0xf]
        %v360 = vld [vmem:[%s1 + $0xd8] sm:$0xf]
        %v361 = vld [vmem:[%s1 + $0xdc] sm:$0xf]
        %v362 = vld [vmem:[%s1 + $0xe0] sm:$0xf]
        %v363 = vld [vmem:[%s1 + $0xe4] sm:$0xf]
        %v364 = vld [vmem:[%s1 + $0xe8] sm:$0xf]
        %v365 = vld [vmem:[%s1 + $0xec] sm:$0xf]
        %v366 = vld [vmem:[%s1 + $0xf0] sm:$0xf]
        %v367 = vld [vmem:[%s1 + $0xf4] sm:$0xf]
        %v368 = vld [vmem:[%s1 + $0xf8] sm:$0xf]
        %v369 = vld [vmem:[%s1 + $0xfc] sm:$0xf]
        %v418 = vunpack.c.l.b16 %v258
        %v419 = vunpack.c.h.b16 %v258
        %v420 = vunpack.c.l.b16 %v259
        %v421 = vunpack.c.h.b16 %v259
        %v422 = vunpack.c.l.b16 %v260
        %v423 = vunpack.c.h.b16 %v260
        %v424 = vunpack.c.l.b16 %v261
        %v425 = vunpack.c.h.b16 %v261
        %v426 = vunpack.c.l.b16 %v262
        %v427 = vunpack.c.h.b16 %v262
        %v428 = vunpack.c.l.b16 %v263
        %v429 = vunpack.c.h.b16 %v263
        %v430 = vunpack.c.l.b16 %v264
        %v431 = vunpack.c.h.b16 %v264
        %v432 = vunpack.c.l.b16 %v265
        %v433 = vunpack.c.h.b16 %v265
        %v434 = vunpack.c.l.b16 %v266
        %v435 = vunpack.c.h.b16 %v266
        %v436 = vunpack.c.l.b16 %v267
        %v437 = vunpack.c.h.b16 %v267
        %v438 = vunpack.c.l.b16 %v268
        %v439 = vunpack.c.h.b16 %v268
        %v440 = vunpack.c.l.b16 %v269
        %v441 = vunpack.c.h.b16 %v269
        %v442 = vunpack.c.l.b16 %v270
        %v443 = vunpack.c.h.b16 %v270
        %v444 = vunpack.c.l.b16 %v271
        %v445 = vunpack.c.h.b16 %v271
        %v446 = vunpack.c.l.b16 %v272
        %v447 = vunpack.c.h.b16 %v272
        %v448 = vunpack.c.l.b16 %v273
        %v449 = vunpack.c.h.b16 %v273
        %v450 = vunpack.c.l.b16 %v274
        %v451 = vunpack.c.h.b16 %v274
        %v452 = vunpack.c.l.b16 %v275
        %v453 = vunpack.c.h.b16 %v275
        %v454 = vunpack.c.l.b16 %v276
        %v455 = vunpack.c.h.b16 %v276
        %v456 = vunpack.c.l.b16 %v277
        %v457 = vunpack.c.h.b16 %v277
        %v458 = vunpack.c.l.b16 %v278
        %v459 = vunpack.c.h.b16 %v278
        %v460 = vunpack.c.l.b16 %v279
        %v461 = vunpack.c.h.b16 %v279
        %v462 = vunpack.c.l.b16 %v280
        %v463 = vunpack.c.h.b16 %v280
        %v464 = vunpack.c.l.b16 %v281
        %v465 = vunpack.c.h.b16 %v281
        %v466 = vunpack.c.l.b16 %v282
        %v467 = vunpack.c.h.b16 %v282
        %v468 = vunpack.c.l.b16 %v283
        %v469 = vunpack.c.h.b16 %v283
        %v470 = vunpack.c.l.b16 %v284
        %v471 = vunpack.c.h.b16 %v284
        %v472 = vunpack.c.l.b16 %v285
        %v473 = vunpack.c.h.b16 %v285
        %v474 = vunpack.c.l.b16 %v286
        %v475 = vunpack.c.h.b16 %v286
        %v476 = vunpack.c.l.b16 %v287
        %v477 = vunpack.c.h.b16 %v287
        %v478 = vunpack.c.l.b16 %v288
        %v479 = vunpack.c.h.b16 %v288
        %v480 = vunpack.c.l.b16 %v289
        %v481 = vunpack.c.h.b16 %v289
        %v482 = vunpack.c.l.b16 %v290
        %v483 = vunpack.c.h.b16 %v290
        %v484 = vunpack.c.l.b16 %v291
        %v485 = vunpack.c.h.b16 %v291
        %v486 = vunpack.c.l.b16 %v292
        %v487 = vunpack.c.h.b16 %v292
        %v488 = vunpack.c.l.b16 %v293
        %v489 = vunpack.c.h.b16 %v293
        %v490 = vunpack.c.l.b16 %v294
        %v491 = vunpack.c.h.b16 %v294
        %v492 = vunpack.c.l.b16 %v295
        %v493 = vunpack.c.h.b16 %v295
        %v494 = vunpack.c.l.b16 %v296
        %v495 = vunpack.c.h.b16 %v296
        %v496 = vunpack.c.l.b16 %v297
        %v497 = vunpack.c.h.b16 %v297
        %v498 = vunpack.c.l.b16 %v298
        %v499 = vunpack.c.h.b16 %v298
        %v500 = vunpack.c.l.b16 %v299
        %v501 = vunpack.c.h.b16 %v299
        %v502 = vunpack.c.l.b16 %v300
        %v503 = vunpack.c.h.b16 %v300
        %v504 = vunpack.c.l.b16 %v301
        %v505 = vunpack.c.h.b16 %v301
        %v506 = vunpack.c.l.b16 %v302
        %v507 = vunpack.c.h.b16 %v302
        %v508 = vunpack.c.l.b16 %v303
        %v509 = vunpack.c.h.b16 %v303
        %v510 = vunpack.c.l.b16 %v304
        %v511 = vunpack.c.h.b16 %v304
        %v512 = vunpack.c.l.b16 %v305
        %v513 = vunpack.c.h.b16 %v305
        %v514 = vpack.c.b16 %v422, %v418
        %v515 = vpack.c.b16 %v423, %v419
        %v516 = vpack.c.b16 %v424, %v420
        %v517 = vpack.c.b16 %v425, %v421
        %v518 = vpack.c.b16 %v430, %v426
        %v519 = vpack.c.b16 %v431, %v427
        %v520 = vpack.c.b16 %v432, %v428
        %v521 = vpack.c.b16 %v433, %v429
        %v522 = vpack.c.b16 %v438, %v434
        %v523 = vpack.c.b16 %v439, %v435
        %v524 = vpack.c.b16 %v440, %v436
        %v525 = vpack.c.b16 %v441, %v437
        %v526 = vpack.c.b16 %v446, %v442
        %v527 = vpack.c.b16 %v447, %v443
        %v528 = vpack.c.b16 %v448, %v444
        %v529 = vpack.c.b16 %v449, %v445
        %v530 = vpack.c.b16 %v454, %v450
        %v531 = vpack.c.b16 %v455, %v451
        %v532 = vpack.c.b16 %v456, %v452
        %v533 = vpack.c.b16 %v457, %v453
        %v534 = vpack.c.b16 %v462, %v458
        %v535 = vpack.c.b16 %v463, %v459
        %v536 = vpack.c.b16 %v464, %v460
        %v537 = vpack.c.b16 %v465, %v461
        %v538 = vpack.c.b16 %v470, %v466
        %v539 = vpack.c.b16 %v471, %v467
        %v540 = vpack.c.b16 %v472, %v468
        %v541 = vpack.c.b16 %v473, %v469
        %v542 = vpack.c.b16 %v478, %v474
        %v543 = vpack.c.b16 %v479, %v475
        %v544 = vpack.c.b16 %v480, %v476
        %v545 = vpack.c.b16 %v481, %v477
        %v546 = vpack.c.b16 %v486, %v482
        %v547 = vpack.c.b16 %v487, %v483
        %v548 = vpack.c.b16 %v488, %v484
        %v549 = vpack.c.b16 %v489, %v485
        %v550 = vpack.c.b16 %v494, %v490
        %v551 = vpack.c.b16 %v495, %v491
        %v552 = vpack.c.b16 %v496, %v492
        %v553 = vpack.c.b16 %v497, %v493
        %v554 = vpack.c.b16 %v502, %v498
        %v555 = vpack.c.b16 %v503, %v499
        %v556 = vpack.c.b16 %v504, %v500
        %v557 = vpack.c.b16 %v505, %v501
        %v558 = vpack.c.b16 %v510, %v506
        %v559 = vpack.c.b16 %v511, %v507
        %v560 = vpack.c.b16 %v512, %v508
        %v561 = vpack.c.b16 %v513, %v509
        %v674 = vunpack.c.l.b16 %v306
        %v675 = vunpack.c.l.b16 %v307
        %v676 = vunpack.c.l.b16 %v308
        %v677 = vunpack.c.l.b16 %v309
        %v678 = vunpack.c.l.b16 %v310
        %v679 = vunpack.c.l.b16 %v311
        %v680 = vunpack.c.l.b16 %v312
        %v681 = vunpack.c.l.b16 %v313
        %v682 = vunpack.c.l.b16 %v314
        %v683 = vunpack.c.l.b16 %v315
        %v684 = vunpack.c.l.b16 %v316
        %v685 = vunpack.c.l.b16 %v317
        %v686 = vunpack.c.l.b16 %v318
        %v687 = vunpack.c.l.b16 %v319
        %v688 = vunpack.c.l.b16 %v320
        %v689 = vunpack.c.l.b16 %v321
        %v690 = vunpack.c.l.b16 %v322
        %v691 = vunpack.c.l.b16 %v323
        %v692 = vunpack.c.l.b16 %v324
        %v693 = vunpack.c.l.b16 %v325
        %v694 = vunpack.c.l.b16 %v326
        %v695 = vunpack.c.l.b16 %v327
        %v696 = vunpack.c.l.b16 %v328
        %v697 = vunpack.c.l.b16 %v329
        %v698 = vunpack.c.l.b16 %v330
        %v699 = vunpack.c.l.b16 %v331
        %v700 = vunpack.c.l.b16 %v332
        %v701 = vunpack.c.l.b16 %v333
        %v702 = vunpack.c.l.b16 %v334
        %v703 = vunpack.c.l.b16 %v335
        %v704 = vunpack.c.l.b16 %v336
        %v705 = vunpack.c.l.b16 %v337
        %v706 = vunpack.c.l.b16 %v338
        %v707 = vunpack.c.l.b16 %v339
        %v708 = vunpack.c.l.b16 %v340
        %v709 = vunpack.c.l.b16 %v341
        %v710 = vunpack.c.l.b16 %v342
        %v711 = vunpack.c.l.b16 %v343
        %v712 = vunpack.c.l.b16 %v344
        %v713 = vunpack.c.l.b16 %v345
        %v714 = vunpack.c.l.b16 %v346
        %v715 = vunpack.c.l.b16 %v347
        %v716 = vunpack.c.l.b16 %v348
        %v717 = vunpack.c.l.b16 %v349
        %v718 = vunpack.c.l.b16 %v350
        %v719 = vunpack.c.l.b16 %v351
        %v720 = vunpack.c.l.b16 %v352
        %v721 = vunpack.c.l.b16 %v353
        %v722 = vunpack.c.l.b16 %v354
        %v723 = vunpack.c.l.b16 %v355
        %v724 = vunpack.c.l.b16 %v356
        %v725 = vunpack.c.l.b16 %v357
        %v726 = vunpack.c.l.b16 %v358
        %v727 = vunpack.c.l.b16 %v359
        %v728 = vunpack.c.l.b16 %v360
        %v729 = vunpack.c.l.b16 %v361
        %v730 = vunpack.c.l.b16 %v362
        %v731 = vunpack.c.l.b16 %v363
        %v732 = vunpack.c.l.b16 %v364
        %v733 = vunpack.c.l.b16 %v365
        %v734 = vunpack.c.l.b16 %v366
        %v735 = vunpack.c.l.b16 %v367
        %v736 = vunpack.c.l.b16 %v368
        %v737 = vunpack.c.l.b16 %v369
        %v738 = vpack.c.b16 %v675, %v674
        %v739 = vpack.c.b16 %v677, %v676
        %v740 = vpack.c.b16 %v679, %v678
        %v741 = vpack.c.b16 %v681, %v680
        %v742 = vpack.c.b16 %v683, %v682
        %v743 = vpack.c.b16 %v685, %v684
        %v744 = vpack.c.b16 %v687, %v686
        %v745 = vpack.c.b16 %v689, %v688
        %v746 = vpack.c.b16 %v691, %v690
        %v747 = vpack.c.b16 %v693, %v692
        %v748 = vpack.c.b16 %v695, %v694
        %v749 = vpack.c.b16 %v697, %v696
        %v750 = vpack.c.b16 %v699, %v698
        %v751 = vpack.c.b16 %v701, %v700
        %v752 = vpack.c.b16 %v703, %v702
        %v753 = vpack.c.b16 %v705, %v704
        %v754 = vpack.c.b16 %v707, %v706
        %v755 = vpack.c.b16 %v709, %v708
        %v756 = vpack.c.b16 %v711, %v710
        %v757 = vpack.c.b16 %v713, %v712
        %v758 = vpack.c.b16 %v715, %v714
        %v759 = vpack.c.b16 %v717, %v716
        %v760 = vpack.c.b16 %v719, %v718
        %v761 = vpack.c.b16 %v721, %v720
        %v762 = vpack.c.b16 %v723, %v722
        %v763 = vpack.c.b16 %v725, %v724
        %v764 = vpack.c.b16 %v727, %v726
        %v765 = vpack.c.b16 %v729, %v728
        %v766 = vpack.c.b16 %v731, %v730
        %v767 = vpack.c.b16 %v733, %v732
        %v768 = vpack.c.b16 %v735, %v734
        %v769 = vpack.c.b16 %v737, %v736
        %802 = vmatpush.bf16.msra.mxu0 %v745
        %803 = vmatpush.bf16.msra.mxu0 %v744
        %804 = vmatpush.bf16.msra.mxu0 %v743
        %805 = vmatpush.bf16.msra.mxu0 %v742
        %806 = vmatpush.bf16.msra.mxu0 %v741
        %807 = vmatpush.bf16.msra.mxu0 %v740
        %808 = vmatpush.bf16.msra.mxu0 %v739
        %809 = vmatpush.bf16.msra.mxu0 %v738
        %810 = vmatmul.bf16.gmra.mxu0 %v514
        %v811 = vpop.f32.mrf.mxu0
        %v812 = vadd.f32 0.0, %v811
        %v813 = vpop.f32.mrf.mxu0
        %v814 = vadd.f32 0.0, %v813
        %815 = vmatmul.bf16.gmra.mxu0 %v518
        %v816 = vpop.f32.mrf.mxu0
        %v817 = vadd.f32 0.0, %v816
        %v818 = vpop.f32.mrf.mxu0
        %v819 = vadd.f32 0.0, %v818
        %820 = vmatmul.bf16.gmra.mxu0 %v522
        %v821 = vpop.f32.mrf.mxu0
        %v822 = vadd.f32 0.0, %v821
        %v823 = vpop.f32.mrf.mxu0
        %v824 = vadd.f32 0.0, %v823
        %825 = vmatmul.bf16.gmra.mxu0 %v526
        %v826 = vpop.f32.mrf.mxu0
        %v827 = vadd.f32 0.0, %v826
        %v828 = vpop.f32.mrf.mxu0
        %v829 = vadd.f32 0.0, %v828
        %830 = vmatmul.bf16.gmra.mxu0 %v530
        %v831 = vpop.f32.mrf.mxu0
        %v832 = vadd.f32 0.0, %v831
        %v833 = vpop.f32.mrf.mxu0
        %v834 = vadd.f32 0.0, %v833
        %835 = vmatmul.bf16.gmra.mxu0 %v534
        %v836 = vpop.f32.mrf.mxu0
        %v837 = vadd.f32 0.0, %v836
        %v838 = vpop.f32.mrf.mxu0
        %v839 = vadd.f32 0.0, %v838
        %840 = vmatmul.bf16.gmra.mxu0 %v538
        %v841 = vpop.f32.mrf.mxu0
        %v842 = vadd.f32 0.0, %v841
        %v843 = vpop.f32.mrf.mxu0
        %v844 = vadd.f32 0.0, %v843
        %845 = vmatmul.bf16.gmra.mxu0 %v542
        %v846 = vpop.f32.mrf.mxu0
        %v847 = vadd.f32 0.0, %v846
        %v848 = vpop.f32.mrf.mxu0
        %v849 = vadd.f32 0.0, %v848
        %850 = vmatmul.bf16.gmra.mxu0 %v546
        %v851 = vpop.f32.mrf.mxu0
        %v852 = vadd.f32 0.0, %v851
        %v853 = vpop.f32.mrf.mxu0
        %v854 = vadd.f32 0.0, %v853
        %855 = vmatmul.bf16.gmra.mxu0 %v550
        %v856 = vpop.f32.mrf.mxu0
        %v857 = vadd.f32 0.0, %v856
        %v858 = vpop.f32.mrf.mxu0
        %v859 = vadd.f32 0.0, %v858
        %860 = vmatmul.bf16.gmra.mxu0 %v554
        %v861 = vpop.f32.mrf.mxu0
        %v862 = vadd.f32 0.0, %v861
        %v863 = vpop.f32.mrf.mxu0
        %v864 = vadd.f32 0.0, %v863
        %865 = vmatmul.bf16.gmra.mxu0 %v558
        %v866 = vpop.f32.mrf.mxu0
        %v867 = vadd.f32 0.0, %v866
        %v868 = vpop.f32.mrf.mxu0
        %v869 = vadd.f32 0.0, %v868
        %870 = vdwg.mxu0
        %871 = vmatpush.bf16.msra.mxu0 %v753
        %872 = vmatpush.bf16.msra.mxu0 %v752
        %873 = vmatpush.bf16.msra.mxu0 %v751
        %874 = vmatpush.bf16.msra.mxu0 %v750
        %875 = vmatpush.bf16.msra.mxu0 %v749
        %876 = vmatpush.bf16.msra.mxu0 %v748
        %877 = vmatpush.bf16.msra.mxu0 %v747
        %878 = vmatpush.bf16.msra.mxu0 %v746
        %879 = vmatmul.bf16.gmra.mxu0 %v515
        %v880 = vpop.f32.mrf.mxu0
        %v881 = vadd.f32 %v812, %v880
        %v882 = vpop.f32.mrf.mxu0
        %v883 = vadd.f32 %v814, %v882
        %884 = vmatmul.bf16.gmra.mxu0 %v519
        %v885 = vpop.f32.mrf.mxu0
        %v886 = vadd.f32 %v817, %v885
        %v887 = vpop.f32.mrf.mxu0
        %v888 = vadd.f32 %v819, %v887
        %889 = vmatmul.bf16.gmra.mxu0 %v523
        %v890 = vpop.f32.mrf.mxu0
        %v891 = vadd.f32 %v822, %v890
        %v892 = vpop.f32.mrf.mxu0
        %v893 = vadd.f32 %v824, %v892
        %894 = vmatmul.bf16.gmra.mxu0 %v527
        %v895 = vpop.f32.mrf.mxu0
        %v896 = vadd.f32 %v827, %v895
        %v897 = vpop.f32.mrf.mxu0
        %v898 = vadd.f32 %v829, %v897
        %899 = vmatmul.bf16.gmra.mxu0 %v531
        %v900 = vpop.f32.mrf.mxu0
        %v901 = vadd.f32 %v832, %v900
        %v902 = vpop.f32.mrf.mxu0
        %v903 = vadd.f32 %v834, %v902
        %904 = vmatmul.bf16.gmra.mxu0 %v535
        %v905 = vpop.f32.mrf.mxu0
        %v906 = vadd.f32 %v837, %v905
        %v907 = vpop.f32.mrf.mxu0
        %v908 = vadd.f32 %v839, %v907
        %909 = vmatmul.bf16.gmra.mxu0 %v539
        %v910 = vpop.f32.mrf.mxu0
        %v911 = vadd.f32 %v842, %v910
        %v912 = vpop.f32.mrf.mxu0
        %v913 = vadd.f32 %v844, %v912
        %914 = vmatmul.bf16.gmra.mxu0 %v543
        %v915 = vpop.f32.mrf.mxu0
        %v916 = vadd.f32 %v847, %v915
        %v917 = vpop.f32.mrf.mxu0
        %v918 = vadd.f32 %v849, %v917
        %919 = vmatmul.bf16.gmra.mxu0 %v547
        %v920 = vpop.f32.mrf.mxu0
        %v921 = vadd.f32 %v852, %v920
        %v922 = vpop.f32.mrf.mxu0
        %v923 = vadd.f32 %v854, %v922
        %924 = vmatmul.bf16.gmra.mxu0 %v551
        %v925 = vpop.f32.mrf.mxu0
        %v926 = vadd.f32 %v857, %v925
        %v927 = vpop.f32.mrf.mxu0
        %v928 = vadd.f32 %v859, %v927
        %929 = vmatmul.bf16.gmra.mxu0 %v555
        %v930 = vpop.f32.mrf.mxu0
        %v931 = vadd.f32 %v862, %v930
        %v932 = vpop.f32.mrf.mxu0
        %v933 = vadd.f32 %v864, %v932
        %934 = vmatmul.bf16.gmra.mxu0 %v559
        %v935 = vpop.f32.mrf.mxu0
        %v936 = vadd.f32 %v867, %v935
        %v937 = vpop.f32.mrf.mxu0
        %v938 = vadd.f32 %v869, %v937
        %939 = vdwg.mxu0
        %940 = vmatpush.bf16.msra.mxu0 %v761
        %941 = vmatpush.bf16.msra.mxu0 %v760
        %942 = vmatpush.bf16.msra.mxu0 %v759
        %943 = vmatpush.bf16.msra.mxu0 %v758
        %944 = vmatpush.bf16.msra.mxu0 %v757
        %945 = vmatpush.bf16.msra.mxu0 %v756
        %946 = vmatpush.bf16.msra.mxu0 %v755
        %947 = vmatpush.bf16.msra.mxu0 %v754
        %948 = vmatmul.bf16.gmra.mxu0 %v516
        %v949 = vpop.f32.mrf.mxu0
        %v950 = vadd.f32 %v881, %v949
        %v951 = vpop.f32.mrf.mxu0
        %v952 = vadd.f32 %v883, %v951
        %953 = vmatmul.bf16.gmra.mxu0 %v520
        %v954 = vpop.f32.mrf.mxu0
        %v955 = vadd.f32 %v886, %v954
        %v956 = vpop.f32.mrf.mxu0
        %v957 = vadd.f32 %v888, %v956
        %958 = vmatmul.bf16.gmra.mxu0 %v524
        %v959 = vpop.f32.mrf.mxu0
        %v960 = vadd.f32 %v891, %v959
        %v961 = vpop.f32.mrf.mxu0
        %v962 = vadd.f32 %v893, %v961
        %963 = vmatmul.bf16.gmra.mxu0 %v528
        %v964 = vpop.f32.mrf.mxu0
        %v965 = vadd.f32 %v896, %v964
        %v966 = vpop.f32.mrf.mxu0
        %v967 = vadd.f32 %v898, %v966
        %968 = vmatmul.bf16.gmra.mxu0 %v532
        %v969 = vpop.f32.mrf.mxu0
        %v970 = vadd.f32 %v901, %v969
        %v971 = vpop.f32.mrf.mxu0
        %v972 = vadd.f32 %v903, %v971
        %973 = vmatmul.bf16.gmra.mxu0 %v536
        %v974 = vpop.f32.mrf.mxu0
        %v975 = vadd.f32 %v906, %v974
        %v976 = vpop.f32.mrf.mxu0
        %v977 = vadd.f32 %v908, %v976
        %978 = vmatmul.bf16.gmra.mxu0 %v540
        %v979 = vpop.f32.mrf.mxu0
        %v980 = vadd.f32 %v911, %v979
        %v981 = vpop.f32.mrf.mxu0
        %v982 = vadd.f32 %v913, %v981
        %983 = vmatmul.bf16.gmra.mxu0 %v544
        %v984 = vpop.f32.mrf.mxu0
        %v985 = vadd.f32 %v916, %v984
        %v986 = vpop.f32.mrf.mxu0
        %v987 = vadd.f32 %v918, %v986
        %988 = vmatmul.bf16.gmra.mxu0 %v548
        %v989 = vpop.f32.mrf.mxu0
        %v990 = vadd.f32 %v921, %v989
        %v991 = vpop.f32.mrf.mxu0
        %v992 = vadd.f32 %v923, %v991
        %993 = vmatmul.bf16.gmra.mxu0 %v552
        %v994 = vpop.f32.mrf.mxu0
        %v995 = vadd.f32 %v926, %v994
        %v996 = vpop.f32.mrf.mxu0
        %v997 = vadd.f32 %v928, %v996
        %998 = vmatmul.bf16.gmra.mxu0 %v556
        %v999 = vpop.f32.mrf.mxu0
        %v1000 = vadd.f32 %v931, %v999
        %v1001 = vpop.f32.mrf.mxu0
        %v1002 = vadd.f32 %v933, %v1001
        %1003 = vmatmul.bf16.gmra.mxu0 %v560
        %v1004 = vpop.f32.mrf.mxu0
        %v1005 = vadd.f32 %v936, %v1004
        %v1006 = vpop.f32.mrf.mxu0
        %v1007 = vadd.f32 %v938, %v1006
        %1008 = vdwg.mxu0
        %1009 = vmatpush.bf16.msra.mxu0 %v769
        %1010 = vmatpush.bf16.msra.mxu0 %v768
        %1011 = vmatpush.bf16.msra.mxu0 %v767
        %1012 = vmatpush.bf16.msra.mxu0 %v766
        %1013 = vmatpush.bf16.msra.mxu0 %v765
        %1014 = vmatpush.bf16.msra.mxu0 %v764
        %1015 = vmatpush.bf16.msra.mxu0 %v763
        %1016 = vmatpush.bf16.msra.mxu0 %v762
        %1017 = vmatmul.bf16.gmra.mxu0 %v517
        %v1018 = vpop.f32.mrf.mxu0
        %v1019 = vadd.f32 %v950, %v1018
        %v1020 = vpop.f32.mrf.mxu0
        %v1021 = vadd.f32 %v952, %v1020
        %1022 = vmatmul.bf16.gmra.mxu0 %v521
        %v1023 = vpop.f32.mrf.mxu0
        %v1024 = vadd.f32 %v955, %v1023
        %v1025 = vpop.f32.mrf.mxu0
        %v1026 = vadd.f32 %v957, %v1025
        %1027 = vmatmul.bf16.gmra.mxu0 %v525
        %v1028 = vpop.f32.mrf.mxu0
        %v1029 = vadd.f32 %v960, %v1028
        %v1030 = vpop.f32.mrf.mxu0
        %v1031 = vadd.f32 %v962, %v1030
        %1032 = vmatmul.bf16.gmra.mxu0 %v529
        %v1033 = vpop.f32.mrf.mxu0
        %v1034 = vadd.f32 %v965, %v1033
        %v1035 = vpop.f32.mrf.mxu0
        %v1036 = vadd.f32 %v967, %v1035
        %1037 = vmatmul.bf16.gmra.mxu0 %v533
        %v1038 = vpop.f32.mrf.mxu0
        %v1039 = vadd.f32 %v970, %v1038
        %v1040 = vpop.f32.mrf.mxu0
        %v1041 = vadd.f32 %v972, %v1040
        %1042 = vmatmul.bf16.gmra.mxu0 %v537
        %v1043 = vpop.f32.mrf.mxu0
        %v1044 = vadd.f32 %v975, %v1043
        %v1045 = vpop.f32.mrf.mxu0
        %v1046 = vadd.f32 %v977, %v1045
        %1047 = vmatmul.bf16.gmra.mxu0 %v541
        %v1048 = vpop.f32.mrf.mxu0
        %v1049 = vadd.f32 %v980, %v1048
        %v1050 = vpop.f32.mrf.mxu0
        %v1051 = vadd.f32 %v982, %v1050
        %1052 = vmatmul.bf16.gmra.mxu0 %v545
        %v1053 = vpop.f32.mrf.mxu0
        %v1054 = vadd.f32 %v985, %v1053
        %v1055 = vpop.f32.mrf.mxu0
        %v1056 = vadd.f32 %v987, %v1055
        %1057 = vmatmul.bf16.gmra.mxu0 %v549
        %v1058 = vpop.f32.mrf.mxu0
        %v1059 = vadd.f32 %v990, %v1058
        %v1060 = vpop.f32.mrf.mxu0
        %v1061 = vadd.f32 %v992, %v1060
        %1062 = vmatmul.bf16.gmra.mxu0 %v553
        %v1063 = vpop.f32.mrf.mxu0
        %v1064 = vadd.f32 %v995, %v1063
        %v1065 = vpop.f32.mrf.mxu0
        %v1066 = vadd.f32 %v997, %v1065
        %1067 = vmatmul.bf16.gmra.mxu0 %v557
        %v1068 = vpop.f32.mrf.mxu0
        %v1069 = vadd.f32 %v1000, %v1068
        %v1070 = vpop.f32.mrf.mxu0
        %v1071 = vadd.f32 %v1002, %v1070
        %1072 = vmatmul.bf16.gmra.mxu0 %v561
        %v1073 = vpop.f32.mrf.mxu0
        %v1074 = vadd.f32 %v1005, %v1073
        %v1075 = vpop.f32.mrf.mxu0
        %v1076 = vadd.f32 %v1007, %v1075
        %1077 = vdwg.mxu0
        %v1078 = vadd.f32 %v1019, %v1049
        %v1079 = vadd.f32 %v1021, %v1051
        %v1080 = vadd.f32 %v1024, %v1054
        %v1081 = vadd.f32 %v1026, %v1056
        %v1082 = vadd.f32 %v1029, %v1059
        %v1083 = vadd.f32 %v1031, %v1061
        %v1084 = vadd.f32 %v1034, %v1064
        %v1085 = vadd.f32 %v1036, %v1066
        %v1086 = vadd.f32 %v1039, %v1069
        %v1087 = vadd.f32 %v1041, %v1071
        %v1088 = vadd.f32 %v1044, %v1074
        %v1089 = vadd.f32 %v1046, %v1076
        %v1090 = vmul.f32 %v1019, %v1019
        %v1091 = vmul.f32 %v1021, %v1021
        %v1092 = vmul.f32 %v1024, %v1024
        %v1093 = vmul.f32 %v1026, %v1026
        %v1094 = vmul.f32 %v1029, %v1029
        %v1095 = vmul.f32 %v1031, %v1031
        %v1096 = vmul.f32 %v1034, %v1034
        %v1097 = vmul.f32 %v1036, %v1036
        %v1098 = vmul.f32 %v1039, %v1039
        %v1099 = vmul.f32 %v1041, %v1041
        %v1100 = vmul.f32 %v1044, %v1044
        %v1101 = vmul.f32 %v1046, %v1046
        %1102 = vrot.lane.b32.xlu0 %v1090, 64
        %v1103 = vpop.permute.xlu0 %1102
        %1104 = vrot.lane.b32.xlu0 %v1091, 64
        %v1105 = vpop.permute.xlu0 %1104
        %1106 = vrot.lane.b32.xlu0 %v1092, 64
        %v1107 = vpop.permute.xlu0 %1106
        %1108 = vrot.lane.b32.xlu0 %v1093, 64
        %v1109 = vpop.permute.xlu0 %1108
        %1110 = vrot.lane.b32.xlu0 %v1094, 64
        %v1111 = vpop.permute.xlu0 %1110
        %1112 = vrot.lane.b32.xlu0 %v1095, 64
        %v1113 = vpop.permute.xlu0 %1112
        %1114 = vrot.lane.b32.xlu0 %v1096, 64
        %v1115 = vpop.permute.xlu0 %1114
        %1116 = vrot.lane.b32.xlu0 %v1097, 64
        %v1117 = vpop.permute.xlu0 %1116
        %1118 = vrot.lane.b32.xlu0 %v1098, 64
        %v1119 = vpop.permute.xlu0 %1118
        %1120 = vrot.lane.b32.xlu0 %v1099, 64
        %v1121 = vpop.permute.xlu0 %1120
        %1122 = vrot.lane.b32.xlu0 %v1100, 64
        %v1123 = vpop.permute.xlu0 %1122
        %1124 = vrot.lane.b32.xlu0 %v1101, 64
        %v1125 = vpop.permute.xlu0 %1124
        %v1126 = vadd.f32 %v1090, %v1103
        %v1127 = vadd.f32 %v1091, %v1105
        %v1128 = vadd.f32 %v1092, %v1107
        %v1129 = vadd.f32 %v1093, %v1109
        %v1130 = vadd.f32 %v1094, %v1111
        %v1131 = vadd.f32 %v1095, %v1113
        %v1132 = vadd.f32 %v1096, %v1115
        %v1133 = vadd.f32 %v1097, %v1117
        %v1134 = vadd.f32 %v1098, %v1119
        %v1135 = vadd.f32 %v1099, %v1121
        %v1136 = vadd.f32 %v1100, %v1123
        %v1137 = vadd.f32 %v1101, %v1125
        %v1138 = vmax.f32 %v1126, 1e-08
        %v1139 = vmax.f32 %v1127, 1e-08
        %v1140 = vmax.f32 %v1128, 1e-08
        %v1141 = vmax.f32 %v1129, 1e-08
        %v1142 = vmax.f32 %v1130, 1e-08
        %v1143 = vmax.f32 %v1131, 1e-08
        %v1144 = vmax.f32 %v1132, 1e-08
        %v1145 = vmax.f32 %v1133, 1e-08
        %v1146 = vmax.f32 %v1134, 1e-08
        %v1147 = vmax.f32 %v1135, 1e-08
        %v1148 = vmax.f32 %v1136, 1e-08
        %v1149 = vmax.f32 %v1137, 1e-08
        %v1150 = vrsqrt.pop %v1138
        %v1151 = vmul.f32 %v1150, %v1138
        %v1152 = vmul.f32 %v1151, %v1150
        %v1153 = vmul.f32 0.5, %v1152
        %v1154 = vsub.f32 1.5, %v1153
        %v1155 = vmul.f32 %v1150, %v1154
        %v1156 = vmul.f32 %v1138, %v1155
        %vm1157 = vcmp.eq.f32.partialorder %v1138, inf
        %v1158 = vsel %vm1157, %v1138, %v1156
        %vm1159 = vcmp.eq.f32.partialorder %v1138, 0.0
        %v1160 = vand.u32 %v1138, 2147483648
        %v1161 = vsel %vm1159, %v1160, %v1158
        %v1162 = vrsqrt.pop %v1139
        %v1163 = vmul.f32 %v1162, %v1139
        %v1164 = vmul.f32 %v1163, %v1162
        %v1165 = vmul.f32 0.5, %v1164
        %v1166 = vsub.f32 1.5, %v1165
        %v1167 = vmul.f32 %v1162, %v1166
        %v1168 = vmul.f32 %v1139, %v1167
        %vm1169 = vcmp.eq.f32.partialorder %v1139, inf
        %v1170 = vsel %vm1169, %v1139, %v1168
        %vm1171 = vcmp.eq.f32.partialorder %v1139, 0.0
        %v1172 = vand.u32 %v1139, 2147483648
        %v1173 = vsel %vm1171, %v1172, %v1170
        %v1174 = vrsqrt.pop %v1140
        %v1175 = vmul.f32 %v1174, %v1140
        %v1176 = vmul.f32 %v1175, %v1174
        %v1177 = vmul.f32 0.5, %v1176
        %v1178 = vsub.f32 1.5, %v1177
        %v1179 = vmul.f32 %v1174, %v1178
        %v1180 = vmul.f32 %v1140, %v1179
        %vm1181 = vcmp.eq.f32.partialorder %v1140, inf
        %v1182 = vsel %vm1181, %v1140, %v1180
        %vm1183 = vcmp.eq.f32.partialorder %v1140, 0.0
        %v1184 = vand.u32 %v1140, 2147483648
        %v1185 = vsel %vm1183, %v1184, %v1182
        %v1186 = vrsqrt.pop %v1141
        %v1187 = vmul.f32 %v1186, %v1141
        %v1188 = vmul.f32 %v1187, %v1186
        %v1189 = vmul.f32 0.5, %v1188
        %v1190 = vsub.f32 1.5, %v1189
        %v1191 = vmul.f32 %v1186, %v1190
        %v1192 = vmul.f32 %v1141, %v1191
        %vm1193 = vcmp.eq.f32.partialorder %v1141, inf
        %v1194 = vsel %vm1193, %v1141, %v1192
        %vm1195 = vcmp.eq.f32.partialorder %v1141, 0.0
        %v1196 = vand.u32 %v1141, 2147483648
        %v1197 = vsel %vm1195, %v1196, %v1194
        %v1198 = vrsqrt.pop %v1142
        %v1199 = vmul.f32 %v1198, %v1142
        %v1200 = vmul.f32 %v1199, %v1198
        %v1201 = vmul.f32 0.5, %v1200
        %v1202 = vsub.f32 1.5, %v1201
        %v1203 = vmul.f32 %v1198, %v1202
        %v1204 = vmul.f32 %v1142, %v1203
        %vm1205 = vcmp.eq.f32.partialorder %v1142, inf
        %v1206 = vsel %vm1205, %v1142, %v1204
        %vm1207 = vcmp.eq.f32.partialorder %v1142, 0.0
        %v1208 = vand.u32 %v1142, 2147483648
        %v1209 = vsel %vm1207, %v1208, %v1206
        %v1210 = vrsqrt.pop %v1143
        %v1211 = vmul.f32 %v1210, %v1143
        %v1212 = vmul.f32 %v1211, %v1210
        %v1213 = vmul.f32 0.5, %v1212
        %v1214 = vsub.f32 1.5, %v1213
        %v1215 = vmul.f32 %v1210, %v1214
        %v1216 = vmul.f32 %v1143, %v1215
        %vm1217 = vcmp.eq.f32.partialorder %v1143, inf
        %v1218 = vsel %vm1217, %v1143, %v1216
        %vm1219 = vcmp.eq.f32.partialorder %v1143, 0.0
        %v1220 = vand.u32 %v1143, 2147483648
        %v1221 = vsel %vm1219, %v1220, %v1218
        %v1222 = vrsqrt.pop %v1144
        %v1223 = vmul.f32 %v1222, %v1144
        %v1224 = vmul.f32 %v1223, %v1222
        %v1225 = vmul.f32 0.5, %v1224
        %v1226 = vsub.f32 1.5, %v1225
        %v1227 = vmul.f32 %v1222, %v1226
        %v1228 = vmul.f32 %v1144, %v1227
        %vm1229 = vcmp.eq.f32.partialorder %v1144, inf
        %v1230 = vsel %vm1229, %v1144, %v1228
        %vm1231 = vcmp.eq.f32.partialorder %v1144, 0.0
        %v1232 = vand.u32 %v1144, 2147483648
        %v1233 = vsel %vm1231, %v1232, %v1230
        %v1234 = vrsqrt.pop %v1145
        %v1235 = vmul.f32 %v1234, %v1145
        %v1236 = vmul.f32 %v1235, %v1234
        %v1237 = vmul.f32 0.5, %v1236
        %v1238 = vsub.f32 1.5, %v1237
        %v1239 = vmul.f32 %v1234, %v1238
        %v1240 = vmul.f32 %v1145, %v1239
        %vm1241 = vcmp.eq.f32.partialorder %v1145, inf
        %v1242 = vsel %vm1241, %v1145, %v1240
        %vm1243 = vcmp.eq.f32.partialorder %v1145, 0.0
        %v1244 = vand.u32 %v1145, 2147483648
        %v1245 = vsel %vm1243, %v1244, %v1242
        %v1246 = vrsqrt.pop %v1146
        %v1247 = vmul.f32 %v1246, %v1146
        %v1248 = vmul.f32 %v1247, %v1246
        %v1249 = vmul.f32 0.5, %v1248
        %v1250 = vsub.f32 1.5, %v1249
        %v1251 = vmul.f32 %v1246, %v1250
        %v1252 = vmul.f32 %v1146, %v1251
        %vm1253 = vcmp.eq.f32.partialorder %v1146, inf
        %v1254 = vsel %vm1253, %v1146, %v1252
        %vm1255 = vcmp.eq.f32.partialorder %v1146, 0.0
        %v1256 = vand.u32 %v1146, 2147483648
        %v1257 = vsel %vm1255, %v1256, %v1254
        %v1258 = vrsqrt.pop %v1147
        %v1259 = vmul.f32 %v1258, %v1147
        %v1260 = vmul.f32 %v1259, %v1258
        %v1261 = vmul.f32 0.5, %v1260
        %v1262 = vsub.f32 1.5, %v1261
        %v1263 = vmul.f32 %v1258, %v1262
        %v1264 = vmul.f32 %v1147, %v1263
        %vm1265 = vcmp.eq.f32.partialorder %v1147, inf
        %v1266 = vsel %vm1265, %v1147, %v1264
        %vm1267 = vcmp.eq.f32.partialorder %v1147, 0.0
        %v1268 = vand.u32 %v1147, 2147483648
        %v1269 = vsel %vm1267, %v1268, %v1266
        %v1270 = vrsqrt.pop %v1148
        %v1271 = vmul.f32 %v1270, %v1148
        %v1272 = vmul.f32 %v1271, %v1270
        %v1273 = vmul.f32 0.5, %v1272
        %v1274 = vsub.f32 1.5, %v1273
        %v1275 = vmul.f32 %v1270, %v1274
        %v1276 = vmul.f32 %v1148, %v1275
        %vm1277 = vcmp.eq.f32.partialorder %v1148, inf
        %v1278 = vsel %vm1277, %v1148, %v1276
        %vm1279 = vcmp.eq.f32.partialorder %v1148, 0.0
        %v1280 = vand.u32 %v1148, 2147483648
        %v1281 = vsel %vm1279, %v1280, %v1278
        %v1282 = vrsqrt.pop %v1149
        %v1283 = vmul.f32 %v1282, %v1149
        %v1284 = vmul.f32 %v1283, %v1282
        %v1285 = vmul.f32 0.5, %v1284
        %v1286 = vsub.f32 1.5, %v1285
        %v1287 = vmul.f32 %v1282, %v1286
        %v1288 = vmul.f32 %v1149, %v1287
        %vm1289 = vcmp.eq.f32.partialorder %v1149, inf
        %v1290 = vsel %vm1289, %v1149, %v1288
        %vm1291 = vcmp.eq.f32.partialorder %v1149, 0.0
        %v1292 = vand.u32 %v1149, 2147483648
        %v1293 = vsel %vm1291, %v1292, %v1290
        %v1294 = vmul.f32 %v1049, %v1049
        %v1295 = vmul.f32 %v1051, %v1051
        %v1296 = vmul.f32 %v1054, %v1054
        %v1297 = vmul.f32 %v1056, %v1056
        %v1298 = vmul.f32 %v1059, %v1059
        %v1299 = vmul.f32 %v1061, %v1061
        %v1300 = vmul.f32 %v1064, %v1064
        %v1301 = vmul.f32 %v1066, %v1066
        %v1302 = vmul.f32 %v1069, %v1069
        %v1303 = vmul.f32 %v1071, %v1071
        %v1304 = vmul.f32 %v1074, %v1074
        %v1305 = vmul.f32 %v1076, %v1076
        %1306 = vrot.lane.b32.xlu0 %v1294, 64
        %v1307 = vpop.permute.xlu0 %1306
        %1308 = vrot.lane.b32.xlu0 %v1295, 64
        %v1309 = vpop.permute.xlu0 %1308
        %1310 = vrot.lane.b32.xlu0 %v1296, 64
        %v1311 = vpop.permute.xlu0 %1310
        %1312 = vrot.lane.b32.xlu0 %v1297, 64
        %v1313 = vpop.permute.xlu0 %1312
        %1314 = vrot.lane.b32.xlu0 %v1298, 64
        %v1315 = vpop.permute.xlu0 %1314
        %1316 = vrot.lane.b32.xlu0 %v1299, 64
        %v1317 = vpop.permute.xlu0 %1316
        %1318 = vrot.lane.b32.xlu0 %v1300, 64
        %v1319 = vpop.permute.xlu0 %1318
        %1320 = vrot.lane.b32.xlu0 %v1301, 64
        %v1321 = vpop.permute.xlu0 %1320
        %1322 = vrot.lane.b32.xlu0 %v1302, 64
        %v1323 = vpop.permute.xlu0 %1322
        %1324 = vrot.lane.b32.xlu0 %v1303, 64
        %v1325 = vpop.permute.xlu0 %1324
        %1326 = vrot.lane.b32.xlu0 %v1304, 64
        %v1327 = vpop.permute.xlu0 %1326
        %1328 = vrot.lane.b32.xlu0 %v1305, 64
        %v1329 = vpop.permute.xlu0 %1328
        %v1330 = vadd.f32 %v1294, %v1307
        %v1331 = vadd.f32 %v1295, %v1309
        %v1332 = vadd.f32 %v1296, %v1311
        %v1333 = vadd.f32 %v1297, %v1313
        %v1334 = vadd.f32 %v1298, %v1315
        %v1335 = vadd.f32 %v1299, %v1317
        %v1336 = vadd.f32 %v1300, %v1319
        %v1337 = vadd.f32 %v1301, %v1321
        %v1338 = vadd.f32 %v1302, %v1323
        %v1339 = vadd.f32 %v1303, %v1325
        %v1340 = vadd.f32 %v1304, %v1327
        %v1341 = vadd.f32 %v1305, %v1329
        %v1342 = vmax.f32 %v1330, 1e-08
        %v1343 = vmax.f32 %v1331, 1e-08
        %v1344 = vmax.f32 %v1332, 1e-08
        %v1345 = vmax.f32 %v1333, 1e-08
        %v1346 = vmax.f32 %v1334, 1e-08
        %v1347 = vmax.f32 %v1335, 1e-08
        %v1348 = vmax.f32 %v1336, 1e-08
        %v1349 = vmax.f32 %v1337, 1e-08
        %v1350 = vmax.f32 %v1338, 1e-08
        %v1351 = vmax.f32 %v1339, 1e-08
        %v1352 = vmax.f32 %v1340, 1e-08
        %v1353 = vmax.f32 %v1341, 1e-08
        %v1354 = vrsqrt.pop %v1342
        %v1355 = vmul.f32 %v1354, %v1342
        %v1356 = vmul.f32 %v1355, %v1354
        %v1357 = vmul.f32 0.5, %v1356
        %v1358 = vsub.f32 1.5, %v1357
        %v1359 = vmul.f32 %v1354, %v1358
        %v1360 = vmul.f32 %v1342, %v1359
        %vm1361 = vcmp.eq.f32.partialorder %v1342, inf
        %v1362 = vsel %vm1361, %v1342, %v1360
        %vm1363 = vcmp.eq.f32.partialorder %v1342, 0.0
        %v1364 = vand.u32 %v1342, 2147483648
        %v1365 = vsel %vm1363, %v1364, %v1362
        %v1366 = vrsqrt.pop %v1343
        %v1367 = vmul.f32 %v1366, %v1343
        %v1368 = vmul.f32 %v1367, %v1366
        %v1369 = vmul.f32 0.5, %v1368
        %v1370 = vsub.f32 1.5, %v1369
        %v1371 = vmul.f32 %v1366, %v1370
        %v1372 = vmul.f32 %v1343, %v1371
        %vm1373 = vcmp.eq.f32.partialorder %v1343, inf
        %v1374 = vsel %vm1373, %v1343, %v1372
        %vm1375 = vcmp.eq.f32.partialorder %v1343, 0.0
        %v1376 = vand.u32 %v1343, 2147483648
        %v1377 = vsel %vm1375, %v1376, %v1374
        %v1378 = vrsqrt.pop %v1344
        %v1379 = vmul.f32 %v1378, %v1344
        %v1380 = vmul.f32 %v1379, %v1378
        %v1381 = vmul.f32 0.5, %v1380
        %v1382 = vsub.f32 1.5, %v1381
        %v1383 = vmul.f32 %v1378, %v1382
        %v1384 = vmul.f32 %v1344, %v1383
        %vm1385 = vcmp.eq.f32.partialorder %v1344, inf
        %v1386 = vsel %vm1385, %v1344, %v1384
        %vm1387 = vcmp.eq.f32.partialorder %v1344, 0.0
        %v1388 = vand.u32 %v1344, 2147483648
        %v1389 = vsel %vm1387, %v1388, %v1386
        %v1390 = vrsqrt.pop %v1345
        %v1391 = vmul.f32 %v1390, %v1345
        %v1392 = vmul.f32 %v1391, %v1390
        %v1393 = vmul.f32 0.5, %v1392
        %v1394 = vsub.f32 1.5, %v1393
        %v1395 = vmul.f32 %v1390, %v1394
        %v1396 = vmul.f32 %v1345, %v1395
        %vm1397 = vcmp.eq.f32.partialorder %v1345, inf
        %v1398 = vsel %vm1397, %v1345, %v1396
        %vm1399 = vcmp.eq.f32.partialorder %v1345, 0.0
        %v1400 = vand.u32 %v1345, 2147483648
        %v1401 = vsel %vm1399, %v1400, %v1398
        %v1402 = vrsqrt.pop %v1346
        %v1403 = vmul.f32 %v1402, %v1346
        %v1404 = vmul.f32 %v1403, %v1402
        %v1405 = vmul.f32 0.5, %v1404
        %v1406 = vsub.f32 1.5, %v1405
        %v1407 = vmul.f32 %v1402, %v1406
        %v1408 = vmul.f32 %v1346, %v1407
        %vm1409 = vcmp.eq.f32.partialorder %v1346, inf
        %v1410 = vsel %vm1409, %v1346, %v1408
        %vm1411 = vcmp.eq.f32.partialorder %v1346, 0.0
        %v1412 = vand.u32 %v1346, 2147483648
        %v1413 = vsel %vm1411, %v1412, %v1410
        %v1414 = vrsqrt.pop %v1347
        %v1415 = vmul.f32 %v1414, %v1347
        %v1416 = vmul.f32 %v1415, %v1414
        %v1417 = vmul.f32 0.5, %v1416
        %v1418 = vsub.f32 1.5, %v1417
        %v1419 = vmul.f32 %v1414, %v1418
        %v1420 = vmul.f32 %v1347, %v1419
        %vm1421 = vcmp.eq.f32.partialorder %v1347, inf
        %v1422 = vsel %vm1421, %v1347, %v1420
        %vm1423 = vcmp.eq.f32.partialorder %v1347, 0.0
        %v1424 = vand.u32 %v1347, 2147483648
        %v1425 = vsel %vm1423, %v1424, %v1422
        %v1426 = vrsqrt.pop %v1348
        %v1427 = vmul.f32 %v1426, %v1348
        %v1428 = vmul.f32 %v1427, %v1426
        %v1429 = vmul.f32 0.5, %v1428
        %v1430 = vsub.f32 1.5, %v1429
        %v1431 = vmul.f32 %v1426, %v1430
        %v1432 = vmul.f32 %v1348, %v1431
        %vm1433 = vcmp.eq.f32.partialorder %v1348, inf
        %v1434 = vsel %vm1433, %v1348, %v1432
        %vm1435 = vcmp.eq.f32.partialorder %v1348, 0.0
        %v1436 = vand.u32 %v1348, 2147483648
        %v1437 = vsel %vm1435, %v1436, %v1434
        %v1438 = vrsqrt.pop %v1349
        %v1439 = vmul.f32 %v1438, %v1349
        %v1440 = vmul.f32 %v1439, %v1438
        %v1441 = vmul.f32 0.5, %v1440
        %v1442 = vsub.f32 1.5, %v1441
        %v1443 = vmul.f32 %v1438, %v1442
        %v1444 = vmul.f32 %v1349, %v1443
        %vm1445 = vcmp.eq.f32.partialorder %v1349, inf
        %v1446 = vsel %vm1445, %v1349, %v1444
        %vm1447 = vcmp.eq.f32.partialorder %v1349, 0.0
        %v1448 = vand.u32 %v1349, 2147483648
        %v1449 = vsel %vm1447, %v1448, %v1446
        %v1450 = vrsqrt.pop %v1350
        %v1451 = vmul.f32 %v1450, %v1350
        %v1452 = vmul.f32 %v1451, %v1450
        %v1453 = vmul.f32 0.5, %v1452
        %v1454 = vsub.f32 1.5, %v1453
        %v1455 = vmul.f32 %v1450, %v1454
        %v1456 = vmul.f32 %v1350, %v1455
        %vm1457 = vcmp.eq.f32.partialorder %v1350, inf
        %v1458 = vsel %vm1457, %v1350, %v1456
        %vm1459 = vcmp.eq.f32.partialorder %v1350, 0.0
        %v1460 = vand.u32 %v1350, 2147483648
        %v1461 = vsel %vm1459, %v1460, %v1458
        %v1462 = vrsqrt.pop %v1351
        %v1463 = vmul.f32 %v1462, %v1351
        %v1464 = vmul.f32 %v1463, %v1462
        %v1465 = vmul.f32 0.5, %v1464
        %v1466 = vsub.f32 1.5, %v1465
        %v1467 = vmul.f32 %v1462, %v1466
        %v1468 = vmul.f32 %v1351, %v1467
        %vm1469 = vcmp.eq.f32.partialorder %v1351, inf
        %v1470 = vsel %vm1469, %v1351, %v1468
        %vm1471 = vcmp.eq.f32.partialorder %v1351, 0.0
        %v1472 = vand.u32 %v1351, 2147483648
        %v1473 = vsel %vm1471, %v1472, %v1470
        %v1474 = vrsqrt.pop %v1352
        %v1475 = vmul.f32 %v1474, %v1352
        %v1476 = vmul.f32 %v1475, %v1474
        %v1477 = vmul.f32 0.5, %v1476
        %v1478 = vsub.f32 1.5, %v1477
        %v1479 = vmul.f32 %v1474, %v1478
        %v1480 = vmul.f32 %v1352, %v1479
        %vm1481 = vcmp.eq.f32.partialorder %v1352, inf
        %v1482 = vsel %vm1481, %v1352, %v1480
        %vm1483 = vcmp.eq.f32.partialorder %v1352, 0.0
        %v1484 = vand.u32 %v1352, 2147483648
        %v1485 = vsel %vm1483, %v1484, %v1482
        %v1486 = vrsqrt.pop %v1353
        %v1487 = vmul.f32 %v1486, %v1353
        %v1488 = vmul.f32 %v1487, %v1486
        %v1489 = vmul.f32 0.5, %v1488
        %v1490 = vsub.f32 1.5, %v1489
        %v1491 = vmul.f32 %v1486, %v1490
        %v1492 = vmul.f32 %v1353, %v1491
        %vm1493 = vcmp.eq.f32.partialorder %v1353, inf
        %v1494 = vsel %vm1493, %v1353, %v1492
        %vm1495 = vcmp.eq.f32.partialorder %v1353, 0.0
        %v1496 = vand.u32 %v1353, 2147483648
        %v1497 = vsel %vm1495, %v1496, %v1494
        %v1498 = vadd.f32 %v1161, %v1365
        %v1499 = vadd.f32 %v1173, %v1377
        %v1500 = vadd.f32 %v1185, %v1389
        %v1501 = vadd.f32 %v1197, %v1401
        %v1502 = vadd.f32 %v1209, %v1413
        %v1503 = vadd.f32 %v1221, %v1425
        %v1504 = vadd.f32 %v1233, %v1437
        %v1505 = vadd.f32 %v1245, %v1449
        %v1506 = vadd.f32 %v1257, %v1461
        %v1507 = vadd.f32 %v1269, %v1473
        %v1508 = vadd.f32 %v1281, %v1485
        %v1509 = vadd.f32 %v1293, %v1497
        %v1510 = vmul.f32 %v1078, %v1078
        %v1511 = vmul.f32 %v1079, %v1079
        %v1512 = vmul.f32 %v1080, %v1080
        %v1513 = vmul.f32 %v1081, %v1081
        %v1514 = vmul.f32 %v1082, %v1082
        %v1515 = vmul.f32 %v1083, %v1083
        %v1516 = vmul.f32 %v1084, %v1084
        %v1517 = vmul.f32 %v1085, %v1085
        %v1518 = vmul.f32 %v1086, %v1086
        %v1519 = vmul.f32 %v1087, %v1087
        %v1520 = vmul.f32 %v1088, %v1088
        %v1521 = vmul.f32 %v1089, %v1089
        %1522 = vrot.lane.b32.xlu0 %v1510, 64
        %v1523 = vpop.permute.xlu0 %1522
        %1524 = vrot.lane.b32.xlu0 %v1511, 64
        %v1525 = vpop.permute.xlu0 %1524
        %1526 = vrot.lane.b32.xlu0 %v1512, 64
        %v1527 = vpop.permute.xlu0 %1526
        %1528 = vrot.lane.b32.xlu0 %v1513, 64
        %v1529 = vpop.permute.xlu0 %1528
        %1530 = vrot.lane.b32.xlu0 %v1514, 64
        %v1531 = vpop.permute.xlu0 %1530
        %1532 = vrot.lane.b32.xlu0 %v1515, 64
        %v1533 = vpop.permute.xlu0 %1532
        %1534 = vrot.lane.b32.xlu0 %v1516, 64
        %v1535 = vpop.permute.xlu0 %1534
        %1536 = vrot.lane.b32.xlu0 %v1517, 64
        %v1537 = vpop.permute.xlu0 %1536
        %1538 = vrot.lane.b32.xlu0 %v1518, 64
        %v1539 = vpop.permute.xlu0 %1538
        %1540 = vrot.lane.b32.xlu0 %v1519, 64
        %v1541 = vpop.permute.xlu0 %1540
        %1542 = vrot.lane.b32.xlu0 %v1520, 64
        %v1543 = vpop.permute.xlu0 %1542
        %1544 = vrot.lane.b32.xlu0 %v1521, 64
        %v1545 = vpop.permute.xlu0 %1544
        %v1546 = vadd.f32 %v1510, %v1523
        %v1547 = vadd.f32 %v1511, %v1525
        %v1548 = vadd.f32 %v1512, %v1527
        %v1549 = vadd.f32 %v1513, %v1529
        %v1550 = vadd.f32 %v1514, %v1531
        %v1551 = vadd.f32 %v1515, %v1533
        %v1552 = vadd.f32 %v1516, %v1535
        %v1553 = vadd.f32 %v1517, %v1537
        %v1554 = vadd.f32 %v1518, %v1539
        %v1555 = vadd.f32 %v1519, %v1541
        %v1556 = vadd.f32 %v1520, %v1543
        %v1557 = vadd.f32 %v1521, %v1545
        %v1558 = vmax.f32 %v1546, 1e-08
        %v1559 = vmax.f32 %v1547, 1e-08
        %v1560 = vmax.f32 %v1548, 1e-08
        %v1561 = vmax.f32 %v1549, 1e-08
        %v1562 = vmax.f32 %v1550, 1e-08
        %v1563 = vmax.f32 %v1551, 1e-08
        %v1564 = vmax.f32 %v1552, 1e-08
        %v1565 = vmax.f32 %v1553, 1e-08
        %v1566 = vmax.f32 %v1554, 1e-08
        %v1567 = vmax.f32 %v1555, 1e-08
        %v1568 = vmax.f32 %v1556, 1e-08
        %v1569 = vmax.f32 %v1557, 1e-08
        %v1570 = vrsqrt.pop %v1558
        %v1571 = vmul.f32 %v1570, %v1558
        %v1572 = vmul.f32 %v1571, %v1570
        %v1573 = vmul.f32 0.5, %v1572
        %v1574 = vsub.f32 1.5, %v1573
        %v1575 = vmul.f32 %v1570, %v1574
        %v1576 = vmul.f32 %v1558, %v1575
        %vm1577 = vcmp.eq.f32.partialorder %v1558, inf
        %v1578 = vsel %vm1577, %v1558, %v1576
        %vm1579 = vcmp.eq.f32.partialorder %v1558, 0.0
        %v1580 = vand.u32 %v1558, 2147483648
        %v1581 = vsel %vm1579, %v1580, %v1578
        %v1582 = vrsqrt.pop %v1559
        %v1583 = vmul.f32 %v1582, %v1559
        %v1584 = vmul.f32 %v1583, %v1582
        %v1585 = vmul.f32 0.5, %v1584
        %v1586 = vsub.f32 1.5, %v1585
        %v1587 = vmul.f32 %v1582, %v1586
        %v1588 = vmul.f32 %v1559, %v1587
        %vm1589 = vcmp.eq.f32.partialorder %v1559, inf
        %v1590 = vsel %vm1589, %v1559, %v1588
        %vm1591 = vcmp.eq.f32.partialorder %v1559, 0.0
        %v1592 = vand.u32 %v1559, 2147483648
        %v1593 = vsel %vm1591, %v1592, %v1590
        %v1594 = vrsqrt.pop %v1560
        %v1595 = vmul.f32 %v1594, %v1560
        %v1596 = vmul.f32 %v1595, %v1594
        %v1597 = vmul.f32 0.5, %v1596
        %v1598 = vsub.f32 1.5, %v1597
        %v1599 = vmul.f32 %v1594, %v1598
        %v1600 = vmul.f32 %v1560, %v1599
        %vm1601 = vcmp.eq.f32.partialorder %v1560, inf
        %v1602 = vsel %vm1601, %v1560, %v1600
        %vm1603 = vcmp.eq.f32.partialorder %v1560, 0.0
        %v1604 = vand.u32 %v1560, 2147483648
        %v1605 = vsel %vm1603, %v1604, %v1602
        %v1606 = vrsqrt.pop %v1561
        %v1607 = vmul.f32 %v1606, %v1561
        %v1608 = vmul.f32 %v1607, %v1606
        %v1609 = vmul.f32 0.5, %v1608
        %v1610 = vsub.f32 1.5, %v1609
        %v1611 = vmul.f32 %v1606, %v1610
        %v1612 = vmul.f32 %v1561, %v1611
        %vm1613 = vcmp.eq.f32.partialorder %v1561, inf
        %v1614 = vsel %vm1613, %v1561, %v1612
        %vm1615 = vcmp.eq.f32.partialorder %v1561, 0.0
        %v1616 = vand.u32 %v1561, 2147483648
        %v1617 = vsel %vm1615, %v1616, %v1614
        %v1618 = vrsqrt.pop %v1562
        %v1619 = vmul.f32 %v1618, %v1562
        %v1620 = vmul.f32 %v1619, %v1618
        %v1621 = vmul.f32 0.5, %v1620
        %v1622 = vsub.f32 1.5, %v1621
        %v1623 = vmul.f32 %v1618, %v1622
        %v1624 = vmul.f32 %v1562, %v1623
        %vm1625 = vcmp.eq.f32.partialorder %v1562, inf
        %v1626 = vsel %vm1625, %v1562, %v1624
        %vm1627 = vcmp.eq.f32.partialorder %v1562, 0.0
        %v1628 = vand.u32 %v1562, 2147483648
        %v1629 = vsel %vm1627, %v1628, %v1626
        %v1630 = vrsqrt.pop %v1563
        %v1631 = vmul.f32 %v1630, %v1563
        %v1632 = vmul.f32 %v1631, %v1630
        %v1633 = vmul.f32 0.5, %v1632
        %v1634 = vsub.f32 1.5, %v1633
        %v1635 = vmul.f32 %v1630, %v1634
        %v1636 = vmul.f32 %v1563, %v1635
        %vm1637 = vcmp.eq.f32.partialorder %v1563, inf
        %v1638 = vsel %vm1637, %v1563, %v1636
        %vm1639 = vcmp.eq.f32.partialorder %v1563, 0.0
        %v1640 = vand.u32 %v1563, 2147483648
        %v1641 = vsel %vm1639, %v1640, %v1638
        %v1642 = vrsqrt.pop %v1564
        %v1643 = vmul.f32 %v1642, %v1564
        %v1644 = vmul.f32 %v1643, %v1642
        %v1645 = vmul.f32 0.5, %v1644
        %v1646 = vsub.f32 1.5, %v1645
        %v1647 = vmul.f32 %v1642, %v1646
        %v1648 = vmul.f32 %v1564, %v1647
        %vm1649 = vcmp.eq.f32.partialorder %v1564, inf
        %v1650 = vsel %vm1649, %v1564, %v1648
        %vm1651 = vcmp.eq.f32.partialorder %v1564, 0.0
        %v1652 = vand.u32 %v1564, 2147483648
        %v1653 = vsel %vm1651, %v1652, %v1650
        %v1654 = vrsqrt.pop %v1565
        %v1655 = vmul.f32 %v1654, %v1565
        %v1656 = vmul.f32 %v1655, %v1654
        %v1657 = vmul.f32 0.5, %v1656
        %v1658 = vsub.f32 1.5, %v1657
        %v1659 = vmul.f32 %v1654, %v1658
        %v1660 = vmul.f32 %v1565, %v1659
        %vm1661 = vcmp.eq.f32.partialorder %v1565, inf
        %v1662 = vsel %vm1661, %v1565, %v1660
        %vm1663 = vcmp.eq.f32.partialorder %v1565, 0.0
        %v1664 = vand.u32 %v1565, 2147483648
        %v1665 = vsel %vm1663, %v1664, %v1662
        %v1666 = vrsqrt.pop %v1566
        %v1667 = vmul.f32 %v1666, %v1566
        %v1668 = vmul.f32 %v1667, %v1666
        %v1669 = vmul.f32 0.5, %v1668
        %v1670 = vsub.f32 1.5, %v1669
        %v1671 = vmul.f32 %v1666, %v1670
        %v1672 = vmul.f32 %v1566, %v1671
        %vm1673 = vcmp.eq.f32.partialorder %v1566, inf
        %v1674 = vsel %vm1673, %v1566, %v1672
        %vm1675 = vcmp.eq.f32.partialorder %v1566, 0.0
        %v1676 = vand.u32 %v1566, 2147483648
        %v1677 = vsel %vm1675, %v1676, %v1674
        %v1678 = vrsqrt.pop %v1567
        %v1679 = vmul.f32 %v1678, %v1567
        %v1680 = vmul.f32 %v1679, %v1678
        %v1681 = vmul.f32 0.5, %v1680
        %v1682 = vsub.f32 1.5, %v1681
        %v1683 = vmul.f32 %v1678, %v1682
        %v1684 = vmul.f32 %v1567, %v1683
        %vm1685 = vcmp.eq.f32.partialorder %v1567, inf
        %v1686 = vsel %vm1685, %v1567, %v1684
        %vm1687 = vcmp.eq.f32.partialorder %v1567, 0.0
        %v1688 = vand.u32 %v1567, 2147483648
        %v1689 = vsel %vm1687, %v1688, %v1686
        %v1690 = vrsqrt.pop %v1568
        %v1691 = vmul.f32 %v1690, %v1568
        %v1692 = vmul.f32 %v1691, %v1690
        %v1693 = vmul.f32 0.5, %v1692
        %v1694 = vsub.f32 1.5, %v1693
        %v1695 = vmul.f32 %v1690, %v1694
        %v1696 = vmul.f32 %v1568, %v1695
        %vm1697 = vcmp.eq.f32.partialorder %v1568, inf
        %v1698 = vsel %vm1697, %v1568, %v1696
        %vm1699 = vcmp.eq.f32.partialorder %v1568, 0.0
        %v1700 = vand.u32 %v1568, 2147483648
        %v1701 = vsel %vm1699, %v1700, %v1698
        %v1702 = vrsqrt.pop %v1569
        %v1703 = vmul.f32 %v1702, %v1569
        %v1704 = vmul.f32 %v1703, %v1702
        %v1705 = vmul.f32 0.5, %v1704
        %v1706 = vsub.f32 1.5, %v1705
        %v1707 = vmul.f32 %v1702, %v1706
        %v1708 = vmul.f32 %v1569, %v1707
        %vm1709 = vcmp.eq.f32.partialorder %v1569, inf
        %v1710 = vsel %vm1709, %v1569, %v1708
        %vm1711 = vcmp.eq.f32.partialorder %v1569, 0.0
        %v1712 = vand.u32 %v1569, 2147483648
        %v1713 = vsel %vm1711, %v1712, %v1710
        %v1714 = vsub.f32 %v1498, %v1581
        %v1715 = vsub.f32 %v1499, %v1593
        %v1716 = vsub.f32 %v1500, %v1605
        %v1717 = vsub.f32 %v1501, %v1617
        %v1718 = vsub.f32 %v1502, %v1629
        %v1719 = vsub.f32 %v1503, %v1641
        %v1720 = vsub.f32 %v1504, %v1653
        %v1721 = vsub.f32 %v1505, %v1665
        %v1722 = vsub.f32 %v1506, %v1677
        %v1723 = vsub.f32 %v1507, %v1689
        %v1724 = vsub.f32 %v1508, %v1701
        %v1725 = vsub.f32 %v1509, %v1713
        %p1726 = scmp.ne.s32.totalorder %s13, 1
        // Predicated region
        $region52: #{multi_resolution_stft_loss.4} parent=46 // pred_check
          %p1727 = pneg %p1726
        $region53: #{multi_resolution_stft_loss.4} parent=46 // pred_check_branch
          %1729 = sbr.rel (%p1727) target = $region55
        $region54: #{multi_resolution_stft_loss.4} parent=46 // pred_region
          %v1730 = vmul.f32 %v1714, %v1714
          %v1731 = vmul.f32 %v1715, %v1715
          %v1732 = vmul.f32 %v1716, %v1716
          %v1733 = vmul.f32 %v1717, %v1717
          %v1734 = vmul.f32 %v1718, %v1718
          %v1735 = vmul.f32 %v1719, %v1719
          %v1736 = vmul.f32 %v1720, %v1720
          %v1737 = vmul.f32 %v1721, %v1721
          %v1738 = vmul.f32 %v1722, %v1722
          %v1739 = vmul.f32 %v1723, %v1723
          %v1740 = vmul.f32 %v1724, %v1724
          %v1741 = vmul.f32 %v1725, %v1725
          %v1742 = vadd.f32 %v1730, %v1731
          %v1743 = vadd.f32 %v1742, %v1732
          %v1744 = vadd.f32 %v1743, %v1733
          %v1745 = vadd.f32 %v1744, %v1734
          %v1746 = vadd.f32 %v1745, %v1735
          %v1747 = vadd.f32 %v1746, %v1736
          %v1748 = vadd.f32 %v1747, %v1737
          %v1749 = vadd.f32 %v1748, %v1738
          %v1750 = vadd.f32 %v1749, %v1739
          %v1751 = vadd.f32 %v1750, %v1740
          %v1752 = vadd.f32 %v1751, %v1741
          %1753 = vadd.xlane.f32.xlu0 %v1752
          %v1754 = vpop.xlane.xlu0 %1753
          %v1755 = vrot.slane %v1754, 4
          %v1756 = vadd.f32 %v1754, %v1755
          %v1757 = vrot.slane %v1756, 2
          %v1758 = vadd.f32 %v1756, %v1757
          %v1759 = vrot.slane %v1758, 1
          %v1760 = vadd.f32 %v1758, %v1759
          %s1761 = vtos %v1760
          %v1762 = vstv %s1761
          %1763 = vst [vmem:[%s257] sm:$0xff] %v1762
        $region55: #{multi_resolution_stft_loss.4} parent=46 // pred_fallthru
          _
        %p1764 = scmp.eq.s32.totalorder %s13, 1
        // Predicated region
        $region56: #{multi_resolution_stft_loss.4} parent=46 // pred_check
          %p1765 = pneg %p1764
        $region57: #{multi_resolution_stft_loss.4} parent=46 // pred_check_branch
          %1767 = sbr.rel (%p1765) target = $region59
        $region58: #{multi_resolution_stft_loss.4} parent=46 // pred_region
          %v1768 = vlaneseq
          %v1769 = vshrl.u32 %v1768, 7
          %v1770 = vadd.s32 %v1769, 8
          %v1771 = vadd.s32 %v1769, 16
          %v1772 = vadd.s32 %v1769, 24
          %v1773 = vadd.s32 %v1769, 32
          %v1774 = vadd.s32 %v1769, 40
          %v1775 = vadd.s32 %v1769, 48
          %v1776 = vadd.s32 %v1769, 56
          %v1777 = vadd.s32 %v1769, 64
          %v1778 = vadd.s32 %v1769, 72
          %v1779 = vadd.s32 %v1769, 80
          %v1780 = vadd.s32 %v1769, 88
          %vm1781 = vcmp.lt.s32.totalorder %v1769, 68
          %vm1782 = vcmp.lt.s32.totalorder %v1770, 68
          %vm1783 = vcmp.lt.s32.totalorder %v1771, 68
          %vm1784 = vcmp.lt.s32.totalorder %v1772, 68
          %vm1785 = vcmp.lt.s32.totalorder %v1773, 68
          %vm1786 = vcmp.lt.s32.totalorder %v1774, 68
          %vm1787 = vcmp.lt.s32.totalorder %v1775, 68
          %vm1788 = vcmp.lt.s32.totalorder %v1776, 68
          %vm1789 = vcmp.lt.s32.totalorder %v1777, 68
          %vm1790 = vcmp.lt.s32.totalorder %v1778, 68
          %vm1791 = vcmp.lt.s32.totalorder %v1779, 68
          %vm1792 = vcmp.lt.s32.totalorder %v1780, 68
          %v1793 = vsel %vm1781, %v1714, 0.0
          %v1794 = vsel %vm1782, %v1715, 0.0
          %v1795 = vsel %vm1783, %v1716, 0.0
          %v1796 = vsel %vm1784, %v1717, 0.0
          %v1797 = vsel %vm1785, %v1718, 0.0
          %v1798 = vsel %vm1786, %v1719, 0.0
          %v1799 = vsel %vm1787, %v1720, 0.0
          %v1800 = vsel %vm1788, %v1721, 0.0
          %v1801 = vsel %vm1789, %v1722, 0.0
          %v1802 = vsel %vm1790, %v1723, 0.0
          %v1803 = vsel %vm1791, %v1724, 0.0
          %v1804 = vsel %vm1792, %v1725, 0.0
          %v1805 = vmul.f32 %v1793, %v1793
          %v1806 = vmul.f32 %v1794, %v1794
          %v1807 = vmul.f32 %v1795, %v1795
          %v1808 = vmul.f32 %v1796, %v1796
          %v1809 = vmul.f32 %v1797, %v1797
          %v1810 = vmul.f32 %v1798, %v1798
          %v1811 = vmul.f32 %v1799, %v1799
          %v1812 = vmul.f32 %v1800, %v1800
          %v1813 = vmul.f32 %v1801, %v1801
          %v1814 = vmul.f32 %v1802, %v1802
          %v1815 = vmul.f32 %v1803, %v1803
          %v1816 = vmul.f32 %v1804, %v1804
          %v1817 = vadd.f32 %v1805, %v1806
          %v1818 = vadd.f32 %v1817, %v1807
          %v1819 = vadd.f32 %v1818, %v1808
          %v1820 = vadd.f32 %v1819, %v1809
          %v1821 = vadd.f32 %v1820, %v1810
          %v1822 = vadd.f32 %v1821, %v1811
          %v1823 = vadd.f32 %v1822, %v1812
          %v1824 = vadd.f32 %v1823, %v1813
          %v1825 = vadd.f32 %v1824, %v1814
          %v1826 = vadd.f32 %v1825, %v1815
          %v1827 = vadd.f32 %v1826, %v1816
          %1828 = vadd.xlane.f32.xlu0 %v1827
          %v1829 = vpop.xlane.xlu0 %1828
          %v1830 = vrot.slane %v1829, 4
          %v1831 = vadd.f32 %v1829, %v1830
          %v1832 = vrot.slane %v1831, 2
          %v1833 = vadd.f32 %v1831, %v1832
          %v1834 = vrot.slane %v1833, 1
          %v1835 = vadd.f32 %v1833, %v1834
          %s1836 = vtos %v1835
          %v1837 = vstv %s1836
          %1838 = vst [vmem:[%s257] sm:$0xff] %v1837
        $region59: #{multi_resolution_stft_loss.4} parent=46 // pred_fallthru
          _
        %p1839 = scmp.lt.s32.totalorder %s13, 1
        %s1840 = scalar_select %p1839, %s13, 1
        %s1841 = smul.addr %s1840, 8
        %s1842 = scalar_lea.vmem %s2, %s1841
        // Predicated region
        $region60: #{multi_resolution_stft_loss.4} parent=46 // pred_check
          %p1843 = pneg %p78
        $region61: #{multi_resolution_stft_loss.4} parent=46 // pred_check_branch
          %1845 = sbr.rel (%p1843) target = $region63
        $region62: #{multi_resolution_stft_loss.4} parent=46 // pred_region
          _
        $region63: #{multi_resolution_stft_loss.4} parent=46 // pred_fallthru
          _
      $region47: #{multi_resolution_stft_loss.4} parent=5 // pred_fallthru
        _
      %p1846 = scmp.le.s32.totalorder 2, %s8
      // Predicated region
      $region64: #{multi_resolution_stft_loss.4} parent=5 // pred_check
        %p1847 = pneg %p1846
      $region65: #{multi_resolution_stft_loss.4} parent=5 // pred_check_branch
        %1849 = sbr.rel (%p1847) target = $region67
      $region66: #{multi_resolution_stft_loss.4} parent=5 // pred_region
        %s1850 = ssub.s32 %s8, 2
        // Predicated region
        $region68: #{multi_resolution_stft_loss.4} parent=66 // pred_check
          %p1851 = pneg %p84
        $region69: #{multi_resolution_stft_loss.4} parent=66 // pred_check_branch
          %1853 = sbr.rel (%p1851) target = $region71
        $region70: #{multi_resolution_stft_loss.4} parent=66 // pred_region
          %p1854 = scmp.lt.s32.totalorder %s14, 1
          %s1855 = scalar_select %p1854, %s14, 1
          %s1856 = smul.addr %s1855, 8
          %s1857 = scalar_lea.vmem %s2, %s1856
        $region71: #{multi_resolution_stft_loss.4} parent=66 // pred_fallthru
          _
      $region67: #{multi_resolution_stft_loss.4} parent=5 // pred_fallthru
        _
    $region6: #{multi_resolution_stft_loss.4} parent=1 // loop_footer
      %s12 = sadd.s32 1, %s8
    $region7: #{multi_resolution_stft_loss.4} parent=1 // loop_footer_branch
      %7 = sbr.rel target = $region3
    $region8: #{multi_resolution_stft_loss.4} parent=1 // loop_exit
      _

// kernel: multi_resolution_stft_loss.3
$region0: #{multi_resolution_stft_loss.3}
  #allocation0 [shape = 'u32[]', space=smem, size = 0x4, offset = 0x4, fixed_abs, tag = 'smem constant byte address 0x4 - core index']
  #allocation1 [shape = 'u32[72,128]{1,0:T(1,128)}', space=vmem, size = 0x9000, scoped, tag = 'internal scratch']
  %s0 = inlined_call_operand.vmem [shape: bf16[2,96,1024], index: 0, kind: input, shape index: {}]
  %s1 = inlined_call_operand.vmem [shape: bf16[1024,256], index: 1, kind: input, shape index: {}]
  %s2 = inlined_call_operand.vmem [shape: f32[2,8,128], index: 2, kind: output, shape index: {}]
  %s3 = sld [smem:[#allocation0]]
  $region72: #{multi_resolution_stft_loss.3} parent=0
    _
  %s5 = ssub.s32 1, %s3
  %s6 = scalar_select 0, %s5, %s3
  $region1: #{multi_resolution_stft_loss.3} parent=0
    #allocation2 [shape = 'u8[393216]{0}', space=vmem, size = 0x60000, scoped, tag = 'input window, operand 0']
    loop: start=0, step=1, limit=4
    $region2: #{multi_resolution_stft_loss.3} parent=1 // loop_pre_header
      _
    $region3: #{multi_resolution_stft_loss.3} parent=1 // loop_header
      %s8 = sphi 0, %s12
      %p9 = scmp.ge.s32.totalorder %s8, 4
      %s18 = sphi 0, %s20
      %s21 = sphi 0, %s18
      %s22 = sphi 0, %s21
      %s38 = sphi 0, %s22
      %s42 = sphi 0, %s42
      %s44 = sphi 0, %s42
      %s45 = sphi 0, %s44
      %s59 = sphi 0, %s45
      %s65 = sphi 0, %s67
      %s68 = sphi 0, %s65
      %s69 = sphi 0, %s68
      %s85 = sphi 0, %s69
    $region4: #{multi_resolution_stft_loss.3} parent=1 // loop_header_branch
      %11 = sbr.rel (%p9) target = $region8
    $region5: #{multi_resolution_stft_loss.3} parent=1 // loop_body
      %s13 = ssub.s32 %s8, 1
      %s14 = ssub.s32 %s8, 2
      %s15 = sadd.s32 %s8, 1
      %s16 = ssub.s32 %s8, %s15
      %p17 = scmp.eq.s32.totalorder %s16, 0
      %s19 = sadd.s32 %s18, 1
      %s20 = scalar_select %p17, %s18, %s19
      %p23 = pneg %p17
      %p24 = scmp.eq.s32.totalorder %s8, 1
      %p25 = por %p23, %p24
      %p26 = scmp.ne.s32.totalorder %s18, %s21
      %p27 = scmp.eq.s32.totalorder %s8, 0
      %p28 = por %p26, %p27
      %p29 = scmp.ne.s32.totalorder %s18, %s21
      %p30 = scmp.eq.s32.totalorder %s13, 1
      %p31 = por %p29, %p30
      %p32 = scmp.ne.s32.totalorder %s21, %s22
      %p33 = scmp.eq.s32.totalorder %s13, 0
      %p34 = por %p32, %p33
      %p35 = scmp.ne.s32.totalorder %s21, %s22
      %p36 = scmp.eq.s32.totalorder %s14, 1
      %p37 = por %p35, %p36
      %p39 = scmp.ne.s32.totalorder %s22, %s38
      %p40 = scmp.eq.s32.totalorder %s14, 0
      %p41 = por %p39, %p40
      %s43 = sadd.s32 %s42, 1
      %p46 = scmp.eq.s32.totalorder %s8, 1
      %p47 = scmp.ne.s32.totalorder %s42, %s44
      %p48 = scmp.eq.s32.totalorder %s8, 0
      %p49 = por %p47, %p48
      %p50 = scmp.ne.s32.totalorder %s42, %s44
      %p51 = scmp.eq.s32.totalorder %s13, 1
      %p52 = por %p50, %p51
      %p53 = scmp.ne.s32.totalorder %s44, %s45
      %p54 = scmp.eq.s32.totalorder %s13, 0
      %p55 = por %p53, %p54
      %p56 = scmp.ne.s32.totalorder %s44, %s45
      %p57 = scmp.eq.s32.totalorder %s14, 1
      %p58 = por %p56, %p57
      %p60 = scmp.ne.s32.totalorder %s45, %s59
      %p61 = scmp.eq.s32.totalorder %s14, 0
      %p62 = por %p60, %p61
      %s63 = ssub.s32 %s8, %s15
      %p64 = scmp.eq.s32.totalorder %s63, 0
      %s66 = sadd.s32 %s65, 1
      %s67 = scalar_select %p64, %s65, %s66
      %p70 = pneg %p64
      %p71 = scmp.eq.s32.totalorder %s8, 1
      %p72 = por %p70, %p71
      %p73 = scmp.ne.s32.totalorder %s65, %s68
      %p74 = scmp.eq.s32.totalorder %s8, 0
      %p75 = por %p73, %p74
      %p76 = scmp.ne.s32.totalorder %s65, %s68
      %p77 = scmp.eq.s32.totalorder %s13, 1
      %p78 = por %p76, %p77
      %p79 = scmp.ne.s32.totalorder %s68, %s69
      %p80 = scmp.eq.s32.totalorder %s13, 0
      %p81 = por %p79, %p80
      %p82 = scmp.ne.s32.totalorder %s68, %s69
      %p83 = scmp.eq.s32.totalorder %s14, 1
      %p84 = por %p82, %p83
      %p86 = scmp.ne.s32.totalorder %s69, %s85
      %p87 = scmp.eq.s32.totalorder %s14, 0
      %p88 = por %p86, %p87
      %p89 = scmp.le.s32.totalorder 1, %s8
      %p90 = scmp.lt.s32.totalorder %s8, 3
      %p91 = pnand %p89, %p90
      %p92 = pneg %p91
      // Predicated region
      $region9: #{multi_resolution_stft_loss.3} parent=5 // pred_check
        _
      $region10: #{multi_resolution_stft_loss.3} parent=5 // pred_check_branch
        %94 = sbr.rel (%p91) target = $region12
      $region11: #{multi_resolution_stft_loss.3} parent=5 // pred_region
        %s95 = ssub.s32 %s8, 1
        // Predicated region
        $region13: #{multi_resolution_stft_loss.3} parent=11 // pred_check
          %p96 = pneg %p55
        $region14: #{multi_resolution_stft_loss.3} parent=11 // pred_check_branch
          %98 = sbr.rel (%p96) target = $region16
        $region15: #{multi_resolution_stft_loss.3} parent=11 // pred_region
          _
        $region16: #{multi_resolution_stft_loss.3} parent=11 // pred_fallthru
          _
      $region12: #{multi_resolution_stft_loss.3} parent=5 // pred_fallthru
        _
      %p99 = scmp.lt.s32.totalorder %s8, 2
      // Predicated region
      $region17: #{multi_resolution_stft_loss.3} parent=5 // pred_check
        %p100 = pneg %p99
      $region18: #{multi_resolution_stft_loss.3} parent=5 // pred_check_branch
        %102 = sbr.rel (%p100) target = $region20
      $region19: #{multi_resolution_stft_loss.3} parent=5 // pred_region
        // Predicated region
        $region21: #{multi_resolution_stft_loss.3} parent=19 // pred_check
          %p103 = pneg %p28
        $region22: #{multi_resolution_stft_loss.3} parent=19 // pred_check_branch
          %105 = sbr.rel (%p103) target = $region24
        $region23: #{multi_resolution_stft_loss.3} parent=19 // pred_region
          %s106 = sand.u32 %s18, 1
          %s107 = sand.u32 %s18, 1
          %s108 = smul.addr %s107, 384
          %s109 = scalar_lea.vmem [#allocation2], %s108
          %s110 = smul.u32 6, %s8
          %s111 = smul.addr %s110, 8
          %s112 = smul.addr %s111, 4
          %s113 = scalar_lea.vmem %s0, %s112
          // Predicated region
          $region25: #{multi_resolution_stft_loss.3} parent=23 // pred_check
            _
          $region26: #{multi_resolution_stft_loss.3} parent=23 // pred_check_branch
            %115 = sbr.rel (0) target = $region28
          $region27: #{multi_resolution_stft_loss.3} parent=23 // pred_region
            // Predicated region
            $region29: #{multi_resolution_stft_loss.3} parent=27 // pred_check
              _
            $region30: #{multi_resolution_stft_loss.3} parent=27 // pred_check_branch
              %117 = sbr.rel (0) target = $region32
            $region31: #{multi_resolution_stft_loss.3} parent=27 // pred_region
              loop: start=0, step=1, limit=1
              $region33: #{multi_resolution_stft_loss.3} parent=31 // loop_pre_header
                _
              $region34: #{multi_resolution_stft_loss.3} parent=31 // loop_header
                %s119 = sphi 0, %s123
                %p120 = scmp.ge.s32.totalorder %s119, 1
                %s124 = sphi %s113, %s113
                %s125 = sphi %s109, %s109
              $region35: #{multi_resolution_stft_loss.3} parent=31 // loop_header_branch
                %122 = sbr.rel (%p120) target = $region39
              $region36: #{multi_resolution_stft_loss.3} parent=31 // loop_body
                %v126 = vld [vmem:[%s124] sm:$0xff]
                %127 = vst [vmem:[%s125] sm:$0xff] %v126
                %v128 = vld [vmem:[%s124 + $0x8] sm:$0xff]
                %129 = vst [vmem:[%s125 + $0x8] sm:$0xff] %v128
                %v130 = vld [vmem:[%s124 + $0x10] sm:$0xff]
                %131 = vst [vmem:[%s125 + $0x10] sm:$0xff] %v130
                %v132 = vld [vmem:[%s124 + $0x18] sm:$0xff]
                %133 = vst [vmem:[%s125 + $0x18] sm:$0xff] %v132
                %v134 = vld [vmem:[%s124 + $0x20] sm:$0xff]
                %135 = vst [vmem:[%s125 + $0x20] sm:$0xff] %v134
                %v136 = vld [vmem:[%s124 + $0x28] sm:$0xff]
                %137 = vst [vmem:[%s125 + $0x28] sm:$0xff] %v136
                %v138 = vld [vmem:[%s124 + $0x30] sm:$0xff]
                %139 = vst [vmem:[%s125 + $0x30] sm:$0xff] %v138
                %v140 = vld [vmem:[%s124 + $0x38] sm:$0xff]
                %141 = vst [vmem:[%s125 + $0x38] sm:$0xff] %v140
                %v142 = vld [vmem:[%s124 + $0x40] sm:$0xff]
                %143 = vst [vmem:[%s125 + $0x40] sm:$0xff] %v142
                %v144 = vld [vmem:[%s124 + $0x48] sm:$0xff]
                %145 = vst [vmem:[%s125 + $0x48] sm:$0xff] %v144
                %v146 = vld [vmem:[%s124 + $0x50] sm:$0xff]
                %147 = vst [vmem:[%s125 + $0x50] sm:$0xff] %v146
                %v148 = vld [vmem:[%s124 + $0x58] sm:$0xff]
                %149 = vst [vmem:[%s125 + $0x58] sm:$0xff] %v148
                %v150 = vld [vmem:[%s124 + $0x60] sm:$0xff]
                %151 = vst [vmem:[%s125 + $0x60] sm:$0xff] %v150
                %v152 = vld [vmem:[%s124 + $0x68] sm:$0xff]
                %153 = vst [vmem:[%s125 + $0x68] sm:$0xff] %v152
                %v154 = vld [vmem:[%s124 + $0x70] sm:$0xff]
                %155 = vst [vmem:[%s125 + $0x70] sm:$0xff] %v154
                %v156 = vld [vmem:[%s124 + $0x78] sm:$0xff]
                %157 = vst [vmem:[%s125 + $0x78] sm:$0xff] %v156
                %v158 = vld [vmem:[%s124 + $0x80] sm:$0xff]
                %159 = vst [vmem:[%s125 + $0x80] sm:$0xff] %v158
                %v160 = vld [vmem:[%s124 + $0x88] sm:$0xff]
                %161 = vst [vmem:[%s125 + $0x88] sm:$0xff] %v160
                %v162 = vld [vmem:[%s124 + $0x90] sm:$0xff]
                %163 = vst [vmem:[%s125 + $0x90] sm:$0xff] %v162
                %v164 = vld [vmem:[%s124 + $0x98] sm:$0xff]
                %165 = vst [vmem:[%s125 + $0x98] sm:$0xff] %v164
                %v166 = vld [vmem:[%s124 + $0xa0] sm:$0xff]
                %167 = vst [vmem:[%s125 + $0xa0] sm:$0xff] %v166
                %v168 = vld [vmem:[%s124 + $0xa8] sm:$0xff]
                %169 = vst [vmem:[%s125 + $0xa8] sm:$0xff] %v168
                %v170 = vld [vmem:[%s124 + $0xb0] sm:$0xff]
                %171 = vst [vmem:[%s125 + $0xb0] sm:$0xff] %v170
                %v172 = vld [vmem:[%s124 + $0xb8] sm:$0xff]
                %173 = vst [vmem:[%s125 + $0xb8] sm:$0xff] %v172
                %v174 = vld [vmem:[%s124 + $0x180] sm:$0xff]
                %175 = vst [vmem:[%s125 + $0xc0] sm:$0xff] %v174
                %v176 = vld [vmem:[%s124 + $0x188] sm:$0xff]
                %177 = vst [vmem:[%s125 + $0xc8] sm:$0xff] %v176
                %v178 = vld [vmem:[%s124 + $0x190] sm:$0xff]
                %179 = vst [vmem:[%s125 + $0xd0] sm:$0xff] %v178
                %v180 = vld [vmem:[%s124 + $0x198] sm:$0xff]
                %181 = vst [vmem:[%s125 + $0xd8] sm:$0xff] %v180
                %v182 = vld [vmem:[%s124 + $0x1a0] sm:$0xff]
                %183 = vst [vmem:[%s125 + $0xe0] sm:$0xff] %v182
                %v184 = vld [vmem:[%s124 + $0x1a8] sm:$0xff]
                %185 = vst [vmem:[%s125 + $0xe8] sm:$0xff] %v184
                %v186 = vld [vmem:[%s124 + $0x1b0] sm:$0xff]
                %187 = vst [vmem:[%s125 + $0xf0] sm:$0xff] %v186
                %v188 = vld [vmem:[%s124 + $0x1b8] sm:$0xff]
                %189 = vst [vmem:[%s125 + $0xf8] sm:$0xff] %v188
                %v190 = vld [vmem:[%s124 + $0x1c0] sm:$0xff]
                %191 = vst [vmem:[%s125 + $0x100] sm:$0xff] %v190
                %v192 = vld [vmem:[%s124 + $0x1c8] sm:$0xff]
                %193 = vst [vmem:[%s125 + $0x108] sm:$0xff] %v192
                %v194 = vld [vmem:[%s124 + $0x1d0] sm:$0xff]
                %195 = vst [vmem:[%s125 + $0x110] sm:$0xff] %v194
                %v196 = vld [vmem:[%s124 + $0x1d8] sm:$0xff]
                %197 = vst [vmem:[%s125 + $0x118] sm:$0xff] %v196
                %v198 = vld [vmem:[%s124 + $0x1e0] sm:$0xff]
                %199 = vst [vmem:[%s125 + $0x120] sm:$0xff] %v198
                %v200 = vld [vmem:[%s124 + $0x1e8] sm:$0xff]
                %201 = vst [vmem:[%s125 + $0x128] sm:$0xff] %v200
                %v202 = vld [vmem:[%s124 + $0x1f0] sm:$0xff]
                %203 = vst [vmem:[%s125 + $0x130] sm:$0xff] %v202
                %v204 = vld [vmem:[%s124 + $0x1f8] sm:$0xff]
                %205 = vst [vmem:[%s125 + $0x138] sm:$0xff] %v204
                %v206 = vld [vmem:[%s124 + $0x200] sm:$0xff]
                %207 = vst [vmem:[%s125 + $0x140] sm:$0xff] %v206
                %v208 = vld [vmem:[%s124 + $0x208] sm:$0xff]
                %209 = vst [vmem:[%s125 + $0x148] sm:$0xff] %v208
                %v210 = vld [vmem:[%s124 + $0x210] sm:$0xff]
                %211 = vst [vmem:[%s125 + $0x150] sm:$0xff] %v210
                %v212 = vld [vmem:[%s124 + $0x218] sm:$0xff]
                %213 = vst [vmem:[%s125 + $0x158] sm:$0xff] %v212
                %v214 = vld [vmem:[%s124 + $0x220] sm:$0xff]
                %215 = vst [vmem:[%s125 + $0x160] sm:$0xff] %v214
                %v216 = vld [vmem:[%s124 + $0x228] sm:$0xff]
                %217 = vst [vmem:[%s125 + $0x168] sm:$0xff] %v216
                %v218 = vld [vmem:[%s124 + $0x230] sm:$0xff]
                %219 = vst [vmem:[%s125 + $0x170] sm:$0xff] %v218
                %v220 = vld [vmem:[%s124 + $0x238] sm:$0xff]
                %221 = vst [vmem:[%s125 + $0x178] sm:$0xff] %v220
              $region37: #{multi_resolution_stft_loss.3} parent=31 // loop_footer
                %s123 = sadd.s32 1, %s119
              $region38: #{multi_resolution_stft_loss.3} parent=31 // loop_footer_branch
                %118 = sbr.rel target = $region34
              $region39: #{multi_resolution_stft_loss.3} parent=31 // loop_exit
                _
            $region32: #{multi_resolution_stft_loss.3} parent=27 // pred_fallthru
              _
            // Predicated region
            $region40: #{multi_resolution_stft_loss.3} parent=27 // pred_check
              _
            $region41: #{multi_resolution_stft_loss.3} parent=27 // pred_check_branch
              %223 = sbr.rel target = $region43
            $region42: #{multi_resolution_stft_loss.3} parent=27 // pred_region
              _
            $region43: #{multi_resolution_stft_loss.3} parent=27 // pred_fallthru
              _
          $region28: #{multi_resolution_stft_loss.3} parent=23 // pred_fallthru
            _
          %224 = vnop
        $region24: #{multi_resolution_stft_loss.3} parent=19 // pred_fallthru
          _
      $region20: #{multi_resolution_stft_loss.3} parent=5 // pred_fallthru
        _
      %p225 = scmp.le.s32.totalorder 1, %s8
      %p226 = scmp.lt.s32.totalorder %s8, 3
      %p227 = pnand %p225, %p226
      %p228 = pneg %p227
      // Predicated region
      $region44: #{multi_resolution_stft_loss.3} parent=5 // pred_check
        _
      $region45: #{multi_resolution_stft_loss.3} parent=5 // pred_check_branch
        %230 = sbr.rel (%p227) target = $region47
      $region46: #{multi_resolution_stft_loss.3} parent=5 // pred_region
        %s231 = ssub.s32 %s8, 1
        %s232 = sand.u32 %s21, 1
        %s233 = sand.u32 %s21, 1
        %s234 = smul.addr %s233, 384
        %s235 = scalar_lea.vmem [#allocation2], %s234
        // Predicated region
        $region48: #{multi_resolution_stft_loss.3} parent=46 // pred_check
          %p236 = pneg %p34
        $region49: #{multi_resolution_stft_loss.3} parent=46 // pred_check_branch
          %238 = sbr.rel (%p236) target = $region51
        $region50: #{multi_resolution_stft_loss.3} parent=46 // pred_region
          _
        $region51: #{multi_resolution_stft_loss.3} parent=46 // pred_fallthru
          _
        %s239 = sand.u32 %s21, 1
        %s240 = sand.u32 %s21, 1
        %s241 = smul.addr %s240, 384
        %s242 = scalar_lea.vmem [#allocation2], %s241
        %p243 = pneg %p34
        %p244 = pneg %p31
        %p245 = pneg %p55
        %p246 = pneg %p52
        %p247 = pneg %p81
        %p248 = pneg %p78
        %p249 = scmp.lt.s32.totalorder %s13, 1
        %s250 = scalar_select %p249, %s13, 1
        %s251 = smul.addr %s250, 8
        %s252 = scalar_lea.vmem %s2, %s251
        %s253 = smul.u32 6, %s13
        %p254 = scmp.lt.s32.totalorder %s13, 1
        %s255 = scalar_select %p254, %s13, 1
        %s256 = smul.addr %s255, 8
        %s257 = scalar_lea.vmem %s2, %s256
        %v258 = vld [vmem:[%s235] sm:$0xff]
        %v259 = vld [vmem:[%s235 + $0x8] sm:$0xff]
        %v260 = vld [vmem:[%s235 + $0x10] sm:$0xff]
        %v261 = vld [vmem:[%s235 + $0x18] sm:$0xff]
        %v262 = vld [vmem:[%s235 + $0x20] sm:$0xff]
        %v263 = vld [vmem:[%s235 + $0x28] sm:$0xff]
        %v264 = vld [vmem:[%s235 + $0x30] sm:$0xff]
        %v265 = vld [vmem:[%s235 + $0x38] sm:$0xff]
        %v266 = vld [vmem:[%s235 + $0x40] sm:$0xff]
        %v267 = vld [vmem:[%s235 + $0x48] sm:$0xff]
        %v268 = vld [vmem:[%s235 + $0x50] sm:$0xff]
        %v269 = vld [vmem:[%s235 + $0x58] sm:$0xff]
        %v270 = vld [vmem:[%s235 + $0x60] sm:$0xff]
        %v271 = vld [vmem:[%s235 + $0x68] sm:$0xff]
        %v272 = vld [vmem:[%s235 + $0x70] sm:$0xff]
        %v273 = vld [vmem:[%s235 + $0x78] sm:$0xff]
        %v274 = vld [vmem:[%s235 + $0x80] sm:$0xff]
        %v275 = vld [vmem:[%s235 + $0x88] sm:$0xff]
        %v276 = vld [vmem:[%s235 + $0x90] sm:$0xff]
        %v277 = vld [vmem:[%s235 + $0x98] sm:$0xff]
        %v278 = vld [vmem:[%s235 + $0xa0] sm:$0xff]
        %v279 = vld [vmem:[%s235 + $0xa8] sm:$0xff]
        %v280 = vld [vmem:[%s235 + $0xb0] sm:$0xff]
        %v281 = vld [vmem:[%s235 + $0xb8] sm:$0xff]
        %v282 = vld [vmem:[%s235 + $0xc0] sm:$0xff]
        %v283 = vld [vmem:[%s235 + $0xc8] sm:$0xff]
        %v284 = vld [vmem:[%s235 + $0xd0] sm:$0xff]
        %v285 = vld [vmem:[%s235 + $0xd8] sm:$0xff]
        %v286 = vld [vmem:[%s235 + $0xe0] sm:$0xff]
        %v287 = vld [vmem:[%s235 + $0xe8] sm:$0xff]
        %v288 = vld [vmem:[%s235 + $0xf0] sm:$0xff]
        %v289 = vld [vmem:[%s235 + $0xf8] sm:$0xff]
        %v290 = vld [vmem:[%s235 + $0x100] sm:$0xff]
        %v291 = vld [vmem:[%s235 + $0x108] sm:$0xff]
        %v292 = vld [vmem:[%s235 + $0x110] sm:$0xff]
        %v293 = vld [vmem:[%s235 + $0x118] sm:$0xff]
        %v294 = vld [vmem:[%s235 + $0x120] sm:$0xff]
        %v295 = vld [vmem:[%s235 + $0x128] sm:$0xff]
        %v296 = vld [vmem:[%s235 + $0x130] sm:$0xff]
        %v297 = vld [vmem:[%s235 + $0x138] sm:$0xff]
        %v298 = vld [vmem:[%s235 + $0x140] sm:$0xff]
        %v299 = vld [vmem:[%s235 + $0x148] sm:$0xff]
        %v300 = vld [vmem:[%s235 + $0x150] sm:$0xff]
        %v301 = vld [vmem:[%s235 + $0x158] sm:$0xff]
        %v302 = vld [vmem:[%s235 + $0x160] sm:$0xff]
        %v303 = vld [vmem:[%s235 + $0x168] sm:$0xff]
        %v304 = vld [vmem:[%s235 + $0x170] sm:$0xff]
        %v305 = vld [vmem:[%s235 + $0x178] sm:$0xff]
        %v306 = vld [vmem:[%s1] sm:$0xff]
        %v307 = vld [vmem:[%s1 + $0x8] sm:$0xff]
        %v308 = vld [vmem:[%s1 + $0x10] sm:$0xff]
        %v309 = vld [vmem:[%s1 + $0x18] sm:$0xff]
        %v310 = vld [vmem:[%s1 + $0x20] sm:$0xff]
        %v311 = vld [vmem:[%s1 + $0x28] sm:$0xff]
        %v312 = vld [vmem:[%s1 + $0x30] sm:$0xff]
        %v313 = vld [vmem:[%s1 + $0x38] sm:$0xff]
        %v314 = vld [vmem:[%s1 + $0x40] sm:$0xff]
        %v315 = vld [vmem:[%s1 + $0x48] sm:$0xff]
        %v316 = vld [vmem:[%s1 + $0x50] sm:$0xff]
        %v317 = vld [vmem:[%s1 + $0x58] sm:$0xff]
        %v318 = vld [vmem:[%s1 + $0x60] sm:$0xff]
        %v319 = vld [vmem:[%s1 + $0x68] sm:$0xff]
        %v320 = vld [vmem:[%s1 + $0x70] sm:$0xff]
        %v321 = vld [vmem:[%s1 + $0x78] sm:$0xff]
        %v322 = vld [vmem:[%s1 + $0x80] sm:$0xff]
        %v323 = vld [vmem:[%s1 + $0x88] sm:$0xff]
        %v324 = vld [vmem:[%s1 + $0x90] sm:$0xff]
        %v325 = vld [vmem:[%s1 + $0x98] sm:$0xff]
        %v326 = vld [vmem:[%s1 + $0xa0] sm:$0xff]
        %v327 = vld [vmem:[%s1 + $0xa8] sm:$0xff]
        %v328 = vld [vmem:[%s1 + $0xb0] sm:$0xff]
        %v329 = vld [vmem:[%s1 + $0xb8] sm:$0xff]
        %v330 = vld [vmem:[%s1 + $0xc0] sm:$0xff]
        %v331 = vld [vmem:[%s1 + $0xc8] sm:$0xff]
        %v332 = vld [vmem:[%s1 + $0xd0] sm:$0xff]
        %v333 = vld [vmem:[%s1 + $0xd8] sm:$0xff]
        %v334 = vld [vmem:[%s1 + $0xe0] sm:$0xff]
        %v335 = vld [vmem:[%s1 + $0xe8] sm:$0xff]
        %v336 = vld [vmem:[%s1 + $0xf0] sm:$0xff]
        %v337 = vld [vmem:[%s1 + $0xf8] sm:$0xff]
        %v338 = vld [vmem:[%s1 + $0x100] sm:$0xff]
        %v339 = vld [vmem:[%s1 + $0x108] sm:$0xff]
        %v340 = vld [vmem:[%s1 + $0x110] sm:$0xff]
        %v341 = vld [vmem:[%s1 + $0x118] sm:$0xff]
        %v342 = vld [vmem:[%s1 + $0x120] sm:$0xff]
        %v343 = vld [vmem:[%s1 + $0x128] sm:$0xff]
        %v344 = vld [vmem:[%s1 + $0x130] sm:$0xff]
        %v345 = vld [vmem:[%s1 + $0x138] sm:$0xff]
        %v346 = vld [vmem:[%s1 + $0x140] sm:$0xff]
        %v347 = vld [vmem:[%s1 + $0x148] sm:$0xff]
        %v348 = vld [vmem:[%s1 + $0x150] sm:$0xff]
        %v349 = vld [vmem:[%s1 + $0x158] sm:$0xff]
        %v350 = vld [vmem:[%s1 + $0x160] sm:$0xff]
        %v351 = vld [vmem:[%s1 + $0x168] sm:$0xff]
        %v352 = vld [vmem:[%s1 + $0x170] sm:$0xff]
        %v353 = vld [vmem:[%s1 + $0x178] sm:$0xff]
        %v354 = vld [vmem:[%s1 + $0x180] sm:$0xff]
        %v355 = vld [vmem:[%s1 + $0x188] sm:$0xff]
        %v356 = vld [vmem:[%s1 + $0x190] sm:$0xff]
        %v357 = vld [vmem:[%s1 + $0x198] sm:$0xff]
        %v358 = vld [vmem:[%s1 + $0x1a0] sm:$0xff]
        %v359 = vld [vmem:[%s1 + $0x1a8] sm:$0xff]
        %v360 = vld [vmem:[%s1 + $0x1b0] sm:$0xff]
        %v361 = vld [vmem:[%s1 + $0x1b8] sm:$0xff]
        %v362 = vld [vmem:[%s1 + $0x1c0] sm:$0xff]
        %v363 = vld [vmem:[%s1 + $0x1c8] sm:$0xff]
        %v364 = vld [vmem:[%s1 + $0x1d0] sm:$0xff]
        %v365 = vld [vmem:[%s1 + $0x1d8] sm:$0xff]
        %v366 = vld [vmem:[%s1 + $0x1e0] sm:$0xff]
        %v367 = vld [vmem:[%s1 + $0x1e8] sm:$0xff]
        %v368 = vld [vmem:[%s1 + $0x1f0] sm:$0xff]
        %v369 = vld [vmem:[%s1 + $0x1f8] sm:$0xff]
        %v370 = vld [vmem:[%s1 + $0x200] sm:$0xff]
        %v371 = vld [vmem:[%s1 + $0x208] sm:$0xff]
        %v372 = vld [vmem:[%s1 + $0x210] sm:$0xff]
        %v373 = vld [vmem:[%s1 + $0x218] sm:$0xff]
        %v374 = vld [vmem:[%s1 + $0x220] sm:$0xff]
        %v375 = vld [vmem:[%s1 + $0x228] sm:$0xff]
        %v376 = vld [vmem:[%s1 + $0x230] sm:$0xff]
        %v377 = vld [vmem:[%s1 + $0x238] sm:$0xff]
        %v378 = vld [vmem:[%s1 + $0x240] sm:$0xff]
        %v379 = vld [vmem:[%s1 + $0x248] sm:$0xff]
        %v380 = vld [vmem:[%s1 + $0x250] sm:$0xff]
        %v381 = vld [vmem:[%s1 + $0x258] sm:$0xff]
        %v382 = vld [vmem:[%s1 + $0x260] sm:$0xff]
        %v383 = vld [vmem:[%s1 + $0x268] sm:$0xff]
        %v384 = vld [vmem:[%s1 + $0x270] sm:$0xff]
        %v385 = vld [vmem:[%s1 + $0x278] sm:$0xff]
        %v386 = vld [vmem:[%s1 + $0x280] sm:$0xff]
        %v387 = vld [vmem:[%s1 + $0x288] sm:$0xff]
        %v388 = vld [vmem:[%s1 + $0x290] sm:$0xff]
        %v389 = vld [vmem:[%s1 + $0x298] sm:$0xff]
        %v390 = vld [vmem:[%s1 + $0x2a0] sm:$0xff]
        %v391 = vld [vmem:[%s1 + $0x2a8] sm:$0xff]
        %v392 = vld [vmem:[%s1 + $0x2b0] sm:$0xff]
        %v393 = vld [vmem:[%s1 + $0x2b8] sm:$0xff]
        %v394 = vld [vmem:[%s1 + $0x2c0] sm:$0xff]
        %v395 = vld [vmem:[%s1 + $0x2c8] sm:$0xff]
        %v396 = vld [vmem:[%s1 + $0x2d0] sm:$0xff]
        %v397 = vld [vmem:[%s1 + $0x2d8] sm:$0xff]
        %v398 = vld [vmem:[%s1 + $0x2e0] sm:$0xff]
        %v399 = vld [vmem:[%s1 + $0x2e8] sm:$0xff]
        %v400 = vld [vmem:[%s1 + $0x2f0] sm:$0xff]
        %v401 = vld [vmem:[%s1 + $0x2f8] sm:$0xff]
        %v402 = vld [vmem:[%s1 + $0x300] sm:$0xff]
        %v403 = vld [vmem:[%s1 + $0x308] sm:$0xff]
        %v404 = vld [vmem:[%s1 + $0x310] sm:$0xff]
        %v405 = vld [vmem:[%s1 + $0x318] sm:$0xff]
        %v406 = vld [vmem:[%s1 + $0x320] sm:$0xff]
        %v407 = vld [vmem:[%s1 + $0x328] sm:$0xff]
        %v408 = vld [vmem:[%s1 + $0x330] sm:$0xff]
        %v409 = vld [vmem:[%s1 + $0x338] sm:$0xff]
        %v410 = vld [vmem:[%s1 + $0x340] sm:$0xff]
        %v411 = vld [vmem:[%s1 + $0x348] sm:$0xff]
        %v412 = vld [vmem:[%s1 + $0x350] sm:$0xff]
        %v413 = vld [vmem:[%s1 + $0x358] sm:$0xff]
        %v414 = vld [vmem:[%s1 + $0x360] sm:$0xff]
        %v415 = vld [vmem:[%s1 + $0x368] sm:$0xff]
        %v416 = vld [vmem:[%s1 + $0x370] sm:$0xff]
        %v417 = vld [vmem:[%s1 + $0x378] sm:$0xff]
        %v418 = vld [vmem:[%s1 + $0x380] sm:$0xff]
        %v419 = vld [vmem:[%s1 + $0x388] sm:$0xff]
        %v420 = vld [vmem:[%s1 + $0x390] sm:$0xff]
        %v421 = vld [vmem:[%s1 + $0x398] sm:$0xff]
        %v422 = vld [vmem:[%s1 + $0x3a0] sm:$0xff]
        %v423 = vld [vmem:[%s1 + $0x3a8] sm:$0xff]
        %v424 = vld [vmem:[%s1 + $0x3b0] sm:$0xff]
        %v425 = vld [vmem:[%s1 + $0x3b8] sm:$0xff]
        %v426 = vld [vmem:[%s1 + $0x3c0] sm:$0xff]
        %v427 = vld [vmem:[%s1 + $0x3c8] sm:$0xff]
        %v428 = vld [vmem:[%s1 + $0x3d0] sm:$0xff]
        %v429 = vld [vmem:[%s1 + $0x3d8] sm:$0xff]
        %v430 = vld [vmem:[%s1 + $0x3e0] sm:$0xff]
        %v431 = vld [vmem:[%s1 + $0x3e8] sm:$0xff]
        %v432 = vld [vmem:[%s1 + $0x3f0] sm:$0xff]
        %v433 = vld [vmem:[%s1 + $0x3f8] sm:$0xff]
        %v482 = vunpack.c.l.b16 %v258
        %v483 = vunpack.c.h.b16 %v258
        %v484 = vunpack.c.l.b16 %v259
        %v485 = vunpack.c.h.b16 %v259
        %v486 = vunpack.c.l.b16 %v260
        %v487 = vunpack.c.h.b16 %v260
        %v488 = vunpack.c.l.b16 %v261
        %v489 = vunpack.c.h.b16 %v261
        %v490 = vunpack.c.l.b16 %v262
        %v491 = vunpack.c.h.b16 %v262
        %v492 = vunpack.c.l.b16 %v263
        %v493 = vunpack.c.h.b16 %v263
        %v494 = vunpack.c.l.b16 %v264
        %v495 = vunpack.c.h.b16 %v264
        %v496 = vunpack.c.l.b16 %v265
        %v497 = vunpack.c.h.b16 %v265
        %v498 = vunpack.c.l.b16 %v266
        %v499 = vunpack.c.h.b16 %v266
        %v500 = vunpack.c.l.b16 %v267
        %v501 = vunpack.c.h.b16 %v267
        %v502 = vunpack.c.l.b16 %v268
        %v503 = vunpack.c.h.b16 %v268
        %v504 = vunpack.c.l.b16 %v269
        %v505 = vunpack.c.h.b16 %v269
        %v506 = vunpack.c.l.b16 %v270
        %v507 = vunpack.c.h.b16 %v270
        %v508 = vunpack.c.l.b16 %v271
        %v509 = vunpack.c.h.b16 %v271
        %v510 = vunpack.c.l.b16 %v272
        %v511 = vunpack.c.h.b16 %v272
        %v512 = vunpack.c.l.b16 %v273
        %v513 = vunpack.c.h.b16 %v273
        %v514 = vunpack.c.l.b16 %v274
        %v515 = vunpack.c.h.b16 %v274
        %v516 = vunpack.c.l.b16 %v275
        %v517 = vunpack.c.h.b16 %v275
        %v518 = vunpack.c.l.b16 %v276
        %v519 = vunpack.c.h.b16 %v276
        %v520 = vunpack.c.l.b16 %v277
        %v521 = vunpack.c.h.b16 %v277
        %v522 = vunpack.c.l.b16 %v278
        %v523 = vunpack.c.h.b16 %v278
        %v524 = vunpack.c.l.b16 %v279
        %v525 = vunpack.c.h.b16 %v279
        %v526 = vunpack.c.l.b16 %v280
        %v527 = vunpack.c.h.b16 %v280
        %v528 = vunpack.c.l.b16 %v281
        %v529 = vunpack.c.h.b16 %v281
        %v530 = vunpack.c.l.b16 %v282
        %v531 = vunpack.c.h.b16 %v282
        %v532 = vunpack.c.l.b16 %v283
        %v533 = vunpack.c.h.b16 %v283
        %v534 = vunpack.c.l.b16 %v284
        %v535 = vunpack.c.h.b16 %v284
        %v536 = vunpack.c.l.b16 %v285
        %v537 = vunpack.c.h.b16 %v285
        %v538 = vunpack.c.l.b16 %v286
        %v539 = vunpack.c.h.b16 %v286
        %v540 = vunpack.c.l.b16 %v287
        %v541 = vunpack.c.h.b16 %v287
        %v542 = vunpack.c.l.b16 %v288
        %v543 = vunpack.c.h.b16 %v288
        %v544 = vunpack.c.l.b16 %v289
        %v545 = vunpack.c.h.b16 %v289
        %v546 = vunpack.c.l.b16 %v290
        %v547 = vunpack.c.h.b16 %v290
        %v548 = vunpack.c.l.b16 %v291
        %v549 = vunpack.c.h.b16 %v291
        %v550 = vunpack.c.l.b16 %v292
        %v551 = vunpack.c.h.b16 %v292
        %v552 = vunpack.c.l.b16 %v293
        %v553 = vunpack.c.h.b16 %v293
        %v554 = vunpack.c.l.b16 %v294
        %v555 = vunpack.c.h.b16 %v294
        %v556 = vunpack.c.l.b16 %v295
        %v557 = vunpack.c.h.b16 %v295
        %v558 = vunpack.c.l.b16 %v296
        %v559 = vunpack.c.h.b16 %v296
        %v560 = vunpack.c.l.b16 %v297
        %v561 = vunpack.c.h.b16 %v297
        %v562 = vunpack.c.l.b16 %v298
        %v563 = vunpack.c.h.b16 %v298
        %v564 = vunpack.c.l.b16 %v299
        %v565 = vunpack.c.h.b16 %v299
        %v566 = vunpack.c.l.b16 %v300
        %v567 = vunpack.c.h.b16 %v300
        %v568 = vunpack.c.l.b16 %v301
        %v569 = vunpack.c.h.b16 %v301
        %v570 = vunpack.c.l.b16 %v302
        %v571 = vunpack.c.h.b16 %v302
        %v572 = vunpack.c.l.b16 %v303
        %v573 = vunpack.c.h.b16 %v303
        %v574 = vunpack.c.l.b16 %v304
        %v575 = vunpack.c.h.b16 %v304
        %v576 = vunpack.c.l.b16 %v305
        %v577 = vunpack.c.h.b16 %v305
        %v578 = vpack.c.b16 %v490, %v482
        %v579 = vpack.c.b16 %v491, %v483
        %v580 = vpack.c.b16 %v492, %v484
        %v581 = vpack.c.b16 %v493, %v485
        %v582 = vpack.c.b16 %v494, %v486
        %v583 = vpack.c.b16 %v495, %v487
        %v584 = vpack.c.b16 %v496, %v488
        %v585 = vpack.c.b16 %v497, %v489
        %v586 = vpack.c.b16 %v506, %v498
        %v587 = vpack.c.b16 %v507, %v499
        %v588 = vpack.c.b16 %v508, %v500
        %v589 = vpack.c.b16 %v509, %v501
        %v590 = vpack.c.b16 %v510, %v502
        %v591 = vpack.c.b16 %v511, %v503
        %v592 = vpack.c.b16 %v512, %v504
        %v593 = vpack.c.b16 %v513, %v505
        %v594 = vpack.c.b16 %v522, %v514
        %v595 = vpack.c.b16 %v523, %v515
        %v596 = vpack.c.b16 %v524, %v516
        %v597 = vpack.c.b16 %v525, %v517
        %v598 = vpack.c.b16 %v526, %v518
        %v599 = vpack.c.b16 %v527, %v519
        %v600 = vpack.c.b16 %v528, %v520
        %v601 = vpack.c.b16 %v529, %v521
        %v602 = vpack.c.b16 %v538, %v530
        %v603 = vpack.c.b16 %v539, %v531
        %v604 = vpack.c.b16 %v540, %v532
        %v605 = vpack.c.b16 %v541, %v533
        %v606 = vpack.c.b16 %v542, %v534
        %v607 = vpack.c.b16 %v543, %v535
        %v608 = vpack.c.b16 %v544, %v536
        %v609 = vpack.c.b16 %v545, %v537
        %v610 = vpack.c.b16 %v554, %v546
        %v611 = vpack.c.b16 %v555, %v547
        %v612 = vpack.c.b16 %v556, %v548
        %v613 = vpack.c.b16 %v557, %v549
        %v614 = vpack.c.b16 %v558, %v550
        %v615 = vpack.c.b16 %v559, %v551
        %v616 = vpack.c.b16 %v560, %v552
        %v617 = vpack.c.b16 %v561, %v553
        %v618 = vpack.c.b16 %v570, %v562
        %v619 = vpack.c.b16 %v571, %v563
        %v620 = vpack.c.b16 %v572, %v564
        %v621 = vpack.c.b16 %v573, %v565
        %v622 = vpack.c.b16 %v574, %v566
        %v623 = vpack.c.b16 %v575, %v567
        %v624 = vpack.c.b16 %v576, %v568
        %v625 = vpack.c.b16 %v577, %v569
        %v802 = vunpack.c.l.b16 %v306
        %v803 = vunpack.c.h.b16 %v306
        %v804 = vunpack.c.l.b16 %v307
        %v805 = vunpack.c.h.b16 %v307
        %v806 = vunpack.c.l.b16 %v308
        %v807 = vunpack.c.h.b16 %v308
        %v808 = vunpack.c.l.b16 %v309
        %v809 = vunpack.c.h.b16 %v309
        %v810 = vunpack.c.l.b16 %v310
        %v811 = vunpack.c.h.b16 %v310
        %v812 = vunpack.c.l.b16 %v311
        %v813 = vunpack.c.h.b16 %v311
        %v814 = vunpack.c.l.b16 %v312
        %v815 = vunpack.c.h.b16 %v312
        %v816 = vunpack.c.l.b16 %v313
        %v817 = vunpack.c.h.b16 %v313
        %v818 = vunpack.c.l.b16 %v314
        %v819 = vunpack.c.h.b16 %v314
        %v820 = vunpack.c.l.b16 %v315
        %v821 = vunpack.c.h.b16 %v315
        %v822 = vunpack.c.l.b16 %v316
        %v823 = vunpack.c.h.b16 %v316
        %v824 = vunpack.c.l.b16 %v317
        %v825 = vunpack.c.h.b16 %v317
        %v826 = vunpack.c.l.b16 %v318
        %v827 = vunpack.c.h.b16 %v318
        %v828 = vunpack.c.l.b16 %v319
        %v829 = vunpack.c.h.b16 %v319
        %v830 = vunpack.c.l.b16 %v320
        %v831 = vunpack.c.h.b16 %v320
        %v832 = vunpack.c.l.b16 %v321
        %v833 = vunpack.c.h.b16 %v321
        %v834 = vunpack.c.l.b16 %v322
        %v835 = vunpack.c.h.b16 %v322
        %v836 = vunpack.c.l.b16 %v323
        %v837 = vunpack.c.h.b16 %v323
        %v838 = vunpack.c.l.b16 %v324
        %v839 = vunpack.c.h.b16 %v324
        %v840 = vunpack.c.l.b16 %v325
        %v841 = vunpack.c.h.b16 %v325
        %v842 = vunpack.c.l.b16 %v326
        %v843 = vunpack.c.h.b16 %v326
        %v844 = vunpack.c.l.b16 %v327
        %v845 = vunpack.c.h.b16 %v327
        %v846 = vunpack.c.l.b16 %v328
        %v847 = vunpack.c.h.b16 %v328
        %v848 = vunpack.c.l.b16 %v329
        %v849 = vunpack.c.h.b16 %v329
        %v850 = vunpack.c.l.b16 %v330
        %v851 = vunpack.c.h.b16 %v330
        %v852 = vunpack.c.l.b16 %v331
        %v853 = vunpack.c.h.b16 %v331
        %v854 = vunpack.c.l.b16 %v332
        %v855 = vunpack.c.h.b16 %v332
        %v856 = vunpack.c.l.b16 %v333
        %v857 = vunpack.c.h.b16 %v333
        %v858 = vunpack.c.l.b16 %v334
        %v859 = vunpack.c.h.b16 %v334
        %v860 = vunpack.c.l.b16 %v335
        %v861 = vunpack.c.h.b16 %v335
        %v862 = vunpack.c.l.b16 %v336
        %v863 = vunpack.c.h.b16 %v336
        %v864 = vunpack.c.l.b16 %v337
        %v865 = vunpack.c.h.b16 %v337
        %v866 = vunpack.c.l.b16 %v338
        %v867 = vunpack.c.h.b16 %v338
        %v868 = vunpack.c.l.b16 %v339
        %v869 = vunpack.c.h.b16 %v339
        %v870 = vunpack.c.l.b16 %v340
        %v871 = vunpack.c.h.b16 %v340
        %v872 = vunpack.c.l.b16 %v341
        %v873 = vunpack.c.h.b16 %v341
        %v874 = vunpack.c.l.b16 %v342
        %v875 = vunpack.c.h.b16 %v342
        %v876 = vunpack.c.l.b16 %v343
        %v877 = vunpack.c.h.b16 %v343
        %v878 = vunpack.c.l.b16 %v344
        %v879 = vunpack.c.h.b16 %v344
        %v880 = vunpack.c.l.b16 %v345
        %v881 = vunpack.c.h.b16 %v345
        %v882 = vunpack.c.l.b16 %v346
        %v883 = vunpack.c.h.b16 %v346
        %v884 = vunpack.c.l.b16 %v347
        %v885 = vunpack.c.h.b16 %v347
        %v886 = vunpack.c.l.b16 %v348
        %v887 = vunpack.c.h.b16 %v348
        %v888 = vunpack.c.l.b16 %v349
        %v889 = vunpack.c.h.b16 %v349
        %v890 = vunpack.c.l.b16 %v350
        %v891 = vunpack.c.h.b16 %v350
        %v892 = vunpack.c.l.b16 %v351
        %v893 = vunpack.c.h.b16 %v351
        %v894 = vunpack.c.l.b16 %v352
        %v895 = vunpack.c.h.b16 %v352
        %v896 = vunpack.c.l.b16 %v353
        %v897 = vunpack.c.h.b16 %v353
        %v898 = vunpack.c.l.b16 %v354
        %v899 = vunpack.c.h.b16 %v354
        %v900 = vunpack.c.l.b16 %v355
        %v901 = vunpack.c.h.b16 %v355
        %v902 = vunpack.c.l.b16 %v356
        %v903 = vunpack.c.h.b16 %v356
        %v904 = vunpack.c.l.b16 %v357
        %v905 = vunpack.c.h.b16 %v357
        %v906 = vunpack.c.l.b16 %v358
        %v907 = vunpack.c.h.b16 %v358
        %v908 = vunpack.c.l.b16 %v359
        %v909 = vunpack.c.h.b16 %v359
        %v910 = vunpack.c.l.b16 %v360
        %v911 = vunpack.c.h.b16 %v360
        %v912 = vunpack.c.l.b16 %v361
        %v913 = vunpack.c.h.b16 %v361
        %v914 = vunpack.c.l.b16 %v362
        %v915 = vunpack.c.h.b16 %v362
        %v916 = vunpack.c.l.b16 %v363
        %v917 = vunpack.c.h.b16 %v363
        %v918 = vunpack.c.l.b16 %v364
        %v919 = vunpack.c.h.b16 %v364
        %v920 = vunpack.c.l.b16 %v365
        %v921 = vunpack.c.h.b16 %v365
        %v922 = vunpack.c.l.b16 %v366
        %v923 = vunpack.c.h.b16 %v366
        %v924 = vunpack.c.l.b16 %v367
        %v925 = vunpack.c.h.b16 %v367
        %v926 = vunpack.c.l.b16 %v368
        %v927 = vunpack.c.h.b16 %v368
        %v928 = vunpack.c.l.b16 %v369
        %v929 = vunpack.c.h.b16 %v369
        %v930 = vunpack.c.l.b16 %v370
        %v931 = vunpack.c.h.b16 %v370
        %v932 = vunpack.c.l.b16 %v371
        %v933 = vunpack.c.h.b16 %v371
        %v934 = vunpack.c.l.b16 %v372
        %v935 = vunpack.c.h.b16 %v372
        %v936 = vunpack.c.l.b16 %v373
        %v937 = vunpack.c.h.b16 %v373
        %v938 = vunpack.c.l.b16 %v374
        %v939 = vunpack.c.h.b16 %v374
        %v940 = vunpack.c.l.b16 %v375
        %v941 = vunpack.c.h.b16 %v375
        %v942 = vunpack.c.l.b16 %v376
        %v943 = vunpack.c.h.b16 %v376
        %v944 = vunpack.c.l.b16 %v377
        %v945 = vunpack.c.h.b16 %v377
        %v946 = vunpack.c.l.b16 %v378
        %v947 = vunpack.c.h.b16 %v378
        %v948 = vunpack.c.l.b16 %v379
        %v949 = vunpack.c.h.b16 %v379
        %v950 = vunpack.c.l.b16 %v380
        %v951 = vunpack.c.h.b16 %v380
        %v952 = vunpack.c.l.b16 %v381
        %v953 = vunpack.c.h.b16 %v381
        %v954 = vunpack.c.l.b16 %v382
        %v955 = vunpack.c.h.b16 %v382
        %v956 = vunpack.c.l.b16 %v383
        %v957 = vunpack.c.h.b16 %v383
        %v958 = vunpack.c.l.b16 %v384
        %v959 = vunpack.c.h.b16 %v384
        %v960 = vunpack.c.l.b16 %v385
        %v961 = vunpack.c.h.b16 %v385
        %v962 = vunpack.c.l.b16 %v386
        %v963 = vunpack.c.h.b16 %v386
        %v964 = vunpack.c.l.b16 %v387
        %v965 = vunpack.c.h.b16 %v387
        %v966 = vunpack.c.l.b16 %v388
        %v967 = vunpack.c.h.b16 %v388
        %v968 = vunpack.c.l.b16 %v389
        %v969 = vunpack.c.h.b16 %v389
        %v970 = vunpack.c.l.b16 %v390
        %v971 = vunpack.c.h.b16 %v390
        %v972 = vunpack.c.l.b16 %v391
        %v973 = vunpack.c.h.b16 %v391
        %v974 = vunpack.c.l.b16 %v392
        %v975 = vunpack.c.h.b16 %v392
        %v976 = vunpack.c.l.b16 %v393
        %v977 = vunpack.c.h.b16 %v393
        %v978 = vunpack.c.l.b16 %v394
        %v979 = vunpack.c.h.b16 %v394
        %v980 = vunpack.c.l.b16 %v395
        %v981 = vunpack.c.h.b16 %v395
        %v982 = vunpack.c.l.b16 %v396
        %v983 = vunpack.c.h.b16 %v396
        %v984 = vunpack.c.l.b16 %v397
        %v985 = vunpack.c.h.b16 %v397
        %v986 = vunpack.c.l.b16 %v398
        %v987 = vunpack.c.h.b16 %v398
        %v988 = vunpack.c.l.b16 %v399
        %v989 = vunpack.c.h.b16 %v399
        %v990 = vunpack.c.l.b16 %v400
        %v991 = vunpack.c.h.b16 %v400
        %v992 = vunpack.c.l.b16 %v401
        %v993 = vunpack.c.h.b16 %v401
        %v994 = vunpack.c.l.b16 %v402
        %v995 = vunpack.c.h.b16 %v402
        %v996 = vunpack.c.l.b16 %v403
        %v997 = vunpack.c.h.b16 %v403
        %v998 = vunpack.c.l.b16 %v404
        %v999 = vunpack.c.h.b16 %v404
        %v1000 = vunpack.c.l.b16 %v405
        %v1001 = vunpack.c.h.b16 %v405
        %v1002 = vunpack.c.l.b16 %v406
        %v1003 = vunpack.c.h.b16 %v406
        %v1004 = vunpack.c.l.b16 %v407
        %v1005 = vunpack.c.h.b16 %v407
        %v1006 = vunpack.c.l.b16 %v408
        %v1007 = vunpack.c.h.b16 %v408
        %v1008 = vunpack.c.l.b16 %v409
        %v1009 = vunpack.c.h.b16 %v409
        %v1010 = vunpack.c.l.b16 %v410
        %v1011 = vunpack.c.h.b16 %v410
        %v1012 = vunpack.c.l.b16 %v411
        %v1013 = vunpack.c.h.b16 %v411
        %v1014 = vunpack.c.l.b16 %v412
        %v1015 = vunpack.c.h.b16 %v412
        %v1016 = vunpack.c.l.b16 %v413
        %v1017 = vunpack.c.h.b16 %v413
        %v1018 = vunpack.c.l.b16 %v414
        %v1019 = vunpack.c.h.b16 %v414
        %v1020 = vunpack.c.l.b16 %v415
        %v1021 = vunpack.c.h.b16 %v415
        %v1022 = vunpack.c.l.b16 %v416
        %v1023 = vunpack.c.h.b16 %v416
        %v1024 = vunpack.c.l.b16 %v417
        %v1025 = vunpack.c.h.b16 %v417
        %v1026 = vunpack.c.l.b16 %v418
        %v1027 = vunpack.c.h.b16 %v418
        %v1028 = vunpack.c.l.b16 %v419
        %v1029 = vunpack.c.h.b16 %v419
        %v1030 = vunpack.c.l.b16 %v420
        %v1031 = vunpack.c.h.b16 %v420
        %v1032 = vunpack.c.l.b16 %v421
        %v1033 = vunpack.c.h.b16 %v421
        %v1034 = vunpack.c.l.b16 %v422
        %v1035 = vunpack.c.h.b16 %v422
        %v1036 = vunpack.c.l.b16 %v423
        %v1037 = vunpack.c.h.b16 %v423
        %v1038 = vunpack.c.l.b16 %v424
        %v1039 = vunpack.c.h.b16 %v424
        %v1040 = vunpack.c.l.b16 %v425
        %v1041 = vunpack.c.h.b16 %v425
        %v1042 = vunpack.c.l.b16 %v426
        %v1043 = vunpack.c.h.b16 %v426
        %v1044 = vunpack.c.l.b16 %v427
        %v1045 = vunpack.c.h.b16 %v427
        %v1046 = vunpack.c.l.b16 %v428
        %v1047 = vunpack.c.h.b16 %v428
        %v1048 = vunpack.c.l.b16 %v429
        %v1049 = vunpack.c.h.b16 %v429
        %v1050 = vunpack.c.l.b16 %v430
        %v1051 = vunpack.c.h.b16 %v430
        %v1052 = vunpack.c.l.b16 %v431
        %v1053 = vunpack.c.h.b16 %v431
        %v1054 = vunpack.c.l.b16 %v432
        %v1055 = vunpack.c.h.b16 %v432
        %v1056 = vunpack.c.l.b16 %v433
        %v1057 = vunpack.c.h.b16 %v433
        %v1058 = vpack.c.b16 %v804, %v802
        %v1059 = vpack.c.b16 %v805, %v803
        %v1060 = vpack.c.b16 %v808, %v806
        %v1061 = vpack.c.b16 %v809, %v807
        %v1062 = vpack.c.b16 %v812, %v810
        %v1063 = vpack.c.b16 %v813, %v811
        %v1064 = vpack.c.b16 %v816, %v814
        %v1065 = vpack.c.b16 %v817, %v815
        %v1066 = vpack.c.b16 %v820, %v818
        %v1067 = vpack.c.b16 %v821, %v819
        %v1068 = vpack.c.b16 %v824, %v822
        %v1069 = vpack.c.b16 %v825, %v823
        %v1070 = vpack.c.b16 %v828, %v826
        %v1071 = vpack.c.b16 %v829, %v827
        %v1072 = vpack.c.b16 %v832, %v830
        %v1073 = vpack.c.b16 %v833, %v831
        %v1074 = vpack.c.b16 %v836, %v834
        %v1075 = vpack.c.b16 %v837, %v835
        %v1076 = vpack.c.b16 %v840, %v838
        %v1077 = vpack.c.b16 %v841, %v839
        %v1078 = vpack.c.b16 %v844, %v842
        %v1079 = vpack.c.b16 %v845, %v843
        %v1080 = vpack.c.b16 %v848, %v846
        %v1081 = vpack.c.b16 %v849, %v847
        %v1082 = vpack.c.b16 %v852, %v850
        %v1083 = vpack.c.b16 %v853, %v851
        %v1084 = vpack.c.b16 %v856, %v854
        %v1085 = vpack.c.b16 %v857, %v855
        %v1086 = vpack.c.b16 %v860, %v858
        %v1087 = vpack.c.b16 %v861, %v859
        %v1088 = vpack.c.b16 %v864, %v862
        %v1089 = vpack.c.b16 %v865, %v863
        %v1090 = vpack.c.b16 %v868, %v866
        %v1091 = vpack.c.b16 %v869, %v867
        %v1092 = vpack.c.b16 %v872, %v870
        %v1093 = vpack.c.b16 %v873, %v871
        %v1094 = vpack.c.b16 %v876, %v874
        %v1095 = vpack.c.b16 %v877, %v875
        %v1096 = vpack.c.b16 %v880, %v878
        %v1097 = vpack.c.b16 %v881, %v879
        %v1098 = vpack.c.b16 %v884, %v882
        %v1099 = vpack.c.b16 %v885, %v883
        %v1100 = vpack.c.b16 %v888, %v886
        %v1101 = vpack.c.b16 %v889, %v887
        %v1102 = vpack.c.b16 %v892, %v890
        %v1103 = vpack.c.b16 %v893, %v891
        %v1104 = vpack.c.b16 %v896, %v894
        %v1105 = vpack.c.b16 %v897, %v895
        %v1106 = vpack.c.b16 %v900, %v898
        %v1107 = vpack.c.b16 %v901, %v899
        %v1108 = vpack.c.b16 %v904, %v902
        %v1109 = vpack.c.b16 %v905, %v903
        %v1110 = vpack.c.b16 %v908, %v906
        %v1111 = vpack.c.b16 %v909, %v907
        %v1112 = vpack.c.b16 %v912, %v910
        %v1113 = vpack.c.b16 %v913, %v911
        %v1114 = vpack.c.b16 %v916, %v914
        %v1115 = vpack.c.b16 %v917, %v915
        %v1116 = vpack.c.b16 %v920, %v918
        %v1117 = vpack.c.b16 %v921, %v919
        %v1118 = vpack.c.b16 %v924, %v922
        %v1119 = vpack.c.b16 %v925, %v923
        %v1120 = vpack.c.b16 %v928, %v926
        %v1121 = vpack.c.b16 %v929, %v927
        %v1122 = vpack.c.b16 %v932, %v930
        %v1123 = vpack.c.b16 %v933, %v931
        %v1124 = vpack.c.b16 %v936, %v934
        %v1125 = vpack.c.b16 %v937, %v935
        %v1126 = vpack.c.b16 %v940, %v938
        %v1127 = vpack.c.b16 %v941, %v939
        %v1128 = vpack.c.b16 %v944, %v942
        %v1129 = vpack.c.b16 %v945, %v943
        %v1130 = vpack.c.b16 %v948, %v946
        %v1131 = vpack.c.b16 %v949, %v947
        %v1132 = vpack.c.b16 %v952, %v950
        %v1133 = vpack.c.b16 %v953, %v951
        %v1134 = vpack.c.b16 %v956, %v954
        %v1135 = vpack.c.b16 %v957, %v955
        %v1136 = vpack.c.b16 %v960, %v958
        %v1137 = vpack.c.b16 %v961, %v959
        %v1138 = vpack.c.b16 %v964, %v962
        %v1139 = vpack.c.b16 %v965, %v963
        %v1140 = vpack.c.b16 %v968, %v966
        %v1141 = vpack.c.b16 %v969, %v967
        %v1142 = vpack.c.b16 %v972, %v970
        %v1143 = vpack.c.b16 %v973, %v971
        %v1144 = vpack.c.b16 %v976, %v974
        %v1145 = vpack.c.b16 %v977, %v975
        %v1146 = vpack.c.b16 %v980, %v978
        %v1147 = vpack.c.b16 %v981, %v979
        %v1148 = vpack.c.b16 %v984, %v982
        %v1149 = vpack.c.b16 %v985, %v983
        %v1150 = vpack.c.b16 %v988, %v986
        %v1151 = vpack.c.b16 %v989, %v987
        %v1152 = vpack.c.b16 %v992, %v990
        %v1153 = vpack.c.b16 %v993, %v991
        %v1154 = vpack.c.b16 %v996, %v994
        %v1155 = vpack.c.b16 %v997, %v995
        %v1156 = vpack.c.b16 %v1000, %v998
        %v1157 = vpack.c.b16 %v1001, %v999
        %v1158 = vpack.c.b16 %v1004, %v1002
        %v1159 = vpack.c.b16 %v1005, %v1003
        %v1160 = vpack.c.b16 %v1008, %v1006
        %v1161 = vpack.c.b16 %v1009, %v1007
        %v1162 = vpack.c.b16 %v1012, %v1010
        %v1163 = vpack.c.b16 %v1013, %v1011
        %v1164 = vpack.c.b16 %v1016, %v1014
        %v1165 = vpack.c.b16 %v1017, %v1015
        %v1166 = vpack.c.b16 %v1020, %v1018
        %v1167 = vpack.c.b16 %v1021, %v1019
        %v1168 = vpack.c.b16 %v1024, %v1022
        %v1169 = vpack.c.b16 %v1025, %v1023
        %v1170 = vpack.c.b16 %v1028, %v1026
        %v1171 = vpack.c.b16 %v1029, %v1027
        %v1172 = vpack.c.b16 %v1032, %v1030
        %v1173 = vpack.c.b16 %v1033, %v1031
        %v1174 = vpack.c.b16 %v1036, %v1034
        %v1175 = vpack.c.b16 %v1037, %v1035
        %v1176 = vpack.c.b16 %v1040, %v1038
        %v1177 = vpack.c.b16 %v1041, %v1039
        %v1178 = vpack.c.b16 %v1044, %v1042
        %v1179 = vpack.c.b16 %v1045, %v1043
        %v1180 = vpack.c.b16 %v1048, %v1046
        %v1181 = vpack.c.b16 %v1049, %v1047
        %v1182 = vpack.c.b16 %v1052, %v1050
        %v1183 = vpack.c.b16 %v1053, %v1051
        %v1184 = vpack.c.b16 %v1056, %v1054
        %v1185 = vpack.c.b16 %v1057, %v1055
        %1314 = vmatpush.bf16.msra.mxu0 %v1072
        %1315 = vmatpush.bf16.msra.mxu0 %v1070
        %1316 = vmatpush.bf16.msra.mxu0 %v1068
        %1317 = vmatpush.bf16.msra.mxu0 %v1066
        %1318 = vmatpush.bf16.msra.mxu0 %v1064
        %1319 = vmatpush.bf16.msra.mxu0 %v1062
        %1320 = vmatpush.bf16.msra.mxu0 %v1060
        %1321 = vmatpush.bf16.msra.mxu0 %v1058
        %1322 = vmatmul.bf16.gmra.mxu0 %v578
        %v1323 = vpop.f32.mrf.mxu0
        %v1324 = vadd.f32 0.0, %v1323
        %v1325 = vpop.f32.mrf.mxu0
        %v1326 = vadd.f32 0.0, %v1325
        %1327 = vmatmul.bf16.gmra.mxu0 %v586
        %v1328 = vpop.f32.mrf.mxu0
        %v1329 = vadd.f32 0.0, %v1328
        %v1330 = vpop.f32.mrf.mxu0
        %v1331 = vadd.f32 0.0, %v1330
        %1332 = vmatmul.bf16.gmra.mxu0 %v594
        %v1333 = vpop.f32.mrf.mxu0
        %v1334 = vadd.f32 0.0, %v1333
        %v1335 = vpop.f32.mrf.mxu0
        %v1336 = vadd.f32 0.0, %v1335
        %1337 = vmatmul.bf16.gmra.mxu0 %v602
        %v1338 = vpop.f32.mrf.mxu0
        %v1339 = vadd.f32 0.0, %v1338
        %v1340 = vpop.f32.mrf.mxu0
        %v1341 = vadd.f32 0.0, %v1340
        %1342 = vmatmul.bf16.gmra.mxu0 %v610
        %v1343 = vpop.f32.mrf.mxu0
        %v1344 = vadd.f32 0.0, %v1343
        %v1345 = vpop.f32.mrf.mxu0
        %v1346 = vadd.f32 0.0, %v1345
        %1347 = vmatmul.bf16.gmra.mxu0 %v618
        %v1348 = vpop.f32.mrf.mxu0
        %v1349 = vadd.f32 0.0, %v1348
        %v1350 = vpop.f32.mrf.mxu0
        %v1351 = vadd.f32 0.0, %v1350
        %1352 = vdwg.mxu0
        %1353 = vmatpush.bf16.msra.mxu0 %v1088
        %1354 = vmatpush.bf16.msra.mxu0 %v1086
        %1355 = vmatpush.bf16.msra.mxu0 %v1084
        %1356 = vmatpush.bf16.msra.mxu0 %v1082
        %1357 = vmatpush.bf16.msra.mxu0 %v1080
        %1358 = vmatpush.bf16.msra.mxu0 %v1078
        %1359 = vmatpush.bf16.msra.mxu0 %v1076
        %1360 = vmatpush.bf16.msra.mxu0 %v1074
        %1361 = vmatmul.bf16.gmra.mxu0 %v579
        %v1362 = vpop.f32.mrf.mxu0
        %v1363 = vadd.f32 %v1324, %v1362
        %v1364 = vpop.f32.mrf.mxu0
        %v1365 = vadd.f32 %v1326, %v1364
        %1366 = vmatmul.bf16.gmra.mxu0 %v587
        %v1367 = vpop.f32.mrf.mxu0
        %v1368 = vadd.f32 %v1329, %v1367
        %v1369 = vpop.f32.mrf.mxu0
        %v1370 = vadd.f32 %v1331, %v1369
        %1371 = vmatmul.bf16.gmra.mxu0 %v595
        %v1372 = vpop.f32.mrf.mxu0
        %v1373 = vadd.f32 %v1334, %v1372
        %v1374 = vpop.f32.mrf.mxu0
        %v1375 = vadd.f32 %v1336, %v1374
        %1376 = vmatmul.bf16.gmra.mxu0 %v603
        %v1377 = vpop.f32.mrf.mxu0
        %v1378 = vadd.f32 %v1339, %v1377
        %v1379 = vpop.f32.mrf.mxu0
        %v1380 = vadd.f32 %v1341, %v1379
        %1381 = vmatmul.bf16.gmra.mxu0 %v611
        %v1382 = vpop.f32.mrf.mxu0
        %v1383 = vadd.f32 %v1344, %v1382
        %v1384 = vpop.f32.mrf.mxu0
        %v1385 = vadd.f32 %v1346, %v1384
        %1386 = vmatmul.bf16.gmra.mxu0 %v619
        %v1387 = vpop.f32.mrf.mxu0
        %v1388 = vadd.f32 %v1349, %v1387
        %v1389 = vpop.f32.mrf.mxu0
        %v1390 = vadd.f32 %v1351, %v1389
        %1391 = vdwg.mxu0
        %1392 = vmatpush.bf16.msra.mxu0 %v1104
        %1393 = vmatpush.bf16.msra.mxu0 %v1102
        %1394 = vmatpush.bf16.msra.mxu0 %v1100
        %1395 = vmatpush.bf16.msra.mxu0 %v1098
        %1396 = vmatpush.bf16.msra.mxu0 %v1096
        %1397 = vmatpush.bf16.msra.mxu0 %v1094
        %1398 = vmatpush.bf16.msra.mxu0 %v1092
        %1399 = vmatpush.bf16.msra.mxu0 %v1090
        %1400 = vmatmul.bf16.gmra.mxu0 %v580
        %v1401 = vpop.f32.mrf.mxu0
        %v1402 = vadd.f32 %v1363, %v1401
        %v1403 = vpop.f32.mrf.mxu0
        %v1404 = vadd.f32 %v1365, %v1403
        %1405 = vmatmul.bf16.gmra.mxu0 %v588
        %v1406 = vpop.f32.mrf.mxu0
        %v1407 = vadd.f32 %v1368, %v1406
        %v1408 = vpop.f32.mrf.mxu0
        %v1409 = vadd.f32 %v1370, %v1408
        %1410 = vmatmul.bf16.gmra.mxu0 %v596
        %v1411 = vpop.f32.mrf.mxu0
        %v1412 = vadd.f32 %v1373, %v1411
        %v1413 = vpop.f32.mrf.mxu0
        %v1414 = vadd.f32 %v1375, %v1413
        %1415 = vmatmul.bf16.gmra.mxu0 %v604
        %v1416 = vpop.f32.mrf.mxu0
        %v1417 = vadd.f32 %v1378, %v1416
        %v1418 = vpop.f32.mrf.mxu0
        %v1419 = vadd.f32 %v1380, %v1418
        %1420 = vmatmul.bf16.gmra.mxu0 %v612
        %v1421 = vpop.f32.mrf.mxu0
        %v1422 = vadd.f32 %v1383, %v1421
        %v1423 = vpop.f32.mrf.mxu0
        %v1424 = vadd.f32 %v1385, %v1423
        %1425 = vmatmul.bf16.gmra.mxu0 %v620
        %v1426 = vpop.f32.mrf.mxu0
        %v1427 = vadd.f32 %v1388, %v1426
        %v1428 = vpop.f32.mrf.mxu0
        %v1429 = vadd.f32 %v1390, %v1428
        %1430 = vdwg.mxu0
        %1431 = vmatpush.bf16.msra.mxu0 %v1120
        %1432 = vmatpush.bf16.msra.mxu0 %v1118
        %1433 = vmatpush.bf16.msra.mxu0 %v1116
        %1434 = vmatpush.bf16.msra.mxu0 %v1114
        %1435 = vmatpush.bf16.msra.mxu0 %v1112
        %1436 = vmatpush.bf16.msra.mxu0 %v1110
        %1437 = vmatpush.bf16.msra.mxu0 %v1108
        %1438 = vmatpush.bf16.msra.mxu0 %v1106
        %1439 = vmatmul.bf16.gmra.mxu0 %v581
        %v1440 = vpop.f32.mrf.mxu0
        %v1441 = vadd.f32 %v1402, %v1440
        %v1442 = vpop.f32.mrf.mxu0
        %v1443 = vadd.f32 %v1404, %v1442
        %1444 = vmatmul.bf16.gmra.mxu0 %v589
        %v1445 = vpop.f32.mrf.mxu0
        %v1446 = vadd.f32 %v1407, %v1445
        %v1447 = vpop.f32.mrf.mxu0
        %v1448 = vadd.f32 %v1409, %v1447
        %1449 = vmatmul.bf16.gmra.mxu0 %v597
        %v1450 = vpop.f32.mrf.mxu0
        %v1451 = vadd.f32 %v1412, %v1450
        %v1452 = vpop.f32.mrf.mxu0
        %v1453 = vadd.f32 %v1414, %v1452
        %1454 = vmatmul.bf16.gmra.mxu0 %v605
        %v1455 = vpop.f32.mrf.mxu0
        %v1456 = vadd.f32 %v1417, %v1455
        %v1457 = vpop.f32.mrf.mxu0
        %v1458 = vadd.f32 %v1419, %v1457
        %1459 = vmatmul.bf16.gmra.mxu0 %v613
        %v1460 = vpop.f32.mrf.mxu0
        %v1461 = vadd.f32 %v1422, %v1460
        %v1462 = vpop.f32.mrf.mxu0
        %v1463 = vadd.f32 %v1424, %v1462
        %1464 = vmatmul.bf16.gmra.mxu0 %v621
        %v1465 = vpop.f32.mrf.mxu0
        %v1466 = vadd.f32 %v1427, %v1465
        %v1467 = vpop.f32.mrf.mxu0
        %v1468 = vadd.f32 %v1429, %v1467
        %1469 = vdwg.mxu0
        %1470 = vmatpush.bf16.msra.mxu0 %v1136
        %1471 = vmatpush.bf16.msra.mxu0 %v1134
        %1472 = vmatpush.bf16.msra.mxu0 %v1132
        %1473 = vmatpush.bf16.msra.mxu0 %v1130
        %1474 = vmatpush.bf16.msra.mxu0 %v1128
        %1475 = vmatpush.bf16.msra.mxu0 %v1126
        %1476 = vmatpush.bf16.msra.mxu0 %v1124
        %1477 = vmatpush.bf16.msra.mxu0 %v1122
        %1478 = vmatmul.bf16.gmra.mxu0 %v582
        %v1479 = vpop.f32.mrf.mxu0
        %v1480 = vadd.f32 %v1441, %v1479
        %v1481 = vpop.f32.mrf.mxu0
        %v1482 = vadd.f32 %v1443, %v1481
        %1483 = vmatmul.bf16.gmra.mxu0 %v590
        %v1484 = vpop.f32.mrf.mxu0
        %v1485 = vadd.f32 %v1446, %v1484
        %v1486 = vpop.f32.mrf.mxu0
        %v1487 = vadd.f32 %v1448, %v1486
        %1488 = vmatmul.bf16.gmra.mxu0 %v598
        %v1489 = vpop.f32.mrf.mxu0
        %v1490 = vadd.f32 %v1451, %v1489
        %v1491 = vpop.f32.mrf.mxu0
        %v1492 = vadd.f32 %v1453, %v1491
        %1493 = vmatmul.bf16.gmra.mxu0 %v606
        %v1494 = vpop.f32.mrf.mxu0
        %v1495 = vadd.f32 %v1456, %v1494
        %v1496 = vpop.f32.mrf.mxu0
        %v1497 = vadd.f32 %v1458, %v1496
        %1498 = vmatmul.bf16.gmra.mxu0 %v614
        %v1499 = vpop.f32.mrf.mxu0
        %v1500 = vadd.f32 %v1461, %v1499
        %v1501 = vpop.f32.mrf.mxu0
        %v1502 = vadd.f32 %v1463, %v1501
        %1503 = vmatmul.bf16.gmra.mxu0 %v622
        %v1504 = vpop.f32.mrf.mxu0
        %v1505 = vadd.f32 %v1466, %v1504
        %v1506 = vpop.f32.mrf.mxu0
        %v1507 = vadd.f32 %v1468, %v1506
        %1508 = vdwg.mxu0
        %1509 = vmatpush.bf16.msra.mxu0 %v1152
        %1510 = vmatpush.bf16.msra.mxu0 %v1150
        %1511 = vmatpush.bf16.msra.mxu0 %v1148
        %1512 = vmatpush.bf16.msra.mxu0 %v1146
        %1513 = vmatpush.bf16.msra.mxu0 %v1144
        %1514 = vmatpush.bf16.msra.mxu0 %v1142
        %1515 = vmatpush.bf16.msra.mxu0 %v1140
        %1516 = vmatpush.bf16.msra.mxu0 %v1138
        %1517 = vmatmul.bf16.gmra.mxu0 %v583
        %v1518 = vpop.f32.mrf.mxu0
        %v1519 = vadd.f32 %v1480, %v1518
        %v1520 = vpop.f32.mrf.mxu0
        %v1521 = vadd.f32 %v1482, %v1520
        %1522 = vmatmul.bf16.gmra.mxu0 %v591
        %v1523 = vpop.f32.mrf.mxu0
        %v1524 = vadd.f32 %v1485, %v1523
        %v1525 = vpop.f32.mrf.mxu0
        %v1526 = vadd.f32 %v1487, %v1525
        %1527 = vmatmul.bf16.gmra.mxu0 %v599
        %v1528 = vpop.f32.mrf.mxu0
        %v1529 = vadd.f32 %v1490, %v1528
        %v1530 = vpop.f32.mrf.mxu0
        %v1531 = vadd.f32 %v1492, %v1530
        %1532 = vmatmul.bf16.gmra.mxu0 %v607
        %v1533 = vpop.f32.mrf.mxu0
        %v1534 = vadd.f32 %v1495, %v1533
        %v1535 = vpop.f32.mrf.mxu0
        %v1536 = vadd.f32 %v1497, %v1535
        %1537 = vmatmul.bf16.gmra.mxu0 %v615
        %v1538 = vpop.f32.mrf.mxu0
        %v1539 = vadd.f32 %v1500, %v1538
        %v1540 = vpop.f32.mrf.mxu0
        %v1541 = vadd.f32 %v1502, %v1540
        %1542 = vmatmul.bf16.gmra.mxu0 %v623
        %v1543 = vpop.f32.mrf.mxu0
        %v1544 = vadd.f32 %v1505, %v1543
        %v1545 = vpop.f32.mrf.mxu0
        %v1546 = vadd.f32 %v1507, %v1545
        %1547 = vdwg.mxu0
        %1548 = vmatpush.bf16.msra.mxu0 %v1168
        %1549 = vmatpush.bf16.msra.mxu0 %v1166
        %1550 = vmatpush.bf16.msra.mxu0 %v1164
        %1551 = vmatpush.bf16.msra.mxu0 %v1162
        %1552 = vmatpush.bf16.msra.mxu0 %v1160
        %1553 = vmatpush.bf16.msra.mxu0 %v1158
        %1554 = vmatpush.bf16.msra.mxu0 %v1156
        %1555 = vmatpush.bf16.msra.mxu0 %v1154
        %1556 = vmatmul.bf16.gmra.mxu0 %v584
        %v1557 = vpop.f32.mrf.mxu0
        %v1558 = vadd.f32 %v1519, %v1557
        %v1559 = vpop.f32.mrf.mxu0
        %v1560 = vadd.f32 %v1521, %v1559
        %1561 = vmatmul.bf16.gmra.mxu0 %v592
        %v1562 = vpop.f32.mrf.mxu0
        %v1563 = vadd.f32 %v1524, %v1562
        %v1564 = vpop.f32.mrf.mxu0
        %v1565 = vadd.f32 %v1526, %v1564
        %1566 = vmatmul.bf16.gmra.mxu0 %v600
        %v1567 = vpop.f32.mrf.mxu0
        %v1568 = vadd.f32 %v1529, %v1567
        %v1569 = vpop.f32.mrf.mxu0
        %v1570 = vadd.f32 %v1531, %v1569
        %1571 = vmatmul.bf16.gmra.mxu0 %v608
        %v1572 = vpop.f32.mrf.mxu0
        %v1573 = vadd.f32 %v1534, %v1572
        %v1574 = vpop.f32.mrf.mxu0
        %v1575 = vadd.f32 %v1536, %v1574
        %1576 = vmatmul.bf16.gmra.mxu0 %v616
        %v1577 = vpop.f32.mrf.mxu0
        %v1578 = vadd.f32 %v1539, %v1577
        %v1579 = vpop.f32.mrf.mxu0
        %v1580 = vadd.f32 %v1541, %v1579
        %1581 = vmatmul.bf16.gmra.mxu0 %v624
        %v1582 = vpop.f32.mrf.mxu0
        %v1583 = vadd.f32 %v1544, %v1582
        %v1584 = vpop.f32.mrf.mxu0
        %v1585 = vadd.f32 %v1546, %v1584
        %1586 = vdwg.mxu0
        %1587 = vmatpush.bf16.msra.mxu0 %v1184
        %1588 = vmatpush.bf16.msra.mxu0 %v1182
        %1589 = vmatpush.bf16.msra.mxu0 %v1180
        %1590 = vmatpush.bf16.msra.mxu0 %v1178
        %1591 = vmatpush.bf16.msra.mxu0 %v1176
        %1592 = vmatpush.bf16.msra.mxu0 %v1174
        %1593 = vmatpush.bf16.msra.mxu0 %v1172
        %1594 = vmatpush.bf16.msra.mxu0 %v1170
        %1595 = vmatmul.bf16.gmra.mxu0 %v585
        %v1596 = vpop.f32.mrf.mxu0
        %v1597 = vadd.f32 %v1558, %v1596
        %v1598 = vpop.f32.mrf.mxu0
        %v1599 = vadd.f32 %v1560, %v1598
        %1600 = vmatmul.bf16.gmra.mxu0 %v593
        %v1601 = vpop.f32.mrf.mxu0
        %v1602 = vadd.f32 %v1563, %v1601
        %v1603 = vpop.f32.mrf.mxu0
        %v1604 = vadd.f32 %v1565, %v1603
        %1605 = vmatmul.bf16.gmra.mxu0 %v601
        %v1606 = vpop.f32.mrf.mxu0
        %v1607 = vadd.f32 %v1568, %v1606
        %v1608 = vpop.f32.mrf.mxu0
        %v1609 = vadd.f32 %v1570, %v1608
        %1610 = vmatmul.bf16.gmra.mxu0 %v609
        %v1611 = vpop.f32.mrf.mxu0
        %v1612 = vadd.f32 %v1573, %v1611
        %v1613 = vpop.f32.mrf.mxu0
        %v1614 = vadd.f32 %v1575, %v1613
        %1615 = vmatmul.bf16.gmra.mxu0 %v617
        %v1616 = vpop.f32.mrf.mxu0
        %v1617 = vadd.f32 %v1578, %v1616
        %v1618 = vpop.f32.mrf.mxu0
        %v1619 = vadd.f32 %v1580, %v1618
        %1620 = vmatmul.bf16.gmra.mxu0 %v625
        %v1621 = vpop.f32.mrf.mxu0
        %v1622 = vadd.f32 %v1583, %v1621
        %v1623 = vpop.f32.mrf.mxu0
        %v1624 = vadd.f32 %v1585, %v1623
        %1625 = vdwg.mxu0
        %1626 = vmatpush.bf16.msra.mxu0 %v1073
        %1627 = vmatpush.bf16.msra.mxu0 %v1071
        %1628 = vmatpush.bf16.msra.mxu0 %v1069
        %1629 = vmatpush.bf16.msra.mxu0 %v1067
        %1630 = vmatpush.bf16.msra.mxu0 %v1065
        %1631 = vmatpush.bf16.msra.mxu0 %v1063
        %1632 = vmatpush.bf16.msra.mxu0 %v1061
        %1633 = vmatpush.bf16.msra.mxu0 %v1059
        %1634 = vmatmul.bf16.gmra.mxu0 %v578
        %v1635 = vpop.f32.mrf.mxu0
        %v1636 = vadd.f32 0.0, %v1635
        %v1637 = vpop.f32.mrf.mxu0
        %v1638 = vadd.f32 0.0, %v1637
        %1639 = vmatmul.bf16.gmra.mxu0 %v586
        %v1640 = vpop.f32.mrf.mxu0
        %v1641 = vadd.f32 0.0, %v1640
        %v1642 = vpop.f32.mrf.mxu0
        %v1643 = vadd.f32 0.0, %v1642
        %1644 = vmatmul.bf16.gmra.mxu0 %v594
        %v1645 = vpop.f32.mrf.mxu0
        %v1646 = vadd.f32 0.0, %v1645
        %v1647 = vpop.f32.mrf.mxu0
        %v1648 = vadd.f32 0.0, %v1647
        %1649 = vmatmul.bf16.gmra.mxu0 %v602
        %v1650 = vpop.f32.mrf.mxu0
        %v1651 = vadd.f32 0.0, %v1650
        %v1652 = vpop.f32.mrf.mxu0
        %v1653 = vadd.f32 0.0, %v1652
        %1654 = vmatmul.bf16.gmra.mxu0 %v610
        %v1655 = vpop.f32.mrf.mxu0
        %v1656 = vadd.f32 0.0, %v1655
        %v1657 = vpop.f32.mrf.mxu0
        %v1658 = vadd.f32 0.0, %v1657
        %1659 = vmatmul.bf16.gmra.mxu0 %v618
        %v1660 = vpop.f32.mrf.mxu0
        %v1661 = vadd.f32 0.0, %v1660
        %v1662 = vpop.f32.mrf.mxu0
        %v1663 = vadd.f32 0.0, %v1662
        %1664 = vdwg.mxu0
        %1665 = vmatpush.bf16.msra.mxu0 %v1089
        %1666 = vmatpush.bf16.msra.mxu0 %v1087
        %1667 = vmatpush.bf16.msra.mxu0 %v1085
        %1668 = vmatpush.bf16.msra.mxu0 %v1083
        %1669 = vmatpush.bf16.msra.mxu0 %v1081
        %1670 = vmatpush.bf16.msra.mxu0 %v1079
        %1671 = vmatpush.bf16.msra.mxu0 %v1077
        %1672 = vmatpush.bf16.msra.mxu0 %v1075
        %1673 = vmatmul.bf16.gmra.mxu0 %v579
        %v1674 = vpop.f32.mrf.mxu0
        %v1675 = vadd.f32 %v1636, %v1674
        %v1676 = vpop.f32.mrf.mxu0
        %v1677 = vadd.f32 %v1638, %v1676
        %1678 = vmatmul.bf16.gmra.mxu0 %v587
        %v1679 = vpop.f32.mrf.mxu0
        %v1680 = vadd.f32 %v1641, %v1679
        %v1681 = vpop.f32.mrf.mxu0
        %v1682 = vadd.f32 %v1643, %v1681
        %1683 = vmatmul.bf16.gmra.mxu0 %v595
        %v1684 = vpop.f32.mrf.mxu0
        %v1685 = vadd.f32 %v1646, %v1684
        %v1686 = vpop.f32.mrf.mxu0
        %v1687 = vadd.f32 %v1648, %v1686
        %1688 = vmatmul.bf16.gmra.mxu0 %v603
        %v1689 = vpop.f32.mrf.mxu0
        %v1690 = vadd.f32 %v1651, %v1689
        %v1691 = vpop.f32.mrf.mxu0
        %v1692 = vadd.f32 %v1653, %v1691
        %1693 = vmatmul.bf16.gmra.mxu0 %v611
        %v1694 = vpop.f32.mrf.mxu0
        %v1695 = vadd.f32 %v1656, %v1694
        %v1696 = vpop.f32.mrf.mxu0
        %v1697 = vadd.f32 %v1658, %v1696
        %1698 = vmatmul.bf16.gmra.mxu0 %v619
        %v1699 = vpop.f32.mrf.mxu0
        %v1700 = vadd.f32 %v1661, %v1699
        %v1701 = vpop.f32.mrf.mxu0
        %v1702 = vadd.f32 %v1663, %v1701
        %1703 = vdwg.mxu0
        %1704 = vmatpush.bf16.msra.mxu0 %v1105
        %1705 = vmatpush.bf16.msra.mxu0 %v1103
        %1706 = vmatpush.bf16.msra.mxu0 %v1101
        %1707 = vmatpush.bf16.msra.mxu0 %v1099
        %1708 = vmatpush.bf16.msra.mxu0 %v1097
        %1709 = vmatpush.bf16.msra.mxu0 %v1095
        %1710 = vmatpush.bf16.msra.mxu0 %v1093
        %1711 = vmatpush.bf16.msra.mxu0 %v1091
        %1712 = vmatmul.bf16.gmra.mxu0 %v580
        %v1713 = vpop.f32.mrf.mxu0
        %v1714 = vadd.f32 %v1675, %v1713
        %v1715 = vpop.f32.mrf.mxu0
        %v1716 = vadd.f32 %v1677, %v1715
        %1717 = vmatmul.bf16.gmra.mxu0 %v588
        %v1718 = vpop.f32.mrf.mxu0
        %v1719 = vadd.f32 %v1680, %v1718
        %v1720 = vpop.f32.mrf.mxu0
        %v1721 = vadd.f32 %v1682, %v1720
        %1722 = vmatmul.bf16.gmra.mxu0 %v596
        %v1723 = vpop.f32.mrf.mxu0
        %v1724 = vadd.f32 %v1685, %v1723
        %v1725 = vpop.f32.mrf.mxu0
        %v1726 = vadd.f32 %v1687, %v1725
        %1727 = vmatmul.bf16.gmra.mxu0 %v604
        %v1728 = vpop.f32.mrf.mxu0
        %v1729 = vadd.f32 %v1690, %v1728
        %v1730 = vpop.f32.mrf.mxu0
        %v1731 = vadd.f32 %v1692, %v1730
        %1732 = vmatmul.bf16.gmra.mxu0 %v612
        %v1733 = vpop.f32.mrf.mxu0
        %v1734 = vadd.f32 %v1695, %v1733
        %v1735 = vpop.f32.mrf.mxu0
        %v1736 = vadd.f32 %v1697, %v1735
        %1737 = vmatmul.bf16.gmra.mxu0 %v620
        %v1738 = vpop.f32.mrf.mxu0
        %v1739 = vadd.f32 %v1700, %v1738
        %v1740 = vpop.f32.mrf.mxu0
        %v1741 = vadd.f32 %v1702, %v1740
        %1742 = vdwg.mxu0
        %1743 = vmatpush.bf16.msra.mxu0 %v1121
        %1744 = vmatpush.bf16.msra.mxu0 %v1119
        %1745 = vmatpush.bf16.msra.mxu0 %v1117
        %1746 = vmatpush.bf16.msra.mxu0 %v1115
        %1747 = vmatpush.bf16.msra.mxu0 %v1113
        %1748 = vmatpush.bf16.msra.mxu0 %v1111
        %1749 = vmatpush.bf16.msra.mxu0 %v1109
        %1750 = vmatpush.bf16.msra.mxu0 %v1107
        %1751 = vmatmul.bf16.gmra.mxu0 %v581
        %v1752 = vpop.f32.mrf.mxu0
        %v1753 = vadd.f32 %v1714, %v1752
        %v1754 = vpop.f32.mrf.mxu0
        %v1755 = vadd.f32 %v1716, %v1754
        %1756 = vmatmul.bf16.gmra.mxu0 %v589
        %v1757 = vpop.f32.mrf.mxu0
        %v1758 = vadd.f32 %v1719, %v1757
        %v1759 = vpop.f32.mrf.mxu0
        %v1760 = vadd.f32 %v1721, %v1759
        %1761 = vmatmul.bf16.gmra.mxu0 %v597
        %v1762 = vpop.f32.mrf.mxu0
        %v1763 = vadd.f32 %v1724, %v1762
        %v1764 = vpop.f32.mrf.mxu0
        %v1765 = vadd.f32 %v1726, %v1764
        %1766 = vmatmul.bf16.gmra.mxu0 %v605
        %v1767 = vpop.f32.mrf.mxu0
        %v1768 = vadd.f32 %v1729, %v1767
        %v1769 = vpop.f32.mrf.mxu0
        %v1770 = vadd.f32 %v1731, %v1769
        %1771 = vmatmul.bf16.gmra.mxu0 %v613
        %v1772 = vpop.f32.mrf.mxu0
        %v1773 = vadd.f32 %v1734, %v1772
        %v1774 = vpop.f32.mrf.mxu0
        %v1775 = vadd.f32 %v1736, %v1774
        %1776 = vmatmul.bf16.gmra.mxu0 %v621
        %v1777 = vpop.f32.mrf.mxu0
        %v1778 = vadd.f32 %v1739, %v1777
        %v1779 = vpop.f32.mrf.mxu0
        %v1780 = vadd.f32 %v1741, %v1779
        %1781 = vdwg.mxu0
        %1782 = vmatpush.bf16.msra.mxu0 %v1137
        %1783 = vmatpush.bf16.msra.mxu0 %v1135
        %1784 = vmatpush.bf16.msra.mxu0 %v1133
        %1785 = vmatpush.bf16.msra.mxu0 %v1131
        %1786 = vmatpush.bf16.msra.mxu0 %v1129
        %1787 = vmatpush.bf16.msra.mxu0 %v1127
        %1788 = vmatpush.bf16.msra.mxu0 %v1125
        %1789 = vmatpush.bf16.msra.mxu0 %v1123
        %1790 = vmatmul.bf16.gmra.mxu0 %v582
        %v1791 = vpop.f32.mrf.mxu0
        %v1792 = vadd.f32 %v1753, %v1791
        %v1793 = vpop.f32.mrf.mxu0
        %v1794 = vadd.f32 %v1755, %v1793
        %1795 = vmatmul.bf16.gmra.mxu0 %v590
        %v1796 = vpop.f32.mrf.mxu0
        %v1797 = vadd.f32 %v1758, %v1796
        %v1798 = vpop.f32.mrf.mxu0
        %v1799 = vadd.f32 %v1760, %v1798
        %1800 = vmatmul.bf16.gmra.mxu0 %v598
        %v1801 = vpop.f32.mrf.mxu0
        %v1802 = vadd.f32 %v1763, %v1801
        %v1803 = vpop.f32.mrf.mxu0
        %v1804 = vadd.f32 %v1765, %v1803
        %1805 = vmatmul.bf16.gmra.mxu0 %v606
        %v1806 = vpop.f32.mrf.mxu0
        %v1807 = vadd.f32 %v1768, %v1806
        %v1808 = vpop.f32.mrf.mxu0
        %v1809 = vadd.f32 %v1770, %v1808
        %1810 = vmatmul.bf16.gmra.mxu0 %v614
        %v1811 = vpop.f32.mrf.mxu0
        %v1812 = vadd.f32 %v1773, %v1811
        %v1813 = vpop.f32.mrf.mxu0
        %v1814 = vadd.f32 %v1775, %v1813
        %1815 = vmatmul.bf16.gmra.mxu0 %v622
        %v1816 = vpop.f32.mrf.mxu0
        %v1817 = vadd.f32 %v1778, %v1816
        %v1818 = vpop.f32.mrf.mxu0
        %v1819 = vadd.f32 %v1780, %v1818
        %1820 = vdwg.mxu0
        %1821 = vmatpush.bf16.msra.mxu0 %v1153
        %1822 = vmatpush.bf16.msra.mxu0 %v1151
        %1823 = vmatpush.bf16.msra.mxu0 %v1149
        %1824 = vmatpush.bf16.msra.mxu0 %v1147
        %1825 = vmatpush.bf16.msra.mxu0 %v1145
        %1826 = vmatpush.bf16.msra.mxu0 %v1143
        %1827 = vmatpush.bf16.msra.mxu0 %v1141
        %1828 = vmatpush.bf16.msra.mxu0 %v1139
        %1829 = vmatmul.bf16.gmra.mxu0 %v583
        %v1830 = vpop.f32.mrf.mxu0
        %v1831 = vadd.f32 %v1792, %v1830
        %v1832 = vpop.f32.mrf.mxu0
        %v1833 = vadd.f32 %v1794, %v1832
        %1834 = vmatmul.bf16.gmra.mxu0 %v591
        %v1835 = vpop.f32.mrf.mxu0
        %v1836 = vadd.f32 %v1797, %v1835
        %v1837 = vpop.f32.mrf.mxu0
        %v1838 = vadd.f32 %v1799, %v1837
        %1839 = vmatmul.bf16.gmra.mxu0 %v599
        %v1840 = vpop.f32.mrf.mxu0
        %v1841 = vadd.f32 %v1802, %v1840
        %v1842 = vpop.f32.mrf.mxu0
        %v1843 = vadd.f32 %v1804, %v1842
        %1844 = vmatmul.bf16.gmra.mxu0 %v607
        %v1845 = vpop.f32.mrf.mxu0
        %v1846 = vadd.f32 %v1807, %v1845
        %v1847 = vpop.f32.mrf.mxu0
        %v1848 = vadd.f32 %v1809, %v1847
        %1849 = vmatmul.bf16.gmra.mxu0 %v615
        %v1850 = vpop.f32.mrf.mxu0
        %v1851 = vadd.f32 %v1812, %v1850
        %v1852 = vpop.f32.mrf.mxu0
        %v1853 = vadd.f32 %v1814, %v1852
        %1854 = vmatmul.bf16.gmra.mxu0 %v623
        %v1855 = vpop.f32.mrf.mxu0
        %v1856 = vadd.f32 %v1817, %v1855
        %v1857 = vpop.f32.mrf.mxu0
        %v1858 = vadd.f32 %v1819, %v1857
        %1859 = vdwg.mxu0
        %1860 = vmatpush.bf16.msra.mxu0 %v1169
        %1861 = vmatpush.bf16.msra.mxu0 %v1167
        %1862 = vmatpush.bf16.msra.mxu0 %v1165
        %1863 = vmatpush.bf16.msra.mxu0 %v1163
        %1864 = vmatpush.bf16.msra.mxu0 %v1161
        %1865 = vmatpush.bf16.msra.mxu0 %v1159
        %1866 = vmatpush.bf16.msra.mxu0 %v1157
        %1867 = vmatpush.bf16.msra.mxu0 %v1155
        %1868 = vmatmul.bf16.gmra.mxu0 %v584
        %v1869 = vpop.f32.mrf.mxu0
        %v1870 = vadd.f32 %v1831, %v1869
        %v1871 = vpop.f32.mrf.mxu0
        %v1872 = vadd.f32 %v1833, %v1871
        %1873 = vmatmul.bf16.gmra.mxu0 %v592
        %v1874 = vpop.f32.mrf.mxu0
        %v1875 = vadd.f32 %v1836, %v1874
        %v1876 = vpop.f32.mrf.mxu0
        %v1877 = vadd.f32 %v1838, %v1876
        %1878 = vmatmul.bf16.gmra.mxu0 %v600
        %v1879 = vpop.f32.mrf.mxu0
        %v1880 = vadd.f32 %v1841, %v1879
        %v1881 = vpop.f32.mrf.mxu0
        %v1882 = vadd.f32 %v1843, %v1881
        %1883 = vmatmul.bf16.gmra.mxu0 %v608
        %v1884 = vpop.f32.mrf.mxu0
        %v1885 = vadd.f32 %v1846, %v1884
        %v1886 = vpop.f32.mrf.mxu0
        %v1887 = vadd.f32 %v1848, %v1886
        %1888 = vmatmul.bf16.gmra.mxu0 %v616
        %v1889 = vpop.f32.mrf.mxu0
        %v1890 = vadd.f32 %v1851, %v1889
        %v1891 = vpop.f32.mrf.mxu0
        %v1892 = vadd.f32 %v1853, %v1891
        %1893 = vmatmul.bf16.gmra.mxu0 %v624
        %v1894 = vpop.f32.mrf.mxu0
        %v1895 = vadd.f32 %v1856, %v1894
        %v1896 = vpop.f32.mrf.mxu0
        %v1897 = vadd.f32 %v1858, %v1896
        %1898 = vdwg.mxu0
        %1899 = vmatpush.bf16.msra.mxu0 %v1185
        %1900 = vmatpush.bf16.msra.mxu0 %v1183
        %1901 = vmatpush.bf16.msra.mxu0 %v1181
        %1902 = vmatpush.bf16.msra.mxu0 %v1179
        %1903 = vmatpush.bf16.msra.mxu0 %v1177
        %1904 = vmatpush.bf16.msra.mxu0 %v1175
        %1905 = vmatpush.bf16.msra.mxu0 %v1173
        %1906 = vmatpush.bf16.msra.mxu0 %v1171
        %1907 = vmatmul.bf16.gmra.mxu0 %v585
        %v1908 = vpop.f32.mrf.mxu0
        %v1909 = vadd.f32 %v1870, %v1908
        %v1910 = vpop.f32.mrf.mxu0
        %v1911 = vadd.f32 %v1872, %v1910
        %1912 = vmatmul.bf16.gmra.mxu0 %v593
        %v1913 = vpop.f32.mrf.mxu0
        %v1914 = vadd.f32 %v1875, %v1913
        %v1915 = vpop.f32.mrf.mxu0
        %v1916 = vadd.f32 %v1877, %v1915
        %1917 = vmatmul.bf16.gmra.mxu0 %v601
        %v1918 = vpop.f32.mrf.mxu0
        %v1919 = vadd.f32 %v1880, %v1918
        %v1920 = vpop.f32.mrf.mxu0
        %v1921 = vadd.f32 %v1882, %v1920
        %1922 = vmatmul.bf16.gmra.mxu0 %v609
        %v1923 = vpop.f32.mrf.mxu0
        %v1924 = vadd.f32 %v1885, %v1923
        %v1925 = vpop.f32.mrf.mxu0
        %v1926 = vadd.f32 %v1887, %v1925
        %1927 = vmatmul.bf16.gmra.mxu0 %v617
        %v1928 = vpop.f32.mrf.mxu0
        %v1929 = vadd.f32 %v1890, %v1928
        %v1930 = vpop.f32.mrf.mxu0
        %v1931 = vadd.f32 %v1892, %v1930
        %1932 = vmatmul.bf16.gmra.mxu0 %v625
        %v1933 = vpop.f32.mrf.mxu0
        %v1934 = vadd.f32 %v1895, %v1933
        %v1935 = vpop.f32.mrf.mxu0
        %v1936 = vadd.f32 %v1897, %v1935
        %1937 = vdwg.mxu0
        %v1938 = vadd.f32 %v1597, %v1612
        %v1939 = vadd.f32 %v1909, %v1924
        %v1940 = vadd.f32 %v1599, %v1614
        %v1941 = vadd.f32 %v1911, %v1926
        %v1942 = vadd.f32 %v1602, %v1617
        %v1943 = vadd.f32 %v1914, %v1929
        %v1944 = vadd.f32 %v1604, %v1619
        %v1945 = vadd.f32 %v1916, %v1931
        %v1946 = vadd.f32 %v1607, %v1622
        %v1947 = vadd.f32 %v1919, %v1934
        %v1948 = vadd.f32 %v1609, %v1624
        %v1949 = vadd.f32 %v1921, %v1936
        %v1950 = vmul.f32 %v1597, %v1597
        %v1951 = vmul.f32 %v1599, %v1599
        %v1952 = vmul.f32 %v1602, %v1602
        %v1953 = vmul.f32 %v1604, %v1604
        %v1954 = vmul.f32 %v1607, %v1607
        %v1955 = vmul.f32 %v1609, %v1609
        %v1956 = vmul.f32 %v1909, %v1909
        %v1957 = vmul.f32 %v1911, %v1911
        %v1958 = vmul.f32 %v1914, %v1914
        %v1959 = vmul.f32 %v1916, %v1916
        %v1960 = vmul.f32 %v1919, %v1919
        %v1961 = vmul.f32 %v1921, %v1921
        %v1962 = vadd.f32 %v1950, %v1956
        %v1963 = vadd.f32 %v1951, %v1957
        %v1964 = vadd.f32 %v1952, %v1958
        %v1965 = vadd.f32 %v1953, %v1959
        %v1966 = vadd.f32 %v1954, %v1960
        %v1967 = vadd.f32 %v1955, %v1961
        %v1968 = vmax.f32 %v1962, 1e-08
        %v1969 = vmax.f32 %v1963, 1e-08
        %v1970 = vmax.f32 %v1964, 1e-08
        %v1971 = vmax.f32 %v1965, 1e-08
        %v1972 = vmax.f32 %v1966, 1e-08
        %v1973 = vmax.f32 %v1967, 1e-08
        %v1974 = vrsqrt.pop %v1968
        %v1975 = vmul.f32 %v1974, %v1968
        %v1976 = vmul.f32 %v1975, %v1974
        %v1977 = vmul.f32 0.5, %v1976
        %v1978 = vsub.f32 1.5, %v1977
        %v1979 = vmul.f32 %v1974, %v1978
        %v1980 = vmul.f32 %v1968, %v1979
        %vm1981 = vcmp.eq.f32.partialorder %v1968, inf
        %v1982 = vsel %vm1981, %v1968, %v1980
        %vm1983 = vcmp.eq.f32.partialorder %v1968, 0.0
        %v1984 = vand.u32 %v1968, 2147483648
        %v1985 = vsel %vm1983, %v1984, %v1982
        %v1986 = vrsqrt.pop %v1969
        %v1987 = vmul.f32 %v1986, %v1969
        %v1988 = vmul.f32 %v1987, %v1986
        %v1989 = vmul.f32 0.5, %v1988
        %v1990 = vsub.f32 1.5, %v1989
        %v1991 = vmul.f32 %v1986, %v1990
        %v1992 = vmul.f32 %v1969, %v1991
        %vm1993 = vcmp.eq.f32.partialorder %v1969, inf
        %v1994 = vsel %vm1993, %v1969, %v1992
        %vm1995 = vcmp.eq.f32.partialorder %v1969, 0.0
        %v1996 = vand.u32 %v1969, 2147483648
        %v1997 = vsel %vm1995, %v1996, %v1994
        %v1998 = vrsqrt.pop %v1970
        %v1999 = vmul.f32 %v1998, %v1970
        %v2000 = vmul.f32 %v1999, %v1998
        %v2001 = vmul.f32 0.5, %v2000
        %v2002 = vsub.f32 1.5, %v2001
        %v2003 = vmul.f32 %v1998, %v2002
        %v2004 = vmul.f32 %v1970, %v2003
        %vm2005 = vcmp.eq.f32.partialorder %v1970, inf
        %v2006 = vsel %vm2005, %v1970, %v2004
        %vm2007 = vcmp.eq.f32.partialorder %v1970, 0.0
        %v2008 = vand.u32 %v1970, 2147483648
        %v2009 = vsel %vm2007, %v2008, %v2006
        %v2010 = vrsqrt.pop %v1971
        %v2011 = vmul.f32 %v2010, %v1971
        %v2012 = vmul.f32 %v2011, %v2010
        %v2013 = vmul.f32 0.5, %v2012
        %v2014 = vsub.f32 1.5, %v2013
        %v2015 = vmul.f32 %v2010, %v2014
        %v2016 = vmul.f32 %v1971, %v2015
        %vm2017 = vcmp.eq.f32.partialorder %v1971, inf
        %v2018 = vsel %vm2017, %v1971, %v2016
        %vm2019 = vcmp.eq.f32.partialorder %v1971, 0.0
        %v2020 = vand.u32 %v1971, 2147483648
        %v2021 = vsel %vm2019, %v2020, %v2018
        %v2022 = vrsqrt.pop %v1972
        %v2023 = vmul.f32 %v2022, %v1972
        %v2024 = vmul.f32 %v2023, %v2022
        %v2025 = vmul.f32 0.5, %v2024
        %v2026 = vsub.f32 1.5, %v2025
        %v2027 = vmul.f32 %v2022, %v2026
        %v2028 = vmul.f32 %v1972, %v2027
        %vm2029 = vcmp.eq.f32.partialorder %v1972, inf
        %v2030 = vsel %vm2029, %v1972, %v2028
        %vm2031 = vcmp.eq.f32.partialorder %v1972, 0.0
        %v2032 = vand.u32 %v1972, 2147483648
        %v2033 = vsel %vm2031, %v2032, %v2030
        %v2034 = vrsqrt.pop %v1973
        %v2035 = vmul.f32 %v2034, %v1973
        %v2036 = vmul.f32 %v2035, %v2034
        %v2037 = vmul.f32 0.5, %v2036
        %v2038 = vsub.f32 1.5, %v2037
        %v2039 = vmul.f32 %v2034, %v2038
        %v2040 = vmul.f32 %v1973, %v2039
        %vm2041 = vcmp.eq.f32.partialorder %v1973, inf
        %v2042 = vsel %vm2041, %v1973, %v2040
        %vm2043 = vcmp.eq.f32.partialorder %v1973, 0.0
        %v2044 = vand.u32 %v1973, 2147483648
        %v2045 = vsel %vm2043, %v2044, %v2042
        %v2046 = vmul.f32 %v1612, %v1612
        %v2047 = vmul.f32 %v1614, %v1614
        %v2048 = vmul.f32 %v1617, %v1617
        %v2049 = vmul.f32 %v1619, %v1619
        %v2050 = vmul.f32 %v1622, %v1622
        %v2051 = vmul.f32 %v1624, %v1624
        %v2052 = vmul.f32 %v1924, %v1924
        %v2053 = vmul.f32 %v1926, %v1926
        %v2054 = vmul.f32 %v1929, %v1929
        %v2055 = vmul.f32 %v1931, %v1931
        %v2056 = vmul.f32 %v1934, %v1934
        %v2057 = vmul.f32 %v1936, %v1936
        %v2058 = vadd.f32 %v2046, %v2052
        %v2059 = vadd.f32 %v2047, %v2053
        %v2060 = vadd.f32 %v2048, %v2054
        %v2061 = vadd.f32 %v2049, %v2055
        %v2062 = vadd.f32 %v2050, %v2056
        %v2063 = vadd.f32 %v2051, %v2057
        %v2064 = vmax.f32 %v2058, 1e-08
        %v2065 = vmax.f32 %v2059, 1e-08
        %v2066 = vmax.f32 %v2060, 1e-08
        %v2067 = vmax.f32 %v2061, 1e-08
        %v2068 = vmax.f32 %v2062, 1e-08
        %v2069 = vmax.f32 %v2063, 1e-08
        %v2070 = vrsqrt.pop %v2064
        %v2071 = vmul.f32 %v2070, %v2064
        %v2072 = vmul.f32 %v2071, %v2070
        %v2073 = vmul.f32 0.5, %v2072
        %v2074 = vsub.f32 1.5, %v2073
        %v2075 = vmul.f32 %v2070, %v2074
        %v2076 = vmul.f32 %v2064, %v2075
        %vm2077 = vcmp.eq.f32.partialorder %v2064, inf
        %v2078 = vsel %vm2077, %v2064, %v2076
        %vm2079 = vcmp.eq.f32.partialorder %v2064, 0.0
        %v2080 = vand.u32 %v2064, 2147483648
        %v2081 = vsel %vm2079, %v2080, %v2078
        %v2082 = vrsqrt.pop %v2065
        %v2083 = vmul.f32 %v2082, %v2065
        %v2084 = vmul.f32 %v2083, %v2082
        %v2085 = vmul.f32 0.5, %v2084
        %v2086 = vsub.f32 1.5, %v2085
        %v2087 = vmul.f32 %v2082, %v2086
        %v2088 = vmul.f32 %v2065, %v2087
        %vm2089 = vcmp.eq.f32.partialorder %v2065, inf
        %v2090 = vsel %vm2089, %v2065, %v2088
        %vm2091 = vcmp.eq.f32.partialorder %v2065, 0.0
        %v2092 = vand.u32 %v2065, 2147483648
        %v2093 = vsel %vm2091, %v2092, %v2090
        %v2094 = vrsqrt.pop %v2066
        %v2095 = vmul.f32 %v2094, %v2066
        %v2096 = vmul.f32 %v2095, %v2094
        %v2097 = vmul.f32 0.5, %v2096
        %v2098 = vsub.f32 1.5, %v2097
        %v2099 = vmul.f32 %v2094, %v2098
        %v2100 = vmul.f32 %v2066, %v2099
        %vm2101 = vcmp.eq.f32.partialorder %v2066, inf
        %v2102 = vsel %vm2101, %v2066, %v2100
        %vm2103 = vcmp.eq.f32.partialorder %v2066, 0.0
        %v2104 = vand.u32 %v2066, 2147483648
        %v2105 = vsel %vm2103, %v2104, %v2102
        %v2106 = vrsqrt.pop %v2067
        %v2107 = vmul.f32 %v2106, %v2067
        %v2108 = vmul.f32 %v2107, %v2106
        %v2109 = vmul.f32 0.5, %v2108
        %v2110 = vsub.f32 1.5, %v2109
        %v2111 = vmul.f32 %v2106, %v2110
        %v2112 = vmul.f32 %v2067, %v2111
        %vm2113 = vcmp.eq.f32.partialorder %v2067, inf
        %v2114 = vsel %vm2113, %v2067, %v2112
        %vm2115 = vcmp.eq.f32.partialorder %v2067, 0.0
        %v2116 = vand.u32 %v2067, 2147483648
        %v2117 = vsel %vm2115, %v2116, %v2114
        %v2118 = vrsqrt.pop %v2068
        %v2119 = vmul.f32 %v2118, %v2068
        %v2120 = vmul.f32 %v2119, %v2118
        %v2121 = vmul.f32 0.5, %v2120
        %v2122 = vsub.f32 1.5, %v2121
        %v2123 = vmul.f32 %v2118, %v2122
        %v2124 = vmul.f32 %v2068, %v2123
        %vm2125 = vcmp.eq.f32.partialorder %v2068, inf
        %v2126 = vsel %vm2125, %v2068, %v2124
        %vm2127 = vcmp.eq.f32.partialorder %v2068, 0.0
        %v2128 = vand.u32 %v2068, 2147483648
        %v2129 = vsel %vm2127, %v2128, %v2126
        %v2130 = vrsqrt.pop %v2069
        %v2131 = vmul.f32 %v2130, %v2069
        %v2132 = vmul.f32 %v2131, %v2130
        %v2133 = vmul.f32 0.5, %v2132
        %v2134 = vsub.f32 1.5, %v2133
        %v2135 = vmul.f32 %v2130, %v2134
        %v2136 = vmul.f32 %v2069, %v2135
        %vm2137 = vcmp.eq.f32.partialorder %v2069, inf
        %v2138 = vsel %vm2137, %v2069, %v2136
        %vm2139 = vcmp.eq.f32.partialorder %v2069, 0.0
        %v2140 = vand.u32 %v2069, 2147483648
        %v2141 = vsel %vm2139, %v2140, %v2138
        %v2142 = vadd.f32 %v1985, %v2081
        %v2143 = vadd.f32 %v1997, %v2093
        %v2144 = vadd.f32 %v2009, %v2105
        %v2145 = vadd.f32 %v2021, %v2117
        %v2146 = vadd.f32 %v2033, %v2129
        %v2147 = vadd.f32 %v2045, %v2141
        %v2148 = vmul.f32 %v1938, %v1938
        %v2149 = vmul.f32 %v1940, %v1940
        %v2150 = vmul.f32 %v1942, %v1942
        %v2151 = vmul.f32 %v1944, %v1944
        %v2152 = vmul.f32 %v1946, %v1946
        %v2153 = vmul.f32 %v1948, %v1948
        %v2154 = vmul.f32 %v1939, %v1939
        %v2155 = vmul.f32 %v1941, %v1941
        %v2156 = vmul.f32 %v1943, %v1943
        %v2157 = vmul.f32 %v1945, %v1945
        %v2158 = vmul.f32 %v1947, %v1947
        %v2159 = vmul.f32 %v1949, %v1949
        %v2160 = vadd.f32 %v2148, %v2154
        %v2161 = vadd.f32 %v2149, %v2155
        %v2162 = vadd.f32 %v2150, %v2156
        %v2163 = vadd.f32 %v2151, %v2157
        %v2164 = vadd.f32 %v2152, %v2158
        %v2165 = vadd.f32 %v2153, %v2159
        %v2166 = vmax.f32 %v2160, 1e-08
        %v2167 = vmax.f32 %v2161, 1e-08
        %v2168 = vmax.f32 %v2162, 1e-08
        %v2169 = vmax.f32 %v2163, 1e-08
        %v2170 = vmax.f32 %v2164, 1e-08
        %v2171 = vmax.f32 %v2165, 1e-08
        %v2172 = vrsqrt.pop %v2166
        %v2173 = vmul.f32 %v2172, %v2166
        %v2174 = vmul.f32 %v2173, %v2172
        %v2175 = vmul.f32 0.5, %v2174
        %v2176 = vsub.f32 1.5, %v2175
        %v2177 = vmul.f32 %v2172, %v2176
        %v2178 = vmul.f32 %v2166, %v2177
        %vm2179 = vcmp.eq.f32.partialorder %v2166, inf
        %v2180 = vsel %vm2179, %v2166, %v2178
        %vm2181 = vcmp.eq.f32.partialorder %v2166, 0.0
        %v2182 = vand.u32 %v2166, 2147483648
        %v2183 = vsel %vm2181, %v2182, %v2180
        %v2184 = vrsqrt.pop %v2167
        %v2185 = vmul.f32 %v2184, %v2167
        %v2186 = vmul.f32 %v2185, %v2184
        %v2187 = vmul.f32 0.5, %v2186
        %v2188 = vsub.f32 1.5, %v2187
        %v2189 = vmul.f32 %v2184, %v2188
        %v2190 = vmul.f32 %v2167, %v2189
        %vm2191 = vcmp.eq.f32.partialorder %v2167, inf
        %v2192 = vsel %vm2191, %v2167, %v2190
        %vm2193 = vcmp.eq.f32.partialorder %v2167, 0.0
        %v2194 = vand.u32 %v2167, 2147483648
        %v2195 = vsel %vm2193, %v2194, %v2192
        %v2196 = vrsqrt.pop %v2168
        %v2197 = vmul.f32 %v2196, %v2168
        %v2198 = vmul.f32 %v2197, %v2196
        %v2199 = vmul.f32 0.5, %v2198
        %v2200 = vsub.f32 1.5, %v2199
        %v2201 = vmul.f32 %v2196, %v2200
        %v2202 = vmul.f32 %v2168, %v2201
        %vm2203 = vcmp.eq.f32.partialorder %v2168, inf
        %v2204 = vsel %vm2203, %v2168, %v2202
        %vm2205 = vcmp.eq.f32.partialorder %v2168, 0.0
        %v2206 = vand.u32 %v2168, 2147483648
        %v2207 = vsel %vm2205, %v2206, %v2204
        %v2208 = vrsqrt.pop %v2169
        %v2209 = vmul.f32 %v2208, %v2169
        %v2210 = vmul.f32 %v2209, %v2208
        %v2211 = vmul.f32 0.5, %v2210
        %v2212 = vsub.f32 1.5, %v2211
        %v2213 = vmul.f32 %v2208, %v2212
        %v2214 = vmul.f32 %v2169, %v2213
        %vm2215 = vcmp.eq.f32.partialorder %v2169, inf
        %v2216 = vsel %vm2215, %v2169, %v2214
        %vm2217 = vcmp.eq.f32.partialorder %v2169, 0.0
        %v2218 = vand.u32 %v2169, 2147483648
        %v2219 = vsel %vm2217, %v2218, %v2216
        %v2220 = vrsqrt.pop %v2170
        %v2221 = vmul.f32 %v2220, %v2170
        %v2222 = vmul.f32 %v2221, %v2220
        %v2223 = vmul.f32 0.5, %v2222
        %v2224 = vsub.f32 1.5, %v2223
        %v2225 = vmul.f32 %v2220, %v2224
        %v2226 = vmul.f32 %v2170, %v2225
        %vm2227 = vcmp.eq.f32.partialorder %v2170, inf
        %v2228 = vsel %vm2227, %v2170, %v2226
        %vm2229 = vcmp.eq.f32.partialorder %v2170, 0.0
        %v2230 = vand.u32 %v2170, 2147483648
        %v2231 = vsel %vm2229, %v2230, %v2228
        %v2232 = vrsqrt.pop %v2171
        %v2233 = vmul.f32 %v2232, %v2171
        %v2234 = vmul.f32 %v2233, %v2232
        %v2235 = vmul.f32 0.5, %v2234
        %v2236 = vsub.f32 1.5, %v2235
        %v2237 = vmul.f32 %v2232, %v2236
        %v2238 = vmul.f32 %v2171, %v2237
        %vm2239 = vcmp.eq.f32.partialorder %v2171, inf
        %v2240 = vsel %vm2239, %v2171, %v2238
        %vm2241 = vcmp.eq.f32.partialorder %v2171, 0.0
        %v2242 = vand.u32 %v2171, 2147483648
        %v2243 = vsel %vm2241, %v2242, %v2240
        %v2244 = vsub.f32 %v2142, %v2183
        %v2245 = vsub.f32 %v2143, %v2195
        %v2246 = vsub.f32 %v2144, %v2207
        %v2247 = vsub.f32 %v2145, %v2219
        %v2248 = vsub.f32 %v2146, %v2231
        %v2249 = vsub.f32 %v2147, %v2243
        %p2250 = scmp.ne.s32.totalorder %s13, 1
        // Predicated region
        $region52: #{multi_resolution_stft_loss.3} parent=46 // pred_check
          %p2251 = pneg %p2250
        $region53: #{multi_resolution_stft_loss.3} parent=46 // pred_check_branch
          %2253 = sbr.rel (%p2251) target = $region55
        $region54: #{multi_resolution_stft_loss.3} parent=46 // pred_region
          %v2254 = vmul.f32 %v2244, %v2244
          %v2255 = vmul.f32 %v2245, %v2245
          %v2256 = vmul.f32 %v2246, %v2246
          %v2257 = vmul.f32 %v2247, %v2247
          %v2258 = vmul.f32 %v2248, %v2248
          %v2259 = vmul.f32 %v2249, %v2249
          %v2260 = vadd.f32 %v2254, %v2255
          %v2261 = vadd.f32 %v2260, %v2256
          %v2262 = vadd.f32 %v2261, %v2257
          %v2263 = vadd.f32 %v2262, %v2258
          %v2264 = vadd.f32 %v2263, %v2259
          %2265 = vadd.xlane.f32.xlu0 %v2264
          %v2266 = vpop.xlane.xlu0 %2265
          %v2267 = vrot.slane %v2266, 4
          %v2268 = vadd.f32 %v2266, %v2267
          %v2269 = vrot.slane %v2268, 2
          %v2270 = vadd.f32 %v2268, %v2269
          %v2271 = vrot.slane %v2270, 1
          %v2272 = vadd.f32 %v2270, %v2271
          %s2273 = vtos %v2272
          %v2274 = vstv %s2273
          %2275 = vst [vmem:[%s257] sm:$0xff] %v2274
        $region55: #{multi_resolution_stft_loss.3} parent=46 // pred_fallthru
          _
        %p2276 = scmp.eq.s32.totalorder %s13, 1
        // Predicated region
        $region56: #{multi_resolution_stft_loss.3} parent=46 // pred_check
          %p2277 = pneg %p2276
        $region57: #{multi_resolution_stft_loss.3} parent=46 // pred_check_branch
          %2279 = sbr.rel (%p2277) target = $region59
        $region58: #{multi_resolution_stft_loss.3} parent=46 // pred_region
          %v2280 = vlaneseq
          %v2281 = vshrl.u32 %v2280, 7
          %v2282 = vadd.s32 %v2281, 8
          %v2283 = vadd.s32 %v2281, 16
          %v2284 = vadd.s32 %v2281, 24
          %v2285 = vadd.s32 %v2281, 32
          %v2286 = vadd.s32 %v2281, 40
          %vm2287 = vcmp.lt.s32.totalorder %v2281, 22
          %vm2288 = vcmp.lt.s32.totalorder %v2282, 22
          %vm2289 = vcmp.lt.s32.totalorder %v2283, 22
          %vm2290 = vcmp.lt.s32.totalorder %v2284, 22
          %vm2291 = vcmp.lt.s32.totalorder %v2285, 22
          %vm2292 = vcmp.lt.s32.totalorder %v2286, 22
          %v2293 = vsel %vm2287, %v2244, 0.0
          %v2294 = vsel %vm2288, %v2245, 0.0
          %v2295 = vsel %vm2289, %v2246, 0.0
          %v2296 = vsel %vm2290, %v2247, 0.0
          %v2297 = vsel %vm2291, %v2248, 0.0
          %v2298 = vsel %vm2292, %v2249, 0.0
          %v2299 = vmul.f32 %v2293, %v2293
          %v2300 = vmul.f32 %v2294, %v2294
          %v2301 = vmul.f32 %v2295, %v2295
          %v2302 = vmul.f32 %v2296, %v2296
          %v2303 = vmul.f32 %v2297, %v2297
          %v2304 = vmul.f32 %v2298, %v2298
          %v2305 = vadd.f32 %v2299, %v2300
          %v2306 = vadd.f32 %v2305, %v2301
          %v2307 = vadd.f32 %v2306, %v2302
          %v2308 = vadd.f32 %v2307, %v2303
          %v2309 = vadd.f32 %v2308, %v2304
          %2310 = vadd.xlane.f32.xlu0 %v2309
          %v2311 = vpop.xlane.xlu0 %2310
          %v2312 = vrot.slane %v2311, 4
          %v2313 = vadd.f32 %v2311, %v2312
          %v2314 = vrot.slane %v2313, 2
          %v2315 = vadd.f32 %v2313, %v2314
          %v2316 = vrot.slane %v2315, 1
          %v2317 = vadd.f32 %v2315, %v2316
          %s2318 = vtos %v2317
          %v2319 = vstv %s2318
          %2320 = vst [vmem:[%s257] sm:$0xff] %v2319
        $region59: #{multi_resolution_stft_loss.3} parent=46 // pred_fallthru
          _
        %p2321 = scmp.lt.s32.totalorder %s13, 1
        %s2322 = scalar_select %p2321, %s13, 1
        %s2323 = smul.addr %s2322, 8
        %s2324 = scalar_lea.vmem %s2, %s2323
        // Predicated region
        $region60: #{multi_resolution_stft_loss.3} parent=46 // pred_check
          %p2325 = pneg %p78
        $region61: #{multi_resolution_stft_loss.3} parent=46 // pred_check_branch
          %2327 = sbr.rel (%p2325) target = $region63
        $region62: #{multi_resolution_stft_loss.3} parent=46 // pred_region
          _
        $region63: #{multi_resolution_stft_loss.3} parent=46 // pred_fallthru
          _
      $region47: #{multi_resolution_stft_loss.3} parent=5 // pred_fallthru
        _
      %p2328 = scmp.le.s32.totalorder 2, %s8
      // Predicated region
      $region64: #{multi_resolution_stft_loss.3} parent=5 // pred_check
        %p2329 = pneg %p2328
      $region65: #{multi_resolution_stft_loss.3} parent=5 // pred_check_branch
        %2331 = sbr.rel (%p2329) target = $region67
      $region66: #{multi_resolution_stft_loss.3} parent=5 // pred_region
        %s2332 = ssub.s32 %s8, 2
        // Predicated region
        $region68: #{multi_resolution_stft_loss.3} parent=66 // pred_check
          %p2333 = pneg %p84
        $region69: #{multi_resolution_stft_loss.3} parent=66 // pred_check_branch
          %2335 = sbr.rel (%p2333) target = $region71
        $region70: #{multi_resolution_stft_loss.3} parent=66 // pred_region
          %p2336 = scmp.lt.s32.totalorder %s14, 1
          %s2337 = scalar_select %p2336, %s14, 1
          %s2338 = smul.addr %s2337, 8
          %s2339 = scalar_lea.vmem %s2, %s2338
        $region71: #{multi_resolution_stft_loss.3} parent=66 // pred_fallthru
          _
      $region67: #{multi_resolution_stft_loss.3} parent=5 // pred_fallthru
        _
    $region6: #{multi_resolution_stft_loss.3} parent=1 // loop_footer
      %s12 = sadd.s32 1, %s8
    $region7: #{multi_resolution_stft_loss.3} parent=1 // loop_footer_branch
      %7 = sbr.rel target = $region3
    $region8: #{multi_resolution_stft_loss.3} parent=1 // loop_exit
      _

// kernel: multi_resolution_stft_loss.5
$region0: #{multi_resolution_stft_loss.5}
  #allocation0 [shape = 'u32[]', space=smem, size = 0x4, offset = 0x4, fixed_abs, tag = 'smem constant byte address 0x4 - core index']
  #allocation1 [shape = 'u32[72,128]{1,0:T(1,128)}', space=vmem, size = 0x9000, scoped, tag = 'internal scratch']
  %s0 = inlined_call_operand.vmem [shape: bf16[2,64,2048], index: 0, kind: input, shape index: {}]
  %s1 = inlined_call_operand.vmem [shape: bf16[2048,512], index: 1, kind: input, shape index: {}]
  %s2 = inlined_call_operand.vmem [shape: f32[2,8,128], index: 2, kind: output, shape index: {}]
  %s3 = sld [smem:[#allocation0]]
  $region72: #{multi_resolution_stft_loss.5} parent=0
    _
  %s5 = ssub.s32 1, %s3
  %s6 = scalar_select 0, %s5, %s3
  $region1: #{multi_resolution_stft_loss.5} parent=0
    #allocation2 [shape = 'u8[524288]{0}', space=vmem, size = 0x80000, scoped, tag = 'input window, operand 0']
    loop: start=0, step=1, limit=4
    $region2: #{multi_resolution_stft_loss.5} parent=1 // loop_pre_header
      _
    $region3: #{multi_resolution_stft_loss.5} parent=1 // loop_header
      %s8 = sphi 0, %s12
      %p9 = scmp.ge.s32.totalorder %s8, 4
      %s18 = sphi 0, %s20
      %s21 = sphi 0, %s18
      %s22 = sphi 0, %s21
      %s38 = sphi 0, %s22
      %s42 = sphi 0, %s42
      %s44 = sphi 0, %s42
      %s45 = sphi 0, %s44
      %s59 = sphi 0, %s45
      %s65 = sphi 0, %s67
      %s68 = sphi 0, %s65
      %s69 = sphi 0, %s68
      %s85 = sphi 0, %s69
    $region4: #{multi_resolution_stft_loss.5} parent=1 // loop_header_branch
      %11 = sbr.rel (%p9) target = $region8
    $region5: #{multi_resolution_stft_loss.5} parent=1 // loop_body
      %s13 = ssub.s32 %s8, 1
      %s14 = ssub.s32 %s8, 2
      %s15 = sadd.s32 %s8, 1
      %s16 = ssub.s32 %s8, %s15
      %p17 = scmp.eq.s32.totalorder %s16, 0
      %s19 = sadd.s32 %s18, 1
      %s20 = scalar_select %p17, %s18, %s19
      %p23 = pneg %p17
      %p24 = scmp.eq.s32.totalorder %s8, 1
      %p25 = por %p23, %p24
      %p26 = scmp.ne.s32.totalorder %s18, %s21
      %p27 = scmp.eq.s32.totalorder %s8, 0
      %p28 = por %p26, %p27
      %p29 = scmp.ne.s32.totalorder %s18, %s21
      %p30 = scmp.eq.s32.totalorder %s13, 1
      %p31 = por %p29, %p30
      %p32 = scmp.ne.s32.totalorder %s21, %s22
      %p33 = scmp.eq.s32.totalorder %s13, 0
      %p34 = por %p32, %p33
      %p35 = scmp.ne.s32.totalorder %s21, %s22
      %p36 = scmp.eq.s32.totalorder %s14, 1
      %p37 = por %p35, %p36
      %p39 = scmp.ne.s32.totalorder %s22, %s38
      %p40 = scmp.eq.s32.totalorder %s14, 0
      %p41 = por %p39, %p40
      %s43 = sadd.s32 %s42, 1
      %p46 = scmp.eq.s32.totalorder %s8, 1
      %p47 = scmp.ne.s32.totalorder %s42, %s44
      %p48 = scmp.eq.s32.totalorder %s8, 0
      %p49 = por %p47, %p48
      %p50 = scmp.ne.s32.totalorder %s42, %s44
      %p51 = scmp.eq.s32.totalorder %s13, 1
      %p52 = por %p50, %p51
      %p53 = scmp.ne.s32.totalorder %s44, %s45
      %p54 = scmp.eq.s32.totalorder %s13, 0
      %p55 = por %p53, %p54
      %p56 = scmp.ne.s32.totalorder %s44, %s45
      %p57 = scmp.eq.s32.totalorder %s14, 1
      %p58 = por %p56, %p57
      %p60 = scmp.ne.s32.totalorder %s45, %s59
      %p61 = scmp.eq.s32.totalorder %s14, 0
      %p62 = por %p60, %p61
      %s63 = ssub.s32 %s8, %s15
      %p64 = scmp.eq.s32.totalorder %s63, 0
      %s66 = sadd.s32 %s65, 1
      %s67 = scalar_select %p64, %s65, %s66
      %p70 = pneg %p64
      %p71 = scmp.eq.s32.totalorder %s8, 1
      %p72 = por %p70, %p71
      %p73 = scmp.ne.s32.totalorder %s65, %s68
      %p74 = scmp.eq.s32.totalorder %s8, 0
      %p75 = por %p73, %p74
      %p76 = scmp.ne.s32.totalorder %s65, %s68
      %p77 = scmp.eq.s32.totalorder %s13, 1
      %p78 = por %p76, %p77
      %p79 = scmp.ne.s32.totalorder %s68, %s69
      %p80 = scmp.eq.s32.totalorder %s13, 0
      %p81 = por %p79, %p80
      %p82 = scmp.ne.s32.totalorder %s68, %s69
      %p83 = scmp.eq.s32.totalorder %s14, 1
      %p84 = por %p82, %p83
      %p86 = scmp.ne.s32.totalorder %s69, %s85
      %p87 = scmp.eq.s32.totalorder %s14, 0
      %p88 = por %p86, %p87
      %p89 = scmp.le.s32.totalorder 1, %s8
      %p90 = scmp.lt.s32.totalorder %s8, 3
      %p91 = pnand %p89, %p90
      %p92 = pneg %p91
      // Predicated region
      $region9: #{multi_resolution_stft_loss.5} parent=5 // pred_check
        _
      $region10: #{multi_resolution_stft_loss.5} parent=5 // pred_check_branch
        %94 = sbr.rel (%p91) target = $region12
      $region11: #{multi_resolution_stft_loss.5} parent=5 // pred_region
        %s95 = ssub.s32 %s8, 1
        // Predicated region
        $region13: #{multi_resolution_stft_loss.5} parent=11 // pred_check
          %p96 = pneg %p55
        $region14: #{multi_resolution_stft_loss.5} parent=11 // pred_check_branch
          %98 = sbr.rel (%p96) target = $region16
        $region15: #{multi_resolution_stft_loss.5} parent=11 // pred_region
          _
        $region16: #{multi_resolution_stft_loss.5} parent=11 // pred_fallthru
          _
      $region12: #{multi_resolution_stft_loss.5} parent=5 // pred_fallthru
        _
      %p99 = scmp.lt.s32.totalorder %s8, 2
      // Predicated region
      $region17: #{multi_resolution_stft_loss.5} parent=5 // pred_check
        %p100 = pneg %p99
      $region18: #{multi_resolution_stft_loss.5} parent=5 // pred_check_branch
        %102 = sbr.rel (%p100) target = $region20
      $region19: #{multi_resolution_stft_loss.5} parent=5 // pred_region
        // Predicated region
        $region21: #{multi_resolution_stft_loss.5} parent=19 // pred_check
          %p103 = pneg %p28
        $region22: #{multi_resolution_stft_loss.5} parent=19 // pred_check_branch
          %105 = sbr.rel (%p103) target = $region24
        $region23: #{multi_resolution_stft_loss.5} parent=19 // pred_region
          %s106 = sand.u32 %s18, 1
          %s107 = sand.u32 %s18, 1
          %s108 = smul.addr %s107, 512
          %s109 = scalar_lea.vmem [#allocation2], %s108
          %s110 = smul.u32 4, %s8
          %s111 = smul.addr %s110, 16
          %s112 = smul.addr %s111, 4
          %s113 = scalar_lea.vmem %s0, %s112
          // Predicated region
          $region25: #{multi_resolution_stft_loss.5} parent=23 // pred_check
            _
          $region26: #{multi_resolution_stft_loss.5} parent=23 // pred_check_branch
            %115 = sbr.rel (0) target = $region28
          $region27: #{multi_resolution_stft_loss.5} parent=23 // pred_region
            // Predicated region
            $region29: #{multi_resolution_stft_loss.5} parent=27 // pred_check
              _
            $region30: #{multi_resolution_stft_loss.5} parent=27 // pred_check_branch
              %117 = sbr.rel (0) target = $region32
            $region31: #{multi_resolution_stft_loss.5} parent=27 // pred_region
              loop: start=0, step=1, limit=1
              $region33: #{multi_resolution_stft_loss.5} parent=31 // loop_pre_header
                _
              $region34: #{multi_resolution_stft_loss.5} parent=31 // loop_header
                %s119 = sphi 0, %s123
                %p120 = scmp.ge.s32.totalorder %s119, 1
                %s124 = sphi %s113, %s113
                %s125 = sphi %s109, %s109
              $region35: #{multi_resolution_stft_loss.5} parent=31 // loop_header_branch
                %122 = sbr.rel (%p120) target = $region39
              $region36: #{multi_resolution_stft_loss.5} parent=31 // loop_body
                %v126 = vld [vmem:[%s124] sm:$0xff]
                %127 = vst [vmem:[%s125] sm:$0xff] %v126
                %v128 = vld [vmem:[%s124 + $0x8] sm:$0xff]
                %129 = vst [vmem:[%s125 + $0x8] sm:$0xff] %v128
                %v130 = vld [vmem:[%s124 + $0x10] sm:$0xff]
                %131 = vst [vmem:[%s125 + $0x10] sm:$0xff] %v130
                %v132 = vld [vmem:[%s124 + $0x18] sm:$0xff]
                %133 = vst [vmem:[%s125 + $0x18] sm:$0xff] %v132
                %v134 = vld [vmem:[%s124 + $0x20] sm:$0xff]
                %135 = vst [vmem:[%s125 + $0x20] sm:$0xff] %v134
                %v136 = vld [vmem:[%s124 + $0x28] sm:$0xff]
                %137 = vst [vmem:[%s125 + $0x28] sm:$0xff] %v136
                %v138 = vld [vmem:[%s124 + $0x30] sm:$0xff]
                %139 = vst [vmem:[%s125 + $0x30] sm:$0xff] %v138
                %v140 = vld [vmem:[%s124 + $0x38] sm:$0xff]
                %141 = vst [vmem:[%s125 + $0x38] sm:$0xff] %v140
                %v142 = vld [vmem:[%s124 + $0x40] sm:$0xff]
                %143 = vst [vmem:[%s125 + $0x40] sm:$0xff] %v142
                %v144 = vld [vmem:[%s124 + $0x48] sm:$0xff]
                %145 = vst [vmem:[%s125 + $0x48] sm:$0xff] %v144
                %v146 = vld [vmem:[%s124 + $0x50] sm:$0xff]
                %147 = vst [vmem:[%s125 + $0x50] sm:$0xff] %v146
                %v148 = vld [vmem:[%s124 + $0x58] sm:$0xff]
                %149 = vst [vmem:[%s125 + $0x58] sm:$0xff] %v148
                %v150 = vld [vmem:[%s124 + $0x60] sm:$0xff]
                %151 = vst [vmem:[%s125 + $0x60] sm:$0xff] %v150
                %v152 = vld [vmem:[%s124 + $0x68] sm:$0xff]
                %153 = vst [vmem:[%s125 + $0x68] sm:$0xff] %v152
                %v154 = vld [vmem:[%s124 + $0x70] sm:$0xff]
                %155 = vst [vmem:[%s125 + $0x70] sm:$0xff] %v154
                %v156 = vld [vmem:[%s124 + $0x78] sm:$0xff]
                %157 = vst [vmem:[%s125 + $0x78] sm:$0xff] %v156
                %v158 = vld [vmem:[%s124 + $0x80] sm:$0xff]
                %159 = vst [vmem:[%s125 + $0x80] sm:$0xff] %v158
                %v160 = vld [vmem:[%s124 + $0x88] sm:$0xff]
                %161 = vst [vmem:[%s125 + $0x88] sm:$0xff] %v160
                %v162 = vld [vmem:[%s124 + $0x90] sm:$0xff]
                %163 = vst [vmem:[%s125 + $0x90] sm:$0xff] %v162
                %v164 = vld [vmem:[%s124 + $0x98] sm:$0xff]
                %165 = vst [vmem:[%s125 + $0x98] sm:$0xff] %v164
                %v166 = vld [vmem:[%s124 + $0xa0] sm:$0xff]
                %167 = vst [vmem:[%s125 + $0xa0] sm:$0xff] %v166
                %v168 = vld [vmem:[%s124 + $0xa8] sm:$0xff]
                %169 = vst [vmem:[%s125 + $0xa8] sm:$0xff] %v168
                %v170 = vld [vmem:[%s124 + $0xb0] sm:$0xff]
                %171 = vst [vmem:[%s125 + $0xb0] sm:$0xff] %v170
                %v172 = vld [vmem:[%s124 + $0xb8] sm:$0xff]
                %173 = vst [vmem:[%s125 + $0xb8] sm:$0xff] %v172
                %v174 = vld [vmem:[%s124 + $0xc0] sm:$0xff]
                %175 = vst [vmem:[%s125 + $0xc0] sm:$0xff] %v174
                %v176 = vld [vmem:[%s124 + $0xc8] sm:$0xff]
                %177 = vst [vmem:[%s125 + $0xc8] sm:$0xff] %v176
                %v178 = vld [vmem:[%s124 + $0xd0] sm:$0xff]
                %179 = vst [vmem:[%s125 + $0xd0] sm:$0xff] %v178
                %v180 = vld [vmem:[%s124 + $0xd8] sm:$0xff]
                %181 = vst [vmem:[%s125 + $0xd8] sm:$0xff] %v180
                %v182 = vld [vmem:[%s124 + $0xe0] sm:$0xff]
                %183 = vst [vmem:[%s125 + $0xe0] sm:$0xff] %v182
                %v184 = vld [vmem:[%s124 + $0xe8] sm:$0xff]
                %185 = vst [vmem:[%s125 + $0xe8] sm:$0xff] %v184
                %v186 = vld [vmem:[%s124 + $0xf0] sm:$0xff]
                %187 = vst [vmem:[%s125 + $0xf0] sm:$0xff] %v186
                %v188 = vld [vmem:[%s124 + $0xf8] sm:$0xff]
                %189 = vst [vmem:[%s125 + $0xf8] sm:$0xff] %v188
                %v190 = vld [vmem:[%s124 + $0x200] sm:$0xff]
                %191 = vst [vmem:[%s125 + $0x100] sm:$0xff] %v190
                %v192 = vld [vmem:[%s124 + $0x208] sm:$0xff]
                %193 = vst [vmem:[%s125 + $0x108] sm:$0xff] %v192
                %v194 = vld [vmem:[%s124 + $0x210] sm:$0xff]
                %195 = vst [vmem:[%s125 + $0x110] sm:$0xff] %v194
                %v196 = vld [vmem:[%s124 + $0x218] sm:$0xff]
                %197 = vst [vmem:[%s125 + $0x118] sm:$0xff] %v196
                %v198 = vld [vmem:[%s124 + $0x220] sm:$0xff]
                %199 = vst [vmem:[%s125 + $0x120] sm:$0xff] %v198
                %v200 = vld [vmem:[%s124 + $0x228] sm:$0xff]
                %201 = vst [vmem:[%s125 + $0x128] sm:$0xff] %v200
                %v202 = vld [vmem:[%s124 + $0x230] sm:$0xff]
                %203 = vst [vmem:[%s125 + $0x130] sm:$0xff] %v202
                %v204 = vld [vmem:[%s124 + $0x238] sm:$0xff]
                %205 = vst [vmem:[%s125 + $0x138] sm:$0xff] %v204
                %v206 = vld [vmem:[%s124 + $0x240] sm:$0xff]
                %207 = vst [vmem:[%s125 + $0x140] sm:$0xff] %v206
                %v208 = vld [vmem:[%s124 + $0x248] sm:$0xff]
                %209 = vst [vmem:[%s125 + $0x148] sm:$0xff] %v208
                %v210 = vld [vmem:[%s124 + $0x250] sm:$0xff]
                %211 = vst [vmem:[%s125 + $0x150] sm:$0xff] %v210
                %v212 = vld [vmem:[%s124 + $0x258] sm:$0xff]
                %213 = vst [vmem:[%s125 + $0x158] sm:$0xff] %v212
                %v214 = vld [vmem:[%s124 + $0x260] sm:$0xff]
                %215 = vst [vmem:[%s125 + $0x160] sm:$0xff] %v214
                %v216 = vld [vmem:[%s124 + $0x268] sm:$0xff]
                %217 = vst [vmem:[%s125 + $0x168] sm:$0xff] %v216
                %v218 = vld [vmem:[%s124 + $0x270] sm:$0xff]
                %219 = vst [vmem:[%s125 + $0x170] sm:$0xff] %v218
                %v220 = vld [vmem:[%s124 + $0x278] sm:$0xff]
                %221 = vst [vmem:[%s125 + $0x178] sm:$0xff] %v220
                %v222 = vld [vmem:[%s124 + $0x280] sm:$0xff]
                %223 = vst [vmem:[%s125 + $0x180] sm:$0xff] %v222
                %v224 = vld [vmem:[%s124 + $0x288] sm:$0xff]
                %225 = vst [vmem:[%s125 + $0x188] sm:$0xff] %v224
                %v226 = vld [vmem:[%s124 + $0x290] sm:$0xff]
                %227 = vst [vmem:[%s125 + $0x190] sm:$0xff] %v226
                %v228 = vld [vmem:[%s124 + $0x298] sm:$0xff]
                %229 = vst [vmem:[%s125 + $0x198] sm:$0xff] %v228
                %v230 = vld [vmem:[%s124 + $0x2a0] sm:$0xff]
                %231 = vst [vmem:[%s125 + $0x1a0] sm:$0xff] %v230
                %v232 = vld [vmem:[%s124 + $0x2a8] sm:$0xff]
                %233 = vst [vmem:[%s125 + $0x1a8] sm:$0xff] %v232
                %v234 = vld [vmem:[%s124 + $0x2b0] sm:$0xff]
                %235 = vst [vmem:[%s125 + $0x1b0] sm:$0xff] %v234
                %v236 = vld [vmem:[%s124 + $0x2b8] sm:$0xff]
                %237 = vst [vmem:[%s125 + $0x1b8] sm:$0xff] %v236
                %v238 = vld [vmem:[%s124 + $0x2c0] sm:$0xff]
                %239 = vst [vmem:[%s125 + $0x1c0] sm:$0xff] %v238
                %v240 = vld [vmem:[%s124 + $0x2c8] sm:$0xff]
                %241 = vst [vmem:[%s125 + $0x1c8] sm:$0xff] %v240
                %v242 = vld [vmem:[%s124 + $0x2d0] sm:$0xff]
                %243 = vst [vmem:[%s125 + $0x1d0] sm:$0xff] %v242
                %v244 = vld [vmem:[%s124 + $0x2d8] sm:$0xff]
                %245 = vst [vmem:[%s125 + $0x1d8] sm:$0xff] %v244
                %v246 = vld [vmem:[%s124 + $0x2e0] sm:$0xff]
                %247 = vst [vmem:[%s125 + $0x1e0] sm:$0xff] %v246
                %v248 = vld [vmem:[%s124 + $0x2e8] sm:$0xff]
                %249 = vst [vmem:[%s125 + $0x1e8] sm:$0xff] %v248
                %v250 = vld [vmem:[%s124 + $0x2f0] sm:$0xff]
                %251 = vst [vmem:[%s125 + $0x1f0] sm:$0xff] %v250
                %v252 = vld [vmem:[%s124 + $0x2f8] sm:$0xff]
                %253 = vst [vmem:[%s125 + $0x1f8] sm:$0xff] %v252
              $region37: #{multi_resolution_stft_loss.5} parent=31 // loop_footer
                %s123 = sadd.s32 1, %s119
              $region38: #{multi_resolution_stft_loss.5} parent=31 // loop_footer_branch
                %118 = sbr.rel target = $region34
              $region39: #{multi_resolution_stft_loss.5} parent=31 // loop_exit
                _
            $region32: #{multi_resolution_stft_loss.5} parent=27 // pred_fallthru
              _
            // Predicated region
            $region40: #{multi_resolution_stft_loss.5} parent=27 // pred_check
              _
            $region41: #{multi_resolution_stft_loss.5} parent=27 // pred_check_branch
              %255 = sbr.rel target = $region43
            $region42: #{multi_resolution_stft_loss.5} parent=27 // pred_region
              _
            $region43: #{multi_resolution_stft_loss.5} parent=27 // pred_fallthru
              _
          $region28: #{multi_resolution_stft_loss.5} parent=23 // pred_fallthru
            _
          %256 = vnop
        $region24: #{multi_resolution_stft_loss.5} parent=19 // pred_fallthru
          _
      $region20: #{multi_resolution_stft_loss.5} parent=5 // pred_fallthru
        _
      %p257 = scmp.le.s32.totalorder 1, %s8
      %p258 = scmp.lt.s32.totalorder %s8, 3
      %p259 = pnand %p257, %p258
      %p260 = pneg %p259
      // Predicated region
      $region44: #{multi_resolution_stft_loss.5} parent=5 // pred_check
        _
      $region45: #{multi_resolution_stft_loss.5} parent=5 // pred_check_branch
        %262 = sbr.rel (%p259) target = $region47
      $region46: #{multi_resolution_stft_loss.5} parent=5 // pred_region
        %s263 = ssub.s32 %s8, 1
        %s264 = sand.u32 %s21, 1
        %s265 = sand.u32 %s21, 1
        %s266 = smul.addr %s265, 512
        %s267 = scalar_lea.vmem [#allocation2], %s266
        // Predicated region
        $region48: #{multi_resolution_stft_loss.5} parent=46 // pred_check
          %p268 = pneg %p34
        $region49: #{multi_resolution_stft_loss.5} parent=46 // pred_check_branch
          %270 = sbr.rel (%p268) target = $region51
        $region50: #{multi_resolution_stft_loss.5} parent=46 // pred_region
          _
        $region51: #{multi_resolution_stft_loss.5} parent=46 // pred_fallthru
          _
        %s271 = sand.u32 %s21, 1
        %s272 = sand.u32 %s21, 1
        %s273 = smul.addr %s272, 512
        %s274 = scalar_lea.vmem [#allocation2], %s273
        %p275 = pneg %p34
        %p276 = pneg %p31
        %p277 = pneg %p55
        %p278 = pneg %p52
        %p279 = pneg %p81
        %p280 = pneg %p78
        %p281 = scmp.lt.s32.totalorder %s13, 1
        %s282 = scalar_select %p281, %s13, 1
        %s283 = smul.addr %s282, 8
        %s284 = scalar_lea.vmem %s2, %s283
        %s285 = smul.u32 4, %s13
        %p286 = scmp.lt.s32.totalorder %s13, 1
        %s287 = scalar_select %p286, %s13, 1
        %s288 = smul.addr %s287, 8
        %s289 = scalar_lea.vmem %s2, %s288
        %v290 = vld [vmem:[%s267] sm:$0xff]
        %v291 = vld [vmem:[%s267 + $0x8] sm:$0xff]
        %v292 = vld [vmem:[%s267 + $0x10] sm:$0xff]
        %v293 = vld [vmem:[%s267 + $0x18] sm:$0xff]
        %v294 = vld [vmem:[%s267 + $0x20] sm:$0xff]
        %v295 = vld [vmem:[%s267 + $0x28] sm:$0xff]
        %v296 = vld [vmem:[%s267 + $0x30] sm:$0xff]
        %v297 = vld [vmem:[%s267 + $0x38] sm:$0xff]
        %v298 = vld [vmem:[%s267 + $0x40] sm:$0xff]
        %v299 = vld [vmem:[%s267 + $0x48] sm:$0xff]
        %v300 = vld [vmem:[%s267 + $0x50] sm:$0xff]
        %v301 = vld [vmem:[%s267 + $0x58] sm:$0xff]
        %v302 = vld [vmem:[%s267 + $0x60] sm:$0xff]
        %v303 = vld [vmem:[%s267 + $0x68] sm:$0xff]
        %v304 = vld [vmem:[%s267 + $0x70] sm:$0xff]
        %v305 = vld [vmem:[%s267 + $0x78] sm:$0xff]
        %v306 = vld [vmem:[%s267 + $0x80] sm:$0xff]
        %v307 = vld [vmem:[%s267 + $0x88] sm:$0xff]
        %v308 = vld [vmem:[%s267 + $0x90] sm:$0xff]
        %v309 = vld [vmem:[%s267 + $0x98] sm:$0xff]
        %v310 = vld [vmem:[%s267 + $0xa0] sm:$0xff]
        %v311 = vld [vmem:[%s267 + $0xa8] sm:$0xff]
        %v312 = vld [vmem:[%s267 + $0xb0] sm:$0xff]
        %v313 = vld [vmem:[%s267 + $0xb8] sm:$0xff]
        %v314 = vld [vmem:[%s267 + $0xc0] sm:$0xff]
        %v315 = vld [vmem:[%s267 + $0xc8] sm:$0xff]
        %v316 = vld [vmem:[%s267 + $0xd0] sm:$0xff]
        %v317 = vld [vmem:[%s267 + $0xd8] sm:$0xff]
        %v318 = vld [vmem:[%s267 + $0xe0] sm:$0xff]
        %v319 = vld [vmem:[%s267 + $0xe8] sm:$0xff]
        %v320 = vld [vmem:[%s267 + $0xf0] sm:$0xff]
        %v321 = vld [vmem:[%s267 + $0xf8] sm:$0xff]
        %v322 = vld [vmem:[%s267 + $0x100] sm:$0xff]
        %v323 = vld [vmem:[%s267 + $0x108] sm:$0xff]
        %v324 = vld [vmem:[%s267 + $0x110] sm:$0xff]
        %v325 = vld [vmem:[%s267 + $0x118] sm:$0xff]
        %v326 = vld [vmem:[%s267 + $0x120] sm:$0xff]
        %v327 = vld [vmem:[%s267 + $0x128] sm:$0xff]
        %v328 = vld [vmem:[%s267 + $0x130] sm:$0xff]
        %v329 = vld [vmem:[%s267 + $0x138] sm:$0xff]
        %v330 = vld [vmem:[%s267 + $0x140] sm:$0xff]
        %v331 = vld [vmem:[%s267 + $0x148] sm:$0xff]
        %v332 = vld [vmem:[%s267 + $0x150] sm:$0xff]
        %v333 = vld [vmem:[%s267 + $0x158] sm:$0xff]
        %v334 = vld [vmem:[%s267 + $0x160] sm:$0xff]
        %v335 = vld [vmem:[%s267 + $0x168] sm:$0xff]
        %v336 = vld [vmem:[%s267 + $0x170] sm:$0xff]
        %v337 = vld [vmem:[%s267 + $0x178] sm:$0xff]
        %v338 = vld [vmem:[%s267 + $0x180] sm:$0xff]
        %v339 = vld [vmem:[%s267 + $0x188] sm:$0xff]
        %v340 = vld [vmem:[%s267 + $0x190] sm:$0xff]
        %v341 = vld [vmem:[%s267 + $0x198] sm:$0xff]
        %v342 = vld [vmem:[%s267 + $0x1a0] sm:$0xff]
        %v343 = vld [vmem:[%s267 + $0x1a8] sm:$0xff]
        %v344 = vld [vmem:[%s267 + $0x1b0] sm:$0xff]
        %v345 = vld [vmem:[%s267 + $0x1b8] sm:$0xff]
        %v346 = vld [vmem:[%s267 + $0x1c0] sm:$0xff]
        %v347 = vld [vmem:[%s267 + $0x1c8] sm:$0xff]
        %v348 = vld [vmem:[%s267 + $0x1d0] sm:$0xff]
        %v349 = vld [vmem:[%s267 + $0x1d8] sm:$0xff]
        %v350 = vld [vmem:[%s267 + $0x1e0] sm:$0xff]
        %v351 = vld [vmem:[%s267 + $0x1e8] sm:$0xff]
        %v352 = vld [vmem:[%s267 + $0x1f0] sm:$0xff]
        %v353 = vld [vmem:[%s267 + $0x1f8] sm:$0xff]
        %v354 = vld [vmem:[%s1] sm:$0xff]
        %v355 = vld [vmem:[%s1 + $0x8] sm:$0xff]
        %v356 = vld [vmem:[%s1 + $0x10] sm:$0xff]
        %v357 = vld [vmem:[%s1 + $0x18] sm:$0xff]
        %v358 = vld [vmem:[%s1 + $0x20] sm:$0xff]
        %v359 = vld [vmem:[%s1 + $0x28] sm:$0xff]
        %v360 = vld [vmem:[%s1 + $0x30] sm:$0xff]
        %v361 = vld [vmem:[%s1 + $0x38] sm:$0xff]
        %v362 = vld [vmem:[%s1 + $0x40] sm:$0xff]
        %v363 = vld [vmem:[%s1 + $0x48] sm:$0xff]
        %v364 = vld [vmem:[%s1 + $0x50] sm:$0xff]
        %v365 = vld [vmem:[%s1 + $0x58] sm:$0xff]
        %v366 = vld [vmem:[%s1 + $0x60] sm:$0xff]
        %v367 = vld [vmem:[%s1 + $0x68] sm:$0xff]
        %v368 = vld [vmem:[%s1 + $0x70] sm:$0xff]
        %v369 = vld [vmem:[%s1 + $0x78] sm:$0xff]
        %v370 = vld [vmem:[%s1 + $0x80] sm:$0xff]
        %v371 = vld [vmem:[%s1 + $0x88] sm:$0xff]
        %v372 = vld [vmem:[%s1 + $0x90] sm:$0xff]
        %v373 = vld [vmem:[%s1 + $0x98] sm:$0xff]
        %v374 = vld [vmem:[%s1 + $0xa0] sm:$0xff]
        %v375 = vld [vmem:[%s1 + $0xa8] sm:$0xff]
        %v376 = vld [vmem:[%s1 + $0xb0] sm:$0xff]
        %v377 = vld [vmem:[%s1 + $0xb8] sm:$0xff]
        %v378 = vld [vmem:[%s1 + $0xc0] sm:$0xff]
        %v379 = vld [vmem:[%s1 + $0xc8] sm:$0xff]
        %v380 = vld [vmem:[%s1 + $0xd0] sm:$0xff]
        %v381 = vld [vmem:[%s1 + $0xd8] sm:$0xff]
        %v382 = vld [vmem:[%s1 + $0xe0] sm:$0xff]
        %v383 = vld [vmem:[%s1 + $0xe8] sm:$0xff]
        %v384 = vld [vmem:[%s1 + $0xf0] sm:$0xff]
        %v385 = vld [vmem:[%s1 + $0xf8] sm:$0xff]
        %v386 = vld [vmem:[%s1 + $0x100] sm:$0xff]
        %v387 = vld [vmem:[%s1 + $0x108] sm:$0xff]
        %v388 = vld [vmem:[%s1 + $0x110] sm:$0xff]
        %v389 = vld [vmem:[%s1 + $0x118] sm:$0xff]
        %v390 = vld [vmem:[%s1 + $0x120] sm:$0xff]
        %v391 = vld [vmem:[%s1 + $0x128] sm:$0xff]
        %v392 = vld [vmem:[%s1 + $0x130] sm:$0xff]
        %v393 = vld [vmem:[%s1 + $0x138] sm:$0xff]
        %v394 = vld [vmem:[%s1 + $0x140] sm:$0xff]
        %v395 = vld [vmem:[%s1 + $0x148] sm:$0xff]
        %v396 = vld [vmem:[%s1 + $0x150] sm:$0xff]
        %v397 = vld [vmem:[%s1 + $0x158] sm:$0xff]
        %v398 = vld [vmem:[%s1 + $0x160] sm:$0xff]
        %v399 = vld [vmem:[%s1 + $0x168] sm:$0xff]
        %v400 = vld [vmem:[%s1 + $0x170] sm:$0xff]
        %v401 = vld [vmem:[%s1 + $0x178] sm:$0xff]
        %v402 = vld [vmem:[%s1 + $0x180] sm:$0xff]
        %v403 = vld [vmem:[%s1 + $0x188] sm:$0xff]
        %v404 = vld [vmem:[%s1 + $0x190] sm:$0xff]
        %v405 = vld [vmem:[%s1 + $0x198] sm:$0xff]
        %v406 = vld [vmem:[%s1 + $0x1a0] sm:$0xff]
        %v407 = vld [vmem:[%s1 + $0x1a8] sm:$0xff]
        %v408 = vld [vmem:[%s1 + $0x1b0] sm:$0xff]
        %v409 = vld [vmem:[%s1 + $0x1b8] sm:$0xff]
        %v410 = vld [vmem:[%s1 + $0x1c0] sm:$0xff]
        %v411 = vld [vmem:[%s1 + $0x1c8] sm:$0xff]
        %v412 = vld [vmem:[%s1 + $0x1d0] sm:$0xff]
        %v413 = vld [vmem:[%s1 + $0x1d8] sm:$0xff]
        %v414 = vld [vmem:[%s1 + $0x1e0] sm:$0xff]
        %v415 = vld [vmem:[%s1 + $0x1e8] sm:$0xff]
        %v416 = vld [vmem:[%s1 + $0x1f0] sm:$0xff]
        %v417 = vld [vmem:[%s1 + $0x1f8] sm:$0xff]
        %v418 = vld [vmem:[%s1 + $0x200] sm:$0xff]
        %v419 = vld [vmem:[%s1 + $0x208] sm:$0xff]
        %v420 = vld [vmem:[%s1 + $0x210] sm:$0xff]
        %v421 = vld [vmem:[%s1 + $0x218] sm:$0xff]
        %v422 = vld [vmem:[%s1 + $0x220] sm:$0xff]
        %v423 = vld [vmem:[%s1 + $0x228] sm:$0xff]
        %v424 = vld [vmem:[%s1 + $0x230] sm:$0xff]
        %v425 = vld [vmem:[%s1 + $0x238] sm:$0xff]
        %v426 = vld [vmem:[%s1 + $0x240] sm:$0xff]
        %v427 = vld [vmem:[%s1 + $0x248] sm:$0xff]
        %v428 = vld [vmem:[%s1 + $0x250] sm:$0xff]
        %v429 = vld [vmem:[%s1 + $0x258] sm:$0xff]
        %v430 = vld [vmem:[%s1 + $0x260] sm:$0xff]
        %v431 = vld [vmem:[%s1 + $0x268] sm:$0xff]
        %v432 = vld [vmem:[%s1 + $0x270] sm:$0xff]
        %v433 = vld [vmem:[%s1 + $0x278] sm:$0xff]
        %v434 = vld [vmem:[%s1 + $0x280] sm:$0xff]
        %v435 = vld [vmem:[%s1 + $0x288] sm:$0xff]
        %v436 = vld [vmem:[%s1 + $0x290] sm:$0xff]
        %v437 = vld [vmem:[%s1 + $0x298] sm:$0xff]
        %v438 = vld [vmem:[%s1 + $0x2a0] sm:$0xff]
        %v439 = vld [vmem:[%s1 + $0x2a8] sm:$0xff]
        %v440 = vld [vmem:[%s1 + $0x2b0] sm:$0xff]
        %v441 = vld [vmem:[%s1 + $0x2b8] sm:$0xff]
        %v442 = vld [vmem:[%s1 + $0x2c0] sm:$0xff]
        %v443 = vld [vmem:[%s1 + $0x2c8] sm:$0xff]
        %v444 = vld [vmem:[%s1 + $0x2d0] sm:$0xff]
        %v445 = vld [vmem:[%s1 + $0x2d8] sm:$0xff]
        %v446 = vld [vmem:[%s1 + $0x2e0] sm:$0xff]
        %v447 = vld [vmem:[%s1 + $0x2e8] sm:$0xff]
        %v448 = vld [vmem:[%s1 + $0x2f0] sm:$0xff]
        %v449 = vld [vmem:[%s1 + $0x2f8] sm:$0xff]
        %v450 = vld [vmem:[%s1 + $0x300] sm:$0xff]
        %v451 = vld [vmem:[%s1 + $0x308] sm:$0xff]
        %v452 = vld [vmem:[%s1 + $0x310] sm:$0xff]
        %v453 = vld [vmem:[%s1 + $0x318] sm:$0xff]
        %v454 = vld [vmem:[%s1 + $0x320] sm:$0xff]
        %v455 = vld [vmem:[%s1 + $0x328] sm:$0xff]
        %v456 = vld [vmem:[%s1 + $0x330] sm:$0xff]
        %v457 = vld [vmem:[%s1 + $0x338] sm:$0xff]
        %v458 = vld [vmem:[%s1 + $0x340] sm:$0xff]
        %v459 = vld [vmem:[%s1 + $0x348] sm:$0xff]
        %v460 = vld [vmem:[%s1 + $0x350] sm:$0xff]
        %v461 = vld [vmem:[%s1 + $0x358] sm:$0xff]
        %v462 = vld [vmem:[%s1 + $0x360] sm:$0xff]
        %v463 = vld [vmem:[%s1 + $0x368] sm:$0xff]
        %v464 = vld [vmem:[%s1 + $0x370] sm:$0xff]
        %v465 = vld [vmem:[%s1 + $0x378] sm:$0xff]
        %v466 = vld [vmem:[%s1 + $0x380] sm:$0xff]
        %v467 = vld [vmem:[%s1 + $0x388] sm:$0xff]
        %v468 = vld [vmem:[%s1 + $0x390] sm:$0xff]
        %v469 = vld [vmem:[%s1 + $0x398] sm:$0xff]
        %v470 = vld [vmem:[%s1 + $0x3a0] sm:$0xff]
        %v471 = vld [vmem:[%s1 + $0x3a8] sm:$0xff]
        %v472 = vld [vmem:[%s1 + $0x3b0] sm:$0xff]
        %v473 = vld [vmem:[%s1 + $0x3b8] sm:$0xff]
        %v474 = vld [vmem:[%s1 + $0x3c0] sm:$0xff]
        %v475 = vld [vmem:[%s1 + $0x3c8] sm:$0xff]
        %v476 = vld [vmem:[%s1 + $0x3d0] sm:$0xff]
        %v477 = vld [vmem:[%s1 + $0x3d8] sm:$0xff]
        %v478 = vld [vmem:[%s1 + $0x3e0] sm:$0xff]
        %v479 = vld [vmem:[%s1 + $0x3e8] sm:$0xff]
        %v480 = vld [vmem:[%s1 + $0x3f0] sm:$0xff]
        %v481 = vld [vmem:[%s1 + $0x3f8] sm:$0xff]
        %v482 = vld [vmem:[%s1 + $0x400] sm:$0xff]
        %v483 = vld [vmem:[%s1 + $0x408] sm:$0xff]
        %v484 = vld [vmem:[%s1 + $0x410] sm:$0xff]
        %v485 = vld [vmem:[%s1 + $0x418] sm:$0xff]
        %v486 = vld [vmem:[%s1 + $0x420] sm:$0xff]
        %v487 = vld [vmem:[%s1 + $0x428] sm:$0xff]
        %v488 = vld [vmem:[%s1 + $0x430] sm:$0xff]
        %v489 = vld [vmem:[%s1 + $0x438] sm:$0xff]
        %v490 = vld [vmem:[%s1 + $0x440] sm:$0xff]
        %v491 = vld [vmem:[%s1 + $0x448] sm:$0xff]
        %v492 = vld [vmem:[%s1 + $0x450] sm:$0xff]
        %v493 = vld [vmem:[%s1 + $0x458] sm:$0xff]
        %v494 = vld [vmem:[%s1 + $0x460] sm:$0xff]
        %v495 = vld [vmem:[%s1 + $0x468] sm:$0xff]
        %v496 = vld [vmem:[%s1 + $0x470] sm:$0xff]
        %v497 = vld [vmem:[%s1 + $0x478] sm:$0xff]
        %v498 = vld [vmem:[%s1 + $0x480] sm:$0xff]
        %v499 = vld [vmem:[%s1 + $0x488] sm:$0xff]
        %v500 = vld [vmem:[%s1 + $0x490] sm:$0xff]
        %v501 = vld [vmem:[%s1 + $0x498] sm:$0xff]
        %v502 = vld [vmem:[%s1 + $0x4a0] sm:$0xff]
        %v503 = vld [vmem:[%s1 + $0x4a8] sm:$0xff]
        %v504 = vld [vmem:[%s1 + $0x4b0] sm:$0xff]
        %v505 = vld [vmem:[%s1 + $0x4b8] sm:$0xff]
        %v506 = vld [vmem:[%s1 + $0x4c0] sm:$0xff]
        %v507 = vld [vmem:[%s1 + $0x4c8] sm:$0xff]
        %v508 = vld [vmem:[%s1 + $0x4d0] sm:$0xff]
        %v509 = vld [vmem:[%s1 + $0x4d8] sm:$0xff]
        %v510 = vld [vmem:[%s1 + $0x4e0] sm:$0xff]
        %v511 = vld [vmem:[%s1 + $0x4e8] sm:$0xff]
        %v512 = vld [vmem:[%s1 + $0x4f0] sm:$0xff]
        %v513 = vld [vmem:[%s1 + $0x4f8] sm:$0xff]
        %v514 = vld [vmem:[%s1 + $0x500] sm:$0xff]
        %v515 = vld [vmem:[%s1 + $0x508] sm:$0xff]
        %v516 = vld [vmem:[%s1 + $0x510] sm:$0xff]
        %v517 = vld [vmem:[%s1 + $0x518] sm:$0xff]
        %v518 = vld [vmem:[%s1 + $0x520] sm:$0xff]
        %v519 = vld [vmem:[%s1 + $0x528] sm:$0xff]
        %v520 = vld [vmem:[%s1 + $0x530] sm:$0xff]
        %v521 = vld [vmem:[%s1 + $0x538] sm:$0xff]
        %v522 = vld [vmem:[%s1 + $0x540] sm:$0xff]
        %v523 = vld [vmem:[%s1 + $0x548] sm:$0xff]
        %v524 = vld [vmem:[%s1 + $0x550] sm:$0xff]
        %v525 = vld [vmem:[%s1 + $0x558] sm:$0xff]
        %v526 = vld [vmem:[%s1 + $0x560] sm:$0xff]
        %v527 = vld [vmem:[%s1 + $0x568] sm:$0xff]
        %v528 = vld [vmem:[%s1 + $0x570] sm:$0xff]
        %v529 = vld [vmem:[%s1 + $0x578] sm:$0xff]
        %v530 = vld [vmem:[%s1 + $0x580] sm:$0xff]
        %v531 = vld [vmem:[%s1 + $0x588] sm:$0xff]
        %v532 = vld [vmem:[%s1 + $0x590] sm:$0xff]
        %v533 = vld [vmem:[%s1 + $0x598] sm:$0xff]
        %v534 = vld [vmem:[%s1 + $0x5a0] sm:$0xff]
        %v535 = vld [vmem:[%s1 + $0x5a8] sm:$0xff]
        %v536 = vld [vmem:[%s1 + $0x5b0] sm:$0xff]
        %v537 = vld [vmem:[%s1 + $0x5b8] sm:$0xff]
        %v538 = vld [vmem:[%s1 + $0x5c0] sm:$0xff]
        %v539 = vld [vmem:[%s1 + $0x5c8] sm:$0xff]
        %v540 = vld [vmem:[%s1 + $0x5d0] sm:$0xff]
        %v541 = vld [vmem:[%s1 + $0x5d8] sm:$0xff]
        %v542 = vld [vmem:[%s1 + $0x5e0] sm:$0xff]
        %v543 = vld [vmem:[%s1 + $0x5e8] sm:$0xff]
        %v544 = vld [vmem:[%s1 + $0x5f0] sm:$0xff]
        %v545 = vld [vmem:[%s1 + $0x5f8] sm:$0xff]
        %v546 = vld [vmem:[%s1 + $0x600] sm:$0xff]
        %v547 = vld [vmem:[%s1 + $0x608] sm:$0xff]
        %v548 = vld [vmem:[%s1 + $0x610] sm:$0xff]
        %v549 = vld [vmem:[%s1 + $0x618] sm:$0xff]
        %v550 = vld [vmem:[%s1 + $0x620] sm:$0xff]
        %v551 = vld [vmem:[%s1 + $0x628] sm:$0xff]
        %v552 = vld [vmem:[%s1 + $0x630] sm:$0xff]
        %v553 = vld [vmem:[%s1 + $0x638] sm:$0xff]
        %v554 = vld [vmem:[%s1 + $0x640] sm:$0xff]
        %v555 = vld [vmem:[%s1 + $0x648] sm:$0xff]
        %v556 = vld [vmem:[%s1 + $0x650] sm:$0xff]
        %v557 = vld [vmem:[%s1 + $0x658] sm:$0xff]
        %v558 = vld [vmem:[%s1 + $0x660] sm:$0xff]
        %v559 = vld [vmem:[%s1 + $0x668] sm:$0xff]
        %v560 = vld [vmem:[%s1 + $0x670] sm:$0xff]
        %v561 = vld [vmem:[%s1 + $0x678] sm:$0xff]
        %v562 = vld [vmem:[%s1 + $0x680] sm:$0xff]
        %v563 = vld [vmem:[%s1 + $0x688] sm:$0xff]
        %v564 = vld [vmem:[%s1 + $0x690] sm:$0xff]
        %v565 = vld [vmem:[%s1 + $0x698] sm:$0xff]
        %v566 = vld [vmem:[%s1 + $0x6a0] sm:$0xff]
        %v567 = vld [vmem:[%s1 + $0x6a8] sm:$0xff]
        %v568 = vld [vmem:[%s1 + $0x6b0] sm:$0xff]
        %v569 = vld [vmem:[%s1 + $0x6b8] sm:$0xff]
        %v570 = vld [vmem:[%s1 + $0x6c0] sm:$0xff]
        %v571 = vld [vmem:[%s1 + $0x6c8] sm:$0xff]
        %v572 = vld [vmem:[%s1 + $0x6d0] sm:$0xff]
        %v573 = vld [vmem:[%s1 + $0x6d8] sm:$0xff]
        %v574 = vld [vmem:[%s1 + $0x6e0] sm:$0xff]
        %v575 = vld [vmem:[%s1 + $0x6e8] sm:$0xff]
        %v576 = vld [vmem:[%s1 + $0x6f0] sm:$0xff]
        %v577 = vld [vmem:[%s1 + $0x6f8] sm:$0xff]
        %v578 = vld [vmem:[%s1 + $0x700] sm:$0xff]
        %v579 = vld [vmem:[%s1 + $0x708] sm:$0xff]
        %v580 = vld [vmem:[%s1 + $0x710] sm:$0xff]
        %v581 = vld [vmem:[%s1 + $0x718] sm:$0xff]
        %v582 = vld [vmem:[%s1 + $0x720] sm:$0xff]
        %v583 = vld [vmem:[%s1 + $0x728] sm:$0xff]
        %v584 = vld [vmem:[%s1 + $0x730] sm:$0xff]
        %v585 = vld [vmem:[%s1 + $0x738] sm:$0xff]
        %v586 = vld [vmem:[%s1 + $0x740] sm:$0xff]
        %v587 = vld [vmem:[%s1 + $0x748] sm:$0xff]
        %v588 = vld [vmem:[%s1 + $0x750] sm:$0xff]
        %v589 = vld [vmem:[%s1 + $0x758] sm:$0xff]
        %v590 = vld [vmem:[%s1 + $0x760] sm:$0xff]
        %v591 = vld [vmem:[%s1 + $0x768] sm:$0xff]
        %v592 = vld [vmem:[%s1 + $0x770] sm:$0xff]
        %v593 = vld [vmem:[%s1 + $0x778] sm:$0xff]
        %v594 = vld [vmem:[%s1 + $0x780] sm:$0xff]
        %v595 = vld [vmem:[%s1 + $0x788] sm:$0xff]
        %v596 = vld [vmem:[%s1 + $0x790] sm:$0xff]
        %v597 = vld [vmem:[%s1 + $0x798] sm:$0xff]
        %v598 = vld [vmem:[%s1 + $0x7a0] sm:$0xff]
        %v599 = vld [vmem:[%s1 + $0x7a8] sm:$0xff]
        %v600 = vld [vmem:[%s1 + $0x7b0] sm:$0xff]
        %v601 = vld [vmem:[%s1 + $0x7b8] sm:$0xff]
        %v602 = vld [vmem:[%s1 + $0x7c0] sm:$0xff]
        %v603 = vld [vmem:[%s1 + $0x7c8] sm:$0xff]
        %v604 = vld [vmem:[%s1 + $0x7d0] sm:$0xff]
        %v605 = vld [vmem:[%s1 + $0x7d8] sm:$0xff]
        %v606 = vld [vmem:[%s1 + $0x7e0] sm:$0xff]
        %v607 = vld [vmem:[%s1 + $0x7e8] sm:$0xff]
        %v608 = vld [vmem:[%s1 + $0x7f0] sm:$0xff]
        %v609 = vld [vmem:[%s1 + $0x7f8] sm:$0xff]
        %v610 = vld [vmem:[%s1 + $0x800] sm:$0xff]
        %v611 = vld [vmem:[%s1 + $0x808] sm:$0xff]
        %v612 = vld [vmem:[%s1 + $0x810] sm:$0xff]
        %v613 = vld [vmem:[%s1 + $0x818] sm:$0xff]
        %v614 = vld [vmem:[%s1 + $0x820] sm:$0xff]
        %v615 = vld [vmem:[%s1 + $0x828] sm:$0xff]
        %v616 = vld [vmem:[%s1 + $0x830] sm:$0xff]
        %v617 = vld [vmem:[%s1 + $0x838] sm:$0xff]
        %v618 = vld [vmem:[%s1 + $0x840] sm:$0xff]
        %v619 = vld [vmem:[%s1 + $0x848] sm:$0xff]
        %v620 = vld [vmem:[%s1 + $0x850] sm:$0xff]
        %v621 = vld [vmem:[%s1 + $0x858] sm:$0xff]
        %v622 = vld [vmem:[%s1 + $0x860] sm:$0xff]
        %v623 = vld [vmem:[%s1 + $0x868] sm:$0xff]
        %v624 = vld [vmem:[%s1 + $0x870] sm:$0xff]
        %v625 = vld [vmem:[%s1 + $0x878] sm:$0xff]
        %v626 = vld [vmem:[%s1 + $0x880] sm:$0xff]
        %v627 = vld [vmem:[%s1 + $0x888] sm:$0xff]
        %v628 = vld [vmem:[%s1 + $0x890] sm:$0xff]
        %v629 = vld [vmem:[%s1 + $0x898] sm:$0xff]
        %v630 = vld [vmem:[%s1 + $0x8a0] sm:$0xff]
        %v631 = vld [vmem:[%s1 + $0x8a8] sm:$0xff]
        %v632 = vld [vmem:[%s1 + $0x8b0] sm:$0xff]
        %v633 = vld [vmem:[%s1 + $0x8b8] sm:$0xff]
        %v634 = vld [vmem:[%s1 + $0x8c0] sm:$0xff]
        %v635 = vld [vmem:[%s1 + $0x8c8] sm:$0xff]
        %v636 = vld [vmem:[%s1 + $0x8d0] sm:$0xff]
        %v637 = vld [vmem:[%s1 + $0x8d8] sm:$0xff]
        %v638 = vld [vmem:[%s1 + $0x8e0] sm:$0xff]
        %v639 = vld [vmem:[%s1 + $0x8e8] sm:$0xff]
        %v640 = vld [vmem:[%s1 + $0x8f0] sm:$0xff]
        %v641 = vld [vmem:[%s1 + $0x8f8] sm:$0xff]
        %v642 = vld [vmem:[%s1 + $0x900] sm:$0xff]
        %v643 = vld [vmem:[%s1 + $0x908] sm:$0xff]
        %v644 = vld [vmem:[%s1 + $0x910] sm:$0xff]
        %v645 = vld [vmem:[%s1 + $0x918] sm:$0xff]
        %v646 = vld [vmem:[%s1 + $0x920] sm:$0xff]
        %v647 = vld [vmem:[%s1 + $0x928] sm:$0xff]
        %v648 = vld [vmem:[%s1 + $0x930] sm:$0xff]
        %v649 = vld [vmem:[%s1 + $0x938] sm:$0xff]
        %v650 = vld [vmem:[%s1 + $0x940] sm:$0xff]
        %v651 = vld [vmem:[%s1 + $0x948] sm:$0xff]
        %v652 = vld [vmem:[%s1 + $0x950] sm:$0xff]
        %v653 = vld [vmem:[%s1 + $0x958] sm:$0xff]
        %v654 = vld [vmem:[%s1 + $0x960] sm:$0xff]
        %v655 = vld [vmem:[%s1 + $0x968] sm:$0xff]
        %v656 = vld [vmem:[%s1 + $0x970] sm:$0xff]
        %v657 = vld [vmem:[%s1 + $0x978] sm:$0xff]
        %v658 = vld [vmem:[%s1 + $0x980] sm:$0xff]
        %v659 = vld [vmem:[%s1 + $0x988] sm:$0xff]
        %v660 = vld [vmem:[%s1 + $0x990] sm:$0xff]
        %v661 = vld [vmem:[%s1 + $0x998] sm:$0xff]
        %v662 = vld [vmem:[%s1 + $0x9a0] sm:$0xff]
        %v663 = vld [vmem:[%s1 + $0x9a8] sm:$0xff]
        %v664 = vld [vmem:[%s1 + $0x9b0] sm:$0xff]
        %v665 = vld [vmem:[%s1 + $0x9b8] sm:$0xff]
        %v666 = vld [vmem:[%s1 + $0x9c0] sm:$0xff]
        %v667 = vld [vmem:[%s1 + $0x9c8] sm:$0xff]
        %v668 = vld [vmem:[%s1 + $0x9d0] sm:$0xff]
        %v669 = vld [vmem:[%s1 + $0x9d8] sm:$0xff]
        %v670 = vld [vmem:[%s1 + $0x9e0] sm:$0xff]
        %v671 = vld [vmem:[%s1 + $0x9e8] sm:$0xff]
        %v672 = vld [vmem:[%s1 + $0x9f0] sm:$0xff]
        %v673 = vld [vmem:[%s1 + $0x9f8] sm:$0xff]
        %v674 = vld [vmem:[%s1 + $0xa00] sm:$0xff]
        %v675 = vld [vmem:[%s1 + $0xa08] sm:$0xff]
        %v676 = vld [vmem:[%s1 + $0xa10] sm:$0xff]
        %v677 = vld [vmem:[%s1 + $0xa18] sm:$0xff]
        %v678 = vld [vmem:[%s1 + $0xa20] sm:$0xff]
        %v679 = vld [vmem:[%s1 + $0xa28] sm:$0xff]
        %v680 = vld [vmem:[%s1 + $0xa30] sm:$0xff]
        %v681 = vld [vmem:[%s1 + $0xa38] sm:$0xff]
        %v682 = vld [vmem:[%s1 + $0xa40] sm:$0xff]
        %v683 = vld [vmem:[%s1 + $0xa48] sm:$0xff]
        %v684 = vld [vmem:[%s1 + $0xa50] sm:$0xff]
        %v685 = vld [vmem:[%s1 + $0xa58] sm:$0xff]
        %v686 = vld [vmem:[%s1 + $0xa60] sm:$0xff]
        %v687 = vld [vmem:[%s1 + $0xa68] sm:$0xff]
        %v688 = vld [vmem:[%s1 + $0xa70] sm:$0xff]
        %v689 = vld [vmem:[%s1 + $0xa78] sm:$0xff]
        %v690 = vld [vmem:[%s1 + $0xa80] sm:$0xff]
        %v691 = vld [vmem:[%s1 + $0xa88] sm:$0xff]
        %v692 = vld [vmem:[%s1 + $0xa90] sm:$0xff]
        %v693 = vld [vmem:[%s1 + $0xa98] sm:$0xff]
        %v694 = vld [vmem:[%s1 + $0xaa0] sm:$0xff]
        %v695 = vld [vmem:[%s1 + $0xaa8] sm:$0xff]
        %v696 = vld [vmem:[%s1 + $0xab0] sm:$0xff]
        %v697 = vld [vmem:[%s1 + $0xab8] sm:$0xff]
        %v698 = vld [vmem:[%s1 + $0xac0] sm:$0xff]
        %v699 = vld [vmem:[%s1 + $0xac8] sm:$0xff]
        %v700 = vld [vmem:[%s1 + $0xad0] sm:$0xff]
        %v701 = vld [vmem:[%s1 + $0xad8] sm:$0xff]
        %v702 = vld [vmem:[%s1 + $0xae0] sm:$0xff]
        %v703 = vld [vmem:[%s1 + $0xae8] sm:$0xff]
        %v704 = vld [vmem:[%s1 + $0xaf0] sm:$0xff]
        %v705 = vld [vmem:[%s1 + $0xaf8] sm:$0xff]
        %v706 = vld [vmem:[%s1 + $0xb00] sm:$0xff]
        %v707 = vld [vmem:[%s1 + $0xb08] sm:$0xff]
        %v708 = vld [vmem:[%s1 + $0xb10] sm:$0xff]
        %v709 = vld [vmem:[%s1 + $0xb18] sm:$0xff]
        %v710 = vld [vmem:[%s1 + $0xb20] sm:$0xff]
        %v711 = vld [vmem:[%s1 + $0xb28] sm:$0xff]
        %v712 = vld [vmem:[%s1 + $0xb30] sm:$0xff]
        %v713 = vld [vmem:[%s1 + $0xb38] sm:$0xff]
        %v714 = vld [vmem:[%s1 + $0xb40] sm:$0xff]
        %v715 = vld [vmem:[%s1 + $0xb48] sm:$0xff]
        %v716 = vld [vmem:[%s1 + $0xb50] sm:$0xff]
        %v717 = vld [vmem:[%s1 + $0xb58] sm:$0xff]
        %v718 = vld [vmem:[%s1 + $0xb60] sm:$0xff]
        %v719 = vld [vmem:[%s1 + $0xb68] sm:$0xff]
        %v720 = vld [vmem:[%s1 + $0xb70] sm:$0xff]
        %v721 = vld [vmem:[%s1 + $0xb78] sm:$0xff]
        %v722 = vld [vmem:[%s1 + $0xb80] sm:$0xff]
        %v723 = vld [vmem:[%s1 + $0xb88] sm:$0xff]
        %v724 = vld [vmem:[%s1 + $0xb90] sm:$0xff]
        %v725 = vld [vmem:[%s1 + $0xb98] sm:$0xff]
        %v726 = vld [vmem:[%s1 + $0xba0] sm:$0xff]
        %v727 = vld [vmem:[%s1 + $0xba8] sm:$0xff]
        %v728 = vld [vmem:[%s1 + $0xbb0] sm:$0xff]
        %v729 = vld [vmem:[%s1 + $0xbb8] sm:$0xff]
        %v730 = vld [vmem:[%s1 + $0xbc0] sm:$0xff]
        %v731 = vld [vmem:[%s1 + $0xbc8] sm:$0xff]
        %v732 = vld [vmem:[%s1 + $0xbd0] sm:$0xff]
        %v733 = vld [vmem:[%s1 + $0xbd8] sm:$0xff]
        %v734 = vld [vmem:[%s1 + $0xbe0] sm:$0xff]
        %v735 = vld [vmem:[%s1 + $0xbe8] sm:$0xff]
        %v736 = vld [vmem:[%s1 + $0xbf0] sm:$0xff]
        %v737 = vld [vmem:[%s1 + $0xbf8] sm:$0xff]
        %v738 = vld [vmem:[%s1 + $0xc00] sm:$0xff]
        %v739 = vld [vmem:[%s1 + $0xc08] sm:$0xff]
        %v740 = vld [vmem:[%s1 + $0xc10] sm:$0xff]
        %v741 = vld [vmem:[%s1 + $0xc18] sm:$0xff]
        %v742 = vld [vmem:[%s1 + $0xc20] sm:$0xff]
        %v743 = vld [vmem:[%s1 + $0xc28] sm:$0xff]
        %v744 = vld [vmem:[%s1 + $0xc30] sm:$0xff]
        %v745 = vld [vmem:[%s1 + $0xc38] sm:$0xff]
        %v746 = vld [vmem:[%s1 + $0xc40] sm:$0xff]
        %v747 = vld [vmem:[%s1 + $0xc48] sm:$0xff]
        %v748 = vld [vmem:[%s1 + $0xc50] sm:$0xff]
        %v749 = vld [vmem:[%s1 + $0xc58] sm:$0xff]
        %v750 = vld [vmem:[%s1 + $0xc60] sm:$0xff]
        %v751 = vld [vmem:[%s1 + $0xc68] sm:$0xff]
        %v752 = vld [vmem:[%s1 + $0xc70] sm:$0xff]
        %v753 = vld [vmem:[%s1 + $0xc78] sm:$0xff]
        %v754 = vld [vmem:[%s1 + $0xc80] sm:$0xff]
        %v755 = vld [vmem:[%s1 + $0xc88] sm:$0xff]
        %v756 = vld [vmem:[%s1 + $0xc90] sm:$0xff]
        %v757 = vld [vmem:[%s1 + $0xc98] sm:$0xff]
        %v758 = vld [vmem:[%s1 + $0xca0] sm:$0xff]
        %v759 = vld [vmem:[%s1 + $0xca8] sm:$0xff]
        %v760 = vld [vmem:[%s1 + $0xcb0] sm:$0xff]
        %v761 = vld [vmem:[%s1 + $0xcb8] sm:$0xff]
        %v762 = vld [vmem:[%s1 + $0xcc0] sm:$0xff]
        %v763 = vld [vmem:[%s1 + $0xcc8] sm:$0xff]
        %v764 = vld [vmem:[%s1 + $0xcd0] sm:$0xff]
        %v765 = vld [vmem:[%s1 + $0xcd8] sm:$0xff]
        %v766 = vld [vmem:[%s1 + $0xce0] sm:$0xff]
        %v767 = vld [vmem:[%s1 + $0xce8] sm:$0xff]
        %v768 = vld [vmem:[%s1 + $0xcf0] sm:$0xff]
        %v769 = vld [vmem:[%s1 + $0xcf8] sm:$0xff]
        %v770 = vld [vmem:[%s1 + $0xd00] sm:$0xff]
        %v771 = vld [vmem:[%s1 + $0xd08] sm:$0xff]
        %v772 = vld [vmem:[%s1 + $0xd10] sm:$0xff]
        %v773 = vld [vmem:[%s1 + $0xd18] sm:$0xff]
        %v774 = vld [vmem:[%s1 + $0xd20] sm:$0xff]
        %v775 = vld [vmem:[%s1 + $0xd28] sm:$0xff]
        %v776 = vld [vmem:[%s1 + $0xd30] sm:$0xff]
        %v777 = vld [vmem:[%s1 + $0xd38] sm:$0xff]
        %v778 = vld [vmem:[%s1 + $0xd40] sm:$0xff]
        %v779 = vld [vmem:[%s1 + $0xd48] sm:$0xff]
        %v780 = vld [vmem:[%s1 + $0xd50] sm:$0xff]
        %v781 = vld [vmem:[%s1 + $0xd58] sm:$0xff]
        %v782 = vld [vmem:[%s1 + $0xd60] sm:$0xff]
        %v783 = vld [vmem:[%s1 + $0xd68] sm:$0xff]
        %v784 = vld [vmem:[%s1 + $0xd70] sm:$0xff]
        %v785 = vld [vmem:[%s1 + $0xd78] sm:$0xff]
        %v786 = vld [vmem:[%s1 + $0xd80] sm:$0xff]
        %v787 = vld [vmem:[%s1 + $0xd88] sm:$0xff]
        %v788 = vld [vmem:[%s1 + $0xd90] sm:$0xff]
        %v789 = vld [vmem:[%s1 + $0xd98] sm:$0xff]
        %v790 = vld [vmem:[%s1 + $0xda0] sm:$0xff]
        %v791 = vld [vmem:[%s1 + $0xda8] sm:$0xff]
        %v792 = vld [vmem:[%s1 + $0xdb0] sm:$0xff]
        %v793 = vld [vmem:[%s1 + $0xdb8] sm:$0xff]
        %v794 = vld [vmem:[%s1 + $0xdc0] sm:$0xff]
        %v795 = vld [vmem:[%s1 + $0xdc8] sm:$0xff]
        %v796 = vld [vmem:[%s1 + $0xdd0] sm:$0xff]
        %v797 = vld [vmem:[%s1 + $0xdd8] sm:$0xff]
        %v798 = vld [vmem:[%s1 + $0xde0] sm:$0xff]
        %v799 = vld [vmem:[%s1 + $0xde8] sm:$0xff]
        %v800 = vld [vmem:[%s1 + $0xdf0] sm:$0xff]
        %v801 = vld [vmem:[%s1 + $0xdf8] sm:$0xff]
        %v802 = vld [vmem:[%s1 + $0xe00] sm:$0xff]
        %v803 = vld [vmem:[%s1 + $0xe08] sm:$0xff]
        %v804 = vld [vmem:[%s1 + $0xe10] sm:$0xff]
        %v805 = vld [vmem:[%s1 + $0xe18] sm:$0xff]
        %v806 = vld [vmem:[%s1 + $0xe20] sm:$0xff]
        %v807 = vld [vmem:[%s1 + $0xe28] sm:$0xff]
        %v808 = vld [vmem:[%s1 + $0xe30] sm:$0xff]
        %v809 = vld [vmem:[%s1 + $0xe38] sm:$0xff]
        %v810 = vld [vmem:[%s1 + $0xe40] sm:$0xff]
        %v811 = vld [vmem:[%s1 + $0xe48] sm:$0xff]
        %v812 = vld [vmem:[%s1 + $0xe50] sm:$0xff]
        %v813 = vld [vmem:[%s1 + $0xe58] sm:$0xff]
        %v814 = vld [vmem:[%s1 + $0xe60] sm:$0xff]
        %v815 = vld [vmem:[%s1 + $0xe68] sm:$0xff]
        %v816 = vld [vmem:[%s1 + $0xe70] sm:$0xff]
        %v817 = vld [vmem:[%s1 + $0xe78] sm:$0xff]
        %v818 = vld [vmem:[%s1 + $0xe80] sm:$0xff]
        %v819 = vld [vmem:[%s1 + $0xe88] sm:$0xff]
        %v820 = vld [vmem:[%s1 + $0xe90] sm:$0xff]
        %v821 = vld [vmem:[%s1 + $0xe98] sm:$0xff]
        %v822 = vld [vmem:[%s1 + $0xea0] sm:$0xff]
        %v823 = vld [vmem:[%s1 + $0xea8] sm:$0xff]
        %v824 = vld [vmem:[%s1 + $0xeb0] sm:$0xff]
        %v825 = vld [vmem:[%s1 + $0xeb8] sm:$0xff]
        %v826 = vld [vmem:[%s1 + $0xec0] sm:$0xff]
        %v827 = vld [vmem:[%s1 + $0xec8] sm:$0xff]
        %v828 = vld [vmem:[%s1 + $0xed0] sm:$0xff]
        %v829 = vld [vmem:[%s1 + $0xed8] sm:$0xff]
        %v830 = vld [vmem:[%s1 + $0xee0] sm:$0xff]
        %v831 = vld [vmem:[%s1 + $0xee8] sm:$0xff]
        %v832 = vld [vmem:[%s1 + $0xef0] sm:$0xff]
        %v833 = vld [vmem:[%s1 + $0xef8] sm:$0xff]
        %v834 = vld [vmem:[%s1 + $0xf00] sm:$0xff]
        %v835 = vld [vmem:[%s1 + $0xf08] sm:$0xff]
        %v836 = vld [vmem:[%s1 + $0xf10] sm:$0xff]
        %v837 = vld [vmem:[%s1 + $0xf18] sm:$0xff]
        %v838 = vld [vmem:[%s1 + $0xf20] sm:$0xff]
        %v839 = vld [vmem:[%s1 + $0xf28] sm:$0xff]
        %v840 = vld [vmem:[%s1 + $0xf30] sm:$0xff]
        %v841 = vld [vmem:[%s1 + $0xf38] sm:$0xff]
        %v842 = vld [vmem:[%s1 + $0xf40] sm:$0xff]
        %v843 = vld [vmem:[%s1 + $0xf48] sm:$0xff]
        %v844 = vld [vmem:[%s1 + $0xf50] sm:$0xff]
        %v845 = vld [vmem:[%s1 + $0xf58] sm:$0xff]
        %v846 = vld [vmem:[%s1 + $0xf60] sm:$0xff]
        %v847 = vld [vmem:[%s1 + $0xf68] sm:$0xff]
        %v848 = vld [vmem:[%s1 + $0xf70] sm:$0xff]
        %v849 = vld [vmem:[%s1 + $0xf78] sm:$0xff]
        %v850 = vld [vmem:[%s1 + $0xf80] sm:$0xff]
        %v851 = vld [vmem:[%s1 + $0xf88] sm:$0xff]
        %v852 = vld [vmem:[%s1 + $0xf90] sm:$0xff]
        %v853 = vld [vmem:[%s1 + $0xf98] sm:$0xff]
        %v854 = vld [vmem:[%s1 + $0xfa0] sm:$0xff]
        %v855 = vld [vmem:[%s1 + $0xfa8] sm:$0xff]
        %v856 = vld [vmem:[%s1 + $0xfb0] sm:$0xff]
        %v857 = vld [vmem:[%s1 + $0xfb8] sm:$0xff]
        %v858 = vld [vmem:[%s1 + $0xfc0] sm:$0xff]
        %v859 = vld [vmem:[%s1 + $0xfc8] sm:$0xff]
        %v860 = vld [vmem:[%s1 + $0xfd0] sm:$0xff]
        %v861 = vld [vmem:[%s1 + $0xfd8] sm:$0xff]
        %v862 = vld [vmem:[%s1 + $0xfe0] sm:$0xff]
        %v863 = vld [vmem:[%s1 + $0xfe8] sm:$0xff]
        %v864 = vld [vmem:[%s1 + $0xff0] sm:$0xff]
        %v865 = vld [vmem:[%s1 + $0xff8] sm:$0xff]
        %v930 = vunpack.c.l.b16 %v290
        %v931 = vunpack.c.h.b16 %v290
        %v932 = vunpack.c.l.b16 %v291
        %v933 = vunpack.c.h.b16 %v291
        %v934 = vunpack.c.l.b16 %v292
        %v935 = vunpack.c.h.b16 %v292
        %v936 = vunpack.c.l.b16 %v293
        %v937 = vunpack.c.h.b16 %v293
        %v938 = vunpack.c.l.b16 %v294
        %v939 = vunpack.c.h.b16 %v294
        %v940 = vunpack.c.l.b16 %v295
        %v941 = vunpack.c.h.b16 %v295
        %v942 = vunpack.c.l.b16 %v296
        %v943 = vunpack.c.h.b16 %v296
        %v944 = vunpack.c.l.b16 %v297
        %v945 = vunpack.c.h.b16 %v297
        %v946 = vunpack.c.l.b16 %v298
        %v947 = vunpack.c.h.b16 %v298
        %v948 = vunpack.c.l.b16 %v299
        %v949 = vunpack.c.h.b16 %v299
        %v950 = vunpack.c.l.b16 %v300
        %v951 = vunpack.c.h.b16 %v300
        %v952 = vunpack.c.l.b16 %v301
        %v953 = vunpack.c.h.b16 %v301
        %v954 = vunpack.c.l.b16 %v302
        %v955 = vunpack.c.h.b16 %v302
        %v956 = vunpack.c.l.b16 %v303
        %v957 = vunpack.c.h.b16 %v303
        %v958 = vunpack.c.l.b16 %v304
        %v959 = vunpack.c.h.b16 %v304
        %v960 = vunpack.c.l.b16 %v305
        %v961 = vunpack.c.h.b16 %v305
        %v962 = vunpack.c.l.b16 %v306
        %v963 = vunpack.c.h.b16 %v306
        %v964 = vunpack.c.l.b16 %v307
        %v965 = vunpack.c.h.b16 %v307
        %v966 = vunpack.c.l.b16 %v308
        %v967 = vunpack.c.h.b16 %v308
        %v968 = vunpack.c.l.b16 %v309
        %v969 = vunpack.c.h.b16 %v309
        %v970 = vunpack.c.l.b16 %v310
        %v971 = vunpack.c.h.b16 %v310
        %v972 = vunpack.c.l.b16 %v311
        %v973 = vunpack.c.h.b16 %v311
        %v974 = vunpack.c.l.b16 %v312
        %v975 = vunpack.c.h.b16 %v312
        %v976 = vunpack.c.l.b16 %v313
        %v977 = vunpack.c.h.b16 %v313
        %v978 = vunpack.c.l.b16 %v314
        %v979 = vunpack.c.h.b16 %v314
        %v980 = vunpack.c.l.b16 %v315
        %v981 = vunpack.c.h.b16 %v315
        %v982 = vunpack.c.l.b16 %v316
        %v983 = vunpack.c.h.b16 %v316
        %v984 = vunpack.c.l.b16 %v317
        %v985 = vunpack.c.h.b16 %v317
        %v986 = vunpack.c.l.b16 %v318
        %v987 = vunpack.c.h.b16 %v318
        %v988 = vunpack.c.l.b16 %v319
        %v989 = vunpack.c.h.b16 %v319
        %v990 = vunpack.c.l.b16 %v320
        %v991 = vunpack.c.h.b16 %v320
        %v992 = vunpack.c.l.b16 %v321
        %v993 = vunpack.c.h.b16 %v321
        %v994 = vunpack.c.l.b16 %v322
        %v995 = vunpack.c.h.b16 %v322
        %v996 = vunpack.c.l.b16 %v323
        %v997 = vunpack.c.h.b16 %v323
        %v998 = vunpack.c.l.b16 %v324
        %v999 = vunpack.c.h.b16 %v324
        %v1000 = vunpack.c.l.b16 %v325
        %v1001 = vunpack.c.h.b16 %v325
        %v1002 = vunpack.c.l.b16 %v326
        %v1003 = vunpack.c.h.b16 %v326
        %v1004 = vunpack.c.l.b16 %v327
        %v1005 = vunpack.c.h.b16 %v327
        %v1006 = vunpack.c.l.b16 %v328
        %v1007 = vunpack.c.h.b16 %v328
        %v1008 = vunpack.c.l.b16 %v329
        %v1009 = vunpack.c.h.b16 %v329
        %v1010 = vunpack.c.l.b16 %v330
        %v1011 = vunpack.c.h.b16 %v330
        %v1012 = vunpack.c.l.b16 %v331
        %v1013 = vunpack.c.h.b16 %v331
        %v1014 = vunpack.c.l.b16 %v332
        %v1015 = vunpack.c.h.b16 %v332
        %v1016 = vunpack.c.l.b16 %v333
        %v1017 = vunpack.c.h.b16 %v333
        %v1018 = vunpack.c.l.b16 %v334
        %v1019 = vunpack.c.h.b16 %v334
        %v1020 = vunpack.c.l.b16 %v335
        %v1021 = vunpack.c.h.b16 %v335
        %v1022 = vunpack.c.l.b16 %v336
        %v1023 = vunpack.c.h.b16 %v336
        %v1024 = vunpack.c.l.b16 %v337
        %v1025 = vunpack.c.h.b16 %v337
        %v1026 = vunpack.c.l.b16 %v338
        %v1027 = vunpack.c.h.b16 %v338
        %v1028 = vunpack.c.l.b16 %v339
        %v1029 = vunpack.c.h.b16 %v339
        %v1030 = vunpack.c.l.b16 %v340
        %v1031 = vunpack.c.h.b16 %v340
        %v1032 = vunpack.c.l.b16 %v341
        %v1033 = vunpack.c.h.b16 %v341
        %v1034 = vunpack.c.l.b16 %v342
        %v1035 = vunpack.c.h.b16 %v342
        %v1036 = vunpack.c.l.b16 %v343
        %v1037 = vunpack.c.h.b16 %v343
        %v1038 = vunpack.c.l.b16 %v344
        %v1039 = vunpack.c.h.b16 %v344
        %v1040 = vunpack.c.l.b16 %v345
        %v1041 = vunpack.c.h.b16 %v345
        %v1042 = vunpack.c.l.b16 %v346
        %v1043 = vunpack.c.h.b16 %v346
        %v1044 = vunpack.c.l.b16 %v347
        %v1045 = vunpack.c.h.b16 %v347
        %v1046 = vunpack.c.l.b16 %v348
        %v1047 = vunpack.c.h.b16 %v348
        %v1048 = vunpack.c.l.b16 %v349
        %v1049 = vunpack.c.h.b16 %v349
        %v1050 = vunpack.c.l.b16 %v350
        %v1051 = vunpack.c.h.b16 %v350
        %v1052 = vunpack.c.l.b16 %v351
        %v1053 = vunpack.c.h.b16 %v351
        %v1054 = vunpack.c.l.b16 %v352
        %v1055 = vunpack.c.h.b16 %v352
        %v1056 = vunpack.c.l.b16 %v353
        %v1057 = vunpack.c.h.b16 %v353
        %v1058 = vpack.c.b16 %v946, %v930
        %v1059 = vpack.c.b16 %v947, %v931
        %v1060 = vpack.c.b16 %v948, %v932
        %v1061 = vpack.c.b16 %v949, %v933
        %v1062 = vpack.c.b16 %v950, %v934
        %v1063 = vpack.c.b16 %v951, %v935
        %v1064 = vpack.c.b16 %v952, %v936
        %v1065 = vpack.c.b16 %v953, %v937
        %v1066 = vpack.c.b16 %v954, %v938
        %v1067 = vpack.c.b16 %v955, %v939
        %v1068 = vpack.c.b16 %v956, %v940
        %v1069 = vpack.c.b16 %v957, %v941
        %v1070 = vpack.c.b16 %v958, %v942
        %v1071 = vpack.c.b16 %v959, %v943
        %v1072 = vpack.c.b16 %v960, %v944
        %v1073 = vpack.c.b16 %v961, %v945
        %v1074 = vpack.c.b16 %v978, %v962
        %v1075 = vpack.c.b16 %v979, %v963
        %v1076 = vpack.c.b16 %v980, %v964
        %v1077 = vpack.c.b16 %v981, %v965
        %v1078 = vpack.c.b16 %v982, %v966
        %v1079 = vpack.c.b16 %v983, %v967
        %v1080 = vpack.c.b16 %v984, %v968
        %v1081 = vpack.c.b16 %v985, %v969
        %v1082 = vpack.c.b16 %v986, %v970
        %v1083 = vpack.c.b16 %v987, %v971
        %v1084 = vpack.c.b16 %v988, %v972
        %v1085 = vpack.c.b16 %v989, %v973
        %v1086 = vpack.c.b16 %v990, %v974
        %v1087 = vpack.c.b16 %v991, %v975
        %v1088 = vpack.c.b16 %v992, %v976
        %v1089 = vpack.c.b16 %v993, %v977
        %v1090 = vpack.c.b16 %v1010, %v994
        %v1091 = vpack.c.b16 %v1011, %v995
        %v1092 = vpack.c.b16 %v1012, %v996
        %v1093 = vpack.c.b16 %v1013, %v997
        %v1094 = vpack.c.b16 %v1014, %v998
        %v1095 = vpack.c.b16 %v1015, %v999
        %v1096 = vpack.c.b16 %v1016, %v1000
        %v1097 = vpack.c.b16 %v1017, %v1001
        %v1098 = vpack.c.b16 %v1018, %v1002
        %v1099 = vpack.c.b16 %v1019, %v1003
        %v1100 = vpack.c.b16 %v1020, %v1004
        %v1101 = vpack.c.b16 %v1021, %v1005
        %v1102 = vpack.c.b16 %v1022, %v1006
        %v1103 = vpack.c.b16 %v1023, %v1007
        %v1104 = vpack.c.b16 %v1024, %v1008
        %v1105 = vpack.c.b16 %v1025, %v1009
        %v1106 = vpack.c.b16 %v1042, %v1026
        %v1107 = vpack.c.b16 %v1043, %v1027
        %v1108 = vpack.c.b16 %v1044, %v1028
        %v1109 = vpack.c.b16 %v1045, %v1029
        %v1110 = vpack.c.b16 %v1046, %v1030
        %v1111 = vpack.c.b16 %v1047, %v1031
        %v1112 = vpack.c.b16 %v1048, %v1032
        %v1113 = vpack.c.b16 %v1049, %v1033
        %v1114 = vpack.c.b16 %v1050, %v1034
        %v1115 = vpack.c.b16 %v1051, %v1035
        %v1116 = vpack.c.b16 %v1052, %v1036
        %v1117 = vpack.c.b16 %v1053, %v1037
        %v1118 = vpack.c.b16 %v1054, %v1038
        %v1119 = vpack.c.b16 %v1055, %v1039
        %v1120 = vpack.c.b16 %v1056, %v1040
        %v1121 = vpack.c.b16 %v1057, %v1041
        %v1698 = vunpack.c.l.b16 %v354
        %v1699 = vunpack.c.h.b16 %v354
        %v1700 = vunpack.c.l.b16 %v355
        %v1701 = vunpack.c.h.b16 %v355
        %v1702 = vunpack.c.l.b16 %v356
        %v1703 = vunpack.c.h.b16 %v356
        %v1704 = vunpack.c.l.b16 %v357
        %v1705 = vunpack.c.h.b16 %v357
        %v1706 = vunpack.c.l.b16 %v358
        %v1707 = vunpack.c.h.b16 %v358
        %v1708 = vunpack.c.l.b16 %v359
        %v1709 = vunpack.c.h.b16 %v359
        %v1710 = vunpack.c.l.b16 %v360
        %v1711 = vunpack.c.h.b16 %v360
        %v1712 = vunpack.c.l.b16 %v361
        %v1713 = vunpack.c.h.b16 %v361
        %v1714 = vunpack.c.l.b16 %v362
        %v1715 = vunpack.c.h.b16 %v362
        %v1716 = vunpack.c.l.b16 %v363
        %v1717 = vunpack.c.h.b16 %v363
        %v1718 = vunpack.c.l.b16 %v364
        %v1719 = vunpack.c.h.b16 %v364
        %v1720 = vunpack.c.l.b16 %v365
        %v1721 = vunpack.c.h.b16 %v365
        %v1722 = vunpack.c.l.b16 %v366
        %v1723 = vunpack.c.h.b16 %v366
        %v1724 = vunpack.c.l.b16 %v367
        %v1725 = vunpack.c.h.b16 %v367
        %v1726 = vunpack.c.l.b16 %v368
        %v1727 = vunpack.c.h.b16 %v368
        %v1728 = vunpack.c.l.b16 %v369
        %v1729 = vunpack.c.h.b16 %v369
        %v1730 = vunpack.c.l.b16 %v370
        %v1731 = vunpack.c.h.b16 %v370
        %v1732 = vunpack.c.l.b16 %v371
        %v1733 = vunpack.c.h.b16 %v371
        %v1734 = vunpack.c.l.b16 %v372
        %v1735 = vunpack.c.h.b16 %v372
        %v1736 = vunpack.c.l.b16 %v373
        %v1737 = vunpack.c.h.b16 %v373
        %v1738 = vunpack.c.l.b16 %v374
        %v1739 = vunpack.c.h.b16 %v374
        %v1740 = vunpack.c.l.b16 %v375
        %v1741 = vunpack.c.h.b16 %v375
        %v1742 = vunpack.c.l.b16 %v376
        %v1743 = vunpack.c.h.b16 %v376
        %v1744 = vunpack.c.l.b16 %v377
        %v1745 = vunpack.c.h.b16 %v377
        %v1746 = vunpack.c.l.b16 %v378
        %v1747 = vunpack.c.h.b16 %v378
        %v1748 = vunpack.c.l.b16 %v379
        %v1749 = vunpack.c.h.b16 %v379
        %v1750 = vunpack.c.l.b16 %v380
        %v1751 = vunpack.c.h.b16 %v380
        %v1752 = vunpack.c.l.b16 %v381
        %v1753 = vunpack.c.h.b16 %v381
        %v1754 = vunpack.c.l.b16 %v382
        %v1755 = vunpack.c.h.b16 %v382
        %v1756 = vunpack.c.l.b16 %v383
        %v1757 = vunpack.c.h.b16 %v383
        %v1758 = vunpack.c.l.b16 %v384
        %v1759 = vunpack.c.h.b16 %v384
        %v1760 = vunpack.c.l.b16 %v385
        %v1761 = vunpack.c.h.b16 %v385
        %v1762 = vunpack.c.l.b16 %v386
        %v1763 = vunpack.c.h.b16 %v386
        %v1764 = vunpack.c.l.b16 %v387
        %v1765 = vunpack.c.h.b16 %v387
        %v1766 = vunpack.c.l.b16 %v388
        %v1767 = vunpack.c.h.b16 %v388
        %v1768 = vunpack.c.l.b16 %v389
        %v1769 = vunpack.c.h.b16 %v389
        %v1770 = vunpack.c.l.b16 %v390
        %v1771 = vunpack.c.h.b16 %v390
        %v1772 = vunpack.c.l.b16 %v391
        %v1773 = vunpack.c.h.b16 %v391
        %v1774 = vunpack.c.l.b16 %v392
        %v1775 = vunpack.c.h.b16 %v392
        %v1776 = vunpack.c.l.b16 %v393
        %v1777 = vunpack.c.h.b16 %v393
        %v1778 = vunpack.c.l.b16 %v394
        %v1779 = vunpack.c.h.b16 %v394
        %v1780 = vunpack.c.l.b16 %v395
        %v1781 = vunpack.c.h.b16 %v395
        %v1782 = vunpack.c.l.b16 %v396
        %v1783 = vunpack.c.h.b16 %v396
        %v1784 = vunpack.c.l.b16 %v397
        %v1785 = vunpack.c.h.b16 %v397
        %v1786 = vunpack.c.l.b16 %v398
        %v1787 = vunpack.c.h.b16 %v398
        %v1788 = vunpack.c.l.b16 %v399
        %v1789 = vunpack.c.h.b16 %v399
        %v1790 = vunpack.c.l.b16 %v400
        %v1791 = vunpack.c.h.b16 %v400
        %v1792 = vunpack.c.l.b16 %v401
        %v1793 = vunpack.c.h.b16 %v401
        %v1794 = vunpack.c.l.b16 %v402
        %v1795 = vunpack.c.h.b16 %v402
        %v1796 = vunpack.c.l.b16 %v403
        %v1797 = vunpack.c.h.b16 %v403
        %v1798 = vunpack.c.l.b16 %v404
        %v1799 = vunpack.c.h.b16 %v404
        %v1800 = vunpack.c.l.b16 %v405
        %v1801 = vunpack.c.h.b16 %v405
        %v1802 = vunpack.c.l.b16 %v406
        %v1803 = vunpack.c.h.b16 %v406
        %v1804 = vunpack.c.l.b16 %v407
        %v1805 = vunpack.c.h.b16 %v407
        %v1806 = vunpack.c.l.b16 %v408
        %v1807 = vunpack.c.h.b16 %v408
        %v1808 = vunpack.c.l.b16 %v409
        %v1809 = vunpack.c.h.b16 %v409
        %v1810 = vunpack.c.l.b16 %v410
        %v1811 = vunpack.c.h.b16 %v410
        %v1812 = vunpack.c.l.b16 %v411
        %v1813 = vunpack.c.h.b16 %v411
        %v1814 = vunpack.c.l.b16 %v412
        %v1815 = vunpack.c.h.b16 %v412
        %v1816 = vunpack.c.l.b16 %v413
        %v1817 = vunpack.c.h.b16 %v413
        %v1818 = vunpack.c.l.b16 %v414
        %v1819 = vunpack.c.h.b16 %v414
        %v1820 = vunpack.c.l.b16 %v415
        %v1821 = vunpack.c.h.b16 %v415
        %v1822 = vunpack.c.l.b16 %v416
        %v1823 = vunpack.c.h.b16 %v416
        %v1824 = vunpack.c.l.b16 %v417
        %v1825 = vunpack.c.h.b16 %v417
        %v1826 = vunpack.c.l.b16 %v418
        %v1827 = vunpack.c.h.b16 %v418
        %v1828 = vunpack.c.l.b16 %v419
        %v1829 = vunpack.c.h.b16 %v419
        %v1830 = vunpack.c.l.b16 %v420
        %v1831 = vunpack.c.h.b16 %v420
        %v1832 = vunpack.c.l.b16 %v421
        %v1833 = vunpack.c.h.b16 %v421
        %v1834 = vunpack.c.l.b16 %v422
        %v1835 = vunpack.c.h.b16 %v422
        %v1836 = vunpack.c.l.b16 %v423
        %v1837 = vunpack.c.h.b16 %v423
        %v1838 = vunpack.c.l.b16 %v424
        %v1839 = vunpack.c.h.b16 %v424
        %v1840 = vunpack.c.l.b16 %v425
        %v1841 = vunpack.c.h.b16 %v425
        %v1842 = vunpack.c.l.b16 %v426
        %v1843 = vunpack.c.h.b16 %v426
        %v1844 = vunpack.c.l.b16 %v427
        %v1845 = vunpack.c.h.b16 %v427
        %v1846 = vunpack.c.l.b16 %v428
        %v1847 = vunpack.c.h.b16 %v428
        %v1848 = vunpack.c.l.b16 %v429
        %v1849 = vunpack.c.h.b16 %v429
        %v1850 = vunpack.c.l.b16 %v430
        %v1851 = vunpack.c.h.b16 %v430
        %v1852 = vunpack.c.l.b16 %v431
        %v1853 = vunpack.c.h.b16 %v431
        %v1854 = vunpack.c.l.b16 %v432
        %v1855 = vunpack.c.h.b16 %v432
        %v1856 = vunpack.c.l.b16 %v433
        %v1857 = vunpack.c.h.b16 %v433
        %v1858 = vunpack.c.l.b16 %v434
        %v1859 = vunpack.c.h.b16 %v434
        %v1860 = vunpack.c.l.b16 %v435
        %v1861 = vunpack.c.h.b16 %v435
        %v1862 = vunpack.c.l.b16 %v436
        %v1863 = vunpack.c.h.b16 %v436
        %v1864 = vunpack.c.l.b16 %v437
        %v1865 = vunpack.c.h.b16 %v437
        %v1866 = vunpack.c.l.b16 %v438
        %v1867 = vunpack.c.h.b16 %v438
        %v1868 = vunpack.c.l.b16 %v439
        %v1869 = vunpack.c.h.b16 %v439
        %v1870 = vunpack.c.l.b16 %v440
        %v1871 = vunpack.c.h.b16 %v440
        %v1872 = vunpack.c.l.b16 %v441
        %v1873 = vunpack.c.h.b16 %v441
        %v1874 = vunpack.c.l.b16 %v442
        %v1875 = vunpack.c.h.b16 %v442
        %v1876 = vunpack.c.l.b16 %v443
        %v1877 = vunpack.c.h.b16 %v443
        %v1878 = vunpack.c.l.b16 %v444
        %v1879 = vunpack.c.h.b16 %v444
        %v1880 = vunpack.c.l.b16 %v445
        %v1881 = vunpack.c.h.b16 %v445
        %v1882 = vunpack.c.l.b16 %v446
        %v1883 = vunpack.c.h.b16 %v446
        %v1884 = vunpack.c.l.b16 %v447
        %v1885 = vunpack.c.h.b16 %v447
        %v1886 = vunpack.c.l.b16 %v448
        %v1887 = vunpack.c.h.b16 %v448
        %v1888 = vunpack.c.l.b16 %v449
        %v1889 = vunpack.c.h.b16 %v449
        %v1890 = vunpack.c.l.b16 %v450
        %v1891 = vunpack.c.h.b16 %v450
        %v1892 = vunpack.c.l.b16 %v451
        %v1893 = vunpack.c.h.b16 %v451
        %v1894 = vunpack.c.l.b16 %v452
        %v1895 = vunpack.c.h.b16 %v452
        %v1896 = vunpack.c.l.b16 %v453
        %v1897 = vunpack.c.h.b16 %v453
        %v1898 = vunpack.c.l.b16 %v454
        %v1899 = vunpack.c.h.b16 %v454
        %v1900 = vunpack.c.l.b16 %v455
        %v1901 = vunpack.c.h.b16 %v455
        %v1902 = vunpack.c.l.b16 %v456
        %v1903 = vunpack.c.h.b16 %v456
        %v1904 = vunpack.c.l.b16 %v457
        %v1905 = vunpack.c.h.b16 %v457
        %v1906 = vunpack.c.l.b16 %v458
        %v1907 = vunpack.c.h.b16 %v458
        %v1908 = vunpack.c.l.b16 %v459
        %v1909 = vunpack.c.h.b16 %v459
        %v1910 = vunpack.c.l.b16 %v460
        %v1911 = vunpack.c.h.b16 %v460
        %v1912 = vunpack.c.l.b16 %v461
        %v1913 = vunpack.c.h.b16 %v461
        %v1914 = vunpack.c.l.b16 %v462
        %v1915 = vunpack.c.h.b16 %v462
        %v1916 = vunpack.c.l.b16 %v463
        %v1917 = vunpack.c.h.b16 %v463
        %v1918 = vunpack.c.l.b16 %v464
        %v1919 = vunpack.c.h.b16 %v464
        %v1920 = vunpack.c.l.b16 %v465
        %v1921 = vunpack.c.h.b16 %v465
        %v1922 = vunpack.c.l.b16 %v466
        %v1923 = vunpack.c.h.b16 %v466
        %v1924 = vunpack.c.l.b16 %v467
        %v1925 = vunpack.c.h.b16 %v467
        %v1926 = vunpack.c.l.b16 %v468
        %v1927 = vunpack.c.h.b16 %v468
        %v1928 = vunpack.c.l.b16 %v469
        %v1929 = vunpack.c.h.b16 %v469
        %v1930 = vunpack.c.l.b16 %v470
        %v1931 = vunpack.c.h.b16 %v470
        %v1932 = vunpack.c.l.b16 %v471
        %v1933 = vunpack.c.h.b16 %v471
        %v1934 = vunpack.c.l.b16 %v472
        %v1935 = vunpack.c.h.b16 %v472
        %v1936 = vunpack.c.l.b16 %v473
        %v1937 = vunpack.c.h.b16 %v473
        %v1938 = vunpack.c.l.b16 %v474
        %v1939 = vunpack.c.h.b16 %v474
        %v1940 = vunpack.c.l.b16 %v475
        %v1941 = vunpack.c.h.b16 %v475
        %v1942 = vunpack.c.l.b16 %v476
        %v1943 = vunpack.c.h.b16 %v476
        %v1944 = vunpack.c.l.b16 %v477
        %v1945 = vunpack.c.h.b16 %v477
        %v1946 = vunpack.c.l.b16 %v478
        %v1947 = vunpack.c.h.b16 %v478
        %v1948 = vunpack.c.l.b16 %v479
        %v1949 = vunpack.c.h.b16 %v479
        %v1950 = vunpack.c.l.b16 %v480
        %v1951 = vunpack.c.h.b16 %v480
        %v1952 = vunpack.c.l.b16 %v481
        %v1953 = vunpack.c.h.b16 %v481
        %v1954 = vunpack.c.l.b16 %v482
        %v1955 = vunpack.c.h.b16 %v482
        %v1956 = vunpack.c.l.b16 %v483
        %v1957 = vunpack.c.h.b16 %v483
        %v1958 = vunpack.c.l.b16 %v484
        %v1959 = vunpack.c.h.b16 %v484
        %v1960 = vunpack.c.l.b16 %v485
        %v1961 = vunpack.c.h.b16 %v485
        %v1962 = vunpack.c.l.b16 %v486
        %v1963 = vunpack.c.h.b16 %v486
        %v1964 = vunpack.c.l.b16 %v487
        %v1965 = vunpack.c.h.b16 %v487
        %v1966 = vunpack.c.l.b16 %v488
        %v1967 = vunpack.c.h.b16 %v488
        %v1968 = vunpack.c.l.b16 %v489
        %v1969 = vunpack.c.h.b16 %v489
        %v1970 = vunpack.c.l.b16 %v490
        %v1971 = vunpack.c.h.b16 %v490
        %v1972 = vunpack.c.l.b16 %v491
        %v1973 = vunpack.c.h.b16 %v491
        %v1974 = vunpack.c.l.b16 %v492
        %v1975 = vunpack.c.h.b16 %v492
        %v1976 = vunpack.c.l.b16 %v493
        %v1977 = vunpack.c.h.b16 %v493
        %v1978 = vunpack.c.l.b16 %v494
        %v1979 = vunpack.c.h.b16 %v494
        %v1980 = vunpack.c.l.b16 %v495
        %v1981 = vunpack.c.h.b16 %v495
        %v1982 = vunpack.c.l.b16 %v496
        %v1983 = vunpack.c.h.b16 %v496
        %v1984 = vunpack.c.l.b16 %v497
        %v1985 = vunpack.c.h.b16 %v497
        %v1986 = vunpack.c.l.b16 %v498
        %v1987 = vunpack.c.h.b16 %v498
        %v1988 = vunpack.c.l.b16 %v499
        %v1989 = vunpack.c.h.b16 %v499
        %v1990 = vunpack.c.l.b16 %v500
        %v1991 = vunpack.c.h.b16 %v500
        %v1992 = vunpack.c.l.b16 %v501
        %v1993 = vunpack.c.h.b16 %v501
        %v1994 = vunpack.c.l.b16 %v502
        %v1995 = vunpack.c.h.b16 %v502
        %v1996 = vunpack.c.l.b16 %v503
        %v1997 = vunpack.c.h.b16 %v503
        %v1998 = vunpack.c.l.b16 %v504
        %v1999 = vunpack.c.h.b16 %v504
        %v2000 = vunpack.c.l.b16 %v505
        %v2001 = vunpack.c.h.b16 %v505
        %v2002 = vunpack.c.l.b16 %v506
        %v2003 = vunpack.c.h.b16 %v506
        %v2004 = vunpack.c.l.b16 %v507
        %v2005 = vunpack.c.h.b16 %v507
        %v2006 = vunpack.c.l.b16 %v508
        %v2007 = vunpack.c.h.b16 %v508
        %v2008 = vunpack.c.l.b16 %v509
        %v2009 = vunpack.c.h.b16 %v509
        %v2010 = vunpack.c.l.b16 %v510
        %v2011 = vunpack.c.h.b16 %v510
        %v2012 = vunpack.c.l.b16 %v511
        %v2013 = vunpack.c.h.b16 %v511
        %v2014 = vunpack.c.l.b16 %v512
        %v2015 = vunpack.c.h.b16 %v512
        %v2016 = vunpack.c.l.b16 %v513
        %v2017 = vunpack.c.h.b16 %v513
        %v2018 = vunpack.c.l.b16 %v514
        %v2019 = vunpack.c.h.b16 %v514
        %v2020 = vunpack.c.l.b16 %v515
        %v2021 = vunpack.c.h.b16 %v515
        %v2022 = vunpack.c.l.b16 %v516
        %v2023 = vunpack.c.h.b16 %v516
        %v2024 = vunpack.c.l.b16 %v517
        %v2025 = vunpack.c.h.b16 %v517
        %v2026 = vunpack.c.l.b16 %v518
        %v2027 = vunpack.c.h.b16 %v518
        %v2028 = vunpack.c.l.b16 %v519
        %v2029 = vunpack.c.h.b16 %v519
        %v2030 = vunpack.c.l.b16 %v520
        %v2031 = vunpack.c.h.b16 %v520
        %v2032 = vunpack.c.l.b16 %v521
        %v2033 = vunpack.c.h.b16 %v521
        %v2034 = vunpack.c.l.b16 %v522
        %v2035 = vunpack.c.h.b16 %v522
        %v2036 = vunpack.c.l.b16 %v523
        %v2037 = vunpack.c.h.b16 %v523
        %v2038 = vunpack.c.l.b16 %v524
        %v2039 = vunpack.c.h.b16 %v524
        %v2040 = vunpack.c.l.b16 %v525
        %v2041 = vunpack.c.h.b16 %v525
        %v2042 = vunpack.c.l.b16 %v526
        %v2043 = vunpack.c.h.b16 %v526
        %v2044 = vunpack.c.l.b16 %v527
        %v2045 = vunpack.c.h.b16 %v527
        %v2046 = vunpack.c.l.b16 %v528
        %v2047 = vunpack.c.h.b16 %v528
        %v2048 = vunpack.c.l.b16 %v529
        %v2049 = vunpack.c.h.b16 %v529
        %v2050 = vunpack.c.l.b16 %v530
        %v2051 = vunpack.c.h.b16 %v530
        %v2052 = vunpack.c.l.b16 %v531
        %v2053 = vunpack.c.h.b16 %v531
        %v2054 = vunpack.c.l.b16 %v532
        %v2055 = vunpack.c.h.b16 %v532
        %v2056 = vunpack.c.l.b16 %v533
        %v2057 = vunpack.c.h.b16 %v533
        %v2058 = vunpack.c.l.b16 %v534
        %v2059 = vunpack.c.h.b16 %v534
        %v2060 = vunpack.c.l.b16 %v535
        %v2061 = vunpack.c.h.b16 %v535
        %v2062 = vunpack.c.l.b16 %v536
        %v2063 = vunpack.c.h.b16 %v536
        %v2064 = vunpack.c.l.b16 %v537
        %v2065 = vunpack.c.h.b16 %v537
        %v2066 = vunpack.c.l.b16 %v538
        %v2067 = vunpack.c.h.b16 %v538
        %v2068 = vunpack.c.l.b16 %v539
        %v2069 = vunpack.c.h.b16 %v539
        %v2070 = vunpack.c.l.b16 %v540
        %v2071 = vunpack.c.h.b16 %v540
        %v2072 = vunpack.c.l.b16 %v541
        %v2073 = vunpack.c.h.b16 %v541
        %v2074 = vunpack.c.l.b16 %v542
        %v2075 = vunpack.c.h.b16 %v542
        %v2076 = vunpack.c.l.b16 %v543
        %v2077 = vunpack.c.h.b16 %v543
        %v2078 = vunpack.c.l.b16 %v544
        %v2079 = vunpack.c.h.b16 %v544
        %v2080 = vunpack.c.l.b16 %v545
        %v2081 = vunpack.c.h.b16 %v545
        %v2082 = vunpack.c.l.b16 %v546
        %v2083 = vunpack.c.h.b16 %v546
        %v2084 = vunpack.c.l.b16 %v547
        %v2085 = vunpack.c.h.b16 %v547
        %v2086 = vunpack.c.l.b16 %v548
        %v2087 = vunpack.c.h.b16 %v548
        %v2088 = vunpack.c.l.b16 %v549
        %v2089 = vunpack.c.h.b16 %v549
        %v2090 = vunpack.c.l.b16 %v550
        %v2091 = vunpack.c.h.b16 %v550
        %v2092 = vunpack.c.l.b16 %v551
        %v2093 = vunpack.c.h.b16 %v551
        %v2094 = vunpack.c.l.b16 %v552
        %v2095 = vunpack.c.h.b16 %v552
        %v2096 = vunpack.c.l.b16 %v553
        %v2097 = vunpack.c.h.b16 %v553
        %v2098 = vunpack.c.l.b16 %v554
        %v2099 = vunpack.c.h.b16 %v554
        %v2100 = vunpack.c.l.b16 %v555
        %v2101 = vunpack.c.h.b16 %v555
        %v2102 = vunpack.c.l.b16 %v556
        %v2103 = vunpack.c.h.b16 %v556
        %v2104 = vunpack.c.l.b16 %v557
        %v2105 = vunpack.c.h.b16 %v557
        %v2106 = vunpack.c.l.b16 %v558
        %v2107 = vunpack.c.h.b16 %v558
        %v2108 = vunpack.c.l.b16 %v559
        %v2109 = vunpack.c.h.b16 %v559
        %v2110 = vunpack.c.l.b16 %v560
        %v2111 = vunpack.c.h.b16 %v560
        %v2112 = vunpack.c.l.b16 %v561
        %v2113 = vunpack.c.h.b16 %v561
        %v2114 = vunpack.c.l.b16 %v562
        %v2115 = vunpack.c.h.b16 %v562
        %v2116 = vunpack.c.l.b16 %v563
        %v2117 = vunpack.c.h.b16 %v563
        %v2118 = vunpack.c.l.b16 %v564
        %v2119 = vunpack.c.h.b16 %v564
        %v2120 = vunpack.c.l.b16 %v565
        %v2121 = vunpack.c.h.b16 %v565
        %v2122 = vunpack.c.l.b16 %v566
        %v2123 = vunpack.c.h.b16 %v566
        %v2124 = vunpack.c.l.b16 %v567
        %v2125 = vunpack.c.h.b16 %v567
        %v2126 = vunpack.c.l.b16 %v568
        %v2127 = vunpack.c.h.b16 %v568
        %v2128 = vunpack.c.l.b16 %v569
        %v2129 = vunpack.c.h.b16 %v569
        %v2130 = vunpack.c.l.b16 %v570
        %v2131 = vunpack.c.h.b16 %v570
        %v2132 = vunpack.c.l.b16 %v571
        %v2133 = vunpack.c.h.b16 %v571
        %v2134 = vunpack.c.l.b16 %v572
        %v2135 = vunpack.c.h.b16 %v572
        %v2136 = vunpack.c.l.b16 %v573
        %v2137 = vunpack.c.h.b16 %v573
        %v2138 = vunpack.c.l.b16 %v574
        %v2139 = vunpack.c.h.b16 %v574
        %v2140 = vunpack.c.l.b16 %v575
        %v2141 = vunpack.c.h.b16 %v575
        %v2142 = vunpack.c.l.b16 %v576
        %v2143 = vunpack.c.h.b16 %v576
        %v2144 = vunpack.c.l.b16 %v577
        %v2145 = vunpack.c.h.b16 %v577
        %v2146 = vunpack.c.l.b16 %v578
        %v2147 = vunpack.c.h.b16 %v578
        %v2148 = vunpack.c.l.b16 %v579
        %v2149 = vunpack.c.h.b16 %v579
        %v2150 = vunpack.c.l.b16 %v580
        %v2151 = vunpack.c.h.b16 %v580
        %v2152 = vunpack.c.l.b16 %v581
        %v2153 = vunpack.c.h.b16 %v581
        %v2154 = vunpack.c.l.b16 %v582
        %v2155 = vunpack.c.h.b16 %v582
        %v2156 = vunpack.c.l.b16 %v583
        %v2157 = vunpack.c.h.b16 %v583
        %v2158 = vunpack.c.l.b16 %v584
        %v2159 = vunpack.c.h.b16 %v584
        %v2160 = vunpack.c.l.b16 %v585
        %v2161 = vunpack.c.h.b16 %v585
        %v2162 = vunpack.c.l.b16 %v586
        %v2163 = vunpack.c.h.b16 %v586
        %v2164 = vunpack.c.l.b16 %v587
        %v2165 = vunpack.c.h.b16 %v587
        %v2166 = vunpack.c.l.b16 %v588
        %v2167 = vunpack.c.h.b16 %v588
        %v2168 = vunpack.c.l.b16 %v589
        %v2169 = vunpack.c.h.b16 %v589
        %v2170 = vunpack.c.l.b16 %v590
        %v2171 = vunpack.c.h.b16 %v590
        %v2172 = vunpack.c.l.b16 %v591
        %v2173 = vunpack.c.h.b16 %v591
        %v2174 = vunpack.c.l.b16 %v592
        %v2175 = vunpack.c.h.b16 %v592
        %v2176 = vunpack.c.l.b16 %v593
        %v2177 = vunpack.c.h.b16 %v593
        %v2178 = vunpack.c.l.b16 %v594
        %v2179 = vunpack.c.h.b16 %v594
        %v2180 = vunpack.c.l.b16 %v595
        %v2181 = vunpack.c.h.b16 %v595
        %v2182 = vunpack.c.l.b16 %v596
        %v2183 = vunpack.c.h.b16 %v596
        %v2184 = vunpack.c.l.b16 %v597
        %v2185 = vunpack.c.h.b16 %v597
        %v2186 = vunpack.c.l.b16 %v598
        %v2187 = vunpack.c.h.b16 %v598
        %v2188 = vunpack.c.l.b16 %v599
        %v2189 = vunpack.c.h.b16 %v599
        %v2190 = vunpack.c.l.b16 %v600
        %v2191 = vunpack.c.h.b16 %v600
        %v2192 = vunpack.c.l.b16 %v601
        %v2193 = vunpack.c.h.b16 %v601
        %v2194 = vunpack.c.l.b16 %v602
        %v2195 = vunpack.c.h.b16 %v602
        %v2196 = vunpack.c.l.b16 %v603
        %v2197 = vunpack.c.h.b16 %v603
        %v2198 = vunpack.c.l.b16 %v604
        %v2199 = vunpack.c.h.b16 %v604
        %v2200 = vunpack.c.l.b16 %v605
        %v2201 = vunpack.c.h.b16 %v605
        %v2202 = vunpack.c.l.b16 %v606
        %v2203 = vunpack.c.h.b16 %v606
        %v2204 = vunpack.c.l.b16 %v607
        %v2205 = vunpack.c.h.b16 %v607
        %v2206 = vunpack.c.l.b16 %v608
        %v2207 = vunpack.c.h.b16 %v608
        %v2208 = vunpack.c.l.b16 %v609
        %v2209 = vunpack.c.h.b16 %v609
        %v2210 = vunpack.c.l.b16 %v610
        %v2211 = vunpack.c.h.b16 %v610
        %v2212 = vunpack.c.l.b16 %v611
        %v2213 = vunpack.c.h.b16 %v611
        %v2214 = vunpack.c.l.b16 %v612
        %v2215 = vunpack.c.h.b16 %v612
        %v2216 = vunpack.c.l.b16 %v613
        %v2217 = vunpack.c.h.b16 %v613
        %v2218 = vunpack.c.l.b16 %v614
        %v2219 = vunpack.c.h.b16 %v614
        %v2220 = vunpack.c.l.b16 %v615
        %v2221 = vunpack.c.h.b16 %v615
        %v2222 = vunpack.c.l.b16 %v616
        %v2223 = vunpack.c.h.b16 %v616
        %v2224 = vunpack.c.l.b16 %v617
        %v2225 = vunpack.c.h.b16 %v617
        %v2226 = vunpack.c.l.b16 %v618
        %v2227 = vunpack.c.h.b16 %v618
        %v2228 = vunpack.c.l.b16 %v619
        %v2229 = vunpack.c.h.b16 %v619
        %v2230 = vunpack.c.l.b16 %v620
        %v2231 = vunpack.c.h.b16 %v620
        %v2232 = vunpack.c.l.b16 %v621
        %v2233 = vunpack.c.h.b16 %v621
        %v2234 = vunpack.c.l.b16 %v622
        %v2235 = vunpack.c.h.b16 %v622
        %v2236 = vunpack.c.l.b16 %v623
        %v2237 = vunpack.c.h.b16 %v623
        %v2238 = vunpack.c.l.b16 %v624
        %v2239 = vunpack.c.h.b16 %v624
        %v2240 = vunpack.c.l.b16 %v625
        %v2241 = vunpack.c.h.b16 %v625
        %v2242 = vunpack.c.l.b16 %v626
        %v2243 = vunpack.c.h.b16 %v626
        %v2244 = vunpack.c.l.b16 %v627
        %v2245 = vunpack.c.h.b16 %v627
        %v2246 = vunpack.c.l.b16 %v628
        %v2247 = vunpack.c.h.b16 %v628
        %v2248 = vunpack.c.l.b16 %v629
        %v2249 = vunpack.c.h.b16 %v629
        %v2250 = vunpack.c.l.b16 %v630
        %v2251 = vunpack.c.h.b16 %v630
        %v2252 = vunpack.c.l.b16 %v631
        %v2253 = vunpack.c.h.b16 %v631
        %v2254 = vunpack.c.l.b16 %v632
        %v2255 = vunpack.c.h.b16 %v632
        %v2256 = vunpack.c.l.b16 %v633
        %v2257 = vunpack.c.h.b16 %v633
        %v2258 = vunpack.c.l.b16 %v634
        %v2259 = vunpack.c.h.b16 %v634
        %v2260 = vunpack.c.l.b16 %v635
        %v2261 = vunpack.c.h.b16 %v635
        %v2262 = vunpack.c.l.b16 %v636
        %v2263 = vunpack.c.h.b16 %v636
        %v2264 = vunpack.c.l.b16 %v637
        %v2265 = vunpack.c.h.b16 %v637
        %v2266 = vunpack.c.l.b16 %v638
        %v2267 = vunpack.c.h.b16 %v638
        %v2268 = vunpack.c.l.b16 %v639
        %v2269 = vunpack.c.h.b16 %v639
        %v2270 = vunpack.c.l.b16 %v640
        %v2271 = vunpack.c.h.b16 %v640
        %v2272 = vunpack.c.l.b16 %v641
        %v2273 = vunpack.c.h.b16 %v641
        %v2274 = vunpack.c.l.b16 %v642
        %v2275 = vunpack.c.h.b16 %v642
        %v2276 = vunpack.c.l.b16 %v643
        %v2277 = vunpack.c.h.b16 %v643
        %v2278 = vunpack.c.l.b16 %v644
        %v2279 = vunpack.c.h.b16 %v644
        %v2280 = vunpack.c.l.b16 %v645
        %v2281 = vunpack.c.h.b16 %v645
        %v2282 = vunpack.c.l.b16 %v646
        %v2283 = vunpack.c.h.b16 %v646
        %v2284 = vunpack.c.l.b16 %v647
        %v2285 = vunpack.c.h.b16 %v647
        %v2286 = vunpack.c.l.b16 %v648
        %v2287 = vunpack.c.h.b16 %v648
        %v2288 = vunpack.c.l.b16 %v649
        %v2289 = vunpack.c.h.b16 %v649
        %v2290 = vunpack.c.l.b16 %v650
        %v2291 = vunpack.c.h.b16 %v650
        %v2292 = vunpack.c.l.b16 %v651
        %v2293 = vunpack.c.h.b16 %v651
        %v2294 = vunpack.c.l.b16 %v652
        %v2295 = vunpack.c.h.b16 %v652
        %v2296 = vunpack.c.l.b16 %v653
        %v2297 = vunpack.c.h.b16 %v653
        %v2298 = vunpack.c.l.b16 %v654
        %v2299 = vunpack.c.h.b16 %v654
        %v2300 = vunpack.c.l.b16 %v655
        %v2301 = vunpack.c.h.b16 %v655
        %v2302 = vunpack.c.l.b16 %v656
        %v2303 = vunpack.c.h.b16 %v656
        %v2304 = vunpack.c.l.b16 %v657
        %v2305 = vunpack.c.h.b16 %v657
        %v2306 = vunpack.c.l.b16 %v658
        %v2307 = vunpack.c.h.b16 %v658
        %v2308 = vunpack.c.l.b16 %v659
        %v2309 = vunpack.c.h.b16 %v659
        %v2310 = vunpack.c.l.b16 %v660
        %v2311 = vunpack.c.h.b16 %v660
        %v2312 = vunpack.c.l.b16 %v661
        %v2313 = vunpack.c.h.b16 %v661
        %v2314 = vunpack.c.l.b16 %v662
        %v2315 = vunpack.c.h.b16 %v662
        %v2316 = vunpack.c.l.b16 %v663
        %v2317 = vunpack.c.h.b16 %v663
        %v2318 = vunpack.c.l.b16 %v664
        %v2319 = vunpack.c.h.b16 %v664
        %v2320 = vunpack.c.l.b16 %v665
        %v2321 = vunpack.c.h.b16 %v665
        %v2322 = vunpack.c.l.b16 %v666
        %v2323 = vunpack.c.h.b16 %v666
        %v2324 = vunpack.c.l.b16 %v667
        %v2325 = vunpack.c.h.b16 %v667
        %v2326 = vunpack.c.l.b16 %v668
        %v2327 = vunpack.c.h.b16 %v668
        %v2328 = vunpack.c.l.b16 %v669
        %v2329 = vunpack.c.h.b16 %v669
        %v2330 = vunpack.c.l.b16 %v670
        %v2331 = vunpack.c.h.b16 %v670
        %v2332 = vunpack.c.l.b16 %v671
        %v2333 = vunpack.c.h.b16 %v671
        %v2334 = vunpack.c.l.b16 %v672
        %v2335 = vunpack.c.h.b16 %v672
        %v2336 = vunpack.c.l.b16 %v673
        %v2337 = vunpack.c.h.b16 %v673
        %v2338 = vunpack.c.l.b16 %v674
        %v2339 = vunpack.c.h.b16 %v674
        %v2340 = vunpack.c.l.b16 %v675
        %v2341 = vunpack.c.h.b16 %v675
        %v2342 = vunpack.c.l.b16 %v676
        %v2343 = vunpack.c.h.b16 %v676
        %v2344 = vunpack.c.l.b16 %v677
        %v2345 = vunpack.c.h.b16 %v677
        %v2346 = vunpack.c.l.b16 %v678
        %v2347 = vunpack.c.h.b16 %v678
        %v2348 = vunpack.c.l.b16 %v679
        %v2349 = vunpack.c.h.b16 %v679
        %v2350 = vunpack.c.l.b16 %v680
        %v2351 = vunpack.c.h.b16 %v680
        %v2352 = vunpack.c.l.b16 %v681
        %v2353 = vunpack.c.h.b16 %v681
        %v2354 = vunpack.c.l.b16 %v682
        %v2355 = vunpack.c.h.b16 %v682
        %v2356 = vunpack.c.l.b16 %v683
        %v2357 = vunpack.c.h.b16 %v683
        %v2358 = vunpack.c.l.b16 %v684
        %v2359 = vunpack.c.h.b16 %v684
        %v2360 = vunpack.c.l.b16 %v685
        %v2361 = vunpack.c.h.b16 %v685
        %v2362 = vunpack.c.l.b16 %v686
        %v2363 = vunpack.c.h.b16 %v686
        %v2364 = vunpack.c.l.b16 %v687
        %v2365 = vunpack.c.h.b16 %v687
        %v2366 = vunpack.c.l.b16 %v688
        %v2367 = vunpack.c.h.b16 %v688
        %v2368 = vunpack.c.l.b16 %v689
        %v2369 = vunpack.c.h.b16 %v689
        %v2370 = vunpack.c.l.b16 %v690
        %v2371 = vunpack.c.h.b16 %v690
        %v2372 = vunpack.c.l.b16 %v691
        %v2373 = vunpack.c.h.b16 %v691
        %v2374 = vunpack.c.l.b16 %v692
        %v2375 = vunpack.c.h.b16 %v692
        %v2376 = vunpack.c.l.b16 %v693
        %v2377 = vunpack.c.h.b16 %v693
        %v2378 = vunpack.c.l.b16 %v694
        %v2379 = vunpack.c.h.b16 %v694
        %v2380 = vunpack.c.l.b16 %v695
        %v2381 = vunpack.c.h.b16 %v695
        %v2382 = vunpack.c.l.b16 %v696
        %v2383 = vunpack.c.h.b16 %v696
        %v2384 = vunpack.c.l.b16 %v697
        %v2385 = vunpack.c.h.b16 %v697
        %v2386 = vunpack.c.l.b16 %v698
        %v2387 = vunpack.c.h.b16 %v698
        %v2388 = vunpack.c.l.b16 %v699
        %v2389 = vunpack.c.h.b16 %v699
        %v2390 = vunpack.c.l.b16 %v700
        %v2391 = vunpack.c.h.b16 %v700
        %v2392 = vunpack.c.l.b16 %v701
        %v2393 = vunpack.c.h.b16 %v701
        %v2394 = vunpack.c.l.b16 %v702
        %v2395 = vunpack.c.h.b16 %v702
        %v2396 = vunpack.c.l.b16 %v703
        %v2397 = vunpack.c.h.b16 %v703
        %v2398 = vunpack.c.l.b16 %v704
        %v2399 = vunpack.c.h.b16 %v704
        %v2400 = vunpack.c.l.b16 %v705
        %v2401 = vunpack.c.h.b16 %v705
        %v2402 = vunpack.c.l.b16 %v706
        %v2403 = vunpack.c.h.b16 %v706
        %v2404 = vunpack.c.l.b16 %v707
        %v2405 = vunpack.c.h.b16 %v707
        %v2406 = vunpack.c.l.b16 %v708
        %v2407 = vunpack.c.h.b16 %v708
        %v2408 = vunpack.c.l.b16 %v709
        %v2409 = vunpack.c.h.b16 %v709
        %v2410 = vunpack.c.l.b16 %v710
        %v2411 = vunpack.c.h.b16 %v710
        %v2412 = vunpack.c.l.b16 %v711
        %v2413 = vunpack.c.h.b16 %v711
        %v2414 = vunpack.c.l.b16 %v712
        %v2415 = vunpack.c.h.b16 %v712
        %v2416 = vunpack.c.l.b16 %v713
        %v2417 = vunpack.c.h.b16 %v713
        %v2418 = vunpack.c.l.b16 %v714
        %v2419 = vunpack.c.h.b16 %v714
        %v2420 = vunpack.c.l.b16 %v715
        %v2421 = vunpack.c.h.b16 %v715
        %v2422 = vunpack.c.l.b16 %v716
        %v2423 = vunpack.c.h.b16 %v716
        %v2424 = vunpack.c.l.b16 %v717
        %v2425 = vunpack.c.h.b16 %v717
        %v2426 = vunpack.c.l.b16 %v718
        %v2427 = vunpack.c.h.b16 %v718
        %v2428 = vunpack.c.l.b16 %v719
        %v2429 = vunpack.c.h.b16 %v719
        %v2430 = vunpack.c.l.b16 %v720
        %v2431 = vunpack.c.h.b16 %v720
        %v2432 = vunpack.c.l.b16 %v721
        %v2433 = vunpack.c.h.b16 %v721
        %v2434 = vunpack.c.l.b16 %v722
        %v2435 = vunpack.c.h.b16 %v722
        %v2436 = vunpack.c.l.b16 %v723
        %v2437 = vunpack.c.h.b16 %v723
        %v2438 = vunpack.c.l.b16 %v724
        %v2439 = vunpack.c.h.b16 %v724
        %v2440 = vunpack.c.l.b16 %v725
        %v2441 = vunpack.c.h.b16 %v725
        %v2442 = vunpack.c.l.b16 %v726
        %v2443 = vunpack.c.h.b16 %v726
        %v2444 = vunpack.c.l.b16 %v727
        %v2445 = vunpack.c.h.b16 %v727
        %v2446 = vunpack.c.l.b16 %v728
        %v2447 = vunpack.c.h.b16 %v728
        %v2448 = vunpack.c.l.b16 %v729
        %v2449 = vunpack.c.h.b16 %v729
        %v2450 = vunpack.c.l.b16 %v730
        %v2451 = vunpack.c.h.b16 %v730
        %v2452 = vunpack.c.l.b16 %v731
        %v2453 = vunpack.c.h.b16 %v731
        %v2454 = vunpack.c.l.b16 %v732
        %v2455 = vunpack.c.h.b16 %v732
        %v2456 = vunpack.c.l.b16 %v733
        %v2457 = vunpack.c.h.b16 %v733
        %v2458 = vunpack.c.l.b16 %v734
        %v2459 = vunpack.c.h.b16 %v734
        %v2460 = vunpack.c.l.b16 %v735
        %v2461 = vunpack.c.h.b16 %v735
        %v2462 = vunpack.c.l.b16 %v736
        %v2463 = vunpack.c.h.b16 %v736
        %v2464 = vunpack.c.l.b16 %v737
        %v2465 = vunpack.c.h.b16 %v737
        %v2466 = vunpack.c.l.b16 %v738
        %v2467 = vunpack.c.h.b16 %v738
        %v2468 = vunpack.c.l.b16 %v739
        %v2469 = vunpack.c.h.b16 %v739
        %v2470 = vunpack.c.l.b16 %v740
        %v2471 = vunpack.c.h.b16 %v740
        %v2472 = vunpack.c.l.b16 %v741
        %v2473 = vunpack.c.h.b16 %v741
        %v2474 = vunpack.c.l.b16 %v742
        %v2475 = vunpack.c.h.b16 %v742
        %v2476 = vunpack.c.l.b16 %v743
        %v2477 = vunpack.c.h.b16 %v743
        %v2478 = vunpack.c.l.b16 %v744
        %v2479 = vunpack.c.h.b16 %v744
        %v2480 = vunpack.c.l.b16 %v745
        %v2481 = vunpack.c.h.b16 %v745
        %v2482 = vunpack.c.l.b16 %v746
        %v2483 = vunpack.c.h.b16 %v746
        %v2484 = vunpack.c.l.b16 %v747
        %v2485 = vunpack.c.h.b16 %v747
        %v2486 = vunpack.c.l.b16 %v748
        %v2487 = vunpack.c.h.b16 %v748
        %v2488 = vunpack.c.l.b16 %v749
        %v2489 = vunpack.c.h.b16 %v749
        %v2490 = vunpack.c.l.b16 %v750
        %v2491 = vunpack.c.h.b16 %v750
        %v2492 = vunpack.c.l.b16 %v751
        %v2493 = vunpack.c.h.b16 %v751
        %v2494 = vunpack.c.l.b16 %v752
        %v2495 = vunpack.c.h.b16 %v752
        %v2496 = vunpack.c.l.b16 %v753
        %v2497 = vunpack.c.h.b16 %v753
        %v2498 = vunpack.c.l.b16 %v754
        %v2499 = vunpack.c.h.b16 %v754
        %v2500 = vunpack.c.l.b16 %v755
        %v2501 = vunpack.c.h.b16 %v755
        %v2502 = vunpack.c.l.b16 %v756
        %v2503 = vunpack.c.h.b16 %v756
        %v2504 = vunpack.c.l.b16 %v757
        %v2505 = vunpack.c.h.b16 %v757
        %v2506 = vunpack.c.l.b16 %v758
        %v2507 = vunpack.c.h.b16 %v758
        %v2508 = vunpack.c.l.b16 %v759
        %v2509 = vunpack.c.h.b16 %v759
        %v2510 = vunpack.c.l.b16 %v760
        %v2511 = vunpack.c.h.b16 %v760
        %v2512 = vunpack.c.l.b16 %v761
        %v2513 = vunpack.c.h.b16 %v761
        %v2514 = vunpack.c.l.b16 %v762
        %v2515 = vunpack.c.h.b16 %v762
        %v2516 = vunpack.c.l.b16 %v763
        %v2517 = vunpack.c.h.b16 %v763
        %v2518 = vunpack.c.l.b16 %v764
        %v2519 = vunpack.c.h.b16 %v764
        %v2520 = vunpack.c.l.b16 %v765
        %v2521 = vunpack.c.h.b16 %v765
        %v2522 = vunpack.c.l.b16 %v766
        %v2523 = vunpack.c.h.b16 %v766
        %v2524 = vunpack.c.l.b16 %v767
        %v2525 = vunpack.c.h.b16 %v767
        %v2526 = vunpack.c.l.b16 %v768
        %v2527 = vunpack.c.h.b16 %v768
        %v2528 = vunpack.c.l.b16 %v769
        %v2529 = vunpack.c.h.b16 %v769
        %v2530 = vunpack.c.l.b16 %v770
        %v2531 = vunpack.c.h.b16 %v770
        %v2532 = vunpack.c.l.b16 %v771
        %v2533 = vunpack.c.h.b16 %v771
        %v2534 = vunpack.c.l.b16 %v772
        %v2535 = vunpack.c.h.b16 %v772
        %v2536 = vunpack.c.l.b16 %v773
        %v2537 = vunpack.c.h.b16 %v773
        %v2538 = vunpack.c.l.b16 %v774
        %v2539 = vunpack.c.h.b16 %v774
        %v2540 = vunpack.c.l.b16 %v775
        %v2541 = vunpack.c.h.b16 %v775
        %v2542 = vunpack.c.l.b16 %v776
        %v2543 = vunpack.c.h.b16 %v776
        %v2544 = vunpack.c.l.b16 %v777
        %v2545 = vunpack.c.h.b16 %v777
        %v2546 = vunpack.c.l.b16 %v778
        %v2547 = vunpack.c.h.b16 %v778
        %v2548 = vunpack.c.l.b16 %v779
        %v2549 = vunpack.c.h.b16 %v779
        %v2550 = vunpack.c.l.b16 %v780
        %v2551 = vunpack.c.h.b16 %v780
        %v2552 = vunpack.c.l.b16 %v781
        %v2553 = vunpack.c.h.b16 %v781
        %v2554 = vunpack.c.l.b16 %v782
        %v2555 = vunpack.c.h.b16 %v782
        %v2556 = vunpack.c.l.b16 %v783
        %v2557 = vunpack.c.h.b16 %v783
        %v2558 = vunpack.c.l.b16 %v784
        %v2559 = vunpack.c.h.b16 %v784
        %v2560 = vunpack.c.l.b16 %v785
        %v2561 = vunpack.c.h.b16 %v785
        %v2562 = vunpack.c.l.b16 %v786
        %v2563 = vunpack.c.h.b16 %v786
        %v2564 = vunpack.c.l.b16 %v787
        %v2565 = vunpack.c.h.b16 %v787
        %v2566 = vunpack.c.l.b16 %v788
        %v2567 = vunpack.c.h.b16 %v788
        %v2568 = vunpack.c.l.b16 %v789
        %v2569 = vunpack.c.h.b16 %v789
        %v2570 = vunpack.c.l.b16 %v790
        %v2571 = vunpack.c.h.b16 %v790
        %v2572 = vunpack.c.l.b16 %v791
        %v2573 = vunpack.c.h.b16 %v791
        %v2574 = vunpack.c.l.b16 %v792
        %v2575 = vunpack.c.h.b16 %v792
        %v2576 = vunpack.c.l.b16 %v793
        %v2577 = vunpack.c.h.b16 %v793
        %v2578 = vunpack.c.l.b16 %v794
        %v2579 = vunpack.c.h.b16 %v794
        %v2580 = vunpack.c.l.b16 %v795
        %v2581 = vunpack.c.h.b16 %v795
        %v2582 = vunpack.c.l.b16 %v796
        %v2583 = vunpack.c.h.b16 %v796
        %v2584 = vunpack.c.l.b16 %v797
        %v2585 = vunpack.c.h.b16 %v797
        %v2586 = vunpack.c.l.b16 %v798
        %v2587 = vunpack.c.h.b16 %v798
        %v2588 = vunpack.c.l.b16 %v799
        %v2589 = vunpack.c.h.b16 %v799
        %v2590 = vunpack.c.l.b16 %v800
        %v2591 = vunpack.c.h.b16 %v800
        %v2592 = vunpack.c.l.b16 %v801
        %v2593 = vunpack.c.h.b16 %v801
        %v2594 = vunpack.c.l.b16 %v802
        %v2595 = vunpack.c.h.b16 %v802
        %v2596 = vunpack.c.l.b16 %v803
        %v2597 = vunpack.c.h.b16 %v803
        %v2598 = vunpack.c.l.b16 %v804
        %v2599 = vunpack.c.h.b16 %v804
        %v2600 = vunpack.c.l.b16 %v805
        %v2601 = vunpack.c.h.b16 %v805
        %v2602 = vunpack.c.l.b16 %v806
        %v2603 = vunpack.c.h.b16 %v806
        %v2604 = vunpack.c.l.b16 %v807
        %v2605 = vunpack.c.h.b16 %v807
        %v2606 = vunpack.c.l.b16 %v808
        %v2607 = vunpack.c.h.b16 %v808
        %v2608 = vunpack.c.l.b16 %v809
        %v2609 = vunpack.c.h.b16 %v809
        %v2610 = vunpack.c.l.b16 %v810
        %v2611 = vunpack.c.h.b16 %v810
        %v2612 = vunpack.c.l.b16 %v811
        %v2613 = vunpack.c.h.b16 %v811
        %v2614 = vunpack.c.l.b16 %v812
        %v2615 = vunpack.c.h.b16 %v812
        %v2616 = vunpack.c.l.b16 %v813
        %v2617 = vunpack.c.h.b16 %v813
        %v2618 = vunpack.c.l.b16 %v814
        %v2619 = vunpack.c.h.b16 %v814
        %v2620 = vunpack.c.l.b16 %v815
        %v2621 = vunpack.c.h.b16 %v815
        %v2622 = vunpack.c.l.b16 %v816
        %v2623 = vunpack.c.h.b16 %v816
        %v2624 = vunpack.c.l.b16 %v817
        %v2625 = vunpack.c.h.b16 %v817
        %v2626 = vunpack.c.l.b16 %v818
        %v2627 = vunpack.c.h.b16 %v818
        %v2628 = vunpack.c.l.b16 %v819
        %v2629 = vunpack.c.h.b16 %v819
        %v2630 = vunpack.c.l.b16 %v820
        %v2631 = vunpack.c.h.b16 %v820
        %v2632 = vunpack.c.l.b16 %v821
        %v2633 = vunpack.c.h.b16 %v821
        %v2634 = vunpack.c.l.b16 %v822
        %v2635 = vunpack.c.h.b16 %v822
        %v2636 = vunpack.c.l.b16 %v823
        %v2637 = vunpack.c.h.b16 %v823
        %v2638 = vunpack.c.l.b16 %v824
        %v2639 = vunpack.c.h.b16 %v824
        %v2640 = vunpack.c.l.b16 %v825
        %v2641 = vunpack.c.h.b16 %v825
        %v2642 = vunpack.c.l.b16 %v826
        %v2643 = vunpack.c.h.b16 %v826
        %v2644 = vunpack.c.l.b16 %v827
        %v2645 = vunpack.c.h.b16 %v827
        %v2646 = vunpack.c.l.b16 %v828
        %v2647 = vunpack.c.h.b16 %v828
        %v2648 = vunpack.c.l.b16 %v829
        %v2649 = vunpack.c.h.b16 %v829
        %v2650 = vunpack.c.l.b16 %v830
        %v2651 = vunpack.c.h.b16 %v830
        %v2652 = vunpack.c.l.b16 %v831
        %v2653 = vunpack.c.h.b16 %v831
        %v2654 = vunpack.c.l.b16 %v832
        %v2655 = vunpack.c.h.b16 %v832
        %v2656 = vunpack.c.l.b16 %v833
        %v2657 = vunpack.c.h.b16 %v833
        %v2658 = vunpack.c.l.b16 %v834
        %v2659 = vunpack.c.h.b16 %v834
        %v2660 = vunpack.c.l.b16 %v835
        %v2661 = vunpack.c.h.b16 %v835
        %v2662 = vunpack.c.l.b16 %v836
        %v2663 = vunpack.c.h.b16 %v836
        %v2664 = vunpack.c.l.b16 %v837
        %v2665 = vunpack.c.h.b16 %v837
        %v2666 = vunpack.c.l.b16 %v838
        %v2667 = vunpack.c.h.b16 %v838
        %v2668 = vunpack.c.l.b16 %v839
        %v2669 = vunpack.c.h.b16 %v839
        %v2670 = vunpack.c.l.b16 %v840
        %v2671 = vunpack.c.h.b16 %v840
        %v2672 = vunpack.c.l.b16 %v841
        %v2673 = vunpack.c.h.b16 %v841
        %v2674 = vunpack.c.l.b16 %v842
        %v2675 = vunpack.c.h.b16 %v842
        %v2676 = vunpack.c.l.b16 %v843
        %v2677 = vunpack.c.h.b16 %v843
        %v2678 = vunpack.c.l.b16 %v844
        %v2679 = vunpack.c.h.b16 %v844
        %v2680 = vunpack.c.l.b16 %v845
        %v2681 = vunpack.c.h.b16 %v845
        %v2682 = vunpack.c.l.b16 %v846
        %v2683 = vunpack.c.h.b16 %v846
        %v2684 = vunpack.c.l.b16 %v847
        %v2685 = vunpack.c.h.b16 %v847
        %v2686 = vunpack.c.l.b16 %v848
        %v2687 = vunpack.c.h.b16 %v848
        %v2688 = vunpack.c.l.b16 %v849
        %v2689 = vunpack.c.h.b16 %v849
        %v2690 = vunpack.c.l.b16 %v850
        %v2691 = vunpack.c.h.b16 %v850
        %v2692 = vunpack.c.l.b16 %v851
        %v2693 = vunpack.c.h.b16 %v851
        %v2694 = vunpack.c.l.b16 %v852
        %v2695 = vunpack.c.h.b16 %v852
        %v2696 = vunpack.c.l.b16 %v853
        %v2697 = vunpack.c.h.b16 %v853
        %v2698 = vunpack.c.l.b16 %v854
        %v2699 = vunpack.c.h.b16 %v854
        %v2700 = vunpack.c.l.b16 %v855
        %v2701 = vunpack.c.h.b16 %v855
        %v2702 = vunpack.c.l.b16 %v856
        %v2703 = vunpack.c.h.b16 %v856
        %v2704 = vunpack.c.l.b16 %v857
        %v2705 = vunpack.c.h.b16 %v857
        %v2706 = vunpack.c.l.b16 %v858
        %v2707 = vunpack.c.h.b16 %v858
        %v2708 = vunpack.c.l.b16 %v859
        %v2709 = vunpack.c.h.b16 %v859
        %v2710 = vunpack.c.l.b16 %v860
        %v2711 = vunpack.c.h.b16 %v860
        %v2712 = vunpack.c.l.b16 %v861
        %v2713 = vunpack.c.h.b16 %v861
        %v2714 = vunpack.c.l.b16 %v862
        %v2715 = vunpack.c.h.b16 %v862
        %v2716 = vunpack.c.l.b16 %v863
        %v2717 = vunpack.c.h.b16 %v863
        %v2718 = vunpack.c.l.b16 %v864
        %v2719 = vunpack.c.h.b16 %v864
        %v2720 = vunpack.c.l.b16 %v865
        %v2721 = vunpack.c.h.b16 %v865
        %v2722 = vpack.c.b16 %v1702, %v1698
        %v2723 = vpack.c.b16 %v1703, %v1699
        %v2724 = vpack.c.b16 %v1704, %v1700
        %v2725 = vpack.c.b16 %v1705, %v1701
        %v2726 = vpack.c.b16 %v1710, %v1706
        %v2727 = vpack.c.b16 %v1711, %v1707
        %v2728 = vpack.c.b16 %v1712, %v1708
        %v2729 = vpack.c.b16 %v1713, %v1709
        %v2730 = vpack.c.b16 %v1718, %v1714
        %v2731 = vpack.c.b16 %v1719, %v1715
        %v2732 = vpack.c.b16 %v1720, %v1716
        %v2733 = vpack.c.b16 %v1721, %v1717
        %v2734 = vpack.c.b16 %v1726, %v1722
        %v2735 = vpack.c.b16 %v1727, %v1723
        %v2736 = vpack.c.b16 %v1728, %v1724
        %v2737 = vpack.c.b16 %v1729, %v1725
        %v2738 = vpack.c.b16 %v1734, %v1730
        %v2739 = vpack.c.b16 %v1735, %v1731
        %v2740 = vpack.c.b16 %v1736, %v1732
        %v2741 = vpack.c.b16 %v1737, %v1733
        %v2742 = vpack.c.b16 %v1742, %v1738
        %v2743 = vpack.c.b16 %v1743, %v1739
        %v2744 = vpack.c.b16 %v1744, %v1740
        %v2745 = vpack.c.b16 %v1745, %v1741
        %v2746 = vpack.c.b16 %v1750, %v1746
        %v2747 = vpack.c.b16 %v1751, %v1747
        %v2748 = vpack.c.b16 %v1752, %v1748
        %v2749 = vpack.c.b16 %v1753, %v1749
        %v2750 = vpack.c.b16 %v1758, %v1754
        %v2751 = vpack.c.b16 %v1759, %v1755
        %v2752 = vpack.c.b16 %v1760, %v1756
        %v2753 = vpack.c.b16 %v1761, %v1757
        %v2754 = vpack.c.b16 %v1766, %v1762
        %v2755 = vpack.c.b16 %v1767, %v1763
        %v2756 = vpack.c.b16 %v1768, %v1764
        %v2757 = vpack.c.b16 %v1769, %v1765
        %v2758 = vpack.c.b16 %v1774, %v1770
        %v2759 = vpack.c.b16 %v1775, %v1771
        %v2760 = vpack.c.b16 %v1776, %v1772
        %v2761 = vpack.c.b16 %v1777, %v1773
        %v2762 = vpack.c.b16 %v1782, %v1778
        %v2763 = vpack.c.b16 %v1783, %v1779
        %v2764 = vpack.c.b16 %v1784, %v1780
        %v2765 = vpack.c.b16 %v1785, %v1781
        %v2766 = vpack.c.b16 %v1790, %v1786
        %v2767 = vpack.c.b16 %v1791, %v1787
        %v2768 = vpack.c.b16 %v1792, %v1788
        %v2769 = vpack.c.b16 %v1793, %v1789
        %v2770 = vpack.c.b16 %v1798, %v1794
        %v2771 = vpack.c.b16 %v1799, %v1795
        %v2772 = vpack.c.b16 %v1800, %v1796
        %v2773 = vpack.c.b16 %v1801, %v1797
        %v2774 = vpack.c.b16 %v1806, %v1802
        %v2775 = vpack.c.b16 %v1807, %v1803
        %v2776 = vpack.c.b16 %v1808, %v1804
        %v2777 = vpack.c.b16 %v1809, %v1805
        %v2778 = vpack.c.b16 %v1814, %v1810
        %v2779 = vpack.c.b16 %v1815, %v1811
        %v2780 = vpack.c.b16 %v1816, %v1812
        %v2781 = vpack.c.b16 %v1817, %v1813
        %v2782 = vpack.c.b16 %v1822, %v1818
        %v2783 = vpack.c.b16 %v1823, %v1819
        %v2784 = vpack.c.b16 %v1824, %v1820
        %v2785 = vpack.c.b16 %v1825, %v1821
        %v2786 = vpack.c.b16 %v1830, %v1826
        %v2787 = vpack.c.b16 %v1831, %v1827
        %v2788 = vpack.c.b16 %v1832, %v1828
        %v2789 = vpack.c.b16 %v1833, %v1829
        %v2790 = vpack.c.b16 %v1838, %v1834
        %v2791 = vpack.c.b16 %v1839, %v1835
        %v2792 = vpack.c.b16 %v1840, %v1836
        %v2793 = vpack.c.b16 %v1841, %v1837
        %v2794 = vpack.c.b16 %v1846, %v1842
        %v2795 = vpack.c.b16 %v1847, %v1843
        %v2796 = vpack.c.b16 %v1848, %v1844
        %v2797 = vpack.c.b16 %v1849, %v1845
        %v2798 = vpack.c.b16 %v1854, %v1850
        %v2799 = vpack.c.b16 %v1855, %v1851
        %v2800 = vpack.c.b16 %v1856, %v1852
        %v2801 = vpack.c.b16 %v1857, %v1853
        %v2802 = vpack.c.b16 %v1862, %v1858
        %v2803 = vpack.c.b16 %v1863, %v1859
        %v2804 = vpack.c.b16 %v1864, %v1860
        %v2805 = vpack.c.b16 %v1865, %v1861
        %v2806 = vpack.c.b16 %v1870, %v1866
        %v2807 = vpack.c.b16 %v1871, %v1867
        %v2808 = vpack.c.b16 %v1872, %v1868
        %v2809 = vpack.c.b16 %v1873, %v1869
        %v2810 = vpack.c.b16 %v1878, %v1874
        %v2811 = vpack.c.b16 %v1879, %v1875
        %v2812 = vpack.c.b16 %v1880, %v1876
        %v2813 = vpack.c.b16 %v1881, %v1877
        %v2814 = vpack.c.b16 %v1886, %v1882
        %v2815 = vpack.c.b16 %v1887, %v1883
        %v2816 = vpack.c.b16 %v1888, %v1884
        %v2817 = vpack.c.b16 %v1889, %v1885
        %v2818 = vpack.c.b16 %v1894, %v1890
        %v2819 = vpack.c.b16 %v1895, %v1891
        %v2820 = vpack.c.b16 %v1896, %v1892
        %v2821 = vpack.c.b16 %v1897, %v1893
        %v2822 = vpack.c.b16 %v1902, %v1898
        %v2823 = vpack.c.b16 %v1903, %v1899
        %v2824 = vpack.c.b16 %v1904, %v1900
        %v2825 = vpack.c.b16 %v1905, %v1901
        %v2826 = vpack.c.b16 %v1910, %v1906
        %v2827 = vpack.c.b16 %v1911, %v1907
        %v2828 = vpack.c.b16 %v1912, %v1908
        %v2829 = vpack.c.b16 %v1913, %v1909
        %v2830 = vpack.c.b16 %v1918, %v1914
        %v2831 = vpack.c.b16 %v1919, %v1915
        %v2832 = vpack.c.b16 %v1920, %v1916
        %v2833 = vpack.c.b16 %v1921, %v1917
        %v2834 = vpack.c.b16 %v1926, %v1922
        %v2835 = vpack.c.b16 %v1927, %v1923
        %v2836 = vpack.c.b16 %v1928, %v1924
        %v2837 = vpack.c.b16 %v1929, %v1925
        %v2838 = vpack.c.b16 %v1934, %v1930
        %v2839 = vpack.c.b16 %v1935, %v1931
        %v2840 = vpack.c.b16 %v1936, %v1932
        %v2841 = vpack.c.b16 %v1937, %v1933
        %v2842 = vpack.c.b16 %v1942, %v1938
        %v2843 = vpack.c.b16 %v1943, %v1939
        %v2844 = vpack.c.b16 %v1944, %v1940
        %v2845 = vpack.c.b16 %v1945, %v1941
        %v2846 = vpack.c.b16 %v1950, %v1946
        %v2847 = vpack.c.b16 %v1951, %v1947
        %v2848 = vpack.c.b16 %v1952, %v1948
        %v2849 = vpack.c.b16 %v1953, %v1949
        %v2850 = vpack.c.b16 %v1958, %v1954
        %v2851 = vpack.c.b16 %v1959, %v1955
        %v2852 = vpack.c.b16 %v1960, %v1956
        %v2853 = vpack.c.b16 %v1961, %v1957
        %v2854 = vpack.c.b16 %v1966, %v1962
        %v2855 = vpack.c.b16 %v1967, %v1963
        %v2856 = vpack.c.b16 %v1968, %v1964
        %v2857 = vpack.c.b16 %v1969, %v1965
        %v2858 = vpack.c.b16 %v1974, %v1970
        %v2859 = vpack.c.b16 %v1975, %v1971
        %v2860 = vpack.c.b16 %v1976, %v1972
        %v2861 = vpack.c.b16 %v1977, %v1973
        %v2862 = vpack.c.b16 %v1982, %v1978
        %v2863 = vpack.c.b16 %v1983, %v1979
        %v2864 = vpack.c.b16 %v1984, %v1980
        %v2865 = vpack.c.b16 %v1985, %v1981
        %v2866 = vpack.c.b16 %v1990, %v1986
        %v2867 = vpack.c.b16 %v1991, %v1987
        %v2868 = vpack.c.b16 %v1992, %v1988
        %v2869 = vpack.c.b16 %v1993, %v1989
        %v2870 = vpack.c.b16 %v1998, %v1994
        %v2871 = vpack.c.b16 %v1999, %v1995
        %v2872 = vpack.c.b16 %v2000, %v1996
        %v2873 = vpack.c.b16 %v2001, %v1997
        %v2874 = vpack.c.b16 %v2006, %v2002
        %v2875 = vpack.c.b16 %v2007, %v2003
        %v2876 = vpack.c.b16 %v2008, %v2004
        %v2877 = vpack.c.b16 %v2009, %v2005
        %v2878 = vpack.c.b16 %v2014, %v2010
        %v2879 = vpack.c.b16 %v2015, %v2011
        %v2880 = vpack.c.b16 %v2016, %v2012
        %v2881 = vpack.c.b16 %v2017, %v2013
        %v2882 = vpack.c.b16 %v2022, %v2018
        %v2883 = vpack.c.b16 %v2023, %v2019
        %v2884 = vpack.c.b16 %v2024, %v2020
        %v2885 = vpack.c.b16 %v2025, %v2021
        %v2886 = vpack.c.b16 %v2030, %v2026
        %v2887 = vpack.c.b16 %v2031, %v2027
        %v2888 = vpack.c.b16 %v2032, %v2028
        %v2889 = vpack.c.b16 %v2033, %v2029
        %v2890 = vpack.c.b16 %v2038, %v2034
        %v2891 = vpack.c.b16 %v2039, %v2035
        %v2892 = vpack.c.b16 %v2040, %v2036
        %v2893 = vpack.c.b16 %v2041, %v2037
        %v2894 = vpack.c.b16 %v2046, %v2042
        %v2895 = vpack.c.b16 %v2047, %v2043
        %v2896 = vpack.c.b16 %v2048, %v2044
        %v2897 = vpack.c.b16 %v2049, %v2045
        %v2898 = vpack.c.b16 %v2054, %v2050
        %v2899 = vpack.c.b16 %v2055, %v2051
        %v2900 = vpack.c.b16 %v2056, %v2052
        %v2901 = vpack.c.b16 %v2057, %v2053
        %v2902 = vpack.c.b16 %v2062, %v2058
        %v2903 = vpack.c.b16 %v2063, %v2059
        %v2904 = vpack.c.b16 %v2064, %v2060
        %v2905 = vpack.c.b16 %v2065, %v2061
        %v2906 = vpack.c.b16 %v2070, %v2066
        %v2907 = vpack.c.b16 %v2071, %v2067
        %v2908 = vpack.c.b16 %v2072, %v2068
        %v2909 = vpack.c.b16 %v2073, %v2069
        %v2910 = vpack.c.b16 %v2078, %v2074
        %v2911 = vpack.c.b16 %v2079, %v2075
        %v2912 = vpack.c.b16 %v2080, %v2076
        %v2913 = vpack.c.b16 %v2081, %v2077
        %v2914 = vpack.c.b16 %v2086, %v2082
        %v2915 = vpack.c.b16 %v2087, %v2083
        %v2916 = vpack.c.b16 %v2088, %v2084
        %v2917 = vpack.c.b16 %v2089, %v2085
        %v2918 = vpack.c.b16 %v2094, %v2090
        %v2919 = vpack.c.b16 %v2095, %v2091
        %v2920 = vpack.c.b16 %v2096, %v2092
        %v2921 = vpack.c.b16 %v2097, %v2093
        %v2922 = vpack.c.b16 %v2102, %v2098
        %v2923 = vpack.c.b16 %v2103, %v2099
        %v2924 = vpack.c.b16 %v2104, %v2100
        %v2925 = vpack.c.b16 %v2105, %v2101
        %v2926 = vpack.c.b16 %v2110, %v2106
        %v2927 = vpack.c.b16 %v2111, %v2107
        %v2928 = vpack.c.b16 %v2112, %v2108
        %v2929 = vpack.c.b16 %v2113, %v2109
        %v2930 = vpack.c.b16 %v2118, %v2114
        %v2931 = vpack.c.b16 %v2119, %v2115
        %v2932 = vpack.c.b16 %v2120, %v2116
        %v2933 = vpack.c.b16 %v2121, %v2117
        %v2934 = vpack.c.b16 %v2126, %v2122
        %v2935 = vpack.c.b16 %v2127, %v2123
        %v2936 = vpack.c.b16 %v2128, %v2124
        %v2937 = vpack.c.b16 %v2129, %v2125
        %v2938 = vpack.c.b16 %v2134, %v2130
        %v2939 = vpack.c.b16 %v2135, %v2131
        %v2940 = vpack.c.b16 %v2136, %v2132
        %v2941 = vpack.c.b16 %v2137, %v2133
        %v2942 = vpack.c.b16 %v2142, %v2138
        %v2943 = vpack.c.b16 %v2143, %v2139
        %v2944 = vpack.c.b16 %v2144, %v2140
        %v2945 = vpack.c.b16 %v2145, %v2141
        %v2946 = vpack.c.b16 %v2150, %v2146
        %v2947 = vpack.c.b16 %v2151, %v2147
        %v2948 = vpack.c.b16 %v2152, %v2148
        %v2949 = vpack.c.b16 %v2153, %v2149
        %v2950 = vpack.c.b16 %v2158, %v2154
        %v2951 = vpack.c.b16 %v2159, %v2155
        %v2952 = vpack.c.b16 %v2160, %v2156
        %v2953 = vpack.c.b16 %v2161, %v2157
        %v2954 = vpack.c.b16 %v2166, %v2162
        %v2955 = vpack.c.b16 %v2167, %v2163
        %v2956 = vpack.c.b16 %v2168, %v2164
        %v2957 = vpack.c.b16 %v2169, %v2165
        %v2958 = vpack.c.b16 %v2174, %v2170
        %v2959 = vpack.c.b16 %v2175, %v2171
        %v2960 = vpack.c.b16 %v2176, %v2172
        %v2961 = vpack.c.b16 %v2177, %v2173
        %v2962 = vpack.c.b16 %v2182, %v2178
        %v2963 = vpack.c.b16 %v2183, %v2179
        %v2964 = vpack.c.b16 %v2184, %v2180
        %v2965 = vpack.c.b16 %v2185, %v2181
        %v2966 = vpack.c.b16 %v2190, %v2186
        %v2967 = vpack.c.b16 %v2191, %v2187
        %v2968 = vpack.c.b16 %v2192, %v2188
        %v2969 = vpack.c.b16 %v2193, %v2189
        %v2970 = vpack.c.b16 %v2198, %v2194
        %v2971 = vpack.c.b16 %v2199, %v2195
        %v2972 = vpack.c.b16 %v2200, %v2196
        %v2973 = vpack.c.b16 %v2201, %v2197
        %v2974 = vpack.c.b16 %v2206, %v2202
        %v2975 = vpack.c.b16 %v2207, %v2203
        %v2976 = vpack.c.b16 %v2208, %v2204
        %v2977 = vpack.c.b16 %v2209, %v2205
        %v2978 = vpack.c.b16 %v2214, %v2210
        %v2979 = vpack.c.b16 %v2215, %v2211
        %v2980 = vpack.c.b16 %v2216, %v2212
        %v2981 = vpack.c.b16 %v2217, %v2213
        %v2982 = vpack.c.b16 %v2222, %v2218
        %v2983 = vpack.c.b16 %v2223, %v2219
        %v2984 = vpack.c.b16 %v2224, %v2220
        %v2985 = vpack.c.b16 %v2225, %v2221
        %v2986 = vpack.c.b16 %v2230, %v2226
        %v2987 = vpack.c.b16 %v2231, %v2227
        %v2988 = vpack.c.b16 %v2232, %v2228
        %v2989 = vpack.c.b16 %v2233, %v2229
        %v2990 = vpack.c.b16 %v2238, %v2234
        %v2991 = vpack.c.b16 %v2239, %v2235
        %v2992 = vpack.c.b16 %v2240, %v2236
        %v2993 = vpack.c.b16 %v2241, %v2237
        %v2994 = vpack.c.b16 %v2246, %v2242
        %v2995 = vpack.c.b16 %v2247, %v2243
        %v2996 = vpack.c.b16 %v2248, %v2244
        %v2997 = vpack.c.b16 %v2249, %v2245
        %v2998 = vpack.c.b16 %v2254, %v2250
        %v2999 = vpack.c.b16 %v2255, %v2251
        %v3000 = vpack.c.b16 %v2256, %v2252
        %v3001 = vpack.c.b16 %v2257, %v2253
        %v3002 = vpack.c.b16 %v2262, %v2258
        %v3003 = vpack.c.b16 %v2263, %v2259
        %v3004 = vpack.c.b16 %v2264, %v2260
        %v3005 = vpack.c.b16 %v2265, %v2261
        %v3006 = vpack.c.b16 %v2270, %v2266
        %v3007 = vpack.c.b16 %v2271, %v2267
        %v3008 = vpack.c.b16 %v2272, %v2268
        %v3009 = vpack.c.b16 %v2273, %v2269
        %v3010 = vpack.c.b16 %v2278, %v2274
        %v3011 = vpack.c.b16 %v2279, %v2275
        %v3012 = vpack.c.b16 %v2280, %v2276
        %v3013 = vpack.c.b16 %v2281, %v2277
        %v3014 = vpack.c.b16 %v2286, %v2282
        %v3015 = vpack.c.b16 %v2287, %v2283
        %v3016 = vpack.c.b16 %v2288, %v2284
        %v3017 = vpack.c.b16 %v2289, %v2285
        %v3018 = vpack.c.b16 %v2294, %v2290
        %v3019 = vpack.c.b16 %v2295, %v2291
        %v3020 = vpack.c.b16 %v2296, %v2292
        %v3021 = vpack.c.b16 %v2297, %v2293
        %v3022 = vpack.c.b16 %v2302, %v2298
        %v3023 = vpack.c.b16 %v2303, %v2299
        %v3024 = vpack.c.b16 %v2304, %v2300
        %v3025 = vpack.c.b16 %v2305, %v2301
        %v3026 = vpack.c.b16 %v2310, %v2306
        %v3027 = vpack.c.b16 %v2311, %v2307
        %v3028 = vpack.c.b16 %v2312, %v2308
        %v3029 = vpack.c.b16 %v2313, %v2309
        %v3030 = vpack.c.b16 %v2318, %v2314
        %v3031 = vpack.c.b16 %v2319, %v2315
        %v3032 = vpack.c.b16 %v2320, %v2316
        %v3033 = vpack.c.b16 %v2321, %v2317
        %v3034 = vpack.c.b16 %v2326, %v2322
        %v3035 = vpack.c.b16 %v2327, %v2323
        %v3036 = vpack.c.b16 %v2328, %v2324
        %v3037 = vpack.c.b16 %v2329, %v2325
        %v3038 = vpack.c.b16 %v2334, %v2330
        %v3039 = vpack.c.b16 %v2335, %v2331
        %v3040 = vpack.c.b16 %v2336, %v2332
        %v3041 = vpack.c.b16 %v2337, %v2333
        %v3042 = vpack.c.b16 %v2342, %v2338
        %v3043 = vpack.c.b16 %v2343, %v2339
        %v3044 = vpack.c.b16 %v2344, %v2340
        %v3045 = vpack.c.b16 %v2345, %v2341
        %v3046 = vpack.c.b16 %v2350, %v2346
        %v3047 = vpack.c.b16 %v2351, %v2347
        %v3048 = vpack.c.b16 %v2352, %v2348
        %v3049 = vpack.c.b16 %v2353, %v2349
        %v3050 = vpack.c.b16 %v2358, %v2354
        %v3051 = vpack.c.b16 %v2359, %v2355
        %v3052 = vpack.c.b16 %v2360, %v2356
        %v3053 = vpack.c.b16 %v2361, %v2357
        %v3054 = vpack.c.b16 %v2366, %v2362
        %v3055 = vpack.c.b16 %v2367, %v2363
        %v3056 = vpack.c.b16 %v2368, %v2364
        %v3057 = vpack.c.b16 %v2369, %v2365
        %v3058 = vpack.c.b16 %v2374, %v2370
        %v3059 = vpack.c.b16 %v2375, %v2371
        %v3060 = vpack.c.b16 %v2376, %v2372
        %v3061 = vpack.c.b16 %v2377, %v2373
        %v3062 = vpack.c.b16 %v2382, %v2378
        %v3063 = vpack.c.b16 %v2383, %v2379
        %v3064 = vpack.c.b16 %v2384, %v2380
        %v3065 = vpack.c.b16 %v2385, %v2381
        %v3066 = vpack.c.b16 %v2390, %v2386
        %v3067 = vpack.c.b16 %v2391, %v2387
        %v3068 = vpack.c.b16 %v2392, %v2388
        %v3069 = vpack.c.b16 %v2393, %v2389
        %v3070 = vpack.c.b16 %v2398, %v2394
        %v3071 = vpack.c.b16 %v2399, %v2395
        %v3072 = vpack.c.b16 %v2400, %v2396
        %v3073 = vpack.c.b16 %v2401, %v2397
        %v3074 = vpack.c.b16 %v2406, %v2402
        %v3075 = vpack.c.b16 %v2407, %v2403
        %v3076 = vpack.c.b16 %v2408, %v2404
        %v3077 = vpack.c.b16 %v2409, %v2405
        %v3078 = vpack.c.b16 %v2414, %v2410
        %v3079 = vpack.c.b16 %v2415, %v2411
        %v3080 = vpack.c.b16 %v2416, %v2412
        %v3081 = vpack.c.b16 %v2417, %v2413
        %v3082 = vpack.c.b16 %v2422, %v2418
        %v3083 = vpack.c.b16 %v2423, %v2419
        %v3084 = vpack.c.b16 %v2424, %v2420
        %v3085 = vpack.c.b16 %v2425, %v2421
        %v3086 = vpack.c.b16 %v2430, %v2426
        %v3087 = vpack.c.b16 %v2431, %v2427
        %v3088 = vpack.c.b16 %v2432, %v2428
        %v3089 = vpack.c.b16 %v2433, %v2429
        %v3090 = vpack.c.b16 %v2438, %v2434
        %v3091 = vpack.c.b16 %v2439, %v2435
        %v3092 = vpack.c.b16 %v2440, %v2436
        %v3093 = vpack.c.b16 %v2441, %v2437
        %v3094 = vpack.c.b16 %v2446, %v2442
        %v3095 = vpack.c.b16 %v2447, %v2443
        %v3096 = vpack.c.b16 %v2448, %v2444
        %v3097 = vpack.c.b16 %v2449, %v2445
        %v3098 = vpack.c.b16 %v2454, %v2450
        %v3099 = vpack.c.b16 %v2455, %v2451
        %v3100 = vpack.c.b16 %v2456, %v2452
        %v3101 = vpack.c.b16 %v2457, %v2453
        %v3102 = vpack.c.b16 %v2462, %v2458
        %v3103 = vpack.c.b16 %v2463, %v2459
        %v3104 = vpack.c.b16 %v2464, %v2460
        %v3105 = vpack.c.b16 %v2465, %v2461
        %v3106 = vpack.c.b16 %v2470, %v2466
        %v3107 = vpack.c.b16 %v2471, %v2467
        %v3108 = vpack.c.b16 %v2472, %v2468
        %v3109 = vpack.c.b16 %v2473, %v2469
        %v3110 = vpack.c.b16 %v2478, %v2474
        %v3111 = vpack.c.b16 %v2479, %v2475
        %v3112 = vpack.c.b16 %v2480, %v2476
        %v3113 = vpack.c.b16 %v2481, %v2477
        %v3114 = vpack.c.b16 %v2486, %v2482
        %v3115 = vpack.c.b16 %v2487, %v2483
        %v3116 = vpack.c.b16 %v2488, %v2484
        %v3117 = vpack.c.b16 %v2489, %v2485
        %v3118 = vpack.c.b16 %v2494, %v2490
        %v3119 = vpack.c.b16 %v2495, %v2491
        %v3120 = vpack.c.b16 %v2496, %v2492
        %v3121 = vpack.c.b16 %v2497, %v2493
        %v3122 = vpack.c.b16 %v2502, %v2498
        %v3123 = vpack.c.b16 %v2503, %v2499
        %v3124 = vpack.c.b16 %v2504, %v2500
        %v3125 = vpack.c.b16 %v2505, %v2501
        %v3126 = vpack.c.b16 %v2510, %v2506
        %v3127 = vpack.c.b16 %v2511, %v2507
        %v3128 = vpack.c.b16 %v2512, %v2508
        %v3129 = vpack.c.b16 %v2513, %v2509
        %v3130 = vpack.c.b16 %v2518, %v2514
        %v3131 = vpack.c.b16 %v2519, %v2515
        %v3132 = vpack.c.b16 %v2520, %v2516
        %v3133 = vpack.c.b16 %v2521, %v2517
        %v3134 = vpack.c.b16 %v2526, %v2522
        %v3135 = vpack.c.b16 %v2527, %v2523
        %v3136 = vpack.c.b16 %v2528, %v2524
        %v3137 = vpack.c.b16 %v2529, %v2525
        %v3138 = vpack.c.b16 %v2534, %v2530
        %v3139 = vpack.c.b16 %v2535, %v2531
        %v3140 = vpack.c.b16 %v2536, %v2532
        %v3141 = vpack.c.b16 %v2537, %v2533
        %v3142 = vpack.c.b16 %v2542, %v2538
        %v3143 = vpack.c.b16 %v2543, %v2539
        %v3144 = vpack.c.b16 %v2544, %v2540
        %v3145 = vpack.c.b16 %v2545, %v2541
        %v3146 = vpack.c.b16 %v2550, %v2546
        %v3147 = vpack.c.b16 %v2551, %v2547
        %v3148 = vpack.c.b16 %v2552, %v2548
        %v3149 = vpack.c.b16 %v2553, %v2549
        %v3150 = vpack.c.b16 %v2558, %v2554
        %v3151 = vpack.c.b16 %v2559, %v2555
        %v3152 = vpack.c.b16 %v2560, %v2556
        %v3153 = vpack.c.b16 %v2561, %v2557
        %v3154 = vpack.c.b16 %v2566, %v2562
        %v3155 = vpack.c.b16 %v2567, %v2563
        %v3156 = vpack.c.b16 %v2568, %v2564
        %v3157 = vpack.c.b16 %v2569, %v2565
        %v3158 = vpack.c.b16 %v2574, %v2570
        %v3159 = vpack.c.b16 %v2575, %v2571
        %v3160 = vpack.c.b16 %v2576, %v2572
        %v3161 = vpack.c.b16 %v2577, %v2573
        %v3162 = vpack.c.b16 %v2582, %v2578
        %v3163 = vpack.c.b16 %v2583, %v2579
        %v3164 = vpack.c.b16 %v2584, %v2580
        %v3165 = vpack.c.b16 %v2585, %v2581
        %v3166 = vpack.c.b16 %v2590, %v2586
        %v3167 = vpack.c.b16 %v2591, %v2587
        %v3168 = vpack.c.b16 %v2592, %v2588
        %v3169 = vpack.c.b16 %v2593, %v2589
        %v3170 = vpack.c.b16 %v2598, %v2594
        %v3171 = vpack.c.b16 %v2599, %v2595
        %v3172 = vpack.c.b16 %v2600, %v2596
        %v3173 = vpack.c.b16 %v2601, %v2597
        %v3174 = vpack.c.b16 %v2606, %v2602
        %v3175 = vpack.c.b16 %v2607, %v2603
        %v3176 = vpack.c.b16 %v2608, %v2604
        %v3177 = vpack.c.b16 %v2609, %v2605
        %v3178 = vpack.c.b16 %v2614, %v2610
        %v3179 = vpack.c.b16 %v2615, %v2611
        %v3180 = vpack.c.b16 %v2616, %v2612
        %v3181 = vpack.c.b16 %v2617, %v2613
        %v3182 = vpack.c.b16 %v2622, %v2618
        %v3183 = vpack.c.b16 %v2623, %v2619
        %v3184 = vpack.c.b16 %v2624, %v2620
        %v3185 = vpack.c.b16 %v2625, %v2621
        %v3186 = vpack.c.b16 %v2630, %v2626
        %v3187 = vpack.c.b16 %v2631, %v2627
        %v3188 = vpack.c.b16 %v2632, %v2628
        %v3189 = vpack.c.b16 %v2633, %v2629
        %v3190 = vpack.c.b16 %v2638, %v2634
        %v3191 = vpack.c.b16 %v2639, %v2635
        %v3192 = vpack.c.b16 %v2640, %v2636
        %v3193 = vpack.c.b16 %v2641, %v2637
        %v3194 = vpack.c.b16 %v2646, %v2642
        %v3195 = vpack.c.b16 %v2647, %v2643
        %v3196 = vpack.c.b16 %v2648, %v2644
        %v3197 = vpack.c.b16 %v2649, %v2645
        %v3198 = vpack.c.b16 %v2654, %v2650
        %v3199 = vpack.c.b16 %v2655, %v2651
        %v3200 = vpack.c.b16 %v2656, %v2652
        %v3201 = vpack.c.b16 %v2657, %v2653
        %v3202 = vpack.c.b16 %v2662, %v2658
        %v3203 = vpack.c.b16 %v2663, %v2659
        %v3204 = vpack.c.b16 %v2664, %v2660
        %v3205 = vpack.c.b16 %v2665, %v2661
        %v3206 = vpack.c.b16 %v2670, %v2666
        %v3207 = vpack.c.b16 %v2671, %v2667
        %v3208 = vpack.c.b16 %v2672, %v2668
        %v3209 = vpack.c.b16 %v2673, %v2669
        %v3210 = vpack.c.b16 %v2678, %v2674
        %v3211 = vpack.c.b16 %v2679, %v2675
        %v3212 = vpack.c.b16 %v2680, %v2676
        %v3213 = vpack.c.b16 %v2681, %v2677
        %v3214 = vpack.c.b16 %v2686, %v2682
        %v3215 = vpack.c.b16 %v2687, %v2683
        %v3216 = vpack.c.b16 %v2688, %v2684
        %v3217 = vpack.c.b16 %v2689, %v2685
        %v3218 = vpack.c.b16 %v2694, %v2690
        %v3219 = vpack.c.b16 %v2695, %v2691
        %v3220 = vpack.c.b16 %v2696, %v2692
        %v3221 = vpack.c.b16 %v2697, %v2693
        %v3222 = vpack.c.b16 %v2702, %v2698
        %v3223 = vpack.c.b16 %v2703, %v2699
        %v3224 = vpack.c.b16 %v2704, %v2700
        %v3225 = vpack.c.b16 %v2705, %v2701
        %v3226 = vpack.c.b16 %v2710, %v2706
        %v3227 = vpack.c.b16 %v2711, %v2707
        %v3228 = vpack.c.b16 %v2712, %v2708
        %v3229 = vpack.c.b16 %v2713, %v2709
        %v3230 = vpack.c.b16 %v2718, %v2714
        %v3231 = vpack.c.b16 %v2719, %v2715
        %v3232 = vpack.c.b16 %v2720, %v2716
        %v3233 = vpack.c.b16 %v2721, %v2717
        %3746 = vmatpush.bf16.msra.mxu0 %v2750
        %3747 = vmatpush.bf16.msra.mxu0 %v2746
        %3748 = vmatpush.bf16.msra.mxu0 %v2742
        %3749 = vmatpush.bf16.msra.mxu0 %v2738
        %3750 = vmatpush.bf16.msra.mxu0 %v2734
        %3751 = vmatpush.bf16.msra.mxu0 %v2730
        %3752 = vmatpush.bf16.msra.mxu0 %v2726
        %3753 = vmatpush.bf16.msra.mxu0 %v2722
        %3754 = vmatmul.bf16.gmra.mxu0 %v1058
        %v3755 = vpop.f32.mrf.mxu0
        %v3756 = vadd.f32 0.0, %v3755
        %v3757 = vpop.f32.mrf.mxu0
        %v3758 = vadd.f32 0.0, %v3757
        %3759 = vmatmul.bf16.gmra.mxu0 %v1074
        %v3760 = vpop.f32.mrf.mxu0
        %v3761 = vadd.f32 0.0, %v3760
        %v3762 = vpop.f32.mrf.mxu0
        %v3763 = vadd.f32 0.0, %v3762
        %3764 = vmatmul.bf16.gmra.mxu0 %v1090
        %v3765 = vpop.f32.mrf.mxu0
        %v3766 = vadd.f32 0.0, %v3765
        %v3767 = vpop.f32.mrf.mxu0
        %v3768 = vadd.f32 0.0, %v3767
        %3769 = vmatmul.bf16.gmra.mxu0 %v1106
        %v3770 = vpop.f32.mrf.mxu0
        %v3771 = vadd.f32 0.0, %v3770
        %v3772 = vpop.f32.mrf.mxu0
        %v3773 = vadd.f32 0.0, %v3772
        %3774 = vdwg.mxu0
        %3775 = vmatpush.bf16.msra.mxu0 %v2782
        %3776 = vmatpush.bf16.msra.mxu0 %v2778
        %3777 = vmatpush.bf16.msra.mxu0 %v2774
        %3778 = vmatpush.bf16.msra.mxu0 %v2770
        %3779 = vmatpush.bf16.msra.mxu0 %v2766
        %3780 = vmatpush.bf16.msra.mxu0 %v2762
        %3781 = vmatpush.bf16.msra.mxu0 %v2758
        %3782 = vmatpush.bf16.msra.mxu0 %v2754
        %3783 = vmatmul.bf16.gmra.mxu0 %v1059
        %v3784 = vpop.f32.mrf.mxu0
        %v3785 = vadd.f32 %v3756, %v3784
        %v3786 = vpop.f32.mrf.mxu0
        %v3787 = vadd.f32 %v3758, %v3786
        %3788 = vmatmul.bf16.gmra.mxu0 %v1075
        %v3789 = vpop.f32.mrf.mxu0
        %v3790 = vadd.f32 %v3761, %v3789
        %v3791 = vpop.f32.mrf.mxu0
        %v3792 = vadd.f32 %v3763, %v3791
        %3793 = vmatmul.bf16.gmra.mxu0 %v1091
        %v3794 = vpop.f32.mrf.mxu0
        %v3795 = vadd.f32 %v3766, %v3794
        %v3796 = vpop.f32.mrf.mxu0
        %v3797 = vadd.f32 %v3768, %v3796
        %3798 = vmatmul.bf16.gmra.mxu0 %v1107
        %v3799 = vpop.f32.mrf.mxu0
        %v3800 = vadd.f32 %v3771, %v3799
        %v3801 = vpop.f32.mrf.mxu0
        %v3802 = vadd.f32 %v3773, %v3801
        %3803 = vdwg.mxu0
        %3804 = vmatpush.bf16.msra.mxu0 %v2814
        %3805 = vmatpush.bf16.msra.mxu0 %v2810
        %3806 = vmatpush.bf16.msra.mxu0 %v2806
        %3807 = vmatpush.bf16.msra.mxu0 %v2802
        %3808 = vmatpush.bf16.msra.mxu0 %v2798
        %3809 = vmatpush.bf16.msra.mxu0 %v2794
        %3810 = vmatpush.bf16.msra.mxu0 %v2790
        %3811 = vmatpush.bf16.msra.mxu0 %v2786
        %3812 = vmatmul.bf16.gmra.mxu0 %v1060
        %v3813 = vpop.f32.mrf.mxu0
        %v3814 = vadd.f32 %v3785, %v3813
        %v3815 = vpop.f32.mrf.mxu0
        %v3816 = vadd.f32 %v3787, %v3815
        %3817 = vmatmul.bf16.gmra.mxu0 %v1076
        %v3818 = vpop.f32.mrf.mxu0
        %v3819 = vadd.f32 %v3790, %v3818
        %v3820 = vpop.f32.mrf.mxu0
        %v3821 = vadd.f32 %v3792, %v3820
        %3822 = vmatmul.bf16.gmra.mxu0 %v1092
        %v3823 = vpop.f32.mrf.mxu0
        %v3824 = vadd.f32 %v3795, %v3823
        %v3825 = vpop.f32.mrf.mxu0
        %v3826 = vadd.f32 %v3797, %v3825
        %3827 = vmatmul.bf16.gmra.mxu0 %v1108
        %v3828 = vpop.f32.mrf.mxu0
        %v3829 = vadd.f32 %v3800, %v3828
        %v3830 = vpop.f32.mrf.mxu0
        %v3831 = vadd.f32 %v3802, %v3830
        %3832 = vdwg.mxu0
        %3833 = vmatpush.bf16.msra.mxu0 %v2846
        %3834 = vmatpush.bf16.msra.mxu0 %v2842
        %3835 = vmatpush.bf16.msra.mxu0 %v2838
        %3836 = vmatpush.bf16.msra.mxu0 %v2834
        %3837 = vmatpush.bf16.msra.mxu0 %v2830
        %3838 = vmatpush.bf16.msra.mxu0 %v2826
        %3839 = vmatpush.bf16.msra.mxu0 %v2822
        %3840 = vmatpush.bf16.msra.mxu0 %v2818
        %3841 = vmatmul.bf16.gmra.mxu0 %v1061
        %v3842 = vpop.f32.mrf.mxu0
        %v3843 = vadd.f32 %v3814, %v3842
        %v3844 = vpop.f32.mrf.mxu0
        %v3845 = vadd.f32 %v3816, %v3844
        %3846 = vmatmul.bf16.gmra.mxu0 %v1077
        %v3847 = vpop.f32.mrf.mxu0
        %v3848 = vadd.f32 %v3819, %v3847
        %v3849 = vpop.f32.mrf.mxu0
        %v3850 = vadd.f32 %v3821, %v3849
        %3851 = vmatmul.bf16.gmra.mxu0 %v1093
        %v3852 = vpop.f32.mrf.mxu0
        %v3853 = vadd.f32 %v3824, %v3852
        %v3854 = vpop.f32.mrf.mxu0
        %v3855 = vadd.f32 %v3826, %v3854
        %3856 = vmatmul.bf16.gmra.mxu0 %v1109
        %v3857 = vpop.f32.mrf.mxu0
        %v3858 = vadd.f32 %v3829, %v3857
        %v3859 = vpop.f32.mrf.mxu0
        %v3860 = vadd.f32 %v3831, %v3859
        %3861 = vdwg.mxu0
        %3862 = vmatpush.bf16.msra.mxu0 %v2878
        %3863 = vmatpush.bf16.msra.mxu0 %v2874
        %3864 = vmatpush.bf16.msra.mxu0 %v2870
        %3865 = vmatpush.bf16.msra.mxu0 %v2866
        %3866 = vmatpush.bf16.msra.mxu0 %v2862
        %3867 = vmatpush.bf16.msra.mxu0 %v2858
        %3868 = vmatpush.bf16.msra.mxu0 %v2854
        %3869 = vmatpush.bf16.msra.mxu0 %v2850
        %3870 = vmatmul.bf16.gmra.mxu0 %v1062
        %v3871 = vpop.f32.mrf.mxu0
        %v3872 = vadd.f32 %v3843, %v3871
        %v3873 = vpop.f32.mrf.mxu0
        %v3874 = vadd.f32 %v3845, %v3873
        %3875 = vmatmul.bf16.gmra.mxu0 %v1078
        %v3876 = vpop.f32.mrf.mxu0
        %v3877 = vadd.f32 %v3848, %v3876
        %v3878 = vpop.f32.mrf.mxu0
        %v3879 = vadd.f32 %v3850, %v3878
        %3880 = vmatmul.bf16.gmra.mxu0 %v1094
        %v3881 = vpop.f32.mrf.mxu0
        %v3882 = vadd.f32 %v3853, %v3881
        %v3883 = vpop.f32.mrf.mxu0
        %v3884 = vadd.f32 %v3855, %v3883
        %3885 = vmatmul.bf16.gmra.mxu0 %v1110
        %v3886 = vpop.f32.mrf.mxu0
        %v3887 = vadd.f32 %v3858, %v3886
        %v3888 = vpop.f32.mrf.mxu0
        %v3889 = vadd.f32 %v3860, %v3888
        %3890 = vdwg.mxu0
        %3891 = vmatpush.bf16.msra.mxu0 %v2910
        %3892 = vmatpush.bf16.msra.mxu0 %v2906
        %3893 = vmatpush.bf16.msra.mxu0 %v2902
        %3894 = vmatpush.bf16.msra.mxu0 %v2898
        %3895 = vmatpush.bf16.msra.mxu0 %v2894
        %3896 = vmatpush.bf16.msra.mxu0 %v2890
        %3897 = vmatpush.bf16.msra.mxu0 %v2886
        %3898 = vmatpush.bf16.msra.mxu0 %v2882
        %3899 = vmatmul.bf16.gmra.mxu0 %v1063
        %v3900 = vpop.f32.mrf.mxu0
        %v3901 = vadd.f32 %v3872, %v3900
        %v3902 = vpop.f32.mrf.mxu0
        %v3903 = vadd.f32 %v3874, %v3902
        %3904 = vmatmul.bf16.gmra.mxu0 %v1079
        %v3905 = vpop.f32.mrf.mxu0
        %v3906 = vadd.f32 %v3877, %v3905
        %v3907 = vpop.f32.mrf.mxu0
        %v3908 = vadd.f32 %v3879, %v3907
        %3909 = vmatmul.bf16.gmra.mxu0 %v1095
        %v3910 = vpop.f32.mrf.mxu0
        %v3911 = vadd.f32 %v3882, %v3910
        %v3912 = vpop.f32.mrf.mxu0
        %v3913 = vadd.f32 %v3884, %v3912
        %3914 = vmatmul.bf16.gmra.mxu0 %v1111
        %v3915 = vpop.f32.mrf.mxu0
        %v3916 = vadd.f32 %v3887, %v3915
        %v3917 = vpop.f32.mrf.mxu0
        %v3918 = vadd.f32 %v3889, %v3917
        %3919 = vdwg.mxu0
        %3920 = vmatpush.bf16.msra.mxu0 %v2942
        %3921 = vmatpush.bf16.msra.mxu0 %v2938
        %3922 = vmatpush.bf16.msra.mxu0 %v2934
        %3923 = vmatpush.bf16.msra.mxu0 %v2930
        %3924 = vmatpush.bf16.msra.mxu0 %v2926
        %3925 = vmatpush.bf16.msra.mxu0 %v2922
        %3926 = vmatpush.bf16.msra.mxu0 %v2918
        %3927 = vmatpush.bf16.msra.mxu0 %v2914
        %3928 = vmatmul.bf16.gmra.mxu0 %v1064
        %v3929 = vpop.f32.mrf.mxu0
        %v3930 = vadd.f32 %v3901, %v3929
        %v3931 = vpop.f32.mrf.mxu0
        %v3932 = vadd.f32 %v3903, %v3931
        %3933 = vmatmul.bf16.gmra.mxu0 %v1080
        %v3934 = vpop.f32.mrf.mxu0
        %v3935 = vadd.f32 %v3906, %v3934
        %v3936 = vpop.f32.mrf.mxu0
        %v3937 = vadd.f32 %v3908, %v3936
        %3938 = vmatmul.bf16.gmra.mxu0 %v1096
        %v3939 = vpop.f32.mrf.mxu0
        %v3940 = vadd.f32 %v3911, %v3939
        %v3941 = vpop.f32.mrf.mxu0
        %v3942 = vadd.f32 %v3913, %v3941
        %3943 = vmatmul.bf16.gmra.mxu0 %v1112
        %v3944 = vpop.f32.mrf.mxu0
        %v3945 = vadd.f32 %v3916, %v3944
        %v3946 = vpop.f32.mrf.mxu0
        %v3947 = vadd.f32 %v3918, %v3946
        %3948 = vdwg.mxu0
        %3949 = vmatpush.bf16.msra.mxu0 %v2974
        %3950 = vmatpush.bf16.msra.mxu0 %v2970
        %3951 = vmatpush.bf16.msra.mxu0 %v2966
        %3952 = vmatpush.bf16.msra.mxu0 %v2962
        %3953 = vmatpush.bf16.msra.mxu0 %v2958
        %3954 = vmatpush.bf16.msra.mxu0 %v2954
        %3955 = vmatpush.bf16.msra.mxu0 %v2950
        %3956 = vmatpush.bf16.msra.mxu0 %v2946
        %3957 = vmatmul.bf16.gmra.mxu0 %v1065
        %v3958 = vpop.f32.mrf.mxu0
        %v3959 = vadd.f32 %v3930, %v3958
        %v3960 = vpop.f32.mrf.mxu0
        %v3961 = vadd.f32 %v3932, %v3960
        %3962 = vmatmul.bf16.gmra.mxu0 %v1081
        %v3963 = vpop.f32.mrf.mxu0
        %v3964 = vadd.f32 %v3935, %v3963
        %v3965 = vpop.f32.mrf.mxu0
        %v3966 = vadd.f32 %v3937, %v3965
        %3967 = vmatmul.bf16.gmra.mxu0 %v1097
        %v3968 = vpop.f32.mrf.mxu0
        %v3969 = vadd.f32 %v3940, %v3968
        %v3970 = vpop.f32.mrf.mxu0
        %v3971 = vadd.f32 %v3942, %v3970
        %3972 = vmatmul.bf16.gmra.mxu0 %v1113
        %v3973 = vpop.f32.mrf.mxu0
        %v3974 = vadd.f32 %v3945, %v3973
        %v3975 = vpop.f32.mrf.mxu0
        %v3976 = vadd.f32 %v3947, %v3975
        %3977 = vdwg.mxu0
        %3978 = vmatpush.bf16.msra.mxu0 %v3006
        %3979 = vmatpush.bf16.msra.mxu0 %v3002
        %3980 = vmatpush.bf16.msra.mxu0 %v2998
        %3981 = vmatpush.bf16.msra.mxu0 %v2994
        %3982 = vmatpush.bf16.msra.mxu0 %v2990
        %3983 = vmatpush.bf16.msra.mxu0 %v2986
        %3984 = vmatpush.bf16.msra.mxu0 %v2982
        %3985 = vmatpush.bf16.msra.mxu0 %v2978
        %3986 = vmatmul.bf16.gmra.mxu0 %v1066
        %v3987 = vpop.f32.mrf.mxu0
        %v3988 = vadd.f32 %v3959, %v3987
        %v3989 = vpop.f32.mrf.mxu0
        %v3990 = vadd.f32 %v3961, %v3989
        %3991 = vmatmul.bf16.gmra.mxu0 %v1082
        %v3992 = vpop.f32.mrf.mxu0
        %v3993 = vadd.f32 %v3964, %v3992
        %v3994 = vpop.f32.mrf.mxu0
        %v3995 = vadd.f32 %v3966, %v3994
        %3996 = vmatmul.bf16.gmra.mxu0 %v1098
        %v3997 = vpop.f32.mrf.mxu0
        %v3998 = vadd.f32 %v3969, %v3997
        %v3999 = vpop.f32.mrf.mxu0
        %v4000 = vadd.f32 %v3971, %v3999
        %4001 = vmatmul.bf16.gmra.mxu0 %v1114
        %v4002 = vpop.f32.mrf.mxu0
        %v4003 = vadd.f32 %v3974, %v4002
        %v4004 = vpop.f32.mrf.mxu0
        %v4005 = vadd.f32 %v3976, %v4004
        %4006 = vdwg.mxu0
        %4007 = vmatpush.bf16.msra.mxu0 %v3038
        %4008 = vmatpush.bf16.msra.mxu0 %v3034
        %4009 = vmatpush.bf16.msra.mxu0 %v3030
        %4010 = vmatpush.bf16.msra.mxu0 %v3026
        %4011 = vmatpush.bf16.msra.mxu0 %v3022
        %4012 = vmatpush.bf16.msra.mxu0 %v3018
        %4013 = vmatpush.bf16.msra.mxu0 %v3014
        %4014 = vmatpush.bf16.msra.mxu0 %v3010
        %4015 = vmatmul.bf16.gmra.mxu0 %v1067
        %v4016 = vpop.f32.mrf.mxu0
        %v4017 = vadd.f32 %v3988, %v4016
        %v4018 = vpop.f32.mrf.mxu0
        %v4019 = vadd.f32 %v3990, %v4018
        %4020 = vmatmul.bf16.gmra.mxu0 %v1083
        %v4021 = vpop.f32.mrf.mxu0
        %v4022 = vadd.f32 %v3993, %v4021
        %v4023 = vpop.f32.mrf.mxu0
        %v4024 = vadd.f32 %v3995, %v4023
        %4025 = vmatmul.bf16.gmra.mxu0 %v1099
        %v4026 = vpop.f32.mrf.mxu0
        %v4027 = vadd.f32 %v3998, %v4026
        %v4028 = vpop.f32.mrf.mxu0
        %v4029 = vadd.f32 %v4000, %v4028
        %4030 = vmatmul.bf16.gmra.mxu0 %v1115
        %v4031 = vpop.f32.mrf.mxu0
        %v4032 = vadd.f32 %v4003, %v4031
        %v4033 = vpop.f32.mrf.mxu0
        %v4034 = vadd.f32 %v4005, %v4033
        %4035 = vdwg.mxu0
        %4036 = vmatpush.bf16.msra.mxu0 %v3070
        %4037 = vmatpush.bf16.msra.mxu0 %v3066
        %4038 = vmatpush.bf16.msra.mxu0 %v3062
        %4039 = vmatpush.bf16.msra.mxu0 %v3058
        %4040 = vmatpush.bf16.msra.mxu0 %v3054
        %4041 = vmatpush.bf16.msra.mxu0 %v3050
        %4042 = vmatpush.bf16.msra.mxu0 %v3046
        %4043 = vmatpush.bf16.msra.mxu0 %v3042
        %4044 = vmatmul.bf16.gmra.mxu0 %v1068
        %v4045 = vpop.f32.mrf.mxu0
        %v4046 = vadd.f32 %v4017, %v4045
        %v4047 = vpop.f32.mrf.mxu0
        %v4048 = vadd.f32 %v4019, %v4047
        %4049 = vmatmul.bf16.gmra.mxu0 %v1084
        %v4050 = vpop.f32.mrf.mxu0
        %v4051 = vadd.f32 %v4022, %v4050
        %v4052 = vpop.f32.mrf.mxu0
        %v4053 = vadd.f32 %v4024, %v4052
        %4054 = vmatmul.bf16.gmra.mxu0 %v1100
        %v4055 = vpop.f32.mrf.mxu0
        %v4056 = vadd.f32 %v4027, %v4055
        %v4057 = vpop.f32.mrf.mxu0
        %v4058 = vadd.f32 %v4029, %v4057
        %4059 = vmatmul.bf16.gmra.mxu0 %v1116
        %v4060 = vpop.f32.mrf.mxu0
        %v4061 = vadd.f32 %v4032, %v4060
        %v4062 = vpop.f32.mrf.mxu0
        %v4063 = vadd.f32 %v4034, %v4062
        %4064 = vdwg.mxu0
        %4065 = vmatpush.bf16.msra.mxu0 %v3102
        %4066 = vmatpush.bf16.msra.mxu0 %v3098
        %4067 = vmatpush.bf16.msra.mxu0 %v3094
        %4068 = vmatpush.bf16.msra.mxu0 %v3090
        %4069 = vmatpush.bf16.msra.mxu0 %v3086
        %4070 = vmatpush.bf16.msra.mxu0 %v3082
        %4071 = vmatpush.bf16.msra.mxu0 %v3078
        %4072 = vmatpush.bf16.msra.mxu0 %v3074
        %4073 = vmatmul.bf16.gmra.mxu0 %v1069
        %v4074 = vpop.f32.mrf.mxu0
        %v4075 = vadd.f32 %v4046, %v4074
        %v4076 = vpop.f32.mrf.mxu0
        %v4077 = vadd.f32 %v4048, %v4076
        %4078 = vmatmul.bf16.gmra.mxu0 %v1085
        %v4079 = vpop.f32.mrf.mxu0
        %v4080 = vadd.f32 %v4051, %v4079
        %v4081 = vpop.f32.mrf.mxu0
        %v4082 = vadd.f32 %v4053, %v4081
        %4083 = vmatmul.bf16.gmra.mxu0 %v1101
        %v4084 = vpop.f32.mrf.mxu0
        %v4085 = vadd.f32 %v4056, %v4084
        %v4086 = vpop.f32.mrf.mxu0
        %v4087 = vadd.f32 %v4058, %v4086
        %4088 = vmatmul.bf16.gmra.mxu0 %v1117
        %v4089 = vpop.f32.mrf.mxu0
        %v4090 = vadd.f32 %v4061, %v4089
        %v4091 = vpop.f32.mrf.mxu0
        %v4092 = vadd.f32 %v4063, %v4091
        %4093 = vdwg.mxu0
        %4094 = vmatpush.bf16.msra.mxu0 %v3134
        %4095 = vmatpush.bf16.msra.mxu0 %v3130
        %4096 = vmatpush.bf16.msra.mxu0 %v3126
        %4097 = vmatpush.bf16.msra.mxu0 %v3122
        %4098 = vmatpush.bf16.msra.mxu0 %v3118
        %4099 = vmatpush.bf16.msra.mxu0 %v3114
        %4100 = vmatpush.bf16.msra.mxu0 %v3110
        %4101 = vmatpush.bf16.msra.mxu0 %v3106
        %4102 = vmatmul.bf16.gmra.mxu0 %v1070
        %v4103 = vpop.f32.mrf.mxu0
        %v4104 = vadd.f32 %v4075, %v4103
        %v4105 = vpop.f32.mrf.mxu0
        %v4106 = vadd.f32 %v4077, %v4105
        %4107 = vmatmul.bf16.gmra.mxu0 %v1086
        %v4108 = vpop.f32.mrf.mxu0
        %v4109 = vadd.f32 %v4080, %v4108
        %v4110 = vpop.f32.mrf.mxu0
        %v4111 = vadd.f32 %v4082, %v4110
        %4112 = vmatmul.bf16.gmra.mxu0 %v1102
        %v4113 = vpop.f32.mrf.mxu0
        %v4114 = vadd.f32 %v4085, %v4113
        %v4115 = vpop.f32.mrf.mxu0
        %v4116 = vadd.f32 %v4087, %v4115
        %4117 = vmatmul.bf16.gmra.mxu0 %v1118
        %v4118 = vpop.f32.mrf.mxu0
        %v4119 = vadd.f32 %v4090, %v4118
        %v4120 = vpop.f32.mrf.mxu0
        %v4121 = vadd.f32 %v4092, %v4120
        %4122 = vdwg.mxu0
        %4123 = vmatpush.bf16.msra.mxu0 %v3166
        %4124 = vmatpush.bf16.msra.mxu0 %v3162
        %4125 = vmatpush.bf16.msra.mxu0 %v3158
        %4126 = vmatpush.bf16.msra.mxu0 %v3154
        %4127 = vmatpush.bf16.msra.mxu0 %v3150
        %4128 = vmatpush.bf16.msra.mxu0 %v3146
        %4129 = vmatpush.bf16.msra.mxu0 %v3142
        %4130 = vmatpush.bf16.msra.mxu0 %v3138
        %4131 = vmatmul.bf16.gmra.mxu0 %v1071
        %v4132 = vpop.f32.mrf.mxu0
        %v4133 = vadd.f32 %v4104, %v4132
        %v4134 = vpop.f32.mrf.mxu0
        %v4135 = vadd.f32 %v4106, %v4134
        %4136 = vmatmul.bf16.gmra.mxu0 %v1087
        %v4137 = vpop.f32.mrf.mxu0
        %v4138 = vadd.f32 %v4109, %v4137
        %v4139 = vpop.f32.mrf.mxu0
        %v4140 = vadd.f32 %v4111, %v4139
        %4141 = vmatmul.bf16.gmra.mxu0 %v1103
        %v4142 = vpop.f32.mrf.mxu0
        %v4143 = vadd.f32 %v4114, %v4142
        %v4144 = vpop.f32.mrf.mxu0
        %v4145 = vadd.f32 %v4116, %v4144
        %4146 = vmatmul.bf16.gmra.mxu0 %v1119
        %v4147 = vpop.f32.mrf.mxu0
        %v4148 = vadd.f32 %v4119, %v4147
        %v4149 = vpop.f32.mrf.mxu0
        %v4150 = vadd.f32 %v4121, %v4149
        %4151 = vdwg.mxu0
        %4152 = vmatpush.bf16.msra.mxu0 %v3198
        %4153 = vmatpush.bf16.msra.mxu0 %v3194
        %4154 = vmatpush.bf16.msra.mxu0 %v3190
        %4155 = vmatpush.bf16.msra.mxu0 %v3186
        %4156 = vmatpush.bf16.msra.mxu0 %v3182
        %4157 = vmatpush.bf16.msra.mxu0 %v3178
        %4158 = vmatpush.bf16.msra.mxu0 %v3174
        %4159 = vmatpush.bf16.msra.mxu0 %v3170
        %4160 = vmatmul.bf16.gmra.mxu0 %v1072
        %v4161 = vpop.f32.mrf.mxu0
        %v4162 = vadd.f32 %v4133, %v4161
        %v4163 = vpop.f32.mrf.mxu0
        %v4164 = vadd.f32 %v4135, %v4163
        %4165 = vmatmul.bf16.gmra.mxu0 %v1088
        %v4166 = vpop.f32.mrf.mxu0
        %v4167 = vadd.f32 %v4138, %v4166
        %v4168 = vpop.f32.mrf.mxu0
        %v4169 = vadd.f32 %v4140, %v4168
        %4170 = vmatmul.bf16.gmra.mxu0 %v1104
        %v4171 = vpop.f32.mrf.mxu0
        %v4172 = vadd.f32 %v4143, %v4171
        %v4173 = vpop.f32.mrf.mxu0
        %v4174 = vadd.f32 %v4145, %v4173
        %4175 = vmatmul.bf16.gmra.mxu0 %v1120
        %v4176 = vpop.f32.mrf.mxu0
        %v4177 = vadd.f32 %v4148, %v4176
        %v4178 = vpop.f32.mrf.mxu0
        %v4179 = vadd.f32 %v4150, %v4178
        %4180 = vdwg.mxu0
        %4181 = vmatpush.bf16.msra.mxu0 %v3230
        %4182 = vmatpush.bf16.msra.mxu0 %v3226
        %4183 = vmatpush.bf16.msra.mxu0 %v3222
        %4184 = vmatpush.bf16.msra.mxu0 %v3218
        %4185 = vmatpush.bf16.msra.mxu0 %v3214
        %4186 = vmatpush.bf16.msra.mxu0 %v3210
        %4187 = vmatpush.bf16.msra.mxu0 %v3206
        %4188 = vmatpush.bf16.msra.mxu0 %v3202
        %4189 = vmatmul.bf16.gmra.mxu0 %v1073
        %v4190 = vpop.f32.mrf.mxu0
        %v4191 = vadd.f32 %v4162, %v4190
        %v4192 = vpop.f32.mrf.mxu0
        %v4193 = vadd.f32 %v4164, %v4192
        %4194 = vmatmul.bf16.gmra.mxu0 %v1089
        %v4195 = vpop.f32.mrf.mxu0
        %v4196 = vadd.f32 %v4167, %v4195
        %v4197 = vpop.f32.mrf.mxu0
        %v4198 = vadd.f32 %v4169, %v4197
        %4199 = vmatmul.bf16.gmra.mxu0 %v1105
        %v4200 = vpop.f32.mrf.mxu0
        %v4201 = vadd.f32 %v4172, %v4200
        %v4202 = vpop.f32.mrf.mxu0
        %v4203 = vadd.f32 %v4174, %v4202
        %4204 = vmatmul.bf16.gmra.mxu0 %v1121
        %v4205 = vpop.f32.mrf.mxu0
        %v4206 = vadd.f32 %v4177, %v4205
        %v4207 = vpop.f32.mrf.mxu0
        %v4208 = vadd.f32 %v4179, %v4207
        %4209 = vdwg.mxu0
        %4210 = vmatpush.bf16.msra.mxu0 %v2751
        %4211 = vmatpush.bf16.msra.mxu0 %v2747
        %4212 = vmatpush.bf16.msra.mxu0 %v2743
        %4213 = vmatpush.bf16.msra.mxu0 %v2739
        %4214 = vmatpush.bf16.msra.mxu0 %v2735
        %4215 = vmatpush.bf16.msra.mxu0 %v2731
        %4216 = vmatpush.bf16.msra.mxu0 %v2727
        %4217 = vmatpush.bf16.msra.mxu0 %v2723
        %4218 = vmatmul.bf16.gmra.mxu0 %v1058
        %v4219 = vpop.f32.mrf.mxu0
        %v4220 = vadd.f32 0.0, %v4219
        %v4221 = vpop.f32.mrf.mxu0
        %v4222 = vadd.f32 0.0, %v4221
        %4223 = vmatmul.bf16.gmra.mxu0 %v1074
        %v4224 = vpop.f32.mrf.mxu0
        %v4225 = vadd.f32 0.0, %v4224
        %v4226 = vpop.f32.mrf.mxu0
        %v4227 = vadd.f32 0.0, %v4226
        %4228 = vmatmul.bf16.gmra.mxu0 %v1090
        %v4229 = vpop.f32.mrf.mxu0
        %v4230 = vadd.f32 0.0, %v4229
        %v4231 = vpop.f32.mrf.mxu0
        %v4232 = vadd.f32 0.0, %v4231
        %4233 = vmatmul.bf16.gmra.mxu0 %v1106
        %v4234 = vpop.f32.mrf.mxu0
        %v4235 = vadd.f32 0.0, %v4234
        %v4236 = vpop.f32.mrf.mxu0
        %v4237 = vadd.f32 0.0, %v4236
        %4238 = vdwg.mxu0
        %4239 = vmatpush.bf16.msra.mxu0 %v2783
        %4240 = vmatpush.bf16.msra.mxu0 %v2779
        %4241 = vmatpush.bf16.msra.mxu0 %v2775
        %4242 = vmatpush.bf16.msra.mxu0 %v2771
        %4243 = vmatpush.bf16.msra.mxu0 %v2767
        %4244 = vmatpush.bf16.msra.mxu0 %v2763
        %4245 = vmatpush.bf16.msra.mxu0 %v2759
        %4246 = vmatpush.bf16.msra.mxu0 %v2755
        %4247 = vmatmul.bf16.gmra.mxu0 %v1059
        %v4248 = vpop.f32.mrf.mxu0
        %v4249 = vadd.f32 %v4220, %v4248
        %v4250 = vpop.f32.mrf.mxu0
        %v4251 = vadd.f32 %v4222, %v4250
        %4252 = vmatmul.bf16.gmra.mxu0 %v1075
        %v4253 = vpop.f32.mrf.mxu0
        %v4254 = vadd.f32 %v4225, %v4253
        %v4255 = vpop.f32.mrf.mxu0
        %v4256 = vadd.f32 %v4227, %v4255
        %4257 = vmatmul.bf16.gmra.mxu0 %v1091
        %v4258 = vpop.f32.mrf.mxu0
        %v4259 = vadd.f32 %v4230, %v4258
        %v4260 = vpop.f32.mrf.mxu0
        %v4261 = vadd.f32 %v4232, %v4260
        %4262 = vmatmul.bf16.gmra.mxu0 %v1107
        %v4263 = vpop.f32.mrf.mxu0
        %v4264 = vadd.f32 %v4235, %v4263
        %v4265 = vpop.f32.mrf.mxu0
        %v4266 = vadd.f32 %v4237, %v4265
        %4267 = vdwg.mxu0
        %4268 = vmatpush.bf16.msra.mxu0 %v2815
        %4269 = vmatpush.bf16.msra.mxu0 %v2811
        %4270 = vmatpush.bf16.msra.mxu0 %v2807
        %4271 = vmatpush.bf16.msra.mxu0 %v2803
        %4272 = vmatpush.bf16.msra.mxu0 %v2799
        %4273 = vmatpush.bf16.msra.mxu0 %v2795
        %4274 = vmatpush.bf16.msra.mxu0 %v2791
        %4275 = vmatpush.bf16.msra.mxu0 %v2787
        %4276 = vmatmul.bf16.gmra.mxu0 %v1060
        %v4277 = vpop.f32.mrf.mxu0
        %v4278 = vadd.f32 %v4249, %v4277
        %v4279 = vpop.f32.mrf.mxu0
        %v4280 = vadd.f32 %v4251, %v4279
        %4281 = vmatmul.bf16.gmra.mxu0 %v1076
        %v4282 = vpop.f32.mrf.mxu0
        %v4283 = vadd.f32 %v4254, %v4282
        %v4284 = vpop.f32.mrf.mxu0
        %v4285 = vadd.f32 %v4256, %v4284
        %4286 = vmatmul.bf16.gmra.mxu0 %v1092
        %v4287 = vpop.f32.mrf.mxu0
        %v4288 = vadd.f32 %v4259, %v4287
        %v4289 = vpop.f32.mrf.mxu0
        %v4290 = vadd.f32 %v4261, %v4289
        %4291 = vmatmul.bf16.gmra.mxu0 %v1108
        %v4292 = vpop.f32.mrf.mxu0
        %v4293 = vadd.f32 %v4264, %v4292
        %v4294 = vpop.f32.mrf.mxu0
        %v4295 = vadd.f32 %v4266, %v4294
        %4296 = vdwg.mxu0
        %4297 = vmatpush.bf16.msra.mxu0 %v2847
        %4298 = vmatpush.bf16.msra.mxu0 %v2843
        %4299 = vmatpush.bf16.msra.mxu0 %v2839
        %4300 = vmatpush.bf16.msra.mxu0 %v2835
        %4301 = vmatpush.bf16.msra.mxu0 %v2831
        %4302 = vmatpush.bf16.msra.mxu0 %v2827
        %4303 = vmatpush.bf16.msra.mxu0 %v2823
        %4304 = vmatpush.bf16.msra.mxu0 %v2819
        %4305 = vmatmul.bf16.gmra.mxu0 %v1061
        %v4306 = vpop.f32.mrf.mxu0
        %v4307 = vadd.f32 %v4278, %v4306
        %v4308 = vpop.f32.mrf.mxu0
        %v4309 = vadd.f32 %v4280, %v4308
        %4310 = vmatmul.bf16.gmra.mxu0 %v1077
        %v4311 = vpop.f32.mrf.mxu0
        %v4312 = vadd.f32 %v4283, %v4311
        %v4313 = vpop.f32.mrf.mxu0
        %v4314 = vadd.f32 %v4285, %v4313
        %4315 = vmatmul.bf16.gmra.mxu0 %v1093
        %v4316 = vpop.f32.mrf.mxu0
        %v4317 = vadd.f32 %v4288, %v4316
        %v4318 = vpop.f32.mrf.mxu0
        %v4319 = vadd.f32 %v4290, %v4318
        %4320 = vmatmul.bf16.gmra.mxu0 %v1109
        %v4321 = vpop.f32.mrf.mxu0
        %v4322 = vadd.f32 %v4293, %v4321
        %v4323 = vpop.f32.mrf.mxu0
        %v4324 = vadd.f32 %v4295, %v4323
        %4325 = vdwg.mxu0
        %4326 = vmatpush.bf16.msra.mxu0 %v2879
        %4327 = vmatpush.bf16.msra.mxu0 %v2875
        %4328 = vmatpush.bf16.msra.mxu0 %v2871
        %4329 = vmatpush.bf16.msra.mxu0 %v2867
        %4330 = vmatpush.bf16.msra.mxu0 %v2863
        %4331 = vmatpush.bf16.msra.mxu0 %v2859
        %4332 = vmatpush.bf16.msra.mxu0 %v2855
        %4333 = vmatpush.bf16.msra.mxu0 %v2851
        %4334 = vmatmul.bf16.gmra.mxu0 %v1062
        %v4335 = vpop.f32.mrf.mxu0
        %v4336 = vadd.f32 %v4307, %v4335
        %v4337 = vpop.f32.mrf.mxu0
        %v4338 = vadd.f32 %v4309, %v4337
        %4339 = vmatmul.bf16.gmra.mxu0 %v1078
        %v4340 = vpop.f32.mrf.mxu0
        %v4341 = vadd.f32 %v4312, %v4340
        %v4342 = vpop.f32.mrf.mxu0
        %v4343 = vadd.f32 %v4314, %v4342
        %4344 = vmatmul.bf16.gmra.mxu0 %v1094
        %v4345 = vpop.f32.mrf.mxu0
        %v4346 = vadd.f32 %v4317, %v4345
        %v4347 = vpop.f32.mrf.mxu0
        %v4348 = vadd.f32 %v4319, %v4347
        %4349 = vmatmul.bf16.gmra.mxu0 %v1110
        %v4350 = vpop.f32.mrf.mxu0
        %v4351 = vadd.f32 %v4322, %v4350
        %v4352 = vpop.f32.mrf.mxu0
        %v4353 = vadd.f32 %v4324, %v4352
        %4354 = vdwg.mxu0
        %4355 = vmatpush.bf16.msra.mxu0 %v2911
        %4356 = vmatpush.bf16.msra.mxu0 %v2907
        %4357 = vmatpush.bf16.msra.mxu0 %v2903
        %4358 = vmatpush.bf16.msra.mxu0 %v2899
        %4359 = vmatpush.bf16.msra.mxu0 %v2895
        %4360 = vmatpush.bf16.msra.mxu0 %v2891
        %4361 = vmatpush.bf16.msra.mxu0 %v2887
        %4362 = vmatpush.bf16.msra.mxu0 %v2883
        %4363 = vmatmul.bf16.gmra.mxu0 %v1063
        %v4364 = vpop.f32.mrf.mxu0
        %v4365 = vadd.f32 %v4336, %v4364
        %v4366 = vpop.f32.mrf.mxu0
        %v4367 = vadd.f32 %v4338, %v4366
        %4368 = vmatmul.bf16.gmra.mxu0 %v1079
        %v4369 = vpop.f32.mrf.mxu0
        %v4370 = vadd.f32 %v4341, %v4369
        %v4371 = vpop.f32.mrf.mxu0
        %v4372 = vadd.f32 %v4343, %v4371
        %4373 = vmatmul.bf16.gmra.mxu0 %v1095
        %v4374 = vpop.f32.mrf.mxu0
        %v4375 = vadd.f32 %v4346, %v4374
        %v4376 = vpop.f32.mrf.mxu0
        %v4377 = vadd.f32 %v4348, %v4376
        %4378 = vmatmul.bf16.gmra.mxu0 %v1111
        %v4379 = vpop.f32.mrf.mxu0
        %v4380 = vadd.f32 %v4351, %v4379
        %v4381 = vpop.f32.mrf.mxu0
        %v4382 = vadd.f32 %v4353, %v4381
        %4383 = vdwg.mxu0
        %4384 = vmatpush.bf16.msra.mxu0 %v2943
        %4385 = vmatpush.bf16.msra.mxu0 %v2939
        %4386 = vmatpush.bf16.msra.mxu0 %v2935
        %4387 = vmatpush.bf16.msra.mxu0 %v2931
        %4388 = vmatpush.bf16.msra.mxu0 %v2927
        %4389 = vmatpush.bf16.msra.mxu0 %v2923
        %4390 = vmatpush.bf16.msra.mxu0 %v2919
        %4391 = vmatpush.bf16.msra.mxu0 %v2915
        %4392 = vmatmul.bf16.gmra.mxu0 %v1064
        %v4393 = vpop.f32.mrf.mxu0
        %v4394 = vadd.f32 %v4365, %v4393
        %v4395 = vpop.f32.mrf.mxu0
        %v4396 = vadd.f32 %v4367, %v4395
        %4397 = vmatmul.bf16.gmra.mxu0 %v1080
        %v4398 = vpop.f32.mrf.mxu0
        %v4399 = vadd.f32 %v4370, %v4398
        %v4400 = vpop.f32.mrf.mxu0
        %v4401 = vadd.f32 %v4372, %v4400
        %4402 = vmatmul.bf16.gmra.mxu0 %v1096
        %v4403 = vpop.f32.mrf.mxu0
        %v4404 = vadd.f32 %v4375, %v4403
        %v4405 = vpop.f32.mrf.mxu0
        %v4406 = vadd.f32 %v4377, %v4405
        %4407 = vmatmul.bf16.gmra.mxu0 %v1112
        %v4408 = vpop.f32.mrf.mxu0
        %v4409 = vadd.f32 %v4380, %v4408
        %v4410 = vpop.f32.mrf.mxu0
        %v4411 = vadd.f32 %v4382, %v4410
        %4412 = vdwg.mxu0
        %4413 = vmatpush.bf16.msra.mxu0 %v2975
        %4414 = vmatpush.bf16.msra.mxu0 %v2971
        %4415 = vmatpush.bf16.msra.mxu0 %v2967
        %4416 = vmatpush.bf16.msra.mxu0 %v2963
        %4417 = vmatpush.bf16.msra.mxu0 %v2959
        %4418 = vmatpush.bf16.msra.mxu0 %v2955
        %4419 = vmatpush.bf16.msra.mxu0 %v2951
        %4420 = vmatpush.bf16.msra.mxu0 %v2947
        %4421 = vmatmul.bf16.gmra.mxu0 %v1065
        %v4422 = vpop.f32.mrf.mxu0
        %v4423 = vadd.f32 %v4394, %v4422
        %v4424 = vpop.f32.mrf.mxu0
        %v4425 = vadd.f32 %v4396, %v4424
        %4426 = vmatmul.bf16.gmra.mxu0 %v1081
        %v4427 = vpop.f32.mrf.mxu0
        %v4428 = vadd.f32 %v4399, %v4427
        %v4429 = vpop.f32.mrf.mxu0
        %v4430 = vadd.f32 %v4401, %v4429
        %4431 = vmatmul.bf16.gmra.mxu0 %v1097
        %v4432 = vpop.f32.mrf.mxu0
        %v4433 = vadd.f32 %v4404, %v4432
        %v4434 = vpop.f32.mrf.mxu0
        %v4435 = vadd.f32 %v4406, %v4434
        %4436 = vmatmul.bf16.gmra.mxu0 %v1113
        %v4437 = vpop.f32.mrf.mxu0
        %v4438 = vadd.f32 %v4409, %v4437
        %v4439 = vpop.f32.mrf.mxu0
        %v4440 = vadd.f32 %v4411, %v4439
        %4441 = vdwg.mxu0
        %4442 = vmatpush.bf16.msra.mxu0 %v3007
        %4443 = vmatpush.bf16.msra.mxu0 %v3003
        %4444 = vmatpush.bf16.msra.mxu0 %v2999
        %4445 = vmatpush.bf16.msra.mxu0 %v2995
        %4446 = vmatpush.bf16.msra.mxu0 %v2991
        %4447 = vmatpush.bf16.msra.mxu0 %v2987
        %4448 = vmatpush.bf16.msra.mxu0 %v2983
        %4449 = vmatpush.bf16.msra.mxu0 %v2979
        %4450 = vmatmul.bf16.gmra.mxu0 %v1066
        %v4451 = vpop.f32.mrf.mxu0
        %v4452 = vadd.f32 %v4423, %v4451
        %v4453 = vpop.f32.mrf.mxu0
        %v4454 = vadd.f32 %v4425, %v4453
        %4455 = vmatmul.bf16.gmra.mxu0 %v1082
        %v4456 = vpop.f32.mrf.mxu0
        %v4457 = vadd.f32 %v4428, %v4456
        %v4458 = vpop.f32.mrf.mxu0
        %v4459 = vadd.f32 %v4430, %v4458
        %4460 = vmatmul.bf16.gmra.mxu0 %v1098
        %v4461 = vpop.f32.mrf.mxu0
        %v4462 = vadd.f32 %v4433, %v4461
        %v4463 = vpop.f32.mrf.mxu0
        %v4464 = vadd.f32 %v4435, %v4463
        %4465 = vmatmul.bf16.gmra.mxu0 %v1114
        %v4466 = vpop.f32.mrf.mxu0
        %v4467 = vadd.f32 %v4438, %v4466
        %v4468 = vpop.f32.mrf.mxu0
        %v4469 = vadd.f32 %v4440, %v4468
        %4470 = vdwg.mxu0
        %4471 = vmatpush.bf16.msra.mxu0 %v3039
        %4472 = vmatpush.bf16.msra.mxu0 %v3035
        %4473 = vmatpush.bf16.msra.mxu0 %v3031
        %4474 = vmatpush.bf16.msra.mxu0 %v3027
        %4475 = vmatpush.bf16.msra.mxu0 %v3023
        %4476 = vmatpush.bf16.msra.mxu0 %v3019
        %4477 = vmatpush.bf16.msra.mxu0 %v3015
        %4478 = vmatpush.bf16.msra.mxu0 %v3011
        %4479 = vmatmul.bf16.gmra.mxu0 %v1067
        %v4480 = vpop.f32.mrf.mxu0
        %v4481 = vadd.f32 %v4452, %v4480
        %v4482 = vpop.f32.mrf.mxu0
        %v4483 = vadd.f32 %v4454, %v4482
        %4484 = vmatmul.bf16.gmra.mxu0 %v1083
        %v4485 = vpop.f32.mrf.mxu0
        %v4486 = vadd.f32 %v4457, %v4485
        %v4487 = vpop.f32.mrf.mxu0
        %v4488 = vadd.f32 %v4459, %v4487
        %4489 = vmatmul.bf16.gmra.mxu0 %v1099
        %v4490 = vpop.f32.mrf.mxu0
        %v4491 = vadd.f32 %v4462, %v4490
        %v4492 = vpop.f32.mrf.mxu0
        %v4493 = vadd.f32 %v4464, %v4492
        %4494 = vmatmul.bf16.gmra.mxu0 %v1115
        %v4495 = vpop.f32.mrf.mxu0
        %v4496 = vadd.f32 %v4467, %v4495
        %v4497 = vpop.f32.mrf.mxu0
        %v4498 = vadd.f32 %v4469, %v4497
        %4499 = vdwg.mxu0
        %4500 = vmatpush.bf16.msra.mxu0 %v3071
        %4501 = vmatpush.bf16.msra.mxu0 %v3067
        %4502 = vmatpush.bf16.msra.mxu0 %v3063
        %4503 = vmatpush.bf16.msra.mxu0 %v3059
        %4504 = vmatpush.bf16.msra.mxu0 %v3055
        %4505 = vmatpush.bf16.msra.mxu0 %v3051
        %4506 = vmatpush.bf16.msra.mxu0 %v3047
        %4507 = vmatpush.bf16.msra.mxu0 %v3043
        %4508 = vmatmul.bf16.gmra.mxu0 %v1068
        %v4509 = vpop.f32.mrf.mxu0
        %v4510 = vadd.f32 %v4481, %v4509
        %v4511 = vpop.f32.mrf.mxu0
        %v4512 = vadd.f32 %v4483, %v4511
        %4513 = vmatmul.bf16.gmra.mxu0 %v1084
        %v4514 = vpop.f32.mrf.mxu0
        %v4515 = vadd.f32 %v4486, %v4514
        %v4516 = vpop.f32.mrf.mxu0
        %v4517 = vadd.f32 %v4488, %v4516
        %4518 = vmatmul.bf16.gmra.mxu0 %v1100
        %v4519 = vpop.f32.mrf.mxu0
        %v4520 = vadd.f32 %v4491, %v4519
        %v4521 = vpop.f32.mrf.mxu0
        %v4522 = vadd.f32 %v4493, %v4521
        %4523 = vmatmul.bf16.gmra.mxu0 %v1116
        %v4524 = vpop.f32.mrf.mxu0
        %v4525 = vadd.f32 %v4496, %v4524
        %v4526 = vpop.f32.mrf.mxu0
        %v4527 = vadd.f32 %v4498, %v4526
        %4528 = vdwg.mxu0
        %4529 = vmatpush.bf16.msra.mxu0 %v3103
        %4530 = vmatpush.bf16.msra.mxu0 %v3099
        %4531 = vmatpush.bf16.msra.mxu0 %v3095
        %4532 = vmatpush.bf16.msra.mxu0 %v3091
        %4533 = vmatpush.bf16.msra.mxu0 %v3087
        %4534 = vmatpush.bf16.msra.mxu0 %v3083
        %4535 = vmatpush.bf16.msra.mxu0 %v3079
        %4536 = vmatpush.bf16.msra.mxu0 %v3075
        %4537 = vmatmul.bf16.gmra.mxu0 %v1069
        %v4538 = vpop.f32.mrf.mxu0
        %v4539 = vadd.f32 %v4510, %v4538
        %v4540 = vpop.f32.mrf.mxu0
        %v4541 = vadd.f32 %v4512, %v4540
        %4542 = vmatmul.bf16.gmra.mxu0 %v1085
        %v4543 = vpop.f32.mrf.mxu0
        %v4544 = vadd.f32 %v4515, %v4543
        %v4545 = vpop.f32.mrf.mxu0
        %v4546 = vadd.f32 %v4517, %v4545
        %4547 = vmatmul.bf16.gmra.mxu0 %v1101
        %v4548 = vpop.f32.mrf.mxu0
        %v4549 = vadd.f32 %v4520, %v4548
        %v4550 = vpop.f32.mrf.mxu0
        %v4551 = vadd.f32 %v4522, %v4550
        %4552 = vmatmul.bf16.gmra.mxu0 %v1117
        %v4553 = vpop.f32.mrf.mxu0
        %v4554 = vadd.f32 %v4525, %v4553
        %v4555 = vpop.f32.mrf.mxu0
        %v4556 = vadd.f32 %v4527, %v4555
        %4557 = vdwg.mxu0
        %4558 = vmatpush.bf16.msra.mxu0 %v3135
        %4559 = vmatpush.bf16.msra.mxu0 %v3131
        %4560 = vmatpush.bf16.msra.mxu0 %v3127
        %4561 = vmatpush.bf16.msra.mxu0 %v3123
        %4562 = vmatpush.bf16.msra.mxu0 %v3119
        %4563 = vmatpush.bf16.msra.mxu0 %v3115
        %4564 = vmatpush.bf16.msra.mxu0 %v3111
        %4565 = vmatpush.bf16.msra.mxu0 %v3107
        %4566 = vmatmul.bf16.gmra.mxu0 %v1070
        %v4567 = vpop.f32.mrf.mxu0
        %v4568 = vadd.f32 %v4539, %v4567
        %v4569 = vpop.f32.mrf.mxu0
        %v4570 = vadd.f32 %v4541, %v4569
        %4571 = vmatmul.bf16.gmra.mxu0 %v1086
        %v4572 = vpop.f32.mrf.mxu0
        %v4573 = vadd.f32 %v4544, %v4572
        %v4574 = vpop.f32.mrf.mxu0
        %v4575 = vadd.f32 %v4546, %v4574
        %4576 = vmatmul.bf16.gmra.mxu0 %v1102
        %v4577 = vpop.f32.mrf.mxu0
        %v4578 = vadd.f32 %v4549, %v4577
        %v4579 = vpop.f32.mrf.mxu0
        %v4580 = vadd.f32 %v4551, %v4579
        %4581 = vmatmul.bf16.gmra.mxu0 %v1118
        %v4582 = vpop.f32.mrf.mxu0
        %v4583 = vadd.f32 %v4554, %v4582
        %v4584 = vpop.f32.mrf.mxu0
        %v4585 = vadd.f32 %v4556, %v4584
        %4586 = vdwg.mxu0
        %4587 = vmatpush.bf16.msra.mxu0 %v3167
        %4588 = vmatpush.bf16.msra.mxu0 %v3163
        %4589 = vmatpush.bf16.msra.mxu0 %v3159
        %4590 = vmatpush.bf16.msra.mxu0 %v3155
        %4591 = vmatpush.bf16.msra.mxu0 %v3151
        %4592 = vmatpush.bf16.msra.mxu0 %v3147
        %4593 = vmatpush.bf16.msra.mxu0 %v3143
        %4594 = vmatpush.bf16.msra.mxu0 %v3139
        %4595 = vmatmul.bf16.gmra.mxu0 %v1071
        %v4596 = vpop.f32.mrf.mxu0
        %v4597 = vadd.f32 %v4568, %v4596
        %v4598 = vpop.f32.mrf.mxu0
        %v4599 = vadd.f32 %v4570, %v4598
        %4600 = vmatmul.bf16.gmra.mxu0 %v1087
        %v4601 = vpop.f32.mrf.mxu0
        %v4602 = vadd.f32 %v4573, %v4601
        %v4603 = vpop.f32.mrf.mxu0
        %v4604 = vadd.f32 %v4575, %v4603
        %4605 = vmatmul.bf16.gmra.mxu0 %v1103
        %v4606 = vpop.f32.mrf.mxu0
        %v4607 = vadd.f32 %v4578, %v4606
        %v4608 = vpop.f32.mrf.mxu0
        %v4609 = vadd.f32 %v4580, %v4608
        %4610 = vmatmul.bf16.gmra.mxu0 %v1119
        %v4611 = vpop.f32.mrf.mxu0
        %v4612 = vadd.f32 %v4583, %v4611
        %v4613 = vpop.f32.mrf.mxu0
        %v4614 = vadd.f32 %v4585, %v4613
        %4615 = vdwg.mxu0
        %4616 = vmatpush.bf16.msra.mxu0 %v3199
        %4617 = vmatpush.bf16.msra.mxu0 %v3195
        %4618 = vmatpush.bf16.msra.mxu0 %v3191
        %4619 = vmatpush.bf16.msra.mxu0 %v3187
        %4620 = vmatpush.bf16.msra.mxu0 %v3183
        %4621 = vmatpush.bf16.msra.mxu0 %v3179
        %4622 = vmatpush.bf16.msra.mxu0 %v3175
        %4623 = vmatpush.bf16.msra.mxu0 %v3171
        %4624 = vmatmul.bf16.gmra.mxu0 %v1072
        %v4625 = vpop.f32.mrf.mxu0
        %v4626 = vadd.f32 %v4597, %v4625
        %v4627 = vpop.f32.mrf.mxu0
        %v4628 = vadd.f32 %v4599, %v4627
        %4629 = vmatmul.bf16.gmra.mxu0 %v1088
        %v4630 = vpop.f32.mrf.mxu0
        %v4631 = vadd.f32 %v4602, %v4630
        %v4632 = vpop.f32.mrf.mxu0
        %v4633 = vadd.f32 %v4604, %v4632
        %4634 = vmatmul.bf16.gmra.mxu0 %v1104
        %v4635 = vpop.f32.mrf.mxu0
        %v4636 = vadd.f32 %v4607, %v4635
        %v4637 = vpop.f32.mrf.mxu0
        %v4638 = vadd.f32 %v4609, %v4637
        %4639 = vmatmul.bf16.gmra.mxu0 %v1120
        %v4640 = vpop.f32.mrf.mxu0
        %v4641 = vadd.f32 %v4612, %v4640
        %v4642 = vpop.f32.mrf.mxu0
        %v4643 = vadd.f32 %v4614, %v4642
        %4644 = vdwg.mxu0
        %4645 = vmatpush.bf16.msra.mxu0 %v3231
        %4646 = vmatpush.bf16.msra.mxu0 %v3227
        %4647 = vmatpush.bf16.msra.mxu0 %v3223
        %4648 = vmatpush.bf16.msra.mxu0 %v3219
        %4649 = vmatpush.bf16.msra.mxu0 %v3215
        %4650 = vmatpush.bf16.msra.mxu0 %v3211
        %4651 = vmatpush.bf16.msra.mxu0 %v3207
        %4652 = vmatpush.bf16.msra.mxu0 %v3203
        %4653 = vmatmul.bf16.gmra.mxu0 %v1073
        %v4654 = vpop.f32.mrf.mxu0
        %v4655 = vadd.f32 %v4626, %v4654
        %v4656 = vpop.f32.mrf.mxu0
        %v4657 = vadd.f32 %v4628, %v4656
        %4658 = vmatmul.bf16.gmra.mxu0 %v1089
        %v4659 = vpop.f32.mrf.mxu0
        %v4660 = vadd.f32 %v4631, %v4659
        %v4661 = vpop.f32.mrf.mxu0
        %v4662 = vadd.f32 %v4633, %v4661
        %4663 = vmatmul.bf16.gmra.mxu0 %v1105
        %v4664 = vpop.f32.mrf.mxu0
        %v4665 = vadd.f32 %v4636, %v4664
        %v4666 = vpop.f32.mrf.mxu0
        %v4667 = vadd.f32 %v4638, %v4666
        %4668 = vmatmul.bf16.gmra.mxu0 %v1121
        %v4669 = vpop.f32.mrf.mxu0
        %v4670 = vadd.f32 %v4641, %v4669
        %v4671 = vpop.f32.mrf.mxu0
        %v4672 = vadd.f32 %v4643, %v4671
        %4673 = vdwg.mxu0
        %4674 = vmatpush.bf16.msra.mxu0 %v2752
        %4675 = vmatpush.bf16.msra.mxu0 %v2748
        %4676 = vmatpush.bf16.msra.mxu0 %v2744
        %4677 = vmatpush.bf16.msra.mxu0 %v2740
        %4678 = vmatpush.bf16.msra.mxu0 %v2736
        %4679 = vmatpush.bf16.msra.mxu0 %v2732
        %4680 = vmatpush.bf16.msra.mxu0 %v2728
        %4681 = vmatpush.bf16.msra.mxu0 %v2724
        %4682 = vmatmul.bf16.gmra.mxu0 %v1058
        %v4683 = vpop.f32.mrf.mxu0
        %v4684 = vadd.f32 0.0, %v4683
        %v4685 = vpop.f32.mrf.mxu0
        %v4686 = vadd.f32 0.0, %v4685
        %4687 = vmatmul.bf16.gmra.mxu0 %v1074
        %v4688 = vpop.f32.mrf.mxu0
        %v4689 = vadd.f32 0.0, %v4688
        %v4690 = vpop.f32.mrf.mxu0
        %v4691 = vadd.f32 0.0, %v4690
        %4692 = vmatmul.bf16.gmra.mxu0 %v1090
        %v4693 = vpop.f32.mrf.mxu0
        %v4694 = vadd.f32 0.0, %v4693
        %v4695 = vpop.f32.mrf.mxu0
        %v4696 = vadd.f32 0.0, %v4695
        %4697 = vmatmul.bf16.gmra.mxu0 %v1106
        %v4698 = vpop.f32.mrf.mxu0
        %v4699 = vadd.f32 0.0, %v4698
        %v4700 = vpop.f32.mrf.mxu0
        %v4701 = vadd.f32 0.0, %v4700
        %4702 = vdwg.mxu0
        %4703 = vmatpush.bf16.msra.mxu0 %v2784
        %4704 = vmatpush.bf16.msra.mxu0 %v2780
        %4705 = vmatpush.bf16.msra.mxu0 %v2776
        %4706 = vmatpush.bf16.msra.mxu0 %v2772
        %4707 = vmatpush.bf16.msra.mxu0 %v2768
        %4708 = vmatpush.bf16.msra.mxu0 %v2764
        %4709 = vmatpush.bf16.msra.mxu0 %v2760
        %4710 = vmatpush.bf16.msra.mxu0 %v2756
        %4711 = vmatmul.bf16.gmra.mxu0 %v1059
        %v4712 = vpop.f32.mrf.mxu0
        %v4713 = vadd.f32 %v4684, %v4712
        %v4714 = vpop.f32.mrf.mxu0
        %v4715 = vadd.f32 %v4686, %v4714
        %4716 = vmatmul.bf16.gmra.mxu0 %v1075
        %v4717 = vpop.f32.mrf.mxu0
        %v4718 = vadd.f32 %v4689, %v4717
        %v4719 = vpop.f32.mrf.mxu0
        %v4720 = vadd.f32 %v4691, %v4719
        %4721 = vmatmul.bf16.gmra.mxu0 %v1091
        %v4722 = vpop.f32.mrf.mxu0
        %v4723 = vadd.f32 %v4694, %v4722
        %v4724 = vpop.f32.mrf.mxu0
        %v4725 = vadd.f32 %v4696, %v4724
        %4726 = vmatmul.bf16.gmra.mxu0 %v1107
        %v4727 = vpop.f32.mrf.mxu0
        %v4728 = vadd.f32 %v4699, %v4727
        %v4729 = vpop.f32.mrf.mxu0
        %v4730 = vadd.f32 %v4701, %v4729
        %4731 = vdwg.mxu0
        %4732 = vmatpush.bf16.msra.mxu0 %v2816
        %4733 = vmatpush.bf16.msra.mxu0 %v2812
        %4734 = vmatpush.bf16.msra.mxu0 %v2808
        %4735 = vmatpush.bf16.msra.mxu0 %v2804
        %4736 = vmatpush.bf16.msra.mxu0 %v2800
        %4737 = vmatpush.bf16.msra.mxu0 %v2796
        %4738 = vmatpush.bf16.msra.mxu0 %v2792
        %4739 = vmatpush.bf16.msra.mxu0 %v2788
        %4740 = vmatmul.bf16.gmra.mxu0 %v1060
        %v4741 = vpop.f32.mrf.mxu0
        %v4742 = vadd.f32 %v4713, %v4741
        %v4743 = vpop.f32.mrf.mxu0
        %v4744 = vadd.f32 %v4715, %v4743
        %4745 = vmatmul.bf16.gmra.mxu0 %v1076
        %v4746 = vpop.f32.mrf.mxu0
        %v4747 = vadd.f32 %v4718, %v4746
        %v4748 = vpop.f32.mrf.mxu0
        %v4749 = vadd.f32 %v4720, %v4748
        %4750 = vmatmul.bf16.gmra.mxu0 %v1092
        %v4751 = vpop.f32.mrf.mxu0
        %v4752 = vadd.f32 %v4723, %v4751
        %v4753 = vpop.f32.mrf.mxu0
        %v4754 = vadd.f32 %v4725, %v4753
        %4755 = vmatmul.bf16.gmra.mxu0 %v1108
        %v4756 = vpop.f32.mrf.mxu0
        %v4757 = vadd.f32 %v4728, %v4756
        %v4758 = vpop.f32.mrf.mxu0
        %v4759 = vadd.f32 %v4730, %v4758
        %4760 = vdwg.mxu0
        %4761 = vmatpush.bf16.msra.mxu0 %v2848
        %4762 = vmatpush.bf16.msra.mxu0 %v2844
        %4763 = vmatpush.bf16.msra.mxu0 %v2840
        %4764 = vmatpush.bf16.msra.mxu0 %v2836
        %4765 = vmatpush.bf16.msra.mxu0 %v2832
        %4766 = vmatpush.bf16.msra.mxu0 %v2828
        %4767 = vmatpush.bf16.msra.mxu0 %v2824
        %4768 = vmatpush.bf16.msra.mxu0 %v2820
        %4769 = vmatmul.bf16.gmra.mxu0 %v1061
        %v4770 = vpop.f32.mrf.mxu0
        %v4771 = vadd.f32 %v4742, %v4770
        %v4772 = vpop.f32.mrf.mxu0
        %v4773 = vadd.f32 %v4744, %v4772
        %4774 = vmatmul.bf16.gmra.mxu0 %v1077
        %v4775 = vpop.f32.mrf.mxu0
        %v4776 = vadd.f32 %v4747, %v4775
        %v4777 = vpop.f32.mrf.mxu0
        %v4778 = vadd.f32 %v4749, %v4777
        %4779 = vmatmul.bf16.gmra.mxu0 %v1093
        %v4780 = vpop.f32.mrf.mxu0
        %v4781 = vadd.f32 %v4752, %v4780
        %v4782 = vpop.f32.mrf.mxu0
        %v4783 = vadd.f32 %v4754, %v4782
        %4784 = vmatmul.bf16.gmra.mxu0 %v1109
        %v4785 = vpop.f32.mrf.mxu0
        %v4786 = vadd.f32 %v4757, %v4785
        %v4787 = vpop.f32.mrf.mxu0
        %v4788 = vadd.f32 %v4759, %v4787
        %4789 = vdwg.mxu0
        %4790 = vmatpush.bf16.msra.mxu0 %v2880
        %4791 = vmatpush.bf16.msra.mxu0 %v2876
        %4792 = vmatpush.bf16.msra.mxu0 %v2872
        %4793 = vmatpush.bf16.msra.mxu0 %v2868
        %4794 = vmatpush.bf16.msra.mxu0 %v2864
        %4795 = vmatpush.bf16.msra.mxu0 %v2860
        %4796 = vmatpush.bf16.msra.mxu0 %v2856
        %4797 = vmatpush.bf16.msra.mxu0 %v2852
        %4798 = vmatmul.bf16.gmra.mxu0 %v1062
        %v4799 = vpop.f32.mrf.mxu0
        %v4800 = vadd.f32 %v4771, %v4799
        %v4801 = vpop.f32.mrf.mxu0
        %v4802 = vadd.f32 %v4773, %v4801
        %4803 = vmatmul.bf16.gmra.mxu0 %v1078
        %v4804 = vpop.f32.mrf.mxu0
        %v4805 = vadd.f32 %v4776, %v4804
        %v4806 = vpop.f32.mrf.mxu0
        %v4807 = vadd.f32 %v4778, %v4806
        %4808 = vmatmul.bf16.gmra.mxu0 %v1094
        %v4809 = vpop.f32.mrf.mxu0
        %v4810 = vadd.f32 %v4781, %v4809
        %v4811 = vpop.f32.mrf.mxu0
        %v4812 = vadd.f32 %v4783, %v4811
        %4813 = vmatmul.bf16.gmra.mxu0 %v1110
        %v4814 = vpop.f32.mrf.mxu0
        %v4815 = vadd.f32 %v4786, %v4814
        %v4816 = vpop.f32.mrf.mxu0
        %v4817 = vadd.f32 %v4788, %v4816
        %4818 = vdwg.mxu0
        %4819 = vmatpush.bf16.msra.mxu0 %v2912
        %4820 = vmatpush.bf16.msra.mxu0 %v2908
        %4821 = vmatpush.bf16.msra.mxu0 %v2904
        %4822 = vmatpush.bf16.msra.mxu0 %v2900
        %4823 = vmatpush.bf16.msra.mxu0 %v2896
        %4824 = vmatpush.bf16.msra.mxu0 %v2892
        %4825 = vmatpush.bf16.msra.mxu0 %v2888
        %4826 = vmatpush.bf16.msra.mxu0 %v2884
        %4827 = vmatmul.bf16.gmra.mxu0 %v1063
        %v4828 = vpop.f32.mrf.mxu0
        %v4829 = vadd.f32 %v4800, %v4828
        %v4830 = vpop.f32.mrf.mxu0
        %v4831 = vadd.f32 %v4802, %v4830
        %4832 = vmatmul.bf16.gmra.mxu0 %v1079
        %v4833 = vpop.f32.mrf.mxu0
        %v4834 = vadd.f32 %v4805, %v4833
        %v4835 = vpop.f32.mrf.mxu0
        %v4836 = vadd.f32 %v4807, %v4835
        %4837 = vmatmul.bf16.gmra.mxu0 %v1095
        %v4838 = vpop.f32.mrf.mxu0
        %v4839 = vadd.f32 %v4810, %v4838
        %v4840 = vpop.f32.mrf.mxu0
        %v4841 = vadd.f32 %v4812, %v4840
        %4842 = vmatmul.bf16.gmra.mxu0 %v1111
        %v4843 = vpop.f32.mrf.mxu0
        %v4844 = vadd.f32 %v4815, %v4843
        %v4845 = vpop.f32.mrf.mxu0
        %v4846 = vadd.f32 %v4817, %v4845
        %4847 = vdwg.mxu0
        %4848 = vmatpush.bf16.msra.mxu0 %v2944
        %4849 = vmatpush.bf16.msra.mxu0 %v2940
        %4850 = vmatpush.bf16.msra.mxu0 %v2936
        %4851 = vmatpush.bf16.msra.mxu0 %v2932
        %4852 = vmatpush.bf16.msra.mxu0 %v2928
        %4853 = vmatpush.bf16.msra.mxu0 %v2924
        %4854 = vmatpush.bf16.msra.mxu0 %v2920
        %4855 = vmatpush.bf16.msra.mxu0 %v2916
        %4856 = vmatmul.bf16.gmra.mxu0 %v1064
        %v4857 = vpop.f32.mrf.mxu0
        %v4858 = vadd.f32 %v4829, %v4857
        %v4859 = vpop.f32.mrf.mxu0
        %v4860 = vadd.f32 %v4831, %v4859
        %4861 = vmatmul.bf16.gmra.mxu0 %v1080
        %v4862 = vpop.f32.mrf.mxu0
        %v4863 = vadd.f32 %v4834, %v4862
        %v4864 = vpop.f32.mrf.mxu0
        %v4865 = vadd.f32 %v4836, %v4864
        %4866 = vmatmul.bf16.gmra.mxu0 %v1096
        %v4867 = vpop.f32.mrf.mxu0
        %v4868 = vadd.f32 %v4839, %v4867
        %v4869 = vpop.f32.mrf.mxu0
        %v4870 = vadd.f32 %v4841, %v4869
        %4871 = vmatmul.bf16.gmra.mxu0 %v1112
        %v4872 = vpop.f32.mrf.mxu0
        %v4873 = vadd.f32 %v4844, %v4872
        %v4874 = vpop.f32.mrf.mxu0
        %v4875 = vadd.f32 %v4846, %v4874
        %4876 = vdwg.mxu0
        %4877 = vmatpush.bf16.msra.mxu0 %v2976
        %4878 = vmatpush.bf16.msra.mxu0 %v2972
        %4879 = vmatpush.bf16.msra.mxu0 %v2968
        %4880 = vmatpush.bf16.msra.mxu0 %v2964
        %4881 = vmatpush.bf16.msra.mxu0 %v2960
        %4882 = vmatpush.bf16.msra.mxu0 %v2956
        %4883 = vmatpush.bf16.msra.mxu0 %v2952
        %4884 = vmatpush.bf16.msra.mxu0 %v2948
        %4885 = vmatmul.bf16.gmra.mxu0 %v1065
        %v4886 = vpop.f32.mrf.mxu0
        %v4887 = vadd.f32 %v4858, %v4886
        %v4888 = vpop.f32.mrf.mxu0
        %v4889 = vadd.f32 %v4860, %v4888
        %4890 = vmatmul.bf16.gmra.mxu0 %v1081
        %v4891 = vpop.f32.mrf.mxu0
        %v4892 = vadd.f32 %v4863, %v4891
        %v4893 = vpop.f32.mrf.mxu0
        %v4894 = vadd.f32 %v4865, %v4893
        %4895 = vmatmul.bf16.gmra.mxu0 %v1097
        %v4896 = vpop.f32.mrf.mxu0
        %v4897 = vadd.f32 %v4868, %v4896
        %v4898 = vpop.f32.mrf.mxu0
        %v4899 = vadd.f32 %v4870, %v4898
        %4900 = vmatmul.bf16.gmra.mxu0 %v1113
        %v4901 = vpop.f32.mrf.mxu0
        %v4902 = vadd.f32 %v4873, %v4901
        %v4903 = vpop.f32.mrf.mxu0
        %v4904 = vadd.f32 %v4875, %v4903
        %4905 = vdwg.mxu0
        %4906 = vmatpush.bf16.msra.mxu0 %v3008
        %4907 = vmatpush.bf16.msra.mxu0 %v3004
        %4908 = vmatpush.bf16.msra.mxu0 %v3000
        %4909 = vmatpush.bf16.msra.mxu0 %v2996
        %4910 = vmatpush.bf16.msra.mxu0 %v2992
        %4911 = vmatpush.bf16.msra.mxu0 %v2988
        %4912 = vmatpush.bf16.msra.mxu0 %v2984
        %4913 = vmatpush.bf16.msra.mxu0 %v2980
        %4914 = vmatmul.bf16.gmra.mxu0 %v1066
        %v4915 = vpop.f32.mrf.mxu0
        %v4916 = vadd.f32 %v4887, %v4915
        %v4917 = vpop.f32.mrf.mxu0
        %v4918 = vadd.f32 %v4889, %v4917
        %4919 = vmatmul.bf16.gmra.mxu0 %v1082
        %v4920 = vpop.f32.mrf.mxu0
        %v4921 = vadd.f32 %v4892, %v4920
        %v4922 = vpop.f32.mrf.mxu0
        %v4923 = vadd.f32 %v4894, %v4922
        %4924 = vmatmul.bf16.gmra.mxu0 %v1098
        %v4925 = vpop.f32.mrf.mxu0
        %v4926 = vadd.f32 %v4897, %v4925
        %v4927 = vpop.f32.mrf.mxu0
        %v4928 = vadd.f32 %v4899, %v4927
        %4929 = vmatmul.bf16.gmra.mxu0 %v1114
        %v4930 = vpop.f32.mrf.mxu0
        %v4931 = vadd.f32 %v4902, %v4930
        %v4932 = vpop.f32.mrf.mxu0
        %v4933 = vadd.f32 %v4904, %v4932
        %4934 = vdwg.mxu0
        %4935 = vmatpush.bf16.msra.mxu0 %v3040
        %4936 = vmatpush.bf16.msra.mxu0 %v3036
        %4937 = vmatpush.bf16.msra.mxu0 %v3032
        %4938 = vmatpush.bf16.msra.mxu0 %v3028
        %4939 = vmatpush.bf16.msra.mxu0 %v3024
        %4940 = vmatpush.bf16.msra.mxu0 %v3020
        %4941 = vmatpush.bf16.msra.mxu0 %v3016
        %4942 = vmatpush.bf16.msra.mxu0 %v3012
        %4943 = vmatmul.bf16.gmra.mxu0 %v1067
        %v4944 = vpop.f32.mrf.mxu0
        %v4945 = vadd.f32 %v4916, %v4944
        %v4946 = vpop.f32.mrf.mxu0
        %v4947 = vadd.f32 %v4918, %v4946
        %4948 = vmatmul.bf16.gmra.mxu0 %v1083
        %v4949 = vpop.f32.mrf.mxu0
        %v4950 = vadd.f32 %v4921, %v4949
        %v4951 = vpop.f32.mrf.mxu0
        %v4952 = vadd.f32 %v4923, %v4951
        %4953 = vmatmul.bf16.gmra.mxu0 %v1099
        %v4954 = vpop.f32.mrf.mxu0
        %v4955 = vadd.f32 %v4926, %v4954
        %v4956 = vpop.f32.mrf.mxu0
        %v4957 = vadd.f32 %v4928, %v4956
        %4958 = vmatmul.bf16.gmra.mxu0 %v1115
        %v4959 = vpop.f32.mrf.mxu0
        %v4960 = vadd.f32 %v4931, %v4959
        %v4961 = vpop.f32.mrf.mxu0
        %v4962 = vadd.f32 %v4933, %v4961
        %4963 = vdwg.mxu0
        %4964 = vmatpush.bf16.msra.mxu0 %v3072
        %4965 = vmatpush.bf16.msra.mxu0 %v3068
        %4966 = vmatpush.bf16.msra.mxu0 %v3064
        %4967 = vmatpush.bf16.msra.mxu0 %v3060
        %4968 = vmatpush.bf16.msra.mxu0 %v3056
        %4969 = vmatpush.bf16.msra.mxu0 %v3052
        %4970 = vmatpush.bf16.msra.mxu0 %v3048
        %4971 = vmatpush.bf16.msra.mxu0 %v3044
        %4972 = vmatmul.bf16.gmra.mxu0 %v1068
        %v4973 = vpop.f32.mrf.mxu0
        %v4974 = vadd.f32 %v4945, %v4973
        %v4975 = vpop.f32.mrf.mxu0
        %v4976 = vadd.f32 %v4947, %v4975
        %4977 = vmatmul.bf16.gmra.mxu0 %v1084
        %v4978 = vpop.f32.mrf.mxu0
        %v4979 = vadd.f32 %v4950, %v4978
        %v4980 = vpop.f32.mrf.mxu0
        %v4981 = vadd.f32 %v4952, %v4980
        %4982 = vmatmul.bf16.gmra.mxu0 %v1100
        %v4983 = vpop.f32.mrf.mxu0
        %v4984 = vadd.f32 %v4955, %v4983
        %v4985 = vpop.f32.mrf.mxu0
        %v4986 = vadd.f32 %v4957, %v4985
        %4987 = vmatmul.bf16.gmra.mxu0 %v1116
        %v4988 = vpop.f32.mrf.mxu0
        %v4989 = vadd.f32 %v4960, %v4988
        %v4990 = vpop.f32.mrf.mxu0
        %v4991 = vadd.f32 %v4962, %v4990
        %4992 = vdwg.mxu0
        %4993 = vmatpush.bf16.msra.mxu0 %v3104
        %4994 = vmatpush.bf16.msra.mxu0 %v3100
        %4995 = vmatpush.bf16.msra.mxu0 %v3096
        %4996 = vmatpush.bf16.msra.mxu0 %v3092
        %4997 = vmatpush.bf16.msra.mxu0 %v3088
        %4998 = vmatpush.bf16.msra.mxu0 %v3084
        %4999 = vmatpush.bf16.msra.mxu0 %v3080
        %5000 = vmatpush.bf16.msra.mxu0 %v3076
        %5001 = vmatmul.bf16.gmra.mxu0 %v1069
        %v5002 = vpop.f32.mrf.mxu0
        %v5003 = vadd.f32 %v4974, %v5002
        %v5004 = vpop.f32.mrf.mxu0
        %v5005 = vadd.f32 %v4976, %v5004
        %5006 = vmatmul.bf16.gmra.mxu0 %v1085
        %v5007 = vpop.f32.mrf.mxu0
        %v5008 = vadd.f32 %v4979, %v5007
        %v5009 = vpop.f32.mrf.mxu0
        %v5010 = vadd.f32 %v4981, %v5009
        %5011 = vmatmul.bf16.gmra.mxu0 %v1101
        %v5012 = vpop.f32.mrf.mxu0
        %v5013 = vadd.f32 %v4984, %v5012
        %v5014 = vpop.f32.mrf.mxu0
        %v5015 = vadd.f32 %v4986, %v5014
        %5016 = vmatmul.bf16.gmra.mxu0 %v1117
        %v5017 = vpop.f32.mrf.mxu0
        %v5018 = vadd.f32 %v4989, %v5017
        %v5019 = vpop.f32.mrf.mxu0
        %v5020 = vadd.f32 %v4991, %v5019
        %5021 = vdwg.mxu0
        %5022 = vmatpush.bf16.msra.mxu0 %v3136
        %5023 = vmatpush.bf16.msra.mxu0 %v3132
        %5024 = vmatpush.bf16.msra.mxu0 %v3128
        %5025 = vmatpush.bf16.msra.mxu0 %v3124
        %5026 = vmatpush.bf16.msra.mxu0 %v3120
        %5027 = vmatpush.bf16.msra.mxu0 %v3116
        %5028 = vmatpush.bf16.msra.mxu0 %v3112
        %5029 = vmatpush.bf16.msra.mxu0 %v3108
        %5030 = vmatmul.bf16.gmra.mxu0 %v1070
        %v5031 = vpop.f32.mrf.mxu0
        %v5032 = vadd.f32 %v5003, %v5031
        %v5033 = vpop.f32.mrf.mxu0
        %v5034 = vadd.f32 %v5005, %v5033
        %5035 = vmatmul.bf16.gmra.mxu0 %v1086
        %v5036 = vpop.f32.mrf.mxu0
        %v5037 = vadd.f32 %v5008, %v5036
        %v5038 = vpop.f32.mrf.mxu0
        %v5039 = vadd.f32 %v5010, %v5038
        %5040 = vmatmul.bf16.gmra.mxu0 %v1102
        %v5041 = vpop.f32.mrf.mxu0
        %v5042 = vadd.f32 %v5013, %v5041
        %v5043 = vpop.f32.mrf.mxu0
        %v5044 = vadd.f32 %v5015, %v5043
        %5045 = vmatmul.bf16.gmra.mxu0 %v1118
        %v5046 = vpop.f32.mrf.mxu0
        %v5047 = vadd.f32 %v5018, %v5046
        %v5048 = vpop.f32.mrf.mxu0
        %v5049 = vadd.f32 %v5020, %v5048
        %5050 = vdwg.mxu0
        %5051 = vmatpush.bf16.msra.mxu0 %v3168
        %5052 = vmatpush.bf16.msra.mxu0 %v3164
        %5053 = vmatpush.bf16.msra.mxu0 %v3160
        %5054 = vmatpush.bf16.msra.mxu0 %v3156
        %5055 = vmatpush.bf16.msra.mxu0 %v3152
        %5056 = vmatpush.bf16.msra.mxu0 %v3148
        %5057 = vmatpush.bf16.msra.mxu0 %v3144
        %5058 = vmatpush.bf16.msra.mxu0 %v3140
        %5059 = vmatmul.bf16.gmra.mxu0 %v1071
        %v5060 = vpop.f32.mrf.mxu0
        %v5061 = vadd.f32 %v5032, %v5060
        %v5062 = vpop.f32.mrf.mxu0
        %v5063 = vadd.f32 %v5034, %v5062
        %5064 = vmatmul.bf16.gmra.mxu0 %v1087
        %v5065 = vpop.f32.mrf.mxu0
        %v5066 = vadd.f32 %v5037, %v5065
        %v5067 = vpop.f32.mrf.mxu0
        %v5068 = vadd.f32 %v5039, %v5067
        %5069 = vmatmul.bf16.gmra.mxu0 %v1103
        %v5070 = vpop.f32.mrf.mxu0
        %v5071 = vadd.f32 %v5042, %v5070
        %v5072 = vpop.f32.mrf.mxu0
        %v5073 = vadd.f32 %v5044, %v5072
        %5074 = vmatmul.bf16.gmra.mxu0 %v1119
        %v5075 = vpop.f32.mrf.mxu0
        %v5076 = vadd.f32 %v5047, %v5075
        %v5077 = vpop.f32.mrf.mxu0
        %v5078 = vadd.f32 %v5049, %v5077
        %5079 = vdwg.mxu0
        %5080 = vmatpush.bf16.msra.mxu0 %v3200
        %5081 = vmatpush.bf16.msra.mxu0 %v3196
        %5082 = vmatpush.bf16.msra.mxu0 %v3192
        %5083 = vmatpush.bf16.msra.mxu0 %v3188
        %5084 = vmatpush.bf16.msra.mxu0 %v3184
        %5085 = vmatpush.bf16.msra.mxu0 %v3180
        %5086 = vmatpush.bf16.msra.mxu0 %v3176
        %5087 = vmatpush.bf16.msra.mxu0 %v3172
        %5088 = vmatmul.bf16.gmra.mxu0 %v1072
        %v5089 = vpop.f32.mrf.mxu0
        %v5090 = vadd.f32 %v5061, %v5089
        %v5091 = vpop.f32.mrf.mxu0
        %v5092 = vadd.f32 %v5063, %v5091
        %5093 = vmatmul.bf16.gmra.mxu0 %v1088
        %v5094 = vpop.f32.mrf.mxu0
        %v5095 = vadd.f32 %v5066, %v5094
        %v5096 = vpop.f32.mrf.mxu0
        %v5097 = vadd.f32 %v5068, %v5096
        %5098 = vmatmul.bf16.gmra.mxu0 %v1104
        %v5099 = vpop.f32.mrf.mxu0
        %v5100 = vadd.f32 %v5071, %v5099
        %v5101 = vpop.f32.mrf.mxu0
        %v5102 = vadd.f32 %v5073, %v5101
        %5103 = vmatmul.bf16.gmra.mxu0 %v1120
        %v5104 = vpop.f32.mrf.mxu0
        %v5105 = vadd.f32 %v5076, %v5104
        %v5106 = vpop.f32.mrf.mxu0
        %v5107 = vadd.f32 %v5078, %v5106
        %5108 = vdwg.mxu0
        %5109 = vmatpush.bf16.msra.mxu0 %v3232
        %5110 = vmatpush.bf16.msra.mxu0 %v3228
        %5111 = vmatpush.bf16.msra.mxu0 %v3224
        %5112 = vmatpush.bf16.msra.mxu0 %v3220
        %5113 = vmatpush.bf16.msra.mxu0 %v3216
        %5114 = vmatpush.bf16.msra.mxu0 %v3212
        %5115 = vmatpush.bf16.msra.mxu0 %v3208
        %5116 = vmatpush.bf16.msra.mxu0 %v3204
        %5117 = vmatmul.bf16.gmra.mxu0 %v1073
        %v5118 = vpop.f32.mrf.mxu0
        %v5119 = vadd.f32 %v5090, %v5118
        %v5120 = vpop.f32.mrf.mxu0
        %v5121 = vadd.f32 %v5092, %v5120
        %5122 = vmatmul.bf16.gmra.mxu0 %v1089
        %v5123 = vpop.f32.mrf.mxu0
        %v5124 = vadd.f32 %v5095, %v5123
        %v5125 = vpop.f32.mrf.mxu0
        %v5126 = vadd.f32 %v5097, %v5125
        %5127 = vmatmul.bf16.gmra.mxu0 %v1105
        %v5128 = vpop.f32.mrf.mxu0
        %v5129 = vadd.f32 %v5100, %v5128
        %v5130 = vpop.f32.mrf.mxu0
        %v5131 = vadd.f32 %v5102, %v5130
        %5132 = vmatmul.bf16.gmra.mxu0 %v1121
        %v5133 = vpop.f32.mrf.mxu0
        %v5134 = vadd.f32 %v5105, %v5133
        %v5135 = vpop.f32.mrf.mxu0
        %v5136 = vadd.f32 %v5107, %v5135
        %5137 = vdwg.mxu0
        %5138 = vmatpush.bf16.msra.mxu0 %v2753
        %5139 = vmatpush.bf16.msra.mxu0 %v2749
        %5140 = vmatpush.bf16.msra.mxu0 %v2745
        %5141 = vmatpush.bf16.msra.mxu0 %v2741
        %5142 = vmatpush.bf16.msra.mxu0 %v2737
        %5143 = vmatpush.bf16.msra.mxu0 %v2733
        %5144 = vmatpush.bf16.msra.mxu0 %v2729
        %5145 = vmatpush.bf16.msra.mxu0 %v2725
        %5146 = vmatmul.bf16.gmra.mxu0 %v1058
        %v5147 = vpop.f32.mrf.mxu0
        %v5148 = vadd.f32 0.0, %v5147
        %v5149 = vpop.f32.mrf.mxu0
        %v5150 = vadd.f32 0.0, %v5149
        %5151 = vmatmul.bf16.gmra.mxu0 %v1074
        %v5152 = vpop.f32.mrf.mxu0
        %v5153 = vadd.f32 0.0, %v5152
        %v5154 = vpop.f32.mrf.mxu0
        %v5155 = vadd.f32 0.0, %v5154
        %5156 = vmatmul.bf16.gmra.mxu0 %v1090
        %v5157 = vpop.f32.mrf.mxu0
        %v5158 = vadd.f32 0.0, %v5157
        %v5159 = vpop.f32.mrf.mxu0
        %v5160 = vadd.f32 0.0, %v5159
        %5161 = vmatmul.bf16.gmra.mxu0 %v1106
        %v5162 = vpop.f32.mrf.mxu0
        %v5163 = vadd.f32 0.0, %v5162
        %v5164 = vpop.f32.mrf.mxu0
        %v5165 = vadd.f32 0.0, %v5164
        %5166 = vdwg.mxu0
        %5167 = vmatpush.bf16.msra.mxu0 %v2785
        %5168 = vmatpush.bf16.msra.mxu0 %v2781
        %5169 = vmatpush.bf16.msra.mxu0 %v2777
        %5170 = vmatpush.bf16.msra.mxu0 %v2773
        %5171 = vmatpush.bf16.msra.mxu0 %v2769
        %5172 = vmatpush.bf16.msra.mxu0 %v2765
        %5173 = vmatpush.bf16.msra.mxu0 %v2761
        %5174 = vmatpush.bf16.msra.mxu0 %v2757
        %5175 = vmatmul.bf16.gmra.mxu0 %v1059
        %v5176 = vpop.f32.mrf.mxu0
        %v5177 = vadd.f32 %v5148, %v5176
        %v5178 = vpop.f32.mrf.mxu0
        %v5179 = vadd.f32 %v5150, %v5178
        %5180 = vmatmul.bf16.gmra.mxu0 %v1075
        %v5181 = vpop.f32.mrf.mxu0
        %v5182 = vadd.f32 %v5153, %v5181
        %v5183 = vpop.f32.mrf.mxu0
        %v5184 = vadd.f32 %v5155, %v5183
        %5185 = vmatmul.bf16.gmra.mxu0 %v1091
        %v5186 = vpop.f32.mrf.mxu0
        %v5187 = vadd.f32 %v5158, %v5186
        %v5188 = vpop.f32.mrf.mxu0
        %v5189 = vadd.f32 %v5160, %v5188
        %5190 = vmatmul.bf16.gmra.mxu0 %v1107
        %v5191 = vpop.f32.mrf.mxu0
        %v5192 = vadd.f32 %v5163, %v5191
        %v5193 = vpop.f32.mrf.mxu0
        %v5194 = vadd.f32 %v5165, %v5193
        %5195 = vdwg.mxu0
        %5196 = vmatpush.bf16.msra.mxu0 %v2817
        %5197 = vmatpush.bf16.msra.mxu0 %v2813
        %5198 = vmatpush.bf16.msra.mxu0 %v2809
        %5199 = vmatpush.bf16.msra.mxu0 %v2805
        %5200 = vmatpush.bf16.msra.mxu0 %v2801
        %5201 = vmatpush.bf16.msra.mxu0 %v2797
        %5202 = vmatpush.bf16.msra.mxu0 %v2793
        %5203 = vmatpush.bf16.msra.mxu0 %v2789
        %5204 = vmatmul.bf16.gmra.mxu0 %v1060
        %v5205 = vpop.f32.mrf.mxu0
        %v5206 = vadd.f32 %v5177, %v5205
        %v5207 = vpop.f32.mrf.mxu0
        %v5208 = vadd.f32 %v5179, %v5207
        %5209 = vmatmul.bf16.gmra.mxu0 %v1076
        %v5210 = vpop.f32.mrf.mxu0
        %v5211 = vadd.f32 %v5182, %v5210
        %v5212 = vpop.f32.mrf.mxu0
        %v5213 = vadd.f32 %v5184, %v5212
        %5214 = vmatmul.bf16.gmra.mxu0 %v1092
        %v5215 = vpop.f32.mrf.mxu0
        %v5216 = vadd.f32 %v5187, %v5215
        %v5217 = vpop.f32.mrf.mxu0
        %v5218 = vadd.f32 %v5189, %v5217
        %5219 = vmatmul.bf16.gmra.mxu0 %v1108
        %v5220 = vpop.f32.mrf.mxu0
        %v5221 = vadd.f32 %v5192, %v5220
        %v5222 = vpop.f32.mrf.mxu0
        %v5223 = vadd.f32 %v5194, %v5222
        %5224 = vdwg.mxu0
        %5225 = vmatpush.bf16.msra.mxu0 %v2849
        %5226 = vmatpush.bf16.msra.mxu0 %v2845
        %5227 = vmatpush.bf16.msra.mxu0 %v2841
        %5228 = vmatpush.bf16.msra.mxu0 %v2837
        %5229 = vmatpush.bf16.msra.mxu0 %v2833
        %5230 = vmatpush.bf16.msra.mxu0 %v2829
        %5231 = vmatpush.bf16.msra.mxu0 %v2825
        %5232 = vmatpush.bf16.msra.mxu0 %v2821
        %5233 = vmatmul.bf16.gmra.mxu0 %v1061
        %v5234 = vpop.f32.mrf.mxu0
        %v5235 = vadd.f32 %v5206, %v5234
        %v5236 = vpop.f32.mrf.mxu0
        %v5237 = vadd.f32 %v5208, %v5236
        %5238 = vmatmul.bf16.gmra.mxu0 %v1077
        %v5239 = vpop.f32.mrf.mxu0
        %v5240 = vadd.f32 %v5211, %v5239
        %v5241 = vpop.f32.mrf.mxu0
        %v5242 = vadd.f32 %v5213, %v5241
        %5243 = vmatmul.bf16.gmra.mxu0 %v1093
        %v5244 = vpop.f32.mrf.mxu0
        %v5245 = vadd.f32 %v5216, %v5244
        %v5246 = vpop.f32.mrf.mxu0
        %v5247 = vadd.f32 %v5218, %v5246
        %5248 = vmatmul.bf16.gmra.mxu0 %v1109
        %v5249 = vpop.f32.mrf.mxu0
        %v5250 = vadd.f32 %v5221, %v5249
        %v5251 = vpop.f32.mrf.mxu0
        %v5252 = vadd.f32 %v5223, %v5251
        %5253 = vdwg.mxu0
        %5254 = vmatpush.bf16.msra.mxu0 %v2881
        %5255 = vmatpush.bf16.msra.mxu0 %v2877
        %5256 = vmatpush.bf16.msra.mxu0 %v2873
        %5257 = vmatpush.bf16.msra.mxu0 %v2869
        %5258 = vmatpush.bf16.msra.mxu0 %v2865
        %5259 = vmatpush.bf16.msra.mxu0 %v2861
        %5260 = vmatpush.bf16.msra.mxu0 %v2857
        %5261 = vmatpush.bf16.msra.mxu0 %v2853
        %5262 = vmatmul.bf16.gmra.mxu0 %v1062
        %v5263 = vpop.f32.mrf.mxu0
        %v5264 = vadd.f32 %v5235, %v5263
        %v5265 = vpop.f32.mrf.mxu0
        %v5266 = vadd.f32 %v5237, %v5265
        %5267 = vmatmul.bf16.gmra.mxu0 %v1078
        %v5268 = vpop.f32.mrf.mxu0
        %v5269 = vadd.f32 %v5240, %v5268
        %v5270 = vpop.f32.mrf.mxu0
        %v5271 = vadd.f32 %v5242, %v5270
        %5272 = vmatmul.bf16.gmra.mxu0 %v1094
        %v5273 = vpop.f32.mrf.mxu0
        %v5274 = vadd.f32 %v5245, %v5273
        %v5275 = vpop.f32.mrf.mxu0
        %v5276 = vadd.f32 %v5247, %v5275
        %5277 = vmatmul.bf16.gmra.mxu0 %v1110
        %v5278 = vpop.f32.mrf.mxu0
        %v5279 = vadd.f32 %v5250, %v5278
        %v5280 = vpop.f32.mrf.mxu0
        %v5281 = vadd.f32 %v5252, %v5280
        %5282 = vdwg.mxu0
        %5283 = vmatpush.bf16.msra.mxu0 %v2913
        %5284 = vmatpush.bf16.msra.mxu0 %v2909
        %5285 = vmatpush.bf16.msra.mxu0 %v2905
        %5286 = vmatpush.bf16.msra.mxu0 %v2901
        %5287 = vmatpush.bf16.msra.mxu0 %v2897
        %5288 = vmatpush.bf16.msra.mxu0 %v2893
        %5289 = vmatpush.bf16.msra.mxu0 %v2889
        %5290 = vmatpush.bf16.msra.mxu0 %v2885
        %5291 = vmatmul.bf16.gmra.mxu0 %v1063
        %v5292 = vpop.f32.mrf.mxu0
        %v5293 = vadd.f32 %v5264, %v5292
        %v5294 = vpop.f32.mrf.mxu0
        %v5295 = vadd.f32 %v5266, %v5294
        %5296 = vmatmul.bf16.gmra.mxu0 %v1079
        %v5297 = vpop.f32.mrf.mxu0
        %v5298 = vadd.f32 %v5269, %v5297
        %v5299 = vpop.f32.mrf.mxu0
        %v5300 = vadd.f32 %v5271, %v5299
        %5301 = vmatmul.bf16.gmra.mxu0 %v1095
        %v5302 = vpop.f32.mrf.mxu0
        %v5303 = vadd.f32 %v5274, %v5302
        %v5304 = vpop.f32.mrf.mxu0
        %v5305 = vadd.f32 %v5276, %v5304
        %5306 = vmatmul.bf16.gmra.mxu0 %v1111
        %v5307 = vpop.f32.mrf.mxu0
        %v5308 = vadd.f32 %v5279, %v5307
        %v5309 = vpop.f32.mrf.mxu0
        %v5310 = vadd.f32 %v5281, %v5309
        %5311 = vdwg.mxu0
        %5312 = vmatpush.bf16.msra.mxu0 %v2945
        %5313 = vmatpush.bf16.msra.mxu0 %v2941
        %5314 = vmatpush.bf16.msra.mxu0 %v2937
        %5315 = vmatpush.bf16.msra.mxu0 %v2933
        %5316 = vmatpush.bf16.msra.mxu0 %v2929
        %5317 = vmatpush.bf16.msra.mxu0 %v2925
        %5318 = vmatpush.bf16.msra.mxu0 %v2921
        %5319 = vmatpush.bf16.msra.mxu0 %v2917
        %5320 = vmatmul.bf16.gmra.mxu0 %v1064
        %v5321 = vpop.f32.mrf.mxu0
        %v5322 = vadd.f32 %v5293, %v5321
        %v5323 = vpop.f32.mrf.mxu0
        %v5324 = vadd.f32 %v5295, %v5323
        %5325 = vmatmul.bf16.gmra.mxu0 %v1080
        %v5326 = vpop.f32.mrf.mxu0
        %v5327 = vadd.f32 %v5298, %v5326
        %v5328 = vpop.f32.mrf.mxu0
        %v5329 = vadd.f32 %v5300, %v5328
        %5330 = vmatmul.bf16.gmra.mxu0 %v1096
        %v5331 = vpop.f32.mrf.mxu0
        %v5332 = vadd.f32 %v5303, %v5331
        %v5333 = vpop.f32.mrf.mxu0
        %v5334 = vadd.f32 %v5305, %v5333
        %5335 = vmatmul.bf16.gmra.mxu0 %v1112
        %v5336 = vpop.f32.mrf.mxu0
        %v5337 = vadd.f32 %v5308, %v5336
        %v5338 = vpop.f32.mrf.mxu0
        %v5339 = vadd.f32 %v5310, %v5338
        %5340 = vdwg.mxu0
        %5341 = vmatpush.bf16.msra.mxu0 %v2977
        %5342 = vmatpush.bf16.msra.mxu0 %v2973
        %5343 = vmatpush.bf16.msra.mxu0 %v2969
        %5344 = vmatpush.bf16.msra.mxu0 %v2965
        %5345 = vmatpush.bf16.msra.mxu0 %v2961
        %5346 = vmatpush.bf16.msra.mxu0 %v2957
        %5347 = vmatpush.bf16.msra.mxu0 %v2953
        %5348 = vmatpush.bf16.msra.mxu0 %v2949
        %5349 = vmatmul.bf16.gmra.mxu0 %v1065
        %v5350 = vpop.f32.mrf.mxu0
        %v5351 = vadd.f32 %v5322, %v5350
        %v5352 = vpop.f32.mrf.mxu0
        %v5353 = vadd.f32 %v5324, %v5352
        %5354 = vmatmul.bf16.gmra.mxu0 %v1081
        %v5355 = vpop.f32.mrf.mxu0
        %v5356 = vadd.f32 %v5327, %v5355
        %v5357 = vpop.f32.mrf.mxu0
        %v5358 = vadd.f32 %v5329, %v5357
        %5359 = vmatmul.bf16.gmra.mxu0 %v1097
        %v5360 = vpop.f32.mrf.mxu0
        %v5361 = vadd.f32 %v5332, %v5360
        %v5362 = vpop.f32.mrf.mxu0
        %v5363 = vadd.f32 %v5334, %v5362
        %5364 = vmatmul.bf16.gmra.mxu0 %v1113
        %v5365 = vpop.f32.mrf.mxu0
        %v5366 = vadd.f32 %v5337, %v5365
        %v5367 = vpop.f32.mrf.mxu0
        %v5368 = vadd.f32 %v5339, %v5367
        %5369 = vdwg.mxu0
        %5370 = vmatpush.bf16.msra.mxu0 %v3009
        %5371 = vmatpush.bf16.msra.mxu0 %v3005
        %5372 = vmatpush.bf16.msra.mxu0 %v3001
        %5373 = vmatpush.bf16.msra.mxu0 %v2997
        %5374 = vmatpush.bf16.msra.mxu0 %v2993
        %5375 = vmatpush.bf16.msra.mxu0 %v2989
        %5376 = vmatpush.bf16.msra.mxu0 %v2985
        %5377 = vmatpush.bf16.msra.mxu0 %v2981
        %5378 = vmatmul.bf16.gmra.mxu0 %v1066
        %v5379 = vpop.f32.mrf.mxu0
        %v5380 = vadd.f32 %v5351, %v5379
        %v5381 = vpop.f32.mrf.mxu0
        %v5382 = vadd.f32 %v5353, %v5381
        %5383 = vmatmul.bf16.gmra.mxu0 %v1082
        %v5384 = vpop.f32.mrf.mxu0
        %v5385 = vadd.f32 %v5356, %v5384
        %v5386 = vpop.f32.mrf.mxu0
        %v5387 = vadd.f32 %v5358, %v5386
        %5388 = vmatmul.bf16.gmra.mxu0 %v1098
        %v5389 = vpop.f32.mrf.mxu0
        %v5390 = vadd.f32 %v5361, %v5389
        %v5391 = vpop.f32.mrf.mxu0
        %v5392 = vadd.f32 %v5363, %v5391
        %5393 = vmatmul.bf16.gmra.mxu0 %v1114
        %v5394 = vpop.f32.mrf.mxu0
        %v5395 = vadd.f32 %v5366, %v5394
        %v5396 = vpop.f32.mrf.mxu0
        %v5397 = vadd.f32 %v5368, %v5396
        %5398 = vdwg.mxu0
        %5399 = vmatpush.bf16.msra.mxu0 %v3041
        %5400 = vmatpush.bf16.msra.mxu0 %v3037
        %5401 = vmatpush.bf16.msra.mxu0 %v3033
        %5402 = vmatpush.bf16.msra.mxu0 %v3029
        %5403 = vmatpush.bf16.msra.mxu0 %v3025
        %5404 = vmatpush.bf16.msra.mxu0 %v3021
        %5405 = vmatpush.bf16.msra.mxu0 %v3017
        %5406 = vmatpush.bf16.msra.mxu0 %v3013
        %5407 = vmatmul.bf16.gmra.mxu0 %v1067
        %v5408 = vpop.f32.mrf.mxu0
        %v5409 = vadd.f32 %v5380, %v5408
        %v5410 = vpop.f32.mrf.mxu0
        %v5411 = vadd.f32 %v5382, %v5410
        %5412 = vmatmul.bf16.gmra.mxu0 %v1083
        %v5413 = vpop.f32.mrf.mxu0
        %v5414 = vadd.f32 %v5385, %v5413
        %v5415 = vpop.f32.mrf.mxu0
        %v5416 = vadd.f32 %v5387, %v5415
        %5417 = vmatmul.bf16.gmra.mxu0 %v1099
        %v5418 = vpop.f32.mrf.mxu0
        %v5419 = vadd.f32 %v5390, %v5418
        %v5420 = vpop.f32.mrf.mxu0
        %v5421 = vadd.f32 %v5392, %v5420
        %5422 = vmatmul.bf16.gmra.mxu0 %v1115
        %v5423 = vpop.f32.mrf.mxu0
        %v5424 = vadd.f32 %v5395, %v5423
        %v5425 = vpop.f32.mrf.mxu0
        %v5426 = vadd.f32 %v5397, %v5425
        %5427 = vdwg.mxu0
        %5428 = vmatpush.bf16.msra.mxu0 %v3073
        %5429 = vmatpush.bf16.msra.mxu0 %v3069
        %5430 = vmatpush.bf16.msra.mxu0 %v3065
        %5431 = vmatpush.bf16.msra.mxu0 %v3061
        %5432 = vmatpush.bf16.msra.mxu0 %v3057
        %5433 = vmatpush.bf16.msra.mxu0 %v3053
        %5434 = vmatpush.bf16.msra.mxu0 %v3049
        %5435 = vmatpush.bf16.msra.mxu0 %v3045
        %5436 = vmatmul.bf16.gmra.mxu0 %v1068
        %v5437 = vpop.f32.mrf.mxu0
        %v5438 = vadd.f32 %v5409, %v5437
        %v5439 = vpop.f32.mrf.mxu0
        %v5440 = vadd.f32 %v5411, %v5439
        %5441 = vmatmul.bf16.gmra.mxu0 %v1084
        %v5442 = vpop.f32.mrf.mxu0
        %v5443 = vadd.f32 %v5414, %v5442
        %v5444 = vpop.f32.mrf.mxu0
        %v5445 = vadd.f32 %v5416, %v5444
        %5446 = vmatmul.bf16.gmra.mxu0 %v1100
        %v5447 = vpop.f32.mrf.mxu0
        %v5448 = vadd.f32 %v5419, %v5447
        %v5449 = vpop.f32.mrf.mxu0
        %v5450 = vadd.f32 %v5421, %v5449
        %5451 = vmatmul.bf16.gmra.mxu0 %v1116
        %v5452 = vpop.f32.mrf.mxu0
        %v5453 = vadd.f32 %v5424, %v5452
        %v5454 = vpop.f32.mrf.mxu0
        %v5455 = vadd.f32 %v5426, %v5454
        %5456 = vdwg.mxu0
        %5457 = vmatpush.bf16.msra.mxu0 %v3105
        %5458 = vmatpush.bf16.msra.mxu0 %v3101
        %5459 = vmatpush.bf16.msra.mxu0 %v3097
        %5460 = vmatpush.bf16.msra.mxu0 %v3093
        %5461 = vmatpush.bf16.msra.mxu0 %v3089
        %5462 = vmatpush.bf16.msra.mxu0 %v3085
        %5463 = vmatpush.bf16.msra.mxu0 %v3081
        %5464 = vmatpush.bf16.msra.mxu0 %v3077
        %5465 = vmatmul.bf16.gmra.mxu0 %v1069
        %v5466 = vpop.f32.mrf.mxu0
        %v5467 = vadd.f32 %v5438, %v5466
        %v5468 = vpop.f32.mrf.mxu0
        %v5469 = vadd.f32 %v5440, %v5468
        %5470 = vmatmul.bf16.gmra.mxu0 %v1085
        %v5471 = vpop.f32.mrf.mxu0
        %v5472 = vadd.f32 %v5443, %v5471
        %v5473 = vpop.f32.mrf.mxu0
        %v5474 = vadd.f32 %v5445, %v5473
        %5475 = vmatmul.bf16.gmra.mxu0 %v1101
        %v5476 = vpop.f32.mrf.mxu0
        %v5477 = vadd.f32 %v5448, %v5476
        %v5478 = vpop.f32.mrf.mxu0
        %v5479 = vadd.f32 %v5450, %v5478
        %5480 = vmatmul.bf16.gmra.mxu0 %v1117
        %v5481 = vpop.f32.mrf.mxu0
        %v5482 = vadd.f32 %v5453, %v5481
        %v5483 = vpop.f32.mrf.mxu0
        %v5484 = vadd.f32 %v5455, %v5483
        %5485 = vdwg.mxu0
        %5486 = vmatpush.bf16.msra.mxu0 %v3137
        %5487 = vmatpush.bf16.msra.mxu0 %v3133
        %5488 = vmatpush.bf16.msra.mxu0 %v3129
        %5489 = vmatpush.bf16.msra.mxu0 %v3125
        %5490 = vmatpush.bf16.msra.mxu0 %v3121
        %5491 = vmatpush.bf16.msra.mxu0 %v3117
        %5492 = vmatpush.bf16.msra.mxu0 %v3113
        %5493 = vmatpush.bf16.msra.mxu0 %v3109
        %5494 = vmatmul.bf16.gmra.mxu0 %v1070
        %v5495 = vpop.f32.mrf.mxu0
        %v5496 = vadd.f32 %v5467, %v5495
        %v5497 = vpop.f32.mrf.mxu0
        %v5498 = vadd.f32 %v5469, %v5497
        %5499 = vmatmul.bf16.gmra.mxu0 %v1086
        %v5500 = vpop.f32.mrf.mxu0
        %v5501 = vadd.f32 %v5472, %v5500
        %v5502 = vpop.f32.mrf.mxu0
        %v5503 = vadd.f32 %v5474, %v5502
        %5504 = vmatmul.bf16.gmra.mxu0 %v1102
        %v5505 = vpop.f32.mrf.mxu0
        %v5506 = vadd.f32 %v5477, %v5505
        %v5507 = vpop.f32.mrf.mxu0
        %v5508 = vadd.f32 %v5479, %v5507
        %5509 = vmatmul.bf16.gmra.mxu0 %v1118
        %v5510 = vpop.f32.mrf.mxu0
        %v5511 = vadd.f32 %v5482, %v5510
        %v5512 = vpop.f32.mrf.mxu0
        %v5513 = vadd.f32 %v5484, %v5512
        %5514 = vdwg.mxu0
        %5515 = vmatpush.bf16.msra.mxu0 %v3169
        %5516 = vmatpush.bf16.msra.mxu0 %v3165
        %5517 = vmatpush.bf16.msra.mxu0 %v3161
        %5518 = vmatpush.bf16.msra.mxu0 %v3157
        %5519 = vmatpush.bf16.msra.mxu0 %v3153
        %5520 = vmatpush.bf16.msra.mxu0 %v3149
        %5521 = vmatpush.bf16.msra.mxu0 %v3145
        %5522 = vmatpush.bf16.msra.mxu0 %v3141
        %5523 = vmatmul.bf16.gmra.mxu0 %v1071
        %v5524 = vpop.f32.mrf.mxu0
        %v5525 = vadd.f32 %v5496, %v5524
        %v5526 = vpop.f32.mrf.mxu0
        %v5527 = vadd.f32 %v5498, %v5526
        %5528 = vmatmul.bf16.gmra.mxu0 %v1087
        %v5529 = vpop.f32.mrf.mxu0
        %v5530 = vadd.f32 %v5501, %v5529
        %v5531 = vpop.f32.mrf.mxu0
        %v5532 = vadd.f32 %v5503, %v5531
        %5533 = vmatmul.bf16.gmra.mxu0 %v1103
        %v5534 = vpop.f32.mrf.mxu0
        %v5535 = vadd.f32 %v5506, %v5534
        %v5536 = vpop.f32.mrf.mxu0
        %v5537 = vadd.f32 %v5508, %v5536
        %5538 = vmatmul.bf16.gmra.mxu0 %v1119
        %v5539 = vpop.f32.mrf.mxu0
        %v5540 = vadd.f32 %v5511, %v5539
        %v5541 = vpop.f32.mrf.mxu0
        %v5542 = vadd.f32 %v5513, %v5541
        %5543 = vdwg.mxu0
        %5544 = vmatpush.bf16.msra.mxu0 %v3201
        %5545 = vmatpush.bf16.msra.mxu0 %v3197
        %5546 = vmatpush.bf16.msra.mxu0 %v3193
        %5547 = vmatpush.bf16.msra.mxu0 %v3189
        %5548 = vmatpush.bf16.msra.mxu0 %v3185
        %5549 = vmatpush.bf16.msra.mxu0 %v3181
        %5550 = vmatpush.bf16.msra.mxu0 %v3177
        %5551 = vmatpush.bf16.msra.mxu0 %v3173
        %5552 = vmatmul.bf16.gmra.mxu0 %v1072
        %v5553 = vpop.f32.mrf.mxu0
        %v5554 = vadd.f32 %v5525, %v5553
        %v5555 = vpop.f32.mrf.mxu0
        %v5556 = vadd.f32 %v5527, %v5555
        %5557 = vmatmul.bf16.gmra.mxu0 %v1088
        %v5558 = vpop.f32.mrf.mxu0
        %v5559 = vadd.f32 %v5530, %v5558
        %v5560 = vpop.f32.mrf.mxu0
        %v5561 = vadd.f32 %v5532, %v5560
        %5562 = vmatmul.bf16.gmra.mxu0 %v1104
        %v5563 = vpop.f32.mrf.mxu0
        %v5564 = vadd.f32 %v5535, %v5563
        %v5565 = vpop.f32.mrf.mxu0
        %v5566 = vadd.f32 %v5537, %v5565
        %5567 = vmatmul.bf16.gmra.mxu0 %v1120
        %v5568 = vpop.f32.mrf.mxu0
        %v5569 = vadd.f32 %v5540, %v5568
        %v5570 = vpop.f32.mrf.mxu0
        %v5571 = vadd.f32 %v5542, %v5570
        %5572 = vdwg.mxu0
        %5573 = vmatpush.bf16.msra.mxu0 %v3233
        %5574 = vmatpush.bf16.msra.mxu0 %v3229
        %5575 = vmatpush.bf16.msra.mxu0 %v3225
        %5576 = vmatpush.bf16.msra.mxu0 %v3221
        %5577 = vmatpush.bf16.msra.mxu0 %v3217
        %5578 = vmatpush.bf16.msra.mxu0 %v3213
        %5579 = vmatpush.bf16.msra.mxu0 %v3209
        %5580 = vmatpush.bf16.msra.mxu0 %v3205
        %5581 = vmatmul.bf16.gmra.mxu0 %v1073
        %v5582 = vpop.f32.mrf.mxu0
        %v5583 = vadd.f32 %v5554, %v5582
        %v5584 = vpop.f32.mrf.mxu0
        %v5585 = vadd.f32 %v5556, %v5584
        %5586 = vmatmul.bf16.gmra.mxu0 %v1089
        %v5587 = vpop.f32.mrf.mxu0
        %v5588 = vadd.f32 %v5559, %v5587
        %v5589 = vpop.f32.mrf.mxu0
        %v5590 = vadd.f32 %v5561, %v5589
        %5591 = vmatmul.bf16.gmra.mxu0 %v1105
        %v5592 = vpop.f32.mrf.mxu0
        %v5593 = vadd.f32 %v5564, %v5592
        %v5594 = vpop.f32.mrf.mxu0
        %v5595 = vadd.f32 %v5566, %v5594
        %5596 = vmatmul.bf16.gmra.mxu0 %v1121
        %v5597 = vpop.f32.mrf.mxu0
        %v5598 = vadd.f32 %v5569, %v5597
        %v5599 = vpop.f32.mrf.mxu0
        %v5600 = vadd.f32 %v5571, %v5599
        %5601 = vdwg.mxu0
        %v5602 = vadd.f32 %v4191, %v4201
        %v5603 = vadd.f32 %v4655, %v4665
        %v5604 = vadd.f32 %v5119, %v5129
        %v5605 = vadd.f32 %v5583, %v5593
        %v5606 = vadd.f32 %v4193, %v4203
        %v5607 = vadd.f32 %v4657, %v4667
        %v5608 = vadd.f32 %v5121, %v5131
        %v5609 = vadd.f32 %v5585, %v5595
        %v5610 = vadd.f32 %v4196, %v4206
        %v5611 = vadd.f32 %v4660, %v4670
        %v5612 = vadd.f32 %v5124, %v5134
        %v5613 = vadd.f32 %v5588, %v5598
        %v5614 = vadd.f32 %v4198, %v4208
        %v5615 = vadd.f32 %v4662, %v4672
        %v5616 = vadd.f32 %v5126, %v5136
        %v5617 = vadd.f32 %v5590, %v5600
        %v5618 = vmul.f32 %v4191, %v4191
        %v5619 = vmul.f32 %v4655, %v4655
        %v5620 = vmul.f32 %v4193, %v4193
        %v5621 = vmul.f32 %v4657, %v4657
        %v5622 = vmul.f32 %v4196, %v4196
        %v5623 = vmul.f32 %v4660, %v4660
        %v5624 = vmul.f32 %v4198, %v4198
        %v5625 = vmul.f32 %v4662, %v4662
        %v5626 = vmul.f32 %v5119, %v5119
        %v5627 = vmul.f32 %v5583, %v5583
        %v5628 = vmul.f32 %v5121, %v5121
        %v5629 = vmul.f32 %v5585, %v5585
        %v5630 = vmul.f32 %v5124, %v5124
        %v5631 = vmul.f32 %v5588, %v5588
        %v5632 = vmul.f32 %v5126, %v5126
        %v5633 = vmul.f32 %v5590, %v5590
        %v5634 = vadd.f32 %v5618, %v5626
        %v5635 = vadd.f32 %v5619, %v5627
        %v5636 = vadd.f32 %v5620, %v5628
        %v5637 = vadd.f32 %v5621, %v5629
        %v5638 = vadd.f32 %v5622, %v5630
        %v5639 = vadd.f32 %v5623, %v5631
        %v5640 = vadd.f32 %v5624, %v5632
        %v5641 = vadd.f32 %v5625, %v5633
        %v5642 = vmax.f32 %v5634, 1e-08
        %v5643 = vmax.f32 %v5635, 1e-08
        %v5644 = vmax.f32 %v5636, 1e-08
        %v5645 = vmax.f32 %v5637, 1e-08
        %v5646 = vmax.f32 %v5638, 1e-08
        %v5647 = vmax.f32 %v5639, 1e-08
        %v5648 = vmax.f32 %v5640, 1e-08
        %v5649 = vmax.f32 %v5641, 1e-08
        %v5650 = vrsqrt.pop %v5642
        %v5651 = vmul.f32 %v5650, %v5642
        %v5652 = vmul.f32 %v5651, %v5650
        %v5653 = vmul.f32 0.5, %v5652
        %v5654 = vsub.f32 1.5, %v5653
        %v5655 = vmul.f32 %v5650, %v5654
        %v5656 = vmul.f32 %v5642, %v5655
        %vm5657 = vcmp.eq.f32.partialorder %v5642, inf
        %v5658 = vsel %vm5657, %v5642, %v5656
        %vm5659 = vcmp.eq.f32.partialorder %v5642, 0.0
        %v5660 = vand.u32 %v5642, 2147483648
        %v5661 = vsel %vm5659, %v5660, %v5658
        %v5662 = vrsqrt.pop %v5643
        %v5663 = vmul.f32 %v5662, %v5643
        %v5664 = vmul.f32 %v5663, %v5662
        %v5665 = vmul.f32 0.5, %v5664
        %v5666 = vsub.f32 1.5, %v5665
        %v5667 = vmul.f32 %v5662, %v5666
        %v5668 = vmul.f32 %v5643, %v5667
        %vm5669 = vcmp.eq.f32.partialorder %v5643, inf
        %v5670 = vsel %vm5669, %v5643, %v5668
        %vm5671 = vcmp.eq.f32.partialorder %v5643, 0.0
        %v5672 = vand.u32 %v5643, 2147483648
        %v5673 = vsel %vm5671, %v5672, %v5670
        %v5674 = vrsqrt.pop %v5644
        %v5675 = vmul.f32 %v5674, %v5644
        %v5676 = vmul.f32 %v5675, %v5674
        %v5677 = vmul.f32 0.5, %v5676
        %v5678 = vsub.f32 1.5, %v5677
        %v5679 = vmul.f32 %v5674, %v5678
        %v5680 = vmul.f32 %v5644, %v5679
        %vm5681 = vcmp.eq.f32.partialorder %v5644, inf
        %v5682 = vsel %vm5681, %v5644, %v5680
        %vm5683 = vcmp.eq.f32.partialorder %v5644, 0.0
        %v5684 = vand.u32 %v5644, 2147483648
        %v5685 = vsel %vm5683, %v5684, %v5682
        %v5686 = vrsqrt.pop %v5645
        %v5687 = vmul.f32 %v5686, %v5645
        %v5688 = vmul.f32 %v5687, %v5686
        %v5689 = vmul.f32 0.5, %v5688
        %v5690 = vsub.f32 1.5, %v5689
        %v5691 = vmul.f32 %v5686, %v5690
        %v5692 = vmul.f32 %v5645, %v5691
        %vm5693 = vcmp.eq.f32.partialorder %v5645, inf
        %v5694 = vsel %vm5693, %v5645, %v5692
        %vm5695 = vcmp.eq.f32.partialorder %v5645, 0.0
        %v5696 = vand.u32 %v5645, 2147483648
        %v5697 = vsel %vm5695, %v5696, %v5694
        %v5698 = vrsqrt.pop %v5646
        %v5699 = vmul.f32 %v5698, %v5646
        %v5700 = vmul.f32 %v5699, %v5698
        %v5701 = vmul.f32 0.5, %v5700
        %v5702 = vsub.f32 1.5, %v5701
        %v5703 = vmul.f32 %v5698, %v5702
        %v5704 = vmul.f32 %v5646, %v5703
        %vm5705 = vcmp.eq.f32.partialorder %v5646, inf
        %v5706 = vsel %vm5705, %v5646, %v5704
        %vm5707 = vcmp.eq.f32.partialorder %v5646, 0.0
        %v5708 = vand.u32 %v5646, 2147483648
        %v5709 = vsel %vm5707, %v5708, %v5706
        %v5710 = vrsqrt.pop %v5647
        %v5711 = vmul.f32 %v5710, %v5647
        %v5712 = vmul.f32 %v5711, %v5710
        %v5713 = vmul.f32 0.5, %v5712
        %v5714 = vsub.f32 1.5, %v5713
        %v5715 = vmul.f32 %v5710, %v5714
        %v5716 = vmul.f32 %v5647, %v5715
        %vm5717 = vcmp.eq.f32.partialorder %v5647, inf
        %v5718 = vsel %vm5717, %v5647, %v5716
        %vm5719 = vcmp.eq.f32.partialorder %v5647, 0.0
        %v5720 = vand.u32 %v5647, 2147483648
        %v5721 = vsel %vm5719, %v5720, %v5718
        %v5722 = vrsqrt.pop %v5648
        %v5723 = vmul.f32 %v5722, %v5648
        %v5724 = vmul.f32 %v5723, %v5722
        %v5725 = vmul.f32 0.5, %v5724
        %v5726 = vsub.f32 1.5, %v5725
        %v5727 = vmul.f32 %v5722, %v5726
        %v5728 = vmul.f32 %v5648, %v5727
        %vm5729 = vcmp.eq.f32.partialorder %v5648, inf
        %v5730 = vsel %vm5729, %v5648, %v5728
        %vm5731 = vcmp.eq.f32.partialorder %v5648, 0.0
        %v5732 = vand.u32 %v5648, 2147483648
        %v5733 = vsel %vm5731, %v5732, %v5730
        %v5734 = vrsqrt.pop %v5649
        %v5735 = vmul.f32 %v5734, %v5649
        %v5736 = vmul.f32 %v5735, %v5734
        %v5737 = vmul.f32 0.5, %v5736
        %v5738 = vsub.f32 1.5, %v5737
        %v5739 = vmul.f32 %v5734, %v5738
        %v5740 = vmul.f32 %v5649, %v5739
        %vm5741 = vcmp.eq.f32.partialorder %v5649, inf
        %v5742 = vsel %vm5741, %v5649, %v5740
        %vm5743 = vcmp.eq.f32.partialorder %v5649, 0.0
        %v5744 = vand.u32 %v5649, 2147483648
        %v5745 = vsel %vm5743, %v5744, %v5742
        %v5746 = vmul.f32 %v4201, %v4201
        %v5747 = vmul.f32 %v4665, %v4665
        %v5748 = vmul.f32 %v4203, %v4203
        %v5749 = vmul.f32 %v4667, %v4667
        %v5750 = vmul.f32 %v4206, %v4206
        %v5751 = vmul.f32 %v4670, %v4670
        %v5752 = vmul.f32 %v4208, %v4208
        %v5753 = vmul.f32 %v4672, %v4672
        %v5754 = vmul.f32 %v5129, %v5129
        %v5755 = vmul.f32 %v5593, %v5593
        %v5756 = vmul.f32 %v5131, %v5131
        %v5757 = vmul.f32 %v5595, %v5595
        %v5758 = vmul.f32 %v5134, %v5134
        %v5759 = vmul.f32 %v5598, %v5598
        %v5760 = vmul.f32 %v5136, %v5136
        %v5761 = vmul.f32 %v5600, %v5600
        %v5762 = vadd.f32 %v5746, %v5754
        %v5763 = vadd.f32 %v5747, %v5755
        %v5764 = vadd.f32 %v5748, %v5756
        %v5765 = vadd.f32 %v5749, %v5757
        %v5766 = vadd.f32 %v5750, %v5758
        %v5767 = vadd.f32 %v5751, %v5759
        %v5768 = vadd.f32 %v5752, %v5760
        %v5769 = vadd.f32 %v5753, %v5761
        %v5770 = vmax.f32 %v5762, 1e-08
        %v5771 = vmax.f32 %v5763, 1e-08
        %v5772 = vmax.f32 %v5764, 1e-08
        %v5773 = vmax.f32 %v5765, 1e-08
        %v5774 = vmax.f32 %v5766, 1e-08
        %v5775 = vmax.f32 %v5767, 1e-08
        %v5776 = vmax.f32 %v5768, 1e-08
        %v5777 = vmax.f32 %v5769, 1e-08
        %v5778 = vrsqrt.pop %v5770
        %v5779 = vmul.f32 %v5778, %v5770
        %v5780 = vmul.f32 %v5779, %v5778
        %v5781 = vmul.f32 0.5, %v5780
        %v5782 = vsub.f32 1.5, %v5781
        %v5783 = vmul.f32 %v5778, %v5782
        %v5784 = vmul.f32 %v5770, %v5783
        %vm5785 = vcmp.eq.f32.partialorder %v5770, inf
        %v5786 = vsel %vm5785, %v5770, %v5784
        %vm5787 = vcmp.eq.f32.partialorder %v5770, 0.0
        %v5788 = vand.u32 %v5770, 2147483648
        %v5789 = vsel %vm5787, %v5788, %v5786
        %v5790 = vrsqrt.pop %v5771
        %v5791 = vmul.f32 %v5790, %v5771
        %v5792 = vmul.f32 %v5791, %v5790
        %v5793 = vmul.f32 0.5, %v5792
        %v5794 = vsub.f32 1.5, %v5793
        %v5795 = vmul.f32 %v5790, %v5794
        %v5796 = vmul.f32 %v5771, %v5795
        %vm5797 = vcmp.eq.f32.partialorder %v5771, inf
        %v5798 = vsel %vm5797, %v5771, %v5796
        %vm5799 = vcmp.eq.f32.partialorder %v5771, 0.0
        %v5800 = vand.u32 %v5771, 2147483648
        %v5801 = vsel %vm5799, %v5800, %v5798
        %v5802 = vrsqrt.pop %v5772
        %v5803 = vmul.f32 %v5802, %v5772
        %v5804 = vmul.f32 %v5803, %v5802
        %v5805 = vmul.f32 0.5, %v5804
        %v5806 = vsub.f32 1.5, %v5805
        %v5807 = vmul.f32 %v5802, %v5806
        %v5808 = vmul.f32 %v5772, %v5807
        %vm5809 = vcmp.eq.f32.partialorder %v5772, inf
        %v5810 = vsel %vm5809, %v5772, %v5808
        %vm5811 = vcmp.eq.f32.partialorder %v5772, 0.0
        %v5812 = vand.u32 %v5772, 2147483648
        %v5813 = vsel %vm5811, %v5812, %v5810
        %v5814 = vrsqrt.pop %v5773
        %v5815 = vmul.f32 %v5814, %v5773
        %v5816 = vmul.f32 %v5815, %v5814
        %v5817 = vmul.f32 0.5, %v5816
        %v5818 = vsub.f32 1.5, %v5817
        %v5819 = vmul.f32 %v5814, %v5818
        %v5820 = vmul.f32 %v5773, %v5819
        %vm5821 = vcmp.eq.f32.partialorder %v5773, inf
        %v5822 = vsel %vm5821, %v5773, %v5820
        %vm5823 = vcmp.eq.f32.partialorder %v5773, 0.0
        %v5824 = vand.u32 %v5773, 2147483648
        %v5825 = vsel %vm5823, %v5824, %v5822
        %v5826 = vrsqrt.pop %v5774
        %v5827 = vmul.f32 %v5826, %v5774
        %v5828 = vmul.f32 %v5827, %v5826
        %v5829 = vmul.f32 0.5, %v5828
        %v5830 = vsub.f32 1.5, %v5829
        %v5831 = vmul.f32 %v5826, %v5830
        %v5832 = vmul.f32 %v5774, %v5831
        %vm5833 = vcmp.eq.f32.partialorder %v5774, inf
        %v5834 = vsel %vm5833, %v5774, %v5832
        %vm5835 = vcmp.eq.f32.partialorder %v5774, 0.0
        %v5836 = vand.u32 %v5774, 2147483648
        %v5837 = vsel %vm5835, %v5836, %v5834
        %v5838 = vrsqrt.pop %v5775
        %v5839 = vmul.f32 %v5838, %v5775
        %v5840 = vmul.f32 %v5839, %v5838
        %v5841 = vmul.f32 0.5, %v5840
        %v5842 = vsub.f32 1.5, %v5841
        %v5843 = vmul.f32 %v5838, %v5842
        %v5844 = vmul.f32 %v5775, %v5843
        %vm5845 = vcmp.eq.f32.partialorder %v5775, inf
        %v5846 = vsel %vm5845, %v5775, %v5844
        %vm5847 = vcmp.eq.f32.partialorder %v5775, 0.0
        %v5848 = vand.u32 %v5775, 2147483648
        %v5849 = vsel %vm5847, %v5848, %v5846
        %v5850 = vrsqrt.pop %v5776
        %v5851 = vmul.f32 %v5850, %v5776
        %v5852 = vmul.f32 %v5851, %v5850
        %v5853 = vmul.f32 0.5, %v5852
        %v5854 = vsub.f32 1.5, %v5853
        %v5855 = vmul.f32 %v5850, %v5854
        %v5856 = vmul.f32 %v5776, %v5855
        %vm5857 = vcmp.eq.f32.partialorder %v5776, inf
        %v5858 = vsel %vm5857, %v5776, %v5856
        %vm5859 = vcmp.eq.f32.partialorder %v5776, 0.0
        %v5860 = vand.u32 %v5776, 2147483648
        %v5861 = vsel %vm5859, %v5860, %v5858
        %v5862 = vrsqrt.pop %v5777
        %v5863 = vmul.f32 %v5862, %v5777
        %v5864 = vmul.f32 %v5863, %v5862
        %v5865 = vmul.f32 0.5, %v5864
        %v5866 = vsub.f32 1.5, %v5865
        %v5867 = vmul.f32 %v5862, %v5866
        %v5868 = vmul.f32 %v5777, %v5867
        %vm5869 = vcmp.eq.f32.partialorder %v5777, inf
        %v5870 = vsel %vm5869, %v5777, %v5868
        %vm5871 = vcmp.eq.f32.partialorder %v5777, 0.0
        %v5872 = vand.u32 %v5777, 2147483648
        %v5873 = vsel %vm5871, %v5872, %v5870
        %v5874 = vadd.f32 %v5661, %v5789
        %v5875 = vadd.f32 %v5673, %v5801
        %v5876 = vadd.f32 %v5685, %v5813
        %v5877 = vadd.f32 %v5697, %v5825
        %v5878 = vadd.f32 %v5709, %v5837
        %v5879 = vadd.f32 %v5721, %v5849
        %v5880 = vadd.f32 %v5733, %v5861
        %v5881 = vadd.f32 %v5745, %v5873
        %v5882 = vmul.f32 %v5602, %v5602
        %v5883 = vmul.f32 %v5603, %v5603
        %v5884 = vmul.f32 %v5606, %v5606
        %v5885 = vmul.f32 %v5607, %v5607
        %v5886 = vmul.f32 %v5610, %v5610
        %v5887 = vmul.f32 %v5611, %v5611
        %v5888 = vmul.f32 %v5614, %v5614
        %v5889 = vmul.f32 %v5615, %v5615
        %v5890 = vmul.f32 %v5604, %v5604
        %v5891 = vmul.f32 %v5605, %v5605
        %v5892 = vmul.f32 %v5608, %v5608
        %v5893 = vmul.f32 %v5609, %v5609
        %v5894 = vmul.f32 %v5612, %v5612
        %v5895 = vmul.f32 %v5613, %v5613
        %v5896 = vmul.f32 %v5616, %v5616
        %v5897 = vmul.f32 %v5617, %v5617
        %v5898 = vadd.f32 %v5882, %v5890
        %v5899 = vadd.f32 %v5883, %v5891
        %v5900 = vadd.f32 %v5884, %v5892
        %v5901 = vadd.f32 %v5885, %v5893
        %v5902 = vadd.f32 %v5886, %v5894
        %v5903 = vadd.f32 %v5887, %v5895
        %v5904 = vadd.f32 %v5888, %v5896
        %v5905 = vadd.f32 %v5889, %v5897
        %v5906 = vmax.f32 %v5898, 1e-08
        %v5907 = vmax.f32 %v5899, 1e-08
        %v5908 = vmax.f32 %v5900, 1e-08
        %v5909 = vmax.f32 %v5901, 1e-08
        %v5910 = vmax.f32 %v5902, 1e-08
        %v5911 = vmax.f32 %v5903, 1e-08
        %v5912 = vmax.f32 %v5904, 1e-08
        %v5913 = vmax.f32 %v5905, 1e-08
        %v5914 = vrsqrt.pop %v5906
        %v5915 = vmul.f32 %v5914, %v5906
        %v5916 = vmul.f32 %v5915, %v5914
        %v5917 = vmul.f32 0.5, %v5916
        %v5918 = vsub.f32 1.5, %v5917
        %v5919 = vmul.f32 %v5914, %v5918
        %v5920 = vmul.f32 %v5906, %v5919
        %vm5921 = vcmp.eq.f32.partialorder %v5906, inf
        %v5922 = vsel %vm5921, %v5906, %v5920
        %vm5923 = vcmp.eq.f32.partialorder %v5906, 0.0
        %v5924 = vand.u32 %v5906, 2147483648
        %v5925 = vsel %vm5923, %v5924, %v5922
        %v5926 = vrsqrt.pop %v5907
        %v5927 = vmul.f32 %v5926, %v5907
        %v5928 = vmul.f32 %v5927, %v5926
        %v5929 = vmul.f32 0.5, %v5928
        %v5930 = vsub.f32 1.5, %v5929
        %v5931 = vmul.f32 %v5926, %v5930
        %v5932 = vmul.f32 %v5907, %v5931
        %vm5933 = vcmp.eq.f32.partialorder %v5907, inf
        %v5934 = vsel %vm5933, %v5907, %v5932
        %vm5935 = vcmp.eq.f32.partialorder %v5907, 0.0
        %v5936 = vand.u32 %v5907, 2147483648
        %v5937 = vsel %vm5935, %v5936, %v5934
        %v5938 = vrsqrt.pop %v5908
        %v5939 = vmul.f32 %v5938, %v5908
        %v5940 = vmul.f32 %v5939, %v5938
        %v5941 = vmul.f32 0.5, %v5940
        %v5942 = vsub.f32 1.5, %v5941
        %v5943 = vmul.f32 %v5938, %v5942
        %v5944 = vmul.f32 %v5908, %v5943
        %vm5945 = vcmp.eq.f32.partialorder %v5908, inf
        %v5946 = vsel %vm5945, %v5908, %v5944
        %vm5947 = vcmp.eq.f32.partialorder %v5908, 0.0
        %v5948 = vand.u32 %v5908, 2147483648
        %v5949 = vsel %vm5947, %v5948, %v5946
        %v5950 = vrsqrt.pop %v5909
        %v5951 = vmul.f32 %v5950, %v5909
        %v5952 = vmul.f32 %v5951, %v5950
        %v5953 = vmul.f32 0.5, %v5952
        %v5954 = vsub.f32 1.5, %v5953
        %v5955 = vmul.f32 %v5950, %v5954
        %v5956 = vmul.f32 %v5909, %v5955
        %vm5957 = vcmp.eq.f32.partialorder %v5909, inf
        %v5958 = vsel %vm5957, %v5909, %v5956
        %vm5959 = vcmp.eq.f32.partialorder %v5909, 0.0
        %v5960 = vand.u32 %v5909, 2147483648
        %v5961 = vsel %vm5959, %v5960, %v5958
        %v5962 = vrsqrt.pop %v5910
        %v5963 = vmul.f32 %v5962, %v5910
        %v5964 = vmul.f32 %v5963, %v5962
        %v5965 = vmul.f32 0.5, %v5964
        %v5966 = vsub.f32 1.5, %v5965
        %v5967 = vmul.f32 %v5962, %v5966
        %v5968 = vmul.f32 %v5910, %v5967
        %vm5969 = vcmp.eq.f32.partialorder %v5910, inf
        %v5970 = vsel %vm5969, %v5910, %v5968
        %vm5971 = vcmp.eq.f32.partialorder %v5910, 0.0
        %v5972 = vand.u32 %v5910, 2147483648
        %v5973 = vsel %vm5971, %v5972, %v5970
        %v5974 = vrsqrt.pop %v5911
        %v5975 = vmul.f32 %v5974, %v5911
        %v5976 = vmul.f32 %v5975, %v5974
        %v5977 = vmul.f32 0.5, %v5976
        %v5978 = vsub.f32 1.5, %v5977
        %v5979 = vmul.f32 %v5974, %v5978
        %v5980 = vmul.f32 %v5911, %v5979
        %vm5981 = vcmp.eq.f32.partialorder %v5911, inf
        %v5982 = vsel %vm5981, %v5911, %v5980
        %vm5983 = vcmp.eq.f32.partialorder %v5911, 0.0
        %v5984 = vand.u32 %v5911, 2147483648
        %v5985 = vsel %vm5983, %v5984, %v5982
        %v5986 = vrsqrt.pop %v5912
        %v5987 = vmul.f32 %v5986, %v5912
        %v5988 = vmul.f32 %v5987, %v5986
        %v5989 = vmul.f32 0.5, %v5988
        %v5990 = vsub.f32 1.5, %v5989
        %v5991 = vmul.f32 %v5986, %v5990
        %v5992 = vmul.f32 %v5912, %v5991
        %vm5993 = vcmp.eq.f32.partialorder %v5912, inf
        %v5994 = vsel %vm5993, %v5912, %v5992
        %vm5995 = vcmp.eq.f32.partialorder %v5912, 0.0
        %v5996 = vand.u32 %v5912, 2147483648
        %v5997 = vsel %vm5995, %v5996, %v5994
        %v5998 = vrsqrt.pop %v5913
        %v5999 = vmul.f32 %v5998, %v5913
        %v6000 = vmul.f32 %v5999, %v5998
        %v6001 = vmul.f32 0.5, %v6000
        %v6002 = vsub.f32 1.5, %v6001
        %v6003 = vmul.f32 %v5998, %v6002
        %v6004 = vmul.f32 %v5913, %v6003
        %vm6005 = vcmp.eq.f32.partialorder %v5913, inf
        %v6006 = vsel %vm6005, %v5913, %v6004
        %vm6007 = vcmp.eq.f32.partialorder %v5913, 0.0
        %v6008 = vand.u32 %v5913, 2147483648
        %v6009 = vsel %vm6007, %v6008, %v6006
        %v6010 = vsub.f32 %v5874, %v5925
        %v6011 = vsub.f32 %v5875, %v5937
        %v6012 = vsub.f32 %v5876, %v5949
        %v6013 = vsub.f32 %v5877, %v5961
        %v6014 = vsub.f32 %v5878, %v5973
        %v6015 = vsub.f32 %v5879, %v5985
        %v6016 = vsub.f32 %v5880, %v5997
        %v6017 = vsub.f32 %v5881, %v6009
        %p6018 = scmp.ne.s32.totalorder %s13, 1
        // Predicated region
        $region52: #{multi_resolution_stft_loss.5} parent=46 // pred_check
          %p6019 = pneg %p6018
        $region53: #{multi_resolution_stft_loss.5} parent=46 // pred_check_branch
          %6021 = sbr.rel (%p6019) target = $region55
        $region54: #{multi_resolution_stft_loss.5} parent=46 // pred_region
          %v6022 = vmul.f32 %v6010, %v6010
          %v6023 = vmul.f32 %v6011, %v6011
          %v6024 = vmul.f32 %v6012, %v6012
          %v6025 = vmul.f32 %v6013, %v6013
          %v6026 = vmul.f32 %v6014, %v6014
          %v6027 = vmul.f32 %v6015, %v6015
          %v6028 = vmul.f32 %v6016, %v6016
          %v6029 = vmul.f32 %v6017, %v6017
          %v6030 = vadd.f32 %v6022, %v6023
          %v6031 = vadd.f32 %v6030, %v6024
          %v6032 = vadd.f32 %v6031, %v6025
          %v6033 = vadd.f32 %v6032, %v6026
          %v6034 = vadd.f32 %v6033, %v6027
          %v6035 = vadd.f32 %v6034, %v6028
          %v6036 = vadd.f32 %v6035, %v6029
          %6037 = vadd.xlane.f32.xlu0 %v6036
          %v6038 = vpop.xlane.xlu0 %6037
          %v6039 = vrot.slane %v6038, 4
          %v6040 = vadd.f32 %v6038, %v6039
          %v6041 = vrot.slane %v6040, 2
          %v6042 = vadd.f32 %v6040, %v6041
          %v6043 = vrot.slane %v6042, 1
          %v6044 = vadd.f32 %v6042, %v6043
          %s6045 = vtos %v6044
          %v6046 = vstv %s6045
          %6047 = vst [vmem:[%s289] sm:$0xff] %v6046
        $region55: #{multi_resolution_stft_loss.5} parent=46 // pred_fallthru
          _
        %p6048 = scmp.eq.s32.totalorder %s13, 1
        // Predicated region
        $region56: #{multi_resolution_stft_loss.5} parent=46 // pred_check
          %p6049 = pneg %p6048
        $region57: #{multi_resolution_stft_loss.5} parent=46 // pred_check_branch
          %6051 = sbr.rel (%p6049) target = $region59
        $region58: #{multi_resolution_stft_loss.5} parent=46 // pred_region
          %v6052 = vlaneseq
          %v6053 = vshrl.u32 %v6052, 7
          %v6054 = vadd.s32 %v6053, 8
          %v6055 = vadd.s32 %v6053, 16
          %v6056 = vadd.s32 %v6053, 24
          %vm6057 = vcmp.lt.s32.totalorder %v6053, 4
          %vm6058 = vcmp.lt.s32.totalorder %v6054, 4
          %vm6059 = vcmp.lt.s32.totalorder %v6055, 4
          %vm6060 = vcmp.lt.s32.totalorder %v6056, 4
          %v6061 = vsel %vm6057, %v6010, 0.0
          %v6062 = vsel %vm6057, %v6011, 0.0
          %v6063 = vsel %vm6058, %v6012, 0.0
          %v6064 = vsel %vm6058, %v6013, 0.0
          %v6065 = vsel %vm6059, %v6014, 0.0
          %v6066 = vsel %vm6059, %v6015, 0.0
          %v6067 = vsel %vm6060, %v6016, 0.0
          %v6068 = vsel %vm6060, %v6017, 0.0
          %v6069 = vmul.f32 %v6061, %v6061
          %v6070 = vmul.f32 %v6062, %v6062
          %v6071 = vmul.f32 %v6063, %v6063
          %v6072 = vmul.f32 %v6064, %v6064
          %v6073 = vmul.f32 %v6065, %v6065
          %v6074 = vmul.f32 %v6066, %v6066
          %v6075 = vmul.f32 %v6067, %v6067
          %v6076 = vmul.f32 %v6068, %v6068
          %v6077 = vadd.f32 %v6069, %v6070
          %v6078 = vadd.f32 %v6077, %v6071
          %v6079 = vadd.f32 %v6078, %v6072
          %v6080 = vadd.f32 %v6079, %v6073
          %v6081 = vadd.f32 %v6080, %v6074
          %v6082 = vadd.f32 %v6081, %v6075
          %v6083 = vadd.f32 %v6082, %v6076
          %6084 = vadd.xlane.f32.xlu0 %v6083
          %v6085 = vpop.xlane.xlu0 %6084
          %v6086 = vrot.slane %v6085, 4
          %v6087 = vadd.f32 %v6085, %v6086
          %v6088 = vrot.slane %v6087, 2
          %v6089 = vadd.f32 %v6087, %v6088
          %v6090 = vrot.slane %v6089, 1
          %v6091 = vadd.f32 %v6089, %v6090
          %s6092 = vtos %v6091
          %v6093 = vstv %s6092
          %6094 = vst [vmem:[%s289] sm:$0xff] %v6093
        $region59: #{multi_resolution_stft_loss.5} parent=46 // pred_fallthru
          _
        %p6095 = scmp.lt.s32.totalorder %s13, 1
        %s6096 = scalar_select %p6095, %s13, 1
        %s6097 = smul.addr %s6096, 8
        %s6098 = scalar_lea.vmem %s2, %s6097
        // Predicated region
        $region60: #{multi_resolution_stft_loss.5} parent=46 // pred_check
          %p6099 = pneg %p78
        $region61: #{multi_resolution_stft_loss.5} parent=46 // pred_check_branch
          %6101 = sbr.rel (%p6099) target = $region63
        $region62: #{multi_resolution_stft_loss.5} parent=46 // pred_region
          _
        $region63: #{multi_resolution_stft_loss.5} parent=46 // pred_fallthru
          _
      $region47: #{multi_resolution_stft_loss.5} parent=5 // pred_fallthru
        _
      %p6102 = scmp.le.s32.totalorder 2, %s8
      // Predicated region
      $region64: #{multi_resolution_stft_loss.5} parent=5 // pred_check
        %p6103 = pneg %p6102
      $region65: #{multi_resolution_stft_loss.5} parent=5 // pred_check_branch
        %6105 = sbr.rel (%p6103) target = $region67
      $region66: #{multi_resolution_stft_loss.5} parent=5 // pred_region
        %s6106 = ssub.s32 %s8, 2
        // Predicated region
        $region68: #{multi_resolution_stft_loss.5} parent=66 // pred_check
          %p6107 = pneg %p84
        $region69: #{multi_resolution_stft_loss.5} parent=66 // pred_check_branch
          %6109 = sbr.rel (%p6107) target = $region71
        $region70: #{multi_resolution_stft_loss.5} parent=66 // pred_region
          %p6110 = scmp.lt.s32.totalorder %s14, 1
          %s6111 = scalar_select %p6110, %s14, 1
          %s6112 = smul.addr %s6111, 8
          %s6113 = scalar_lea.vmem %s2, %s6112
        $region71: #{multi_resolution_stft_loss.5} parent=66 // pred_fallthru
          _
      $region67: #{multi_resolution_stft_loss.5} parent=5 // pred_fallthru
        _
    $region6: #{multi_resolution_stft_loss.5} parent=1 // loop_footer
      %s12 = sadd.s32 1, %s8
    $region7: #{multi_resolution_stft_loss.5} parent=1 // loop_footer_branch
      %7 = sbr.rel target = $region3
    $region8: #{multi_resolution_stft_loss.5} parent=1 // loop_exit
      _

</llo_original>
